<compile_context>
chip_gen: v6e
topology: v6e:2x2x1
jax: 0.10.0
libtpu: 0.0.40
codegen_flags: <defaults>
</compile_context>

<pallas_src>
import functools
import math

import jax
import jax.numpy as jnp
from jax.experimental import pallas as pl
from jax.experimental.pallas import tpu as pltpu

BERT_DIM = 48
NEG_BIAS = -1e9  # finite "-inf": avoids NaN for fully-masked softmax rows


def _round_up(x, m):
    return (x + m - 1) // m * m


def _batched_index_map(ndim):
    def im(g):
        return (g,) + (0,) * (ndim - 1)
    return im


def _shared_index_map(ndim):
    def im(g):
        return (0,) * ndim
    return im


# ----------------------------------------------------------------------------
# Fused transformer kernel (one pallas_call for the whole network)
# ----------------------------------------------------------------------------
def _fused_transformer_kernel(*refs, treedef, nhead, eps, bert_eps):
    o_ref = refs[-1]
    (src_emb_ref, tgt_emb_ref, src_bias_ref, tgt_bias_ref,
     pe_src_ref, pe_tgt_ref, net) = jax.tree_util.tree_unflatten(treedef, refs[:-1])

    f32 = jnp.float32
    cdt = jnp.bfloat16                        # MXU compute dtype (single-pass on v6e/v7x)

    Bq = src_emb_ref.shape[0]                 # per-program batch block
    Ss = src_emb_ref.shape[1]                 # padded src length (multiple of 8)
    St = tgt_emb_ref.shape[1]                 # padded tgt length (multiple of 8)
    d = net["enc_in"]["w"].shape[1]
    H = nhead
    dh = d // H
    scale = 1.0 / math.sqrt(dh)

    def dense(x, w, b):
        # x: (rows, in) f32; w: (in, out) bf16; b: (1, out) f32
        return jnp.dot(x.astype(w.dtype), w, preferred_element_type=f32) + b

    def lnorm(x, g, b, e):
        mu = jnp.mean(x, axis=-1, keepdims=True)
        xc = x - mu
        var = jnp.mean(xc * xc, axis=-1, keepdims=True)
        return xc * jax.lax.rsqrt(var + e) * g + b

    def add_pe(x2, pe):
        S = pe.shape[0]
        return (x2.reshape(Bq, S, d) + pe[None]).reshape(Bq * S, d)

    def attention(q2, k2, v2, bias, Sq, Sk):
        # q2: (Bq*Sq, d), k2/v2: (Bq*Sk, d) f32; bias: (Bq, 1|Sq, Sk) additive, f32.
        # Batched over Bq via single-leading-batch einsums (validated Mosaic pattern);
        # no k.T transpose (contraction over the last dim), no per-batch concatenates.
        q3 = q2.reshape(Bq, Sq, d).astype(cdt)
        k3 = k2.reshape(Bq, Sk, d).astype(cdt)
        v3 = v2.reshape(Bq, Sk, d).astype(cdt)
        heads = []
        for h in range(H):
            sl = slice(h * dh, (h + 1) * dh)
            s = jnp.einsum("bqd,bkd->bqk", q3[..., sl], k3[..., sl],
                           preferred_element_type=f32) * scale + bias
            m = jnp.max(s, axis=-1, keepdims=True)
            p = jnp.exp(s - m)
            p = p * pl.reciprocal(jnp.sum(p, axis=-1, keepdims=True), approx=True)
            heads.append(jnp.einsum("bqk,bkd->bqd", p.astype(cdt), v3[..., sl],
                                    preferred_element_type=f32))
        return jnp.concatenate(heads, axis=-1).reshape(Bq * Sq, d)

    src_bias = src_bias_ref[...]
    tgt_bias = tgt_bias_ref[...]

    # ---------------- encoder stream ----------------
    bert_src = src_emb_ref[...].reshape(Bq * Ss, src_emb_ref.shape[-1])
    mem = lnorm(bert_src, net["src_bert_ln"]["g"][...],
                net["src_bert_ln"]["b"][...], bert_eps)
    mem = dense(mem, net["enc_in"]["w"][...], net["enc_in"]["b"][...])
    mem = add_pe(mem, pe_src_ref[...])

    enc = net["enc_layers"]
    for l in range(enc["qkv_w"].shape[0]):
        qkv = dense(mem, enc["qkv_w"][l], enc["qkv_b"][l])            # fused Q/K/V matmul
        a = attention(qkv[:, :d], qkv[:, d:2 * d], qkv[:, 2 * d:], src_bias, Ss, Ss)
        a = dense(a, enc["out_w"][l], enc["out_b"][l])
        mem = lnorm(mem + a, enc["n1_g"][l], enc["n1_b"][l], eps)
        hdn = jnp.maximum(dense(mem, enc["ff1_w"][l], enc["ff1_b"][l]), 0.0)
        f = dense(hdn, enc["ff2_w"][l], enc["ff2_b"][l])
        mem = lnorm(mem + f, enc["n2_g"][l], enc["n2_b"][l], eps)
    mem = lnorm(mem, net["enc_norm"]["g"][...], net["enc_norm"]["b"][...], eps)

    # ---------------- decoder stream ----------------
    bert_tgt = tgt_emb_ref[...].reshape(Bq * St, tgt_emb_ref.shape[-1])
    x = lnorm(bert_tgt, net["tgt_bert_ln"]["g"][...],
              net["tgt_bert_ln"]["b"][...], bert_eps)
    x = dense(x, net["dec_in"]["w"][...], net["dec_in"]["b"][...])
    x = add_pe(x, pe_tgt_ref[...])

    dec = net["dec_layers"]
    Ld = dec["s_qkv_w"].shape[0]
    # cross-attention K/V over the fixed encoder memory for ALL layers: one fused matmul
    mem_kv = dense(mem, dec["c_kv_w"][...], dec["c_kv_b"][...])       # (Bq*Ss, Ld*2d)

    for l in range(Ld):
        # self-attention (causal + target key-padding)
        qkv = dense(x, dec["s_qkv_w"][l], dec["s_qkv_b"][l])
        a = attention(qkv[:, :d], qkv[:, d:2 * d], qkv[:, 2 * d:], tgt_bias, St, St)
        a = dense(a, dec["s_out_w"][l], dec["s_out_b"][l])
        x = lnorm(x + a, dec["n1_g"][l], dec["n1_b"][l], eps)

        # cross-attention over encoder memory (memory key-padding)
        q = dense(x, dec["c_q_w"][l], dec["c_q_b"][l])
        k2 = mem_kv[:, (2 * l) * d:(2 * l + 1) * d]
        v2 = mem_kv[:, (2 * l + 1) * d:(2 * l + 2) * d]
        a = attention(q, k2, v2, src_bias, St, Ss)
        a = dense(a, dec["c_out_w"][l], dec["c_out_b"][l])
        x = lnorm(x + a, dec["n2_g"][l], dec["n2_b"][l], eps)

        # feed-forward
        hdn = jnp.maximum(dense(x, dec["ff1_w"][l], dec["ff1_b"][l]), 0.0)
        f = dense(hdn, dec["ff2_w"][l], dec["ff2_b"][l])
        x = lnorm(x + f, dec["n3_g"][l], dec["n3_b"][l], eps)
    x = lnorm(x, net["dec_norm"]["g"][...], net["dec_norm"]["b"][...], eps)

    # lane-dense vocab head (V padded to a multiple of 128 -> unmasked stores)
    logits = dense(x, net["out"]["w"][...], net["out"]["b"][...])
    o_ref[...] = logits.reshape(Bq, St, -1).astype(o_ref.dtype)


# ----------------------------------------------------------------------------
# Forward pass (glue in plain JAX: embedding gathers, padding, mask construction)
# ----------------------------------------------------------------------------
def machine_translation_forward(
    params,
    src_input_ids, src_token_type_ids, src_attention_mask,
    tgt_input_ids, tgt_token_type_ids, tgt_attention_mask,
    *, nhead, layer_norm_eps, tgt_vocab_size,
):
    B, Ss = src_input_ids.shape
    _, St = tgt_input_ids.shape
    net = params["net"]
    Vp = net["out"]["w"].shape[1]          # lane-padded vocab (multiple of 128)

    Ssp = _round_up(Ss, 8)                 # sublane-aligned sequence lengths
    Stp = _round_up(St, 8)

    # BERT stub embedding lookups (gathers stay in plain JAX); LayerNorm is in-kernel.
    def embed(tbl, ids, type_ids, S, Sp):
        x = (jnp.take(tbl["tok"], ids, axis=0)
             + jnp.take(tbl["typ"], type_ids, axis=0)
             + tbl["pos"][:S][None, :, :])
        return jnp.pad(x, ((0, 0), (0, Sp - S), (0, 0)))           # (B, Sp, BERT_DIM)

    src_emb = embed(params["src_bert_emb"], src_input_ids, src_token_type_ids, Ss, Ssp)
    tgt_emb = embed(params["tgt_bert_emb"], tgt_input_ids, tgt_token_type_ids, St, Stp)

    pe_src = params["pe"][:Ssp]            # (Ssp, d) -- broadcast-added in-kernel
    pe_tgt = params["pe"][:Stp]

    # additive attention biases (PyTorch key_padding_mask==True -> masked);
    # sequence rows added by the 8-alignment padding are masked as keys too.
    src_valid = jnp.pad(src_attention_mask, ((0, 0), (0, Ssp - Ss)))
    tgt_valid = jnp.pad(tgt_attention_mask, ((0, 0), (0, Stp - St)))
    src_bias = jnp.where(src_valid == 0, NEG_BIAS, 0.0).astype(jnp.float32)[:, None, :]
    causal = jnp.pad(params["tgt_mask"][:St, :St],
                     ((0, Stp - St), (0, Stp - St)), constant_values=NEG_BIAS)
    tgt_bias = (causal[None, :, :]
                + jnp.where(tgt_valid == 0, NEG_BIAS, 0.0).astype(jnp.float32)[:, None, :])

    # Batch-parallel grid only on 2-TensorCore chips (v7x); gridless (G=1) on v5e/v6e.
    kind = jax.devices()[0].device_kind.lower()
    G = B if (B > 1 and "7" in kind) else 1
    bblk = B // G

    tree = (src_emb, tgt_emb, src_bias, tgt_bias, pe_src, pe_tgt, net)
    leaves, treedef = jax.tree_util.tree_flatten(tree)
    n_batched = 4                          # src_emb, tgt_emb, src_bias, tgt_bias

    def batched_spec(x):
        return pl.BlockSpec((bblk,) + x.shape[1:], _batched_index_map(x.ndim))

    def shared_spec(x):
        return pl.BlockSpec(x.shape, _shared_index_map(x.ndim))

    in_specs = ([batched_spec(x) for x in leaves[:n_batched]]
                + [shared_spec(x) for x in leaves[n_batched:]])

    out = pl.pallas_call(
        functools.partial(_fused_transformer_kernel, treedef=treedef,
                          nhead=nhead, eps=layer_norm_eps, bert_eps=1e-12),
        out_shape=jax.ShapeDtypeStruct((B, Stp, Vp), jnp.float32),
        grid=(G,),
        in_specs=in_specs,
        out_specs=pl.BlockSpec((bblk, Stp, Vp), _batched_index_map(3)),
        compiler_params=pltpu.CompilerParams(dimension_semantics=("parallel",)),
    )(*leaves)
    return out[:, :St, :tgt_vocab_size]


# ----------------------------------------------------------------------------
# Deterministic parameter init (synthetic weights, pre-transposed, layer-stacked,
# matmul weights stored bf16, fused decoder cross-KV, lane-padded vocab head)
# ----------------------------------------------------------------------------
def positional_encoding_table(max_len, d_model):
    position = jnp.arange(max_len, dtype=jnp.float32)[:, None]
    div_term = jnp.exp(
        jnp.arange(0, d_model, 2, dtype=jnp.float32) * (-math.log(10000.0) / d_model))
    pe = jnp.zeros((max_len, d_model), jnp.float32)
    pe = pe.at[:, 0::2].set(jnp.sin(position * div_term))
    pe = pe.at[:, 1::2].set(jnp.cos(position * div_term))
    return pe


def init_params(key, *, d_model, nhead, num_encoder_layers, num_decoder_layers,
                dim_feedforward, tgt_vocab_size, tgt_max_length,
                bert_vocab_size=128, bert_max_pos=64, max_pe_len=256):
    keys = iter(jax.random.split(key, 64))
    d, ff = d_model, dim_feedforward
    wdt = jnp.bfloat16                        # MXU weight storage dtype

    def w(shape):                             # matmul weights -> bf16
        return (jax.random.normal(next(keys), shape, jnp.float32) * 0.02).astype(wdt)

    def zeros(shape):
        return jnp.zeros(shape, jnp.float32)

    def ones(shape):
        return jnp.ones(shape, jnp.float32)

    def bert_emb():
        def e(shape):
            return jax.random.normal(next(keys), shape, jnp.float32) * 0.02
        return {"tok": e((bert_vocab_size, BERT_DIM)),
                "typ": e((2, BERT_DIM)),
                "pos": e((bert_max_pos, BERT_DIM))}

    Le, Ld = num_encoder_layers, num_decoder_layers
    enc_layers = {
        "qkv_w": w((Le, d, 3 * d)), "qkv_b": zeros((Le, 1, 3 * d)),
        "out_w": w((Le, d, d)),     "out_b": zeros((Le, 1, d)),
        "ff1_w": w((Le, d, ff)),    "ff1_b": zeros((Le, 1, ff)),
        "ff2_w": w((Le, ff, d)),    "ff2_b": zeros((Le, 1, d)),
        "n1_g": ones((Le, 1, d)), "n1_b": zeros((Le, 1, d)),
        "n2_g": ones((Le, 1, d)), "n2_b": zeros((Le, 1, d)),
    }
    dec_layers = {
        "s_qkv_w": w((Ld, d, 3 * d)), "s_qkv_b": zeros((Ld, 1, 3 * d)),
        "s_out_w": w((Ld, d, d)),     "s_out_b": zeros((Ld, 1, d)),
        "c_q_w": w((Ld, d, d)),       "c_q_b": zeros((Ld, 1, d)),
        # cross-attention K/V projections for ALL layers fused into one matmul
        "c_kv_w": w((d, Ld * 2 * d)), "c_kv_b": zeros((1, Ld * 2 * d)),
        "c_out_w": w((Ld, d, d)),     "c_out_b": zeros((Ld, 1, d)),
        "ff1_w": w((Ld, d, ff)),      "ff1_b": zeros((Ld, 1, ff)),
        "ff2_w": w((Ld, ff, d)),      "ff2_b": zeros((Ld, 1, d)),
        "n1_g": ones((Ld, 1, d)), "n1_b": zeros((Ld, 1, d)),
        "n2_g": ones((Ld, 1, d)), "n2_b": zeros((Ld, 1, d)),
        "n3_g": ones((Ld, 1, d)), "n3_b": zeros((Ld, 1, d)),
    }

    rows = jnp.arange(tgt_max_length)[:, None]
    cols = jnp.arange(tgt_max_length)[None, :]
    tgt_mask = jnp.where(cols > rows, NEG_BIAS, 0.0).astype(jnp.float32)

    # lane-dense vocab head: pad V up to a multiple of 128 with zero columns
    Vp = _round_up(tgt_vocab_size, 128)
    out_w = jax.random.normal(next(keys), (d, tgt_vocab_size), jnp.float32) * 0.02
    out_w = jnp.pad(out_w, ((0, 0), (0, Vp - tgt_vocab_size))).astype(wdt)

    net = {
        "src_bert_ln": {"g": ones((1, BERT_DIM)), "b": zeros((1, BERT_DIM))},
        "tgt_bert_ln": {"g": ones((1, BERT_DIM)), "b": zeros((1, BERT_DIM))},
        "enc_in": {"w": w((BERT_DIM, d)), "b": zeros((1, d))},
        "dec_in": {"w": w((BERT_DIM, d)), "b": zeros((1, d))},
        "enc_layers": enc_layers,
        "enc_norm": {"g": ones((1, d)), "b": zeros((1, d))},
        "dec_layers": dec_layers,
        "dec_norm": {"g": ones((1, d)), "b": zeros((1, d))},
        "out": {"w": out_w, "b": zeros((1, Vp))},
    }
    return {
        "src_bert_emb": bert_emb(),
        "tgt_bert_emb": bert_emb(),
        "pe": positional_encoding_table(max_pe_len, d),
        "tgt_mask": tgt_mask,
        "net": net,
    }


# ----------------------------------------------------------------------------
if __name__ == "__main__":
    d_model = 32
    nhead = 4
    num_encoder_layers = 2
    num_decoder_layers = 2
    dim_feedforward = 64
    tgt_vocab_size = 64
    tgt_max_length = 8          # decoder_tgt_mask is (tgt_max_length, tgt_max_length)
    layer_norm_eps = 1e-5

    B = 2
    src_seq = 12
    tgt_seq = tgt_max_length
    bert_vocab_size = 128

    key = jax.random.PRNGKey(0)
    pk, k1, k2 = jax.random.split(key, 3)
    params = init_params(
        pk, d_model=d_model, nhead=nhead,
        num_encoder_layers=num_encoder_layers, num_decoder_layers=num_decoder_layers,
        dim_feedforward=dim_feedforward, tgt_vocab_size=tgt_vocab_size,
        tgt_max_length=tgt_max_length, bert_vocab_size=bert_vocab_size,
    )

    src_input_ids = jax.random.randint(k1, (B, src_seq), 0, bert_vocab_size, dtype=jnp.int32)
    tgt_input_ids = jax.random.randint(k2, (B, tgt_seq), 0, bert_vocab_size, dtype=jnp.int32)
    src_token_type_ids = jnp.zeros((B, src_seq), jnp.int32)
    tgt_token_type_ids = jnp.zeros((B, tgt_seq), jnp.int32)
    # padded sequences: lengths [12, 9] for src, [8, 6] for tgt
    src_attention_mask = jnp.array(
        [[1] * src_seq, [1] * 9 + [0] * (src_seq - 9)], dtype=jnp.int32)
    tgt_attention_mask = jnp.array(
        [[1] * tgt_seq, [1] * 6 + [0] * (tgt_seq - 6)], dtype=jnp.int32)

    forward = jax.jit(functools.partial(
        machine_translation_forward, nhead=nhead,
        layer_norm_eps=layer_norm_eps, tgt_vocab_size=tgt_vocab_size))

    logits = forward(
        params,
        src_input_ids, src_token_type_ids, src_attention_mask,
        tgt_input_ids, tgt_token_type_ids, tgt_attention_mask,
    )
    jax.block_until_ready(logits)
    assert logits.shape == (B, tgt_seq, tgt_vocab_size)
    assert bool(jnp.all(jnp.isfinite(logits)))
    print("KERNEL_OK")
</pallas_src>

<mosaic_0001>
module attributes {stable_mosaic.version = 11 : i64} {
  func.func @_fused_transformer_kernel(%arg0: i32, %arg1: memref<2x16x48xf32, #tpu.memory_space<vmem>>, %arg2: memref<2x8x48xf32, #tpu.memory_space<vmem>>, %arg3: memref<2x1x16xf32, #tpu.memory_space<vmem>>, %arg4: memref<2x8x8xf32, #tpu.memory_space<vmem>>, %arg5: memref<16x32xf32, #tpu.memory_space<vmem>>, %arg6: memref<8x32xf32, #tpu.memory_space<vmem>>, %arg7: memref<1x32xf32, #tpu.memory_space<vmem>>, %arg8: memref<48x32xbf16, #tpu.memory_space<vmem>>, %arg9: memref<1x128xf32, #tpu.memory_space<vmem>>, %arg10: memref<32x128xbf16, #tpu.memory_space<vmem>>, %arg11: memref<2x1x32xf32, #tpu.memory_space<vmem>>, %arg12: memref<2x32x32xbf16, #tpu.memory_space<vmem>>, %arg13: memref<2x1x32xf32, #tpu.memory_space<vmem>>, %arg14: memref<2x32x32xbf16, #tpu.memory_space<vmem>>, %arg15: memref<2x1x64xf32, #tpu.memory_space<vmem>>, %arg16: memref<2x32x64xbf16, #tpu.memory_space<vmem>>, %arg17: memref<2x1x32xf32, #tpu.memory_space<vmem>>, %arg18: memref<2x64x32xbf16, #tpu.memory_space<vmem>>, %arg19: memref<2x1x32xf32, #tpu.memory_space<vmem>>, %arg20: memref<2x1x32xf32, #tpu.memory_space<vmem>>, %arg21: memref<2x1x32xf32, #tpu.memory_space<vmem>>, %arg22: memref<2x1x32xf32, #tpu.memory_space<vmem>>, %arg23: memref<2x1x32xf32, #tpu.memory_space<vmem>>, %arg24: memref<2x1x32xf32, #tpu.memory_space<vmem>>, %arg25: memref<2x1x32xf32, #tpu.memory_space<vmem>>, %arg26: memref<2x32x32xbf16, #tpu.memory_space<vmem>>, %arg27: memref<2x1x96xf32, #tpu.memory_space<vmem>>, %arg28: memref<2x32x96xbf16, #tpu.memory_space<vmem>>, %arg29: memref<1x32xf32, #tpu.memory_space<vmem>>, %arg30: memref<1x32xf32, #tpu.memory_space<vmem>>, %arg31: memref<1x32xf32, #tpu.memory_space<vmem>>, %arg32: memref<48x32xbf16, #tpu.memory_space<vmem>>, %arg33: memref<2x1x64xf32, #tpu.memory_space<vmem>>, %arg34: memref<2x32x64xbf16, #tpu.memory_space<vmem>>, %arg35: memref<2x1x32xf32, #tpu.memory_space<vmem>>, %arg36: memref<2x64x32xbf16, #tpu.memory_space<vmem>>, %arg37: memref<2x1x32xf32, #tpu.memory_space<vmem>>, %arg38: memref<2x1x32xf32, #tpu.memory_space<vmem>>, %arg39: memref<2x1x32xf32, #tpu.memory_space<vmem>>, %arg40: memref<2x1x32xf32, #tpu.memory_space<vmem>>, %arg41: memref<2x1x32xf32, #tpu.memory_space<vmem>>, %arg42: memref<2x32x32xbf16, #tpu.memory_space<vmem>>, %arg43: memref<2x1x96xf32, #tpu.memory_space<vmem>>, %arg44: memref<2x32x96xbf16, #tpu.memory_space<vmem>>, %arg45: memref<1x32xf32, #tpu.memory_space<vmem>>, %arg46: memref<1x32xf32, #tpu.memory_space<vmem>>, %arg47: memref<1x128xf32, #tpu.memory_space<vmem>>, %arg48: memref<32x128xbf16, #tpu.memory_space<vmem>>, %arg49: memref<1x48xf32, #tpu.memory_space<vmem>>, %arg50: memref<1x48xf32, #tpu.memory_space<vmem>>, %arg51: memref<1x48xf32, #tpu.memory_space<vmem>>, %arg52: memref<1x48xf32, #tpu.memory_space<vmem>>, %arg53: memref<2x8x128xf32, #tpu.memory_space<vmem>>) attributes {dimension_semantics = [#tpu.dimension_semantics<parallel>], iteration_bounds = array<i64: 1>, scalar_prefetch = 0 : i64, scratch_operands = 0 : i64, tpu.core_type = #tpu.core_type<tc>, window_params = [{transform_indices = @transform_0, window_bounds = array<i64: 2, 16, 48>}, {transform_indices = @transform_1, window_bounds = array<i64: 2, 8, 48>}, {transform_indices = @transform_2, window_bounds = array<i64: 2, 1, 16>}, {transform_indices = @transform_3, window_bounds = array<i64: 2, 8, 8>}, {pipeline_mode = #tpu.pipeline_mode<synchronous>, transform_indices = @transform_4, window_bounds = array<i64: 16, 32>}, {pipeline_mode = #tpu.pipeline_mode<synchronous>, transform_indices = @transform_5, window_bounds = array<i64: 8, 32>}, {pipeline_mode = #tpu.pipeline_mode<synchronous>, transform_indices = @transform_6, window_bounds = array<i64: 1, 32>}, {pipeline_mode = #tpu.pipeline_mode<synchronous>, transform_indices = @transform_7, window_bounds = array<i64: 48, 32>}, {pipeline_mode = #tpu.pipeline_mode<synchronous>, transform_indices = @transform_8, window_bounds = array<i64: 1, 128>}, {pipeline_mode = #tpu.pipeline_mode<synchronous>, transform_indices = @transform_9, window_bounds = array<i64: 32, 128>}, {pipeline_mode = #tpu.pipeline_mode<synchronous>, transform_indices = @transform_10, window_bounds = array<i64: 2, 1, 32>}, {pipeline_mode = #tpu.pipeline_mode<synchronous>, transform_indices = @transform_11, window_bounds = array<i64: 2, 32, 32>}, {pipeline_mode = #tpu.pipeline_mode<synchronous>, transform_indices = @transform_12, window_bounds = array<i64: 2, 1, 32>}, {pipeline_mode = #tpu.pipeline_mode<synchronous>, transform_indices = @transform_13, window_bounds = array<i64: 2, 32, 32>}, {pipeline_mode = #tpu.pipeline_mode<synchronous>, transform_indices = @transform_14, window_bounds = array<i64: 2, 1, 64>}, {pipeline_mode = #tpu.pipeline_mode<synchronous>, transform_indices = @transform_15, window_bounds = array<i64: 2, 32, 64>}, {pipeline_mode = #tpu.pipeline_mode<synchronous>, transform_indices = @transform_16, window_bounds = array<i64: 2, 1, 32>}, {pipeline_mode = #tpu.pipeline_mode<synchronous>, transform_indices = @transform_17, window_bounds = array<i64: 2, 64, 32>}, {pipeline_mode = #tpu.pipeline_mode<synchronous>, transform_indices = @transform_18, window_bounds = array<i64: 2, 1, 32>}, {pipeline_mode = #tpu.pipeline_mode<synchronous>, transform_indices = @transform_19, window_bounds = array<i64: 2, 1, 32>}, {pipeline_mode = #tpu.pipeline_mode<synchronous>, transform_indices = @transform_20, window_bounds = array<i64: 2, 1, 32>}, {pipeline_mode = #tpu.pipeline_mode<synchronous>, transform_indices = @transform_21, window_bounds = array<i64: 2, 1, 32>}, {pipeline_mode = #tpu.pipeline_mode<synchronous>, transform_indices = @transform_22, window_bounds = array<i64: 2, 1, 32>}, {pipeline_mode = #tpu.pipeline_mode<synchronous>, transform_indices = @transform_23, window_bounds = array<i64: 2, 1, 32>}, {pipeline_mode = #tpu.pipeline_mode<synchronous>, transform_indices = @transform_24, window_bounds = array<i64: 2, 1, 32>}, {pipeline_mode = #tpu.pipeline_mode<synchronous>, transform_indices = @transform_25, window_bounds = array<i64: 2, 32, 32>}, {pipeline_mode = #tpu.pipeline_mode<synchronous>, transform_indices = @transform_26, window_bounds = array<i64: 2, 1, 96>}, {pipeline_mode = #tpu.pipeline_mode<synchronous>, transform_indices = @transform_27, window_bounds = array<i64: 2, 32, 96>}, {pipeline_mode = #tpu.pipeline_mode<synchronous>, transform_indices = @transform_28, window_bounds = array<i64: 1, 32>}, {pipeline_mode = #tpu.pipeline_mode<synchronous>, transform_indices = @transform_29, window_bounds = array<i64: 1, 32>}, {pipeline_mode = #tpu.pipeline_mode<synchronous>, transform_indices = @transform_30, window_bounds = array<i64: 1, 32>}, {pipeline_mode = #tpu.pipeline_mode<synchronous>, transform_indices = @transform_31, window_bounds = array<i64: 48, 32>}, {pipeline_mode = #tpu.pipeline_mode<synchronous>, transform_indices = @transform_32, window_bounds = array<i64: 2, 1, 64>}, {pipeline_mode = #tpu.pipeline_mode<synchronous>, transform_indices = @transform_33, window_bounds = array<i64: 2, 32, 64>}, {pipeline_mode = #tpu.pipeline_mode<synchronous>, transform_indices = @transform_34, window_bounds = array<i64: 2, 1, 32>}, {pipeline_mode = #tpu.pipeline_mode<synchronous>, transform_indices = @transform_35, window_bounds = array<i64: 2, 64, 32>}, {pipeline_mode = #tpu.pipeline_mode<synchronous>, transform_indices = @transform_36, window_bounds = array<i64: 2, 1, 32>}, {pipeline_mode = #tpu.pipeline_mode<synchronous>, transform_indices = @transform_37, window_bounds = array<i64: 2, 1, 32>}, {pipeline_mode = #tpu.pipeline_mode<synchronous>, transform_indices = @transform_38, window_bounds = array<i64: 2, 1, 32>}, {pipeline_mode = #tpu.pipeline_mode<synchronous>, transform_indices = @transform_39, window_bounds = array<i64: 2, 1, 32>}, {pipeline_mode = #tpu.pipeline_mode<synchronous>, transform_indices = @transform_40, window_bounds = array<i64: 2, 1, 32>}, {pipeline_mode = #tpu.pipeline_mode<synchronous>, transform_indices = @transform_41, window_bounds = array<i64: 2, 32, 32>}, {pipeline_mode = #tpu.pipeline_mode<synchronous>, transform_indices = @transform_42, window_bounds = array<i64: 2, 1, 96>}, {pipeline_mode = #tpu.pipeline_mode<synchronous>, transform_indices = @transform_43, window_bounds = array<i64: 2, 32, 96>}, {pipeline_mode = #tpu.pipeline_mode<synchronous>, transform_indices = @transform_44, window_bounds = array<i64: 1, 32>}, {pipeline_mode = #tpu.pipeline_mode<synchronous>, transform_indices = @transform_45, window_bounds = array<i64: 1, 32>}, {pipeline_mode = #tpu.pipeline_mode<synchronous>, transform_indices = @transform_46, window_bounds = array<i64: 1, 128>}, {pipeline_mode = #tpu.pipeline_mode<synchronous>, transform_indices = @transform_47, window_bounds = array<i64: 32, 128>}, {pipeline_mode = #tpu.pipeline_mode<synchronous>, transform_indices = @transform_48, window_bounds = array<i64: 1, 48>}, {pipeline_mode = #tpu.pipeline_mode<synchronous>, transform_indices = @transform_49, window_bounds = array<i64: 1, 48>}, {pipeline_mode = #tpu.pipeline_mode<synchronous>, transform_indices = @transform_50, window_bounds = array<i64: 1, 48>}, {pipeline_mode = #tpu.pipeline_mode<synchronous>, transform_indices = @transform_51, window_bounds = array<i64: 1, 48>}, {transform_indices = @transform_52, window_bounds = array<i64: 2, 8, 128>}]} {
    %c0 = arith.constant 0 : index
    %c0_0 = arith.constant 0 : index
    %c0_1 = arith.constant 0 : index
    %0 = vector.load %arg3[%c0, %c0_0, %c0_1] : memref<2x1x16xf32, #tpu.memory_space<vmem>>, vector<2x1x16xf32>
    %c0_2 = arith.constant 0 : index
    %c0_3 = arith.constant 0 : index
    %c0_4 = arith.constant 0 : index
    %1 = vector.load %arg4[%c0_2, %c0_3, %c0_4] : memref<2x8x8xf32, #tpu.memory_space<vmem>>, vector<2x8x8xf32>
    %c0_5 = arith.constant 0 : index
    %c0_6 = arith.constant 0 : index
    %c0_7 = arith.constant 0 : index
    %2 = vector.load %arg1[%c0_5, %c0_6, %c0_7] : memref<2x16x48xf32, #tpu.memory_space<vmem>>, vector<2x16x48xf32>
    %3 = vector.shape_cast %2 : vector<2x16x48xf32> to vector<32x48xf32>
    %c0_8 = arith.constant 0 : index
    %c0_9 = arith.constant 0 : index
    %4 = vector.load %arg50[%c0_8, %c0_9] : memref<1x48xf32, #tpu.memory_space<vmem>>, vector<1x48xf32>
    %c0_10 = arith.constant 0 : index
    %c0_11 = arith.constant 0 : index
    %5 = vector.load %arg49[%c0_10, %c0_11] : memref<1x48xf32, #tpu.memory_space<vmem>>, vector<1x48xf32>
    %cst = arith.constant dense<0.000000e+00> : vector<32xf32>
    %6 = vector.multi_reduction <add>, %3, %cst [1] : vector<32x48xf32> to vector<32xf32>
    %7 = vector.shape_cast %6 : vector<32xf32> to vector<32x1xf32>
    %cst_12 = arith.constant 4.800000e+01 : f32
    %8 = vector.broadcast %cst_12 : f32 to vector<32x1xf32>
    %9 = arith.divf %7, %8 : vector<32x1xf32>
    %10 = vector.broadcast %9 : vector<32x1xf32> to vector<32x48xf32>
    %11 = arith.subf %3, %10 : vector<32x48xf32>
    %12 = arith.mulf %11, %11 : vector<32x48xf32>
    %cst_13 = arith.constant dense<0.000000e+00> : vector<32xf32>
    %13 = vector.multi_reduction <add>, %12, %cst_13 [1] : vector<32x48xf32> to vector<32xf32>
    %14 = vector.shape_cast %13 : vector<32xf32> to vector<32x1xf32>
    %cst_14 = arith.constant 4.800000e+01 : f32
    %15 = vector.broadcast %cst_14 : f32 to vector<32x1xf32>
    %16 = arith.divf %14, %15 : vector<32x1xf32>
    %cst_15 = arith.constant 9.99999996E-13 : f32
    %17 = vector.broadcast %cst_15 : f32 to vector<32x1xf32>
    %18 = arith.addf %16, %17 : vector<32x1xf32>
    %19 = math.rsqrt %18 : vector<32x1xf32>
    %20 = vector.broadcast %19 : vector<32x1xf32> to vector<32x48xf32>
    %21 = arith.mulf %11, %20 : vector<32x48xf32>
    %22 = vector.broadcast %4 : vector<1x48xf32> to vector<32x48xf32>
    %23 = arith.mulf %21, %22 : vector<32x48xf32>
    %24 = vector.broadcast %5 : vector<1x48xf32> to vector<32x48xf32>
    %25 = arith.addf %23, %24 : vector<32x48xf32>
    %c0_16 = arith.constant 0 : index
    %c0_17 = arith.constant 0 : index
    %26 = vector.load %arg32[%c0_16, %c0_17] : memref<48x32xbf16, #tpu.memory_space<vmem>>, vector<48x32xbf16>
    %c0_18 = arith.constant 0 : index
    %c0_19 = arith.constant 0 : index
    %27 = vector.load %arg31[%c0_18, %c0_19] : memref<1x32xf32, #tpu.memory_space<vmem>>, vector<1x32xf32>
    %28 = arith.truncf %25 : vector<32x48xf32> to vector<32x48xbf16>
    %cst_20 = arith.constant dense<0.000000e+00> : vector<32x32xf32>
    %29 = tpu.matmul %28, %26, %cst_20 {dimension_numbers = #tpu.dot_dimension_numbers<[1], [0], [0], [1], [0, 0, 1, 1], [], []>} : vector<32x48xbf16>, vector<48x32xbf16>, vector<32x32xf32> -> vector<32x32xf32>
    %30 = vector.broadcast %27 : vector<1x32xf32> to vector<32x32xf32>
    %31 = arith.addf %29, %30 : vector<32x32xf32>
    %c0_21 = arith.constant 0 : index
    %c0_22 = arith.constant 0 : index
    %32 = vector.load %arg5[%c0_21, %c0_22] : memref<16x32xf32, #tpu.memory_space<vmem>>, vector<16x32xf32>
    %33 = vector.shape_cast %31 : vector<32x32xf32> to vector<2x16x32xf32>
    %34 = vector.shape_cast %32 : vector<16x32xf32> to vector<1x16x32xf32>
    %35 = vector.broadcast %34 : vector<1x16x32xf32> to vector<2x16x32xf32>
    %36 = arith.addf %33, %35 : vector<2x16x32xf32>
    %37 = vector.shape_cast %36 : vector<2x16x32xf32> to vector<32x32xf32>
    %c0_23 = arith.constant 0 : index
    %c0_24 = arith.constant 0 : index
    %c0_25 = arith.constant 0 : index
    %38 = vector.load %arg44[%c0_23, %c0_24, %c0_25] : memref<2x32x96xbf16, #tpu.memory_space<vmem>>, vector<1x32x96xbf16>
    %39 = vector.shape_cast %38 : vector<1x32x96xbf16> to vector<32x96xbf16>
    %c0_26 = arith.constant 0 : index
    %c0_27 = arith.constant 0 : index
    %c0_28 = arith.constant 0 : index
    %40 = vector.load %arg43[%c0_26, %c0_27, %c0_28] : memref<2x1x96xf32, #tpu.memory_space<vmem>>, vector<1x1x96xf32>
    %41 = vector.shape_cast %40 : vector<1x1x96xf32> to vector<1x96xf32>
    %42 = arith.truncf %37 : vector<32x32xf32> to vector<32x32xbf16>
    %cst_29 = arith.constant dense<0.000000e+00> : vector<32x96xf32>
    %43 = tpu.matmul %42, %39, %cst_29 {dimension_numbers = #tpu.dot_dimension_numbers<[1], [0], [0], [1], [0, 0, 1, 1], [], []>} : vector<32x32xbf16>, vector<32x96xbf16>, vector<32x96xf32> -> vector<32x96xf32>
    %44 = vector.broadcast %41 : vector<1x96xf32> to vector<32x96xf32>
    %45 = arith.addf %43, %44 : vector<32x96xf32>
    %46 = vector.extract_strided_slice %45 {offsets = [0, 0], sizes = [32, 32], strides = [1, 1]} : vector<32x96xf32> to vector<32x32xf32>
    %47 = vector.extract_strided_slice %45 {offsets = [0, 32], sizes = [32, 32], strides = [1, 1]} : vector<32x96xf32> to vector<32x32xf32>
    %48 = vector.extract_strided_slice %45 {offsets = [0, 64], sizes = [32, 32], strides = [1, 1]} : vector<32x96xf32> to vector<32x32xf32>
    %49 = vector.shape_cast %46 : vector<32x32xf32> to vector<2x16x32xf32>
    %50 = arith.truncf %49 : vector<2x16x32xf32> to vector<2x16x32xbf16>
    %51 = vector.shape_cast %47 : vector<32x32xf32> to vector<2x16x32xf32>
    %52 = arith.truncf %51 : vector<2x16x32xf32> to vector<2x16x32xbf16>
    %53 = vector.shape_cast %48 : vector<32x32xf32> to vector<2x16x32xf32>
    %54 = arith.truncf %53 : vector<2x16x32xf32> to vector<2x16x32xbf16>
    %55 = vector.extract_strided_slice %50 {offsets = [0, 0, 0], sizes = [2, 16, 8], strides = [1, 1, 1]} : vector<2x16x32xbf16> to vector<2x16x8xbf16>
    %56 = vector.extract_strided_slice %52 {offsets = [0, 0, 0], sizes = [2, 16, 8], strides = [1, 1, 1]} : vector<2x16x32xbf16> to vector<2x16x8xbf16>
    "tpu.trace_start"() <{level = 10 : i32, message = "bqd,bkd->bqk"}> : () -> ()
    %cst_30 = arith.constant dense<0.000000e+00> : vector<2x16x16xf32>
    %57 = tpu.matmul %55, %56, %cst_30 {dimension_numbers = #tpu.dot_dimension_numbers<[2], [2], [1], [1], [0, 0, 0, 1, 1, 1], [0], [0]>} : vector<2x16x8xbf16>, vector<2x16x8xbf16>, vector<2x16x16xf32> -> vector<2x16x16xf32>
    "tpu.trace_stop"() : () -> ()
    %cst_31 = arith.constant 0.353553385 : f32
    %58 = vector.broadcast %cst_31 : f32 to vector<2x16x16xf32>
    %59 = arith.mulf %57, %58 : vector<2x16x16xf32>
    %60 = vector.broadcast %0 : vector<2x1x16xf32> to vector<2x16x16xf32>
    %61 = arith.addf %59, %60 : vector<2x16x16xf32>
    %cst_32 = arith.constant dense<0xFF800000> : vector<2x16xf32>
    %62 = vector.multi_reduction <maximumf>, %61, %cst_32 [2] : vector<2x16x16xf32> to vector<2x16xf32>
    %63 = vector.shape_cast %62 : vector<2x16xf32> to vector<2x16x1xf32>
    %64 = vector.broadcast %63 : vector<2x16x1xf32> to vector<2x16x16xf32>
    %65 = arith.subf %61, %64 : vector<2x16x16xf32>
    %66 = math.exp %65 : vector<2x16x16xf32>
    %cst_33 = arith.constant dense<0.000000e+00> : vector<2x16xf32>
    %67 = vector.multi_reduction <add>, %66, %cst_33 [2] : vector<2x16x16xf32> to vector<2x16xf32>
    %68 = vector.shape_cast %67 : vector<2x16xf32> to vector<2x16x1xf32>
    %69 = tpu.reciprocal %68 {approx = true} : vector<2x16x1xf32> -> vector<2x16x1xf32>
    %70 = vector.broadcast %69 : vector<2x16x1xf32> to vector<2x16x16xf32>
    %71 = arith.mulf %66, %70 : vector<2x16x16xf32>
    %72 = arith.truncf %71 : vector<2x16x16xf32> to vector<2x16x16xbf16>
    %73 = vector.extract_strided_slice %54 {offsets = [0, 0, 0], sizes = [2, 16, 8], strides = [1, 1, 1]} : vector<2x16x32xbf16> to vector<2x16x8xbf16>
    "tpu.trace_start"() <{level = 10 : i32, message = "bqk,bkd->bqd"}> : () -> ()
    %cst_34 = arith.constant dense<0.000000e+00> : vector<2x16x8xf32>
    %74 = tpu.matmul %72, %73, %cst_34 {dimension_numbers = #tpu.dot_dimension_numbers<[2], [1], [1], [2], [0, 0, 0, 1, 1, 2], [0], [0]>} : vector<2x16x16xbf16>, vector<2x16x8xbf16>, vector<2x16x8xf32> -> vector<2x16x8xf32>
    "tpu.trace_stop"() : () -> ()
    %75 = vector.extract_strided_slice %50 {offsets = [0, 0, 8], sizes = [2, 16, 8], strides = [1, 1, 1]} : vector<2x16x32xbf16> to vector<2x16x8xbf16>
    %76 = vector.extract_strided_slice %52 {offsets = [0, 0, 8], sizes = [2, 16, 8], strides = [1, 1, 1]} : vector<2x16x32xbf16> to vector<2x16x8xbf16>
    "tpu.trace_start"() <{level = 10 : i32, message = "bqd,bkd->bqk"}> : () -> ()
    %cst_35 = arith.constant dense<0.000000e+00> : vector<2x16x16xf32>
    %77 = tpu.matmul %75, %76, %cst_35 {dimension_numbers = #tpu.dot_dimension_numbers<[2], [2], [1], [1], [0, 0, 0, 1, 1, 1], [0], [0]>} : vector<2x16x8xbf16>, vector<2x16x8xbf16>, vector<2x16x16xf32> -> vector<2x16x16xf32>
    "tpu.trace_stop"() : () -> ()
    %cst_36 = arith.constant 0.353553385 : f32
    %78 = vector.broadcast %cst_36 : f32 to vector<2x16x16xf32>
    %79 = arith.mulf %77, %78 : vector<2x16x16xf32>
    %80 = vector.broadcast %0 : vector<2x1x16xf32> to vector<2x16x16xf32>
    %81 = arith.addf %79, %80 : vector<2x16x16xf32>
    %cst_37 = arith.constant dense<0xFF800000> : vector<2x16xf32>
    %82 = vector.multi_reduction <maximumf>, %81, %cst_37 [2] : vector<2x16x16xf32> to vector<2x16xf32>
    %83 = vector.shape_cast %82 : vector<2x16xf32> to vector<2x16x1xf32>
    %84 = vector.broadcast %83 : vector<2x16x1xf32> to vector<2x16x16xf32>
    %85 = arith.subf %81, %84 : vector<2x16x16xf32>
    %86 = math.exp %85 : vector<2x16x16xf32>
    %cst_38 = arith.constant dense<0.000000e+00> : vector<2x16xf32>
    %87 = vector.multi_reduction <add>, %86, %cst_38 [2] : vector<2x16x16xf32> to vector<2x16xf32>
    %88 = vector.shape_cast %87 : vector<2x16xf32> to vector<2x16x1xf32>
    %89 = tpu.reciprocal %88 {approx = true} : vector<2x16x1xf32> -> vector<2x16x1xf32>
    %90 = vector.broadcast %89 : vector<2x16x1xf32> to vector<2x16x16xf32>
    %91 = arith.mulf %86, %90 : vector<2x16x16xf32>
    %92 = arith.truncf %91 : vector<2x16x16xf32> to vector<2x16x16xbf16>
    %93 = vector.extract_strided_slice %54 {offsets = [0, 0, 8], sizes = [2, 16, 8], strides = [1, 1, 1]} : vector<2x16x32xbf16> to vector<2x16x8xbf16>
    "tpu.trace_start"() <{level = 10 : i32, message = "bqk,bkd->bqd"}> : () -> ()
    %cst_39 = arith.constant dense<0.000000e+00> : vector<2x16x8xf32>
    %94 = tpu.matmul %92, %93, %cst_39 {dimension_numbers = #tpu.dot_dimension_numbers<[2], [1], [1], [2], [0, 0, 0, 1, 1, 2], [0], [0]>} : vector<2x16x16xbf16>, vector<2x16x8xbf16>, vector<2x16x8xf32> -> vector<2x16x8xf32>
    "tpu.trace_stop"() : () -> ()
    %95 = vector.extract_strided_slice %50 {offsets = [0, 0, 16], sizes = [2, 16, 8], strides = [1, 1, 1]} : vector<2x16x32xbf16> to vector<2x16x8xbf16>
    %96 = vector.extract_strided_slice %52 {offsets = [0, 0, 16], sizes = [2, 16, 8], strides = [1, 1, 1]} : vector<2x16x32xbf16> to vector<2x16x8xbf16>
    "tpu.trace_start"() <{level = 10 : i32, message = "bqd,bkd->bqk"}> : () -> ()
    %cst_40 = arith.constant dense<0.000000e+00> : vector<2x16x16xf32>
    %97 = tpu.matmul %95, %96, %cst_40 {dimension_numbers = #tpu.dot_dimension_numbers<[2], [2], [1], [1], [0, 0, 0, 1, 1, 1], [0], [0]>} : vector<2x16x8xbf16>, vector<2x16x8xbf16>, vector<2x16x16xf32> -> vector<2x16x16xf32>
    "tpu.trace_stop"() : () -> ()
    %cst_41 = arith.constant 0.353553385 : f32
    %98 = vector.broadcast %cst_41 : f32 to vector<2x16x16xf32>
    %99 = arith.mulf %97, %98 : vector<2x16x16xf32>
    %100 = vector.broadcast %0 : vector<2x1x16xf32> to vector<2x16x16xf32>
    %101 = arith.addf %99, %100 : vector<2x16x16xf32>
    %cst_42 = arith.constant dense<0xFF800000> : vector<2x16xf32>
    %102 = vector.multi_reduction <maximumf>, %101, %cst_42 [2] : vector<2x16x16xf32> to vector<2x16xf32>
    %103 = vector.shape_cast %102 : vector<2x16xf32> to vector<2x16x1xf32>
    %104 = vector.broadcast %103 : vector<2x16x1xf32> to vector<2x16x16xf32>
    %105 = arith.subf %101, %104 : vector<2x16x16xf32>
    %106 = math.exp %105 : vector<2x16x16xf32>
    %cst_43 = arith.constant dense<0.000000e+00> : vector<2x16xf32>
    %107 = vector.multi_reduction <add>, %106, %cst_43 [2] : vector<2x16x16xf32> to vector<2x16xf32>
    %108 = vector.shape_cast %107 : vector<2x16xf32> to vector<2x16x1xf32>
    %109 = tpu.reciprocal %108 {approx = true} : vector<2x16x1xf32> -> vector<2x16x1xf32>
    %110 = vector.broadcast %109 : vector<2x16x1xf32> to vector<2x16x16xf32>
    %111 = arith.mulf %106, %110 : vector<2x16x16xf32>
    %112 = arith.truncf %111 : vector<2x16x16xf32> to vector<2x16x16xbf16>
    %113 = vector.extract_strided_slice %54 {offsets = [0, 0, 16], sizes = [2, 16, 8], strides = [1, 1, 1]} : vector<2x16x32xbf16> to vector<2x16x8xbf16>
    "tpu.trace_start"() <{level = 10 : i32, message = "bqk,bkd->bqd"}> : () -> ()
    %cst_44 = arith.constant dense<0.000000e+00> : vector<2x16x8xf32>
    %114 = tpu.matmul %112, %113, %cst_44 {dimension_numbers = #tpu.dot_dimension_numbers<[2], [1], [1], [2], [0, 0, 0, 1, 1, 2], [0], [0]>} : vector<2x16x16xbf16>, vector<2x16x8xbf16>, vector<2x16x8xf32> -> vector<2x16x8xf32>
    "tpu.trace_stop"() : () -> ()
    %115 = vector.extract_strided_slice %50 {offsets = [0, 0, 24], sizes = [2, 16, 8], strides = [1, 1, 1]} : vector<2x16x32xbf16> to vector<2x16x8xbf16>
    %116 = vector.extract_strided_slice %52 {offsets = [0, 0, 24], sizes = [2, 16, 8], strides = [1, 1, 1]} : vector<2x16x32xbf16> to vector<2x16x8xbf16>
    "tpu.trace_start"() <{level = 10 : i32, message = "bqd,bkd->bqk"}> : () -> ()
    %cst_45 = arith.constant dense<0.000000e+00> : vector<2x16x16xf32>
    %117 = tpu.matmul %115, %116, %cst_45 {dimension_numbers = #tpu.dot_dimension_numbers<[2], [2], [1], [1], [0, 0, 0, 1, 1, 1], [0], [0]>} : vector<2x16x8xbf16>, vector<2x16x8xbf16>, vector<2x16x16xf32> -> vector<2x16x16xf32>
    "tpu.trace_stop"() : () -> ()
    %cst_46 = arith.constant 0.353553385 : f32
    %118 = vector.broadcast %cst_46 : f32 to vector<2x16x16xf32>
    %119 = arith.mulf %117, %118 : vector<2x16x16xf32>
    %120 = vector.broadcast %0 : vector<2x1x16xf32> to vector<2x16x16xf32>
    %121 = arith.addf %119, %120 : vector<2x16x16xf32>
    %cst_47 = arith.constant dense<0xFF800000> : vector<2x16xf32>
    %122 = vector.multi_reduction <maximumf>, %121, %cst_47 [2] : vector<2x16x16xf32> to vector<2x16xf32>
    %123 = vector.shape_cast %122 : vector<2x16xf32> to vector<2x16x1xf32>
    %124 = vector.broadcast %123 : vector<2x16x1xf32> to vector<2x16x16xf32>
    %125 = arith.subf %121, %124 : vector<2x16x16xf32>
    %126 = math.exp %125 : vector<2x16x16xf32>
    %cst_48 = arith.constant dense<0.000000e+00> : vector<2x16xf32>
    %127 = vector.multi_reduction <add>, %126, %cst_48 [2] : vector<2x16x16xf32> to vector<2x16xf32>
    %128 = vector.shape_cast %127 : vector<2x16xf32> to vector<2x16x1xf32>
    %129 = tpu.reciprocal %128 {approx = true} : vector<2x16x1xf32> -> vector<2x16x1xf32>
    %130 = vector.broadcast %129 : vector<2x16x1xf32> to vector<2x16x16xf32>
    %131 = arith.mulf %126, %130 : vector<2x16x16xf32>
    %132 = arith.truncf %131 : vector<2x16x16xf32> to vector<2x16x16xbf16>
    %133 = vector.extract_strided_slice %54 {offsets = [0, 0, 24], sizes = [2, 16, 8], strides = [1, 1, 1]} : vector<2x16x32xbf16> to vector<2x16x8xbf16>
    "tpu.trace_start"() <{level = 10 : i32, message = "bqk,bkd->bqd"}> : () -> ()
    %cst_49 = arith.constant dense<0.000000e+00> : vector<2x16x8xf32>
    %134 = tpu.matmul %132, %133, %cst_49 {dimension_numbers = #tpu.dot_dimension_numbers<[2], [1], [1], [2], [0, 0, 0, 1, 1, 2], [0], [0]>} : vector<2x16x16xbf16>, vector<2x16x8xbf16>, vector<2x16x8xf32> -> vector<2x16x8xf32>
    "tpu.trace_stop"() : () -> ()
    %135 = tpu.concatenate %74, %94, %114, %134 in 2 : vector<2x16x8xf32>, vector<2x16x8xf32>, vector<2x16x8xf32>, vector<2x16x8xf32> -> vector<2x16x32xf32>
    %136 = vector.shape_cast %135 : vector<2x16x32xf32> to vector<32x32xf32>
    %c0_50 = arith.constant 0 : index
    %c0_51 = arith.constant 0 : index
    %c0_52 = arith.constant 0 : index
    %137 = vector.load %arg42[%c0_50, %c0_51, %c0_52] : memref<2x32x32xbf16, #tpu.memory_space<vmem>>, vector<1x32x32xbf16>
    %138 = vector.shape_cast %137 : vector<1x32x32xbf16> to vector<32x32xbf16>
    %c0_53 = arith.constant 0 : index
    %c0_54 = arith.constant 0 : index
    %c0_55 = arith.constant 0 : index
    %139 = vector.load %arg41[%c0_53, %c0_54, %c0_55] : memref<2x1x32xf32, #tpu.memory_space<vmem>>, vector<1x1x32xf32>
    %140 = vector.shape_cast %139 : vector<1x1x32xf32> to vector<1x32xf32>
    %141 = arith.truncf %136 : vector<32x32xf32> to vector<32x32xbf16>
    %cst_56 = arith.constant dense<0.000000e+00> : vector<32x32xf32>
    %142 = tpu.matmul %141, %138, %cst_56 {dimension_numbers = #tpu.dot_dimension_numbers<[1], [0], [0], [1], [0, 0, 1, 1], [], []>} : vector<32x32xbf16>, vector<32x32xbf16>, vector<32x32xf32> -> vector<32x32xf32>
    %143 = vector.broadcast %140 : vector<1x32xf32> to vector<32x32xf32>
    %144 = arith.addf %142, %143 : vector<32x32xf32>
    %145 = arith.addf %37, %144 : vector<32x32xf32>
    %c0_57 = arith.constant 0 : index
    %c0_58 = arith.constant 0 : index
    %c0_59 = arith.constant 0 : index
    %146 = vector.load %arg38[%c0_57, %c0_58, %c0_59] : memref<2x1x32xf32, #tpu.memory_space<vmem>>, vector<1x1x32xf32>
    %147 = vector.shape_cast %146 : vector<1x1x32xf32> to vector<1x32xf32>
    %c0_60 = arith.constant 0 : index
    %c0_61 = arith.constant 0 : index
    %c0_62 = arith.constant 0 : index
    %148 = vector.load %arg37[%c0_60, %c0_61, %c0_62] : memref<2x1x32xf32, #tpu.memory_space<vmem>>, vector<1x1x32xf32>
    %149 = vector.shape_cast %148 : vector<1x1x32xf32> to vector<1x32xf32>
    %cst_63 = arith.constant dense<0.000000e+00> : vector<32xf32>
    %150 = vector.multi_reduction <add>, %145, %cst_63 [1] : vector<32x32xf32> to vector<32xf32>
    %151 = vector.shape_cast %150 : vector<32xf32> to vector<32x1xf32>
    %cst_64 = arith.constant 3.200000e+01 : f32
    %152 = vector.broadcast %cst_64 : f32 to vector<32x1xf32>
    %153 = arith.divf %151, %152 : vector<32x1xf32>
    %154 = vector.broadcast %153 : vector<32x1xf32> to vector<32x32xf32>
    %155 = arith.subf %145, %154 : vector<32x32xf32>
    %156 = arith.mulf %155, %155 : vector<32x32xf32>
    %cst_65 = arith.constant dense<0.000000e+00> : vector<32xf32>
    %157 = vector.multi_reduction <add>, %156, %cst_65 [1] : vector<32x32xf32> to vector<32xf32>
    %158 = vector.shape_cast %157 : vector<32xf32> to vector<32x1xf32>
    %cst_66 = arith.constant 3.200000e+01 : f32
    %159 = vector.broadcast %cst_66 : f32 to vector<32x1xf32>
    %160 = arith.divf %158, %159 : vector<32x1xf32>
    %cst_67 = arith.constant 9.99999974E-6 : f32
    %161 = vector.broadcast %cst_67 : f32 to vector<32x1xf32>
    %162 = arith.addf %160, %161 : vector<32x1xf32>
    %163 = math.rsqrt %162 : vector<32x1xf32>
    %164 = vector.broadcast %163 : vector<32x1xf32> to vector<32x32xf32>
    %165 = arith.mulf %155, %164 : vector<32x32xf32>
    %166 = vector.broadcast %147 : vector<1x32xf32> to vector<32x32xf32>
    %167 = arith.mulf %165, %166 : vector<32x32xf32>
    %168 = vector.broadcast %149 : vector<1x32xf32> to vector<32x32xf32>
    %169 = arith.addf %167, %168 : vector<32x32xf32>
    %c0_68 = arith.constant 0 : index
    %c0_69 = arith.constant 0 : index
    %c0_70 = arith.constant 0 : index
    %170 = vector.load %arg34[%c0_68, %c0_69, %c0_70] : memref<2x32x64xbf16, #tpu.memory_space<vmem>>, vector<1x32x64xbf16>
    %171 = vector.shape_cast %170 : vector<1x32x64xbf16> to vector<32x64xbf16>
    %c0_71 = arith.constant 0 : index
    %c0_72 = arith.constant 0 : index
    %c0_73 = arith.constant 0 : index
    %172 = vector.load %arg33[%c0_71, %c0_72, %c0_73] : memref<2x1x64xf32, #tpu.memory_space<vmem>>, vector<1x1x64xf32>
    %173 = vector.shape_cast %172 : vector<1x1x64xf32> to vector<1x64xf32>
    %174 = arith.truncf %169 : vector<32x32xf32> to vector<32x32xbf16>
    %cst_74 = arith.constant dense<0.000000e+00> : vector<32x64xf32>
    %175 = tpu.matmul %174, %171, %cst_74 {dimension_numbers = #tpu.dot_dimension_numbers<[1], [0], [0], [1], [0, 0, 1, 1], [], []>} : vector<32x32xbf16>, vector<32x64xbf16>, vector<32x64xf32> -> vector<32x64xf32>
    %176 = vector.broadcast %173 : vector<1x64xf32> to vector<32x64xf32>
    %177 = arith.addf %175, %176 : vector<32x64xf32>
    %cst_75 = arith.constant 0.000000e+00 : f32
    %178 = vector.broadcast %cst_75 : f32 to vector<32x64xf32>
    %179 = arith.maximumf %177, %178 : vector<32x64xf32>
    %c0_76 = arith.constant 0 : index
    %c0_77 = arith.constant 0 : index
    %c0_78 = arith.constant 0 : index
    %180 = vector.load %arg36[%c0_76, %c0_77, %c0_78] : memref<2x64x32xbf16, #tpu.memory_space<vmem>>, vector<1x64x32xbf16>
    %181 = vector.shape_cast %180 : vector<1x64x32xbf16> to vector<64x32xbf16>
    %c0_79 = arith.constant 0 : index
    %c0_80 = arith.constant 0 : index
    %c0_81 = arith.constant 0 : index
    %182 = vector.load %arg35[%c0_79, %c0_80, %c0_81] : memref<2x1x32xf32, #tpu.memory_space<vmem>>, vector<1x1x32xf32>
    %183 = vector.shape_cast %182 : vector<1x1x32xf32> to vector<1x32xf32>
    %184 = arith.truncf %179 : vector<32x64xf32> to vector<32x64xbf16>
    %cst_82 = arith.constant dense<0.000000e+00> : vector<32x32xf32>
    %185 = tpu.matmul %184, %181, %cst_82 {dimension_numbers = #tpu.dot_dimension_numbers<[1], [0], [0], [1], [0, 0, 1, 1], [], []>} : vector<32x64xbf16>, vector<64x32xbf16>, vector<32x32xf32> -> vector<32x32xf32>
    %186 = vector.broadcast %183 : vector<1x32xf32> to vector<32x32xf32>
    %187 = arith.addf %185, %186 : vector<32x32xf32>
    %188 = arith.addf %169, %187 : vector<32x32xf32>
    %c0_83 = arith.constant 0 : index
    %c0_84 = arith.constant 0 : index
    %c0_85 = arith.constant 0 : index
    %189 = vector.load %arg40[%c0_83, %c0_84, %c0_85] : memref<2x1x32xf32, #tpu.memory_space<vmem>>, vector<1x1x32xf32>
    %190 = vector.shape_cast %189 : vector<1x1x32xf32> to vector<1x32xf32>
    %c0_86 = arith.constant 0 : index
    %c0_87 = arith.constant 0 : index
    %c0_88 = arith.constant 0 : index
    %191 = vector.load %arg39[%c0_86, %c0_87, %c0_88] : memref<2x1x32xf32, #tpu.memory_space<vmem>>, vector<1x1x32xf32>
    %192 = vector.shape_cast %191 : vector<1x1x32xf32> to vector<1x32xf32>
    %cst_89 = arith.constant dense<0.000000e+00> : vector<32xf32>
    %193 = vector.multi_reduction <add>, %188, %cst_89 [1] : vector<32x32xf32> to vector<32xf32>
    %194 = vector.shape_cast %193 : vector<32xf32> to vector<32x1xf32>
    %cst_90 = arith.constant 3.200000e+01 : f32
    %195 = vector.broadcast %cst_90 : f32 to vector<32x1xf32>
    %196 = arith.divf %194, %195 : vector<32x1xf32>
    %197 = vector.broadcast %196 : vector<32x1xf32> to vector<32x32xf32>
    %198 = arith.subf %188, %197 : vector<32x32xf32>
    %199 = arith.mulf %198, %198 : vector<32x32xf32>
    %cst_91 = arith.constant dense<0.000000e+00> : vector<32xf32>
    %200 = vector.multi_reduction <add>, %199, %cst_91 [1] : vector<32x32xf32> to vector<32xf32>
    %201 = vector.shape_cast %200 : vector<32xf32> to vector<32x1xf32>
    %cst_92 = arith.constant 3.200000e+01 : f32
    %202 = vector.broadcast %cst_92 : f32 to vector<32x1xf32>
    %203 = arith.divf %201, %202 : vector<32x1xf32>
    %cst_93 = arith.constant 9.99999974E-6 : f32
    %204 = vector.broadcast %cst_93 : f32 to vector<32x1xf32>
    %205 = arith.addf %203, %204 : vector<32x1xf32>
    %206 = math.rsqrt %205 : vector<32x1xf32>
    %207 = vector.broadcast %206 : vector<32x1xf32> to vector<32x32xf32>
    %208 = arith.mulf %198, %207 : vector<32x32xf32>
    %209 = vector.broadcast %190 : vector<1x32xf32> to vector<32x32xf32>
    %210 = arith.mulf %208, %209 : vector<32x32xf32>
    %211 = vector.broadcast %192 : vector<1x32xf32> to vector<32x32xf32>
    %212 = arith.addf %210, %211 : vector<32x32xf32>
    %c1 = arith.constant 1 : index
    %c0_94 = arith.constant 0 : index
    %c0_95 = arith.constant 0 : index
    %213 = vector.load %arg44[%c1, %c0_94, %c0_95] : memref<2x32x96xbf16, #tpu.memory_space<vmem>>, vector<1x32x96xbf16>
    %214 = vector.shape_cast %213 : vector<1x32x96xbf16> to vector<32x96xbf16>
    %c1_96 = arith.constant 1 : index
    %c0_97 = arith.constant 0 : index
    %c0_98 = arith.constant 0 : index
    %215 = vector.load %arg43[%c1_96, %c0_97, %c0_98] : memref<2x1x96xf32, #tpu.memory_space<vmem>>, vector<1x1x96xf32>
    %216 = vector.shape_cast %215 : vector<1x1x96xf32> to vector<1x96xf32>
    %217 = arith.truncf %212 : vector<32x32xf32> to vector<32x32xbf16>
    %cst_99 = arith.constant dense<0.000000e+00> : vector<32x96xf32>
    %218 = tpu.matmul %217, %214, %cst_99 {dimension_numbers = #tpu.dot_dimension_numbers<[1], [0], [0], [1], [0, 0, 1, 1], [], []>} : vector<32x32xbf16>, vector<32x96xbf16>, vector<32x96xf32> -> vector<32x96xf32>
    %219 = vector.broadcast %216 : vector<1x96xf32> to vector<32x96xf32>
    %220 = arith.addf %218, %219 : vector<32x96xf32>
    %221 = vector.extract_strided_slice %220 {offsets = [0, 0], sizes = [32, 32], strides = [1, 1]} : vector<32x96xf32> to vector<32x32xf32>
    %222 = vector.extract_strided_slice %220 {offsets = [0, 32], sizes = [32, 32], strides = [1, 1]} : vector<32x96xf32> to vector<32x32xf32>
    %223 = vector.extract_strided_slice %220 {offsets = [0, 64], sizes = [32, 32], strides = [1, 1]} : vector<32x96xf32> to vector<32x32xf32>
    %224 = vector.shape_cast %221 : vector<32x32xf32> to vector<2x16x32xf32>
    %225 = arith.truncf %224 : vector<2x16x32xf32> to vector<2x16x32xbf16>
    %226 = vector.shape_cast %222 : vector<32x32xf32> to vector<2x16x32xf32>
    %227 = arith.truncf %226 : vector<2x16x32xf32> to vector<2x16x32xbf16>
    %228 = vector.shape_cast %223 : vector<32x32xf32> to vector<2x16x32xf32>
    %229 = arith.truncf %228 : vector<2x16x32xf32> to vector<2x16x32xbf16>
    %230 = vector.extract_strided_slice %225 {offsets = [0, 0, 0], sizes = [2, 16, 8], strides = [1, 1, 1]} : vector<2x16x32xbf16> to vector<2x16x8xbf16>
    %231 = vector.extract_strided_slice %227 {offsets = [0, 0, 0], sizes = [2, 16, 8], strides = [1, 1, 1]} : vector<2x16x32xbf16> to vector<2x16x8xbf16>
    "tpu.trace_start"() <{level = 10 : i32, message = "bqd,bkd->bqk"}> : () -> ()
    %cst_100 = arith.constant dense<0.000000e+00> : vector<2x16x16xf32>
    %232 = tpu.matmul %230, %231, %cst_100 {dimension_numbers = #tpu.dot_dimension_numbers<[2], [2], [1], [1], [0, 0, 0, 1, 1, 1], [0], [0]>} : vector<2x16x8xbf16>, vector<2x16x8xbf16>, vector<2x16x16xf32> -> vector<2x16x16xf32>
    "tpu.trace_stop"() : () -> ()
    %cst_101 = arith.constant 0.353553385 : f32
    %233 = vector.broadcast %cst_101 : f32 to vector<2x16x16xf32>
    %234 = arith.mulf %232, %233 : vector<2x16x16xf32>
    %235 = vector.broadcast %0 : vector<2x1x16xf32> to vector<2x16x16xf32>
    %236 = arith.addf %234, %235 : vector<2x16x16xf32>
    %cst_102 = arith.constant dense<0xFF800000> : vector<2x16xf32>
    %237 = vector.multi_reduction <maximumf>, %236, %cst_102 [2] : vector<2x16x16xf32> to vector<2x16xf32>
    %238 = vector.shape_cast %237 : vector<2x16xf32> to vector<2x16x1xf32>
    %239 = vector.broadcast %238 : vector<2x16x1xf32> to vector<2x16x16xf32>
    %240 = arith.subf %236, %239 : vector<2x16x16xf32>
    %241 = math.exp %240 : vector<2x16x16xf32>
    %cst_103 = arith.constant dense<0.000000e+00> : vector<2x16xf32>
    %242 = vector.multi_reduction <add>, %241, %cst_103 [2] : vector<2x16x16xf32> to vector<2x16xf32>
    %243 = vector.shape_cast %242 : vector<2x16xf32> to vector<2x16x1xf32>
    %244 = tpu.reciprocal %243 {approx = true} : vector<2x16x1xf32> -> vector<2x16x1xf32>
    %245 = vector.broadcast %244 : vector<2x16x1xf32> to vector<2x16x16xf32>
    %246 = arith.mulf %241, %245 : vector<2x16x16xf32>
    %247 = arith.truncf %246 : vector<2x16x16xf32> to vector<2x16x16xbf16>
    %248 = vector.extract_strided_slice %229 {offsets = [0, 0, 0], sizes = [2, 16, 8], strides = [1, 1, 1]} : vector<2x16x32xbf16> to vector<2x16x8xbf16>
    "tpu.trace_start"() <{level = 10 : i32, message = "bqk,bkd->bqd"}> : () -> ()
    %cst_104 = arith.constant dense<0.000000e+00> : vector<2x16x8xf32>
    %249 = tpu.matmul %247, %248, %cst_104 {dimension_numbers = #tpu.dot_dimension_numbers<[2], [1], [1], [2], [0, 0, 0, 1, 1, 2], [0], [0]>} : vector<2x16x16xbf16>, vector<2x16x8xbf16>, vector<2x16x8xf32> -> vector<2x16x8xf32>
    "tpu.trace_stop"() : () -> ()
    %250 = vector.extract_strided_slice %225 {offsets = [0, 0, 8], sizes = [2, 16, 8], strides = [1, 1, 1]} : vector<2x16x32xbf16> to vector<2x16x8xbf16>
    %251 = vector.extract_strided_slice %227 {offsets = [0, 0, 8], sizes = [2, 16, 8], strides = [1, 1, 1]} : vector<2x16x32xbf16> to vector<2x16x8xbf16>
    "tpu.trace_start"() <{level = 10 : i32, message = "bqd,bkd->bqk"}> : () -> ()
    %cst_105 = arith.constant dense<0.000000e+00> : vector<2x16x16xf32>
    %252 = tpu.matmul %250, %251, %cst_105 {dimension_numbers = #tpu.dot_dimension_numbers<[2], [2], [1], [1], [0, 0, 0, 1, 1, 1], [0], [0]>} : vector<2x16x8xbf16>, vector<2x16x8xbf16>, vector<2x16x16xf32> -> vector<2x16x16xf32>
    "tpu.trace_stop"() : () -> ()
    %cst_106 = arith.constant 0.353553385 : f32
    %253 = vector.broadcast %cst_106 : f32 to vector<2x16x16xf32>
    %254 = arith.mulf %252, %253 : vector<2x16x16xf32>
    %255 = vector.broadcast %0 : vector<2x1x16xf32> to vector<2x16x16xf32>
    %256 = arith.addf %254, %255 : vector<2x16x16xf32>
    %cst_107 = arith.constant dense<0xFF800000> : vector<2x16xf32>
    %257 = vector.multi_reduction <maximumf>, %256, %cst_107 [2] : vector<2x16x16xf32> to vector<2x16xf32>
    %258 = vector.shape_cast %257 : vector<2x16xf32> to vector<2x16x1xf32>
    %259 = vector.broadcast %258 : vector<2x16x1xf32> to vector<2x16x16xf32>
    %260 = arith.subf %256, %259 : vector<2x16x16xf32>
    %261 = math.exp %260 : vector<2x16x16xf32>
    %cst_108 = arith.constant dense<0.000000e+00> : vector<2x16xf32>
    %262 = vector.multi_reduction <add>, %261, %cst_108 [2] : vector<2x16x16xf32> to vector<2x16xf32>
    %263 = vector.shape_cast %262 : vector<2x16xf32> to vector<2x16x1xf32>
    %264 = tpu.reciprocal %263 {approx = true} : vector<2x16x1xf32> -> vector<2x16x1xf32>
    %265 = vector.broadcast %264 : vector<2x16x1xf32> to vector<2x16x16xf32>
    %266 = arith.mulf %261, %265 : vector<2x16x16xf32>
    %267 = arith.truncf %266 : vector<2x16x16xf32> to vector<2x16x16xbf16>
    %268 = vector.extract_strided_slice %229 {offsets = [0, 0, 8], sizes = [2, 16, 8], strides = [1, 1, 1]} : vector<2x16x32xbf16> to vector<2x16x8xbf16>
    "tpu.trace_start"() <{level = 10 : i32, message = "bqk,bkd->bqd"}> : () -> ()
    %cst_109 = arith.constant dense<0.000000e+00> : vector<2x16x8xf32>
    %269 = tpu.matmul %267, %268, %cst_109 {dimension_numbers = #tpu.dot_dimension_numbers<[2], [1], [1], [2], [0, 0, 0, 1, 1, 2], [0], [0]>} : vector<2x16x16xbf16>, vector<2x16x8xbf16>, vector<2x16x8xf32> -> vector<2x16x8xf32>
    "tpu.trace_stop"() : () -> ()
    %270 = vector.extract_strided_slice %225 {offsets = [0, 0, 16], sizes = [2, 16, 8], strides = [1, 1, 1]} : vector<2x16x32xbf16> to vector<2x16x8xbf16>
    %271 = vector.extract_strided_slice %227 {offsets = [0, 0, 16], sizes = [2, 16, 8], strides = [1, 1, 1]} : vector<2x16x32xbf16> to vector<2x16x8xbf16>
    "tpu.trace_start"() <{level = 10 : i32, message = "bqd,bkd->bqk"}> : () -> ()
    %cst_110 = arith.constant dense<0.000000e+00> : vector<2x16x16xf32>
    %272 = tpu.matmul %270, %271, %cst_110 {dimension_numbers = #tpu.dot_dimension_numbers<[2], [2], [1], [1], [0, 0, 0, 1, 1, 1], [0], [0]>} : vector<2x16x8xbf16>, vector<2x16x8xbf16>, vector<2x16x16xf32> -> vector<2x16x16xf32>
    "tpu.trace_stop"() : () -> ()
    %cst_111 = arith.constant 0.353553385 : f32
    %273 = vector.broadcast %cst_111 : f32 to vector<2x16x16xf32>
    %274 = arith.mulf %272, %273 : vector<2x16x16xf32>
    %275 = vector.broadcast %0 : vector<2x1x16xf32> to vector<2x16x16xf32>
    %276 = arith.addf %274, %275 : vector<2x16x16xf32>
    %cst_112 = arith.constant dense<0xFF800000> : vector<2x16xf32>
    %277 = vector.multi_reduction <maximumf>, %276, %cst_112 [2] : vector<2x16x16xf32> to vector<2x16xf32>
    %278 = vector.shape_cast %277 : vector<2x16xf32> to vector<2x16x1xf32>
    %279 = vector.broadcast %278 : vector<2x16x1xf32> to vector<2x16x16xf32>
    %280 = arith.subf %276, %279 : vector<2x16x16xf32>
    %281 = math.exp %280 : vector<2x16x16xf32>
    %cst_113 = arith.constant dense<0.000000e+00> : vector<2x16xf32>
    %282 = vector.multi_reduction <add>, %281, %cst_113 [2] : vector<2x16x16xf32> to vector<2x16xf32>
    %283 = vector.shape_cast %282 : vector<2x16xf32> to vector<2x16x1xf32>
    %284 = tpu.reciprocal %283 {approx = true} : vector<2x16x1xf32> -> vector<2x16x1xf32>
    %285 = vector.broadcast %284 : vector<2x16x1xf32> to vector<2x16x16xf32>
    %286 = arith.mulf %281, %285 : vector<2x16x16xf32>
    %287 = arith.truncf %286 : vector<2x16x16xf32> to vector<2x16x16xbf16>
    %288 = vector.extract_strided_slice %229 {offsets = [0, 0, 16], sizes = [2, 16, 8], strides = [1, 1, 1]} : vector<2x16x32xbf16> to vector<2x16x8xbf16>
    "tpu.trace_start"() <{level = 10 : i32, message = "bqk,bkd->bqd"}> : () -> ()
    %cst_114 = arith.constant dense<0.000000e+00> : vector<2x16x8xf32>
    %289 = tpu.matmul %287, %288, %cst_114 {dimension_numbers = #tpu.dot_dimension_numbers<[2], [1], [1], [2], [0, 0, 0, 1, 1, 2], [0], [0]>} : vector<2x16x16xbf16>, vector<2x16x8xbf16>, vector<2x16x8xf32> -> vector<2x16x8xf32>
    "tpu.trace_stop"() : () -> ()
    %290 = vector.extract_strided_slice %225 {offsets = [0, 0, 24], sizes = [2, 16, 8], strides = [1, 1, 1]} : vector<2x16x32xbf16> to vector<2x16x8xbf16>
    %291 = vector.extract_strided_slice %227 {offsets = [0, 0, 24], sizes = [2, 16, 8], strides = [1, 1, 1]} : vector<2x16x32xbf16> to vector<2x16x8xbf16>
    "tpu.trace_start"() <{level = 10 : i32, message = "bqd,bkd->bqk"}> : () -> ()
    %cst_115 = arith.constant dense<0.000000e+00> : vector<2x16x16xf32>
    %292 = tpu.matmul %290, %291, %cst_115 {dimension_numbers = #tpu.dot_dimension_numbers<[2], [2], [1], [1], [0, 0, 0, 1, 1, 1], [0], [0]>} : vector<2x16x8xbf16>, vector<2x16x8xbf16>, vector<2x16x16xf32> -> vector<2x16x16xf32>
    "tpu.trace_stop"() : () -> ()
    %cst_116 = arith.constant 0.353553385 : f32
    %293 = vector.broadcast %cst_116 : f32 to vector<2x16x16xf32>
    %294 = arith.mulf %292, %293 : vector<2x16x16xf32>
    %295 = vector.broadcast %0 : vector<2x1x16xf32> to vector<2x16x16xf32>
    %296 = arith.addf %294, %295 : vector<2x16x16xf32>
    %cst_117 = arith.constant dense<0xFF800000> : vector<2x16xf32>
    %297 = vector.multi_reduction <maximumf>, %296, %cst_117 [2] : vector<2x16x16xf32> to vector<2x16xf32>
    %298 = vector.shape_cast %297 : vector<2x16xf32> to vector<2x16x1xf32>
    %299 = vector.broadcast %298 : vector<2x16x1xf32> to vector<2x16x16xf32>
    %300 = arith.subf %296, %299 : vector<2x16x16xf32>
    %301 = math.exp %300 : vector<2x16x16xf32>
    %cst_118 = arith.constant dense<0.000000e+00> : vector<2x16xf32>
    %302 = vector.multi_reduction <add>, %301, %cst_118 [2] : vector<2x16x16xf32> to vector<2x16xf32>
    %303 = vector.shape_cast %302 : vector<2x16xf32> to vector<2x16x1xf32>
    %304 = tpu.reciprocal %303 {approx = true} : vector<2x16x1xf32> -> vector<2x16x1xf32>
    %305 = vector.broadcast %304 : vector<2x16x1xf32> to vector<2x16x16xf32>
    %306 = arith.mulf %301, %305 : vector<2x16x16xf32>
    %307 = arith.truncf %306 : vector<2x16x16xf32> to vector<2x16x16xbf16>
    %308 = vector.extract_strided_slice %229 {offsets = [0, 0, 24], sizes = [2, 16, 8], strides = [1, 1, 1]} : vector<2x16x32xbf16> to vector<2x16x8xbf16>
    "tpu.trace_start"() <{level = 10 : i32, message = "bqk,bkd->bqd"}> : () -> ()
    %cst_119 = arith.constant dense<0.000000e+00> : vector<2x16x8xf32>
    %309 = tpu.matmul %307, %308, %cst_119 {dimension_numbers = #tpu.dot_dimension_numbers<[2], [1], [1], [2], [0, 0, 0, 1, 1, 2], [0], [0]>} : vector<2x16x16xbf16>, vector<2x16x8xbf16>, vector<2x16x8xf32> -> vector<2x16x8xf32>
    "tpu.trace_stop"() : () -> ()
    %310 = tpu.concatenate %249, %269, %289, %309 in 2 : vector<2x16x8xf32>, vector<2x16x8xf32>, vector<2x16x8xf32>, vector<2x16x8xf32> -> vector<2x16x32xf32>
    %311 = vector.shape_cast %310 : vector<2x16x32xf32> to vector<32x32xf32>
    %c1_120 = arith.constant 1 : index
    %c0_121 = arith.constant 0 : index
    %c0_122 = arith.constant 0 : index
    %312 = vector.load %arg42[%c1_120, %c0_121, %c0_122] : memref<2x32x32xbf16, #tpu.memory_space<vmem>>, vector<1x32x32xbf16>
    %313 = vector.shape_cast %312 : vector<1x32x32xbf16> to vector<32x32xbf16>
    %c1_123 = arith.constant 1 : index
    %c0_124 = arith.constant 0 : index
    %c0_125 = arith.constant 0 : index
    %314 = vector.load %arg41[%c1_123, %c0_124, %c0_125] : memref<2x1x32xf32, #tpu.memory_space<vmem>>, vector<1x1x32xf32>
    %315 = vector.shape_cast %314 : vector<1x1x32xf32> to vector<1x32xf32>
    %316 = arith.truncf %311 : vector<32x32xf32> to vector<32x32xbf16>
    %cst_126 = arith.constant dense<0.000000e+00> : vector<32x32xf32>
    %317 = tpu.matmul %316, %313, %cst_126 {dimension_numbers = #tpu.dot_dimension_numbers<[1], [0], [0], [1], [0, 0, 1, 1], [], []>} : vector<32x32xbf16>, vector<32x32xbf16>, vector<32x32xf32> -> vector<32x32xf32>
    %318 = vector.broadcast %315 : vector<1x32xf32> to vector<32x32xf32>
    %319 = arith.addf %317, %318 : vector<32x32xf32>
    %320 = arith.addf %212, %319 : vector<32x32xf32>
    %c1_127 = arith.constant 1 : index
    %c0_128 = arith.constant 0 : index
    %c0_129 = arith.constant 0 : index
    %321 = vector.load %arg38[%c1_127, %c0_128, %c0_129] : memref<2x1x32xf32, #tpu.memory_space<vmem>>, vector<1x1x32xf32>
    %322 = vector.shape_cast %321 : vector<1x1x32xf32> to vector<1x32xf32>
    %c1_130 = arith.constant 1 : index
    %c0_131 = arith.constant 0 : index
    %c0_132 = arith.constant 0 : index
    %323 = vector.load %arg37[%c1_130, %c0_131, %c0_132] : memref<2x1x32xf32, #tpu.memory_space<vmem>>, vector<1x1x32xf32>
    %324 = vector.shape_cast %323 : vector<1x1x32xf32> to vector<1x32xf32>
    %cst_133 = arith.constant dense<0.000000e+00> : vector<32xf32>
    %325 = vector.multi_reduction <add>, %320, %cst_133 [1] : vector<32x32xf32> to vector<32xf32>
    %326 = vector.shape_cast %325 : vector<32xf32> to vector<32x1xf32>
    %cst_134 = arith.constant 3.200000e+01 : f32
    %327 = vector.broadcast %cst_134 : f32 to vector<32x1xf32>
    %328 = arith.divf %326, %327 : vector<32x1xf32>
    %329 = vector.broadcast %328 : vector<32x1xf32> to vector<32x32xf32>
    %330 = arith.subf %320, %329 : vector<32x32xf32>
    %331 = arith.mulf %330, %330 : vector<32x32xf32>
    %cst_135 = arith.constant dense<0.000000e+00> : vector<32xf32>
    %332 = vector.multi_reduction <add>, %331, %cst_135 [1] : vector<32x32xf32> to vector<32xf32>
    %333 = vector.shape_cast %332 : vector<32xf32> to vector<32x1xf32>
    %cst_136 = arith.constant 3.200000e+01 : f32
    %334 = vector.broadcast %cst_136 : f32 to vector<32x1xf32>
    %335 = arith.divf %333, %334 : vector<32x1xf32>
    %cst_137 = arith.constant 9.99999974E-6 : f32
    %336 = vector.broadcast %cst_137 : f32 to vector<32x1xf32>
    %337 = arith.addf %335, %336 : vector<32x1xf32>
    %338 = math.rsqrt %337 : vector<32x1xf32>
    %339 = vector.broadcast %338 : vector<32x1xf32> to vector<32x32xf32>
    %340 = arith.mulf %330, %339 : vector<32x32xf32>
    %341 = vector.broadcast %322 : vector<1x32xf32> to vector<32x32xf32>
    %342 = arith.mulf %340, %341 : vector<32x32xf32>
    %343 = vector.broadcast %324 : vector<1x32xf32> to vector<32x32xf32>
    %344 = arith.addf %342, %343 : vector<32x32xf32>
    %c1_138 = arith.constant 1 : index
    %c0_139 = arith.constant 0 : index
    %c0_140 = arith.constant 0 : index
    %345 = vector.load %arg34[%c1_138, %c0_139, %c0_140] : memref<2x32x64xbf16, #tpu.memory_space<vmem>>, vector<1x32x64xbf16>
    %346 = vector.shape_cast %345 : vector<1x32x64xbf16> to vector<32x64xbf16>
    %c1_141 = arith.constant 1 : index
    %c0_142 = arith.constant 0 : index
    %c0_143 = arith.constant 0 : index
    %347 = vector.load %arg33[%c1_141, %c0_142, %c0_143] : memref<2x1x64xf32, #tpu.memory_space<vmem>>, vector<1x1x64xf32>
    %348 = vector.shape_cast %347 : vector<1x1x64xf32> to vector<1x64xf32>
    %349 = arith.truncf %344 : vector<32x32xf32> to vector<32x32xbf16>
    %cst_144 = arith.constant dense<0.000000e+00> : vector<32x64xf32>
    %350 = tpu.matmul %349, %346, %cst_144 {dimension_numbers = #tpu.dot_dimension_numbers<[1], [0], [0], [1], [0, 0, 1, 1], [], []>} : vector<32x32xbf16>, vector<32x64xbf16>, vector<32x64xf32> -> vector<32x64xf32>
    %351 = vector.broadcast %348 : vector<1x64xf32> to vector<32x64xf32>
    %352 = arith.addf %350, %351 : vector<32x64xf32>
    %cst_145 = arith.constant 0.000000e+00 : f32
    %353 = vector.broadcast %cst_145 : f32 to vector<32x64xf32>
    %354 = arith.maximumf %352, %353 : vector<32x64xf32>
    %c1_146 = arith.constant 1 : index
    %c0_147 = arith.constant 0 : index
    %c0_148 = arith.constant 0 : index
    %355 = vector.load %arg36[%c1_146, %c0_147, %c0_148] : memref<2x64x32xbf16, #tpu.memory_space<vmem>>, vector<1x64x32xbf16>
    %356 = vector.shape_cast %355 : vector<1x64x32xbf16> to vector<64x32xbf16>
    %c1_149 = arith.constant 1 : index
    %c0_150 = arith.constant 0 : index
    %c0_151 = arith.constant 0 : index
    %357 = vector.load %arg35[%c1_149, %c0_150, %c0_151] : memref<2x1x32xf32, #tpu.memory_space<vmem>>, vector<1x1x32xf32>
    %358 = vector.shape_cast %357 : vector<1x1x32xf32> to vector<1x32xf32>
    %359 = arith.truncf %354 : vector<32x64xf32> to vector<32x64xbf16>
    %cst_152 = arith.constant dense<0.000000e+00> : vector<32x32xf32>
    %360 = tpu.matmul %359, %356, %cst_152 {dimension_numbers = #tpu.dot_dimension_numbers<[1], [0], [0], [1], [0, 0, 1, 1], [], []>} : vector<32x64xbf16>, vector<64x32xbf16>, vector<32x32xf32> -> vector<32x32xf32>
    %361 = vector.broadcast %358 : vector<1x32xf32> to vector<32x32xf32>
    %362 = arith.addf %360, %361 : vector<32x32xf32>
    %363 = arith.addf %344, %362 : vector<32x32xf32>
    %c1_153 = arith.constant 1 : index
    %c0_154 = arith.constant 0 : index
    %c0_155 = arith.constant 0 : index
    %364 = vector.load %arg40[%c1_153, %c0_154, %c0_155] : memref<2x1x32xf32, #tpu.memory_space<vmem>>, vector<1x1x32xf32>
    %365 = vector.shape_cast %364 : vector<1x1x32xf32> to vector<1x32xf32>
    %c1_156 = arith.constant 1 : index
    %c0_157 = arith.constant 0 : index
    %c0_158 = arith.constant 0 : index
    %366 = vector.load %arg39[%c1_156, %c0_157, %c0_158] : memref<2x1x32xf32, #tpu.memory_space<vmem>>, vector<1x1x32xf32>
    %367 = vector.shape_cast %366 : vector<1x1x32xf32> to vector<1x32xf32>
    %cst_159 = arith.constant dense<0.000000e+00> : vector<32xf32>
    %368 = vector.multi_reduction <add>, %363, %cst_159 [1] : vector<32x32xf32> to vector<32xf32>
    %369 = vector.shape_cast %368 : vector<32xf32> to vector<32x1xf32>
    %cst_160 = arith.constant 3.200000e+01 : f32
    %370 = vector.broadcast %cst_160 : f32 to vector<32x1xf32>
    %371 = arith.divf %369, %370 : vector<32x1xf32>
    %372 = vector.broadcast %371 : vector<32x1xf32> to vector<32x32xf32>
    %373 = arith.subf %363, %372 : vector<32x32xf32>
    %374 = arith.mulf %373, %373 : vector<32x32xf32>
    %cst_161 = arith.constant dense<0.000000e+00> : vector<32xf32>
    %375 = vector.multi_reduction <add>, %374, %cst_161 [1] : vector<32x32xf32> to vector<32xf32>
    %376 = vector.shape_cast %375 : vector<32xf32> to vector<32x1xf32>
    %cst_162 = arith.constant 3.200000e+01 : f32
    %377 = vector.broadcast %cst_162 : f32 to vector<32x1xf32>
    %378 = arith.divf %376, %377 : vector<32x1xf32>
    %cst_163 = arith.constant 9.99999974E-6 : f32
    %379 = vector.broadcast %cst_163 : f32 to vector<32x1xf32>
    %380 = arith.addf %378, %379 : vector<32x1xf32>
    %381 = math.rsqrt %380 : vector<32x1xf32>
    %382 = vector.broadcast %381 : vector<32x1xf32> to vector<32x32xf32>
    %383 = arith.mulf %373, %382 : vector<32x32xf32>
    %384 = vector.broadcast %365 : vector<1x32xf32> to vector<32x32xf32>
    %385 = arith.mulf %383, %384 : vector<32x32xf32>
    %386 = vector.broadcast %367 : vector<1x32xf32> to vector<32x32xf32>
    %387 = arith.addf %385, %386 : vector<32x32xf32>
    %c0_164 = arith.constant 0 : index
    %c0_165 = arith.constant 0 : index
    %388 = vector.load %arg46[%c0_164, %c0_165] : memref<1x32xf32, #tpu.memory_space<vmem>>, vector<1x32xf32>
    %c0_166 = arith.constant 0 : index
    %c0_167 = arith.constant 0 : index
    %389 = vector.load %arg45[%c0_166, %c0_167] : memref<1x32xf32, #tpu.memory_space<vmem>>, vector<1x32xf32>
    %cst_168 = arith.constant dense<0.000000e+00> : vector<32xf32>
    %390 = vector.multi_reduction <add>, %387, %cst_168 [1] : vector<32x32xf32> to vector<32xf32>
    %391 = vector.shape_cast %390 : vector<32xf32> to vector<32x1xf32>
    %cst_169 = arith.constant 3.200000e+01 : f32
    %392 = vector.broadcast %cst_169 : f32 to vector<32x1xf32>
    %393 = arith.divf %391, %392 : vector<32x1xf32>
    %394 = vector.broadcast %393 : vector<32x1xf32> to vector<32x32xf32>
    %395 = arith.subf %387, %394 : vector<32x32xf32>
    %396 = arith.mulf %395, %395 : vector<32x32xf32>
    %cst_170 = arith.constant dense<0.000000e+00> : vector<32xf32>
    %397 = vector.multi_reduction <add>, %396, %cst_170 [1] : vector<32x32xf32> to vector<32xf32>
    %398 = vector.shape_cast %397 : vector<32xf32> to vector<32x1xf32>
    %cst_171 = arith.constant 3.200000e+01 : f32
    %399 = vector.broadcast %cst_171 : f32 to vector<32x1xf32>
    %400 = arith.divf %398, %399 : vector<32x1xf32>
    %cst_172 = arith.constant 9.99999974E-6 : f32
    %401 = vector.broadcast %cst_172 : f32 to vector<32x1xf32>
    %402 = arith.addf %400, %401 : vector<32x1xf32>
    %403 = math.rsqrt %402 : vector<32x1xf32>
    %404 = vector.broadcast %403 : vector<32x1xf32> to vector<32x32xf32>
    %405 = arith.mulf %395, %404 : vector<32x32xf32>
    %406 = vector.broadcast %388 : vector<1x32xf32> to vector<32x32xf32>
    %407 = arith.mulf %405, %406 : vector<32x32xf32>
    %408 = vector.broadcast %389 : vector<1x32xf32> to vector<32x32xf32>
    %409 = arith.addf %407, %408 : vector<32x32xf32>
    %c0_173 = arith.constant 0 : index
    %c0_174 = arith.constant 0 : index
    %c0_175 = arith.constant 0 : index
    %410 = vector.load %arg2[%c0_173, %c0_174, %c0_175] : memref<2x8x48xf32, #tpu.memory_space<vmem>>, vector<2x8x48xf32>
    %411 = vector.shape_cast %410 : vector<2x8x48xf32> to vector<16x48xf32>
    %c0_176 = arith.constant 0 : index
    %c0_177 = arith.constant 0 : index
    %412 = vector.load %arg52[%c0_176, %c0_177] : memref<1x48xf32, #tpu.memory_space<vmem>>, vector<1x48xf32>
    %c0_178 = arith.constant 0 : index
    %c0_179 = arith.constant 0 : index
    %413 = vector.load %arg51[%c0_178, %c0_179] : memref<1x48xf32, #tpu.memory_space<vmem>>, vector<1x48xf32>
    %cst_180 = arith.constant dense<0.000000e+00> : vector<16xf32>
    %414 = vector.multi_reduction <add>, %411, %cst_180 [1] : vector<16x48xf32> to vector<16xf32>
    %415 = vector.shape_cast %414 : vector<16xf32> to vector<16x1xf32>
    %cst_181 = arith.constant 4.800000e+01 : f32
    %416 = vector.broadcast %cst_181 : f32 to vector<16x1xf32>
    %417 = arith.divf %415, %416 : vector<16x1xf32>
    %418 = vector.broadcast %417 : vector<16x1xf32> to vector<16x48xf32>
    %419 = arith.subf %411, %418 : vector<16x48xf32>
    %420 = arith.mulf %419, %419 : vector<16x48xf32>
    %cst_182 = arith.constant dense<0.000000e+00> : vector<16xf32>
    %421 = vector.multi_reduction <add>, %420, %cst_182 [1] : vector<16x48xf32> to vector<16xf32>
    %422 = vector.shape_cast %421 : vector<16xf32> to vector<16x1xf32>
    %cst_183 = arith.constant 4.800000e+01 : f32
    %423 = vector.broadcast %cst_183 : f32 to vector<16x1xf32>
    %424 = arith.divf %422, %423 : vector<16x1xf32>
    %cst_184 = arith.constant 9.99999996E-13 : f32
    %425 = vector.broadcast %cst_184 : f32 to vector<16x1xf32>
    %426 = arith.addf %424, %425 : vector<16x1xf32>
    %427 = math.rsqrt %426 : vector<16x1xf32>
    %428 = vector.broadcast %427 : vector<16x1xf32> to vector<16x48xf32>
    %429 = arith.mulf %419, %428 : vector<16x48xf32>
    %430 = vector.broadcast %412 : vector<1x48xf32> to vector<16x48xf32>
    %431 = arith.mulf %429, %430 : vector<16x48xf32>
    %432 = vector.broadcast %413 : vector<1x48xf32> to vector<16x48xf32>
    %433 = arith.addf %431, %432 : vector<16x48xf32>
    %c0_185 = arith.constant 0 : index
    %c0_186 = arith.constant 0 : index
    %434 = vector.load %arg8[%c0_185, %c0_186] : memref<48x32xbf16, #tpu.memory_space<vmem>>, vector<48x32xbf16>
    %c0_187 = arith.constant 0 : index
    %c0_188 = arith.constant 0 : index
    %435 = vector.load %arg7[%c0_187, %c0_188] : memref<1x32xf32, #tpu.memory_space<vmem>>, vector<1x32xf32>
    %436 = arith.truncf %433 : vector<16x48xf32> to vector<16x48xbf16>
    %cst_189 = arith.constant dense<0.000000e+00> : vector<16x32xf32>
    %437 = tpu.matmul %436, %434, %cst_189 {dimension_numbers = #tpu.dot_dimension_numbers<[1], [0], [0], [1], [0, 0, 1, 1], [], []>} : vector<16x48xbf16>, vector<48x32xbf16>, vector<16x32xf32> -> vector<16x32xf32>
    %438 = vector.broadcast %435 : vector<1x32xf32> to vector<16x32xf32>
    %439 = arith.addf %437, %438 : vector<16x32xf32>
    %c0_190 = arith.constant 0 : index
    %c0_191 = arith.constant 0 : index
    %440 = vector.load %arg6[%c0_190, %c0_191] : memref<8x32xf32, #tpu.memory_space<vmem>>, vector<8x32xf32>
    %441 = vector.shape_cast %439 : vector<16x32xf32> to vector<2x8x32xf32>
    %442 = vector.shape_cast %440 : vector<8x32xf32> to vector<1x8x32xf32>
    %443 = vector.broadcast %442 : vector<1x8x32xf32> to vector<2x8x32xf32>
    %444 = arith.addf %441, %443 : vector<2x8x32xf32>
    %445 = vector.shape_cast %444 : vector<2x8x32xf32> to vector<16x32xf32>
    %c0_192 = arith.constant 0 : index
    %c0_193 = arith.constant 0 : index
    %446 = vector.load %arg10[%c0_192, %c0_193] : memref<32x128xbf16, #tpu.memory_space<vmem>>, vector<32x128xbf16>
    %c0_194 = arith.constant 0 : index
    %c0_195 = arith.constant 0 : index
    %447 = vector.load %arg9[%c0_194, %c0_195] : memref<1x128xf32, #tpu.memory_space<vmem>>, vector<1x128xf32>
    %448 = arith.truncf %409 : vector<32x32xf32> to vector<32x32xbf16>
    %cst_196 = arith.constant dense<0.000000e+00> : vector<32x128xf32>
    %449 = tpu.matmul %448, %446, %cst_196 {dimension_numbers = #tpu.dot_dimension_numbers<[1], [0], [0], [1], [0, 0, 1, 1], [], []>} : vector<32x32xbf16>, vector<32x128xbf16>, vector<32x128xf32> -> vector<32x128xf32>
    %450 = vector.broadcast %447 : vector<1x128xf32> to vector<32x128xf32>
    %451 = arith.addf %449, %450 : vector<32x128xf32>
    %c0_197 = arith.constant 0 : index
    %c0_198 = arith.constant 0 : index
    %c0_199 = arith.constant 0 : index
    %452 = vector.load %arg28[%c0_197, %c0_198, %c0_199] : memref<2x32x96xbf16, #tpu.memory_space<vmem>>, vector<1x32x96xbf16>
    %453 = vector.shape_cast %452 : vector<1x32x96xbf16> to vector<32x96xbf16>
    %c0_200 = arith.constant 0 : index
    %c0_201 = arith.constant 0 : index
    %c0_202 = arith.constant 0 : index
    %454 = vector.load %arg27[%c0_200, %c0_201, %c0_202] : memref<2x1x96xf32, #tpu.memory_space<vmem>>, vector<1x1x96xf32>
    %455 = vector.shape_cast %454 : vector<1x1x96xf32> to vector<1x96xf32>
    %456 = arith.truncf %445 : vector<16x32xf32> to vector<16x32xbf16>
    %cst_203 = arith.constant dense<0.000000e+00> : vector<16x96xf32>
    %457 = tpu.matmul %456, %453, %cst_203 {dimension_numbers = #tpu.dot_dimension_numbers<[1], [0], [0], [1], [0, 0, 1, 1], [], []>} : vector<16x32xbf16>, vector<32x96xbf16>, vector<16x96xf32> -> vector<16x96xf32>
    %458 = vector.broadcast %455 : vector<1x96xf32> to vector<16x96xf32>
    %459 = arith.addf %457, %458 : vector<16x96xf32>
    %460 = vector.extract_strided_slice %459 {offsets = [0, 0], sizes = [16, 32], strides = [1, 1]} : vector<16x96xf32> to vector<16x32xf32>
    %461 = vector.extract_strided_slice %459 {offsets = [0, 32], sizes = [16, 32], strides = [1, 1]} : vector<16x96xf32> to vector<16x32xf32>
    %462 = vector.extract_strided_slice %459 {offsets = [0, 64], sizes = [16, 32], strides = [1, 1]} : vector<16x96xf32> to vector<16x32xf32>
    %463 = vector.shape_cast %460 : vector<16x32xf32> to vector<2x8x32xf32>
    %464 = arith.truncf %463 : vector<2x8x32xf32> to vector<2x8x32xbf16>
    %465 = vector.shape_cast %461 : vector<16x32xf32> to vector<2x8x32xf32>
    %466 = arith.truncf %465 : vector<2x8x32xf32> to vector<2x8x32xbf16>
    %467 = vector.shape_cast %462 : vector<16x32xf32> to vector<2x8x32xf32>
    %468 = arith.truncf %467 : vector<2x8x32xf32> to vector<2x8x32xbf16>
    %469 = vector.extract_strided_slice %464 {offsets = [0, 0, 0], sizes = [2, 8, 8], strides = [1, 1, 1]} : vector<2x8x32xbf16> to vector<2x8x8xbf16>
    %470 = vector.extract_strided_slice %466 {offsets = [0, 0, 0], sizes = [2, 8, 8], strides = [1, 1, 1]} : vector<2x8x32xbf16> to vector<2x8x8xbf16>
    "tpu.trace_start"() <{level = 10 : i32, message = "bqd,bkd->bqk"}> : () -> ()
    %cst_204 = arith.constant dense<0.000000e+00> : vector<2x8x8xf32>
    %471 = tpu.matmul %469, %470, %cst_204 {dimension_numbers = #tpu.dot_dimension_numbers<[2], [2], [1], [1], [0, 0, 0, 1, 1, 1], [0], [0]>} : vector<2x8x8xbf16>, vector<2x8x8xbf16>, vector<2x8x8xf32> -> vector<2x8x8xf32>
    "tpu.trace_stop"() : () -> ()
    %cst_205 = arith.constant 0.353553385 : f32
    %472 = vector.broadcast %cst_205 : f32 to vector<2x8x8xf32>
    %473 = arith.mulf %471, %472 : vector<2x8x8xf32>
    %474 = arith.addf %473, %1 : vector<2x8x8xf32>
    %cst_206 = arith.constant dense<0xFF800000> : vector<2x8xf32>
    %475 = vector.multi_reduction <maximumf>, %474, %cst_206 [2] : vector<2x8x8xf32> to vector<2x8xf32>
    %476 = vector.shape_cast %475 : vector<2x8xf32> to vector<2x8x1xf32>
    %477 = vector.broadcast %476 : vector<2x8x1xf32> to vector<2x8x8xf32>
    %478 = arith.subf %474, %477 : vector<2x8x8xf32>
    %479 = math.exp %478 : vector<2x8x8xf32>
    %cst_207 = arith.constant dense<0.000000e+00> : vector<2x8xf32>
    %480 = vector.multi_reduction <add>, %479, %cst_207 [2] : vector<2x8x8xf32> to vector<2x8xf32>
    %481 = vector.shape_cast %480 : vector<2x8xf32> to vector<2x8x1xf32>
    %482 = tpu.reciprocal %481 {approx = true} : vector<2x8x1xf32> -> vector<2x8x1xf32>
    %483 = vector.broadcast %482 : vector<2x8x1xf32> to vector<2x8x8xf32>
    %484 = arith.mulf %479, %483 : vector<2x8x8xf32>
    %485 = arith.truncf %484 : vector<2x8x8xf32> to vector<2x8x8xbf16>
    %486 = vector.extract_strided_slice %468 {offsets = [0, 0, 0], sizes = [2, 8, 8], strides = [1, 1, 1]} : vector<2x8x32xbf16> to vector<2x8x8xbf16>
    "tpu.trace_start"() <{level = 10 : i32, message = "bqk,bkd->bqd"}> : () -> ()
    %cst_208 = arith.constant dense<0.000000e+00> : vector<2x8x8xf32>
    %487 = tpu.matmul %485, %486, %cst_208 {dimension_numbers = #tpu.dot_dimension_numbers<[2], [1], [1], [2], [0, 0, 0, 1, 1, 2], [0], [0]>} : vector<2x8x8xbf16>, vector<2x8x8xbf16>, vector<2x8x8xf32> -> vector<2x8x8xf32>
    "tpu.trace_stop"() : () -> ()
    %488 = vector.extract_strided_slice %464 {offsets = [0, 0, 8], sizes = [2, 8, 8], strides = [1, 1, 1]} : vector<2x8x32xbf16> to vector<2x8x8xbf16>
    %489 = vector.extract_strided_slice %466 {offsets = [0, 0, 8], sizes = [2, 8, 8], strides = [1, 1, 1]} : vector<2x8x32xbf16> to vector<2x8x8xbf16>
    "tpu.trace_start"() <{level = 10 : i32, message = "bqd,bkd->bqk"}> : () -> ()
    %cst_209 = arith.constant dense<0.000000e+00> : vector<2x8x8xf32>
    %490 = tpu.matmul %488, %489, %cst_209 {dimension_numbers = #tpu.dot_dimension_numbers<[2], [2], [1], [1], [0, 0, 0, 1, 1, 1], [0], [0]>} : vector<2x8x8xbf16>, vector<2x8x8xbf16>, vector<2x8x8xf32> -> vector<2x8x8xf32>
    "tpu.trace_stop"() : () -> ()
    %cst_210 = arith.constant 0.353553385 : f32
    %491 = vector.broadcast %cst_210 : f32 to vector<2x8x8xf32>
    %492 = arith.mulf %490, %491 : vector<2x8x8xf32>
    %493 = arith.addf %492, %1 : vector<2x8x8xf32>
    %cst_211 = arith.constant dense<0xFF800000> : vector<2x8xf32>
    %494 = vector.multi_reduction <maximumf>, %493, %cst_211 [2] : vector<2x8x8xf32> to vector<2x8xf32>
    %495 = vector.shape_cast %494 : vector<2x8xf32> to vector<2x8x1xf32>
    %496 = vector.broadcast %495 : vector<2x8x1xf32> to vector<2x8x8xf32>
    %497 = arith.subf %493, %496 : vector<2x8x8xf32>
    %498 = math.exp %497 : vector<2x8x8xf32>
    %cst_212 = arith.constant dense<0.000000e+00> : vector<2x8xf32>
    %499 = vector.multi_reduction <add>, %498, %cst_212 [2] : vector<2x8x8xf32> to vector<2x8xf32>
    %500 = vector.shape_cast %499 : vector<2x8xf32> to vector<2x8x1xf32>
    %501 = tpu.reciprocal %500 {approx = true} : vector<2x8x1xf32> -> vector<2x8x1xf32>
    %502 = vector.broadcast %501 : vector<2x8x1xf32> to vector<2x8x8xf32>
    %503 = arith.mulf %498, %502 : vector<2x8x8xf32>
    %504 = arith.truncf %503 : vector<2x8x8xf32> to vector<2x8x8xbf16>
    %505 = vector.extract_strided_slice %468 {offsets = [0, 0, 8], sizes = [2, 8, 8], strides = [1, 1, 1]} : vector<2x8x32xbf16> to vector<2x8x8xbf16>
    "tpu.trace_start"() <{level = 10 : i32, message = "bqk,bkd->bqd"}> : () -> ()
    %cst_213 = arith.constant dense<0.000000e+00> : vector<2x8x8xf32>
    %506 = tpu.matmul %504, %505, %cst_213 {dimension_numbers = #tpu.dot_dimension_numbers<[2], [1], [1], [2], [0, 0, 0, 1, 1, 2], [0], [0]>} : vector<2x8x8xbf16>, vector<2x8x8xbf16>, vector<2x8x8xf32> -> vector<2x8x8xf32>
    "tpu.trace_stop"() : () -> ()
    %507 = vector.extract_strided_slice %464 {offsets = [0, 0, 16], sizes = [2, 8, 8], strides = [1, 1, 1]} : vector<2x8x32xbf16> to vector<2x8x8xbf16>
    %508 = vector.extract_strided_slice %466 {offsets = [0, 0, 16], sizes = [2, 8, 8], strides = [1, 1, 1]} : vector<2x8x32xbf16> to vector<2x8x8xbf16>
    "tpu.trace_start"() <{level = 10 : i32, message = "bqd,bkd->bqk"}> : () -> ()
    %cst_214 = arith.constant dense<0.000000e+00> : vector<2x8x8xf32>
    %509 = tpu.matmul %507, %508, %cst_214 {dimension_numbers = #tpu.dot_dimension_numbers<[2], [2], [1], [1], [0, 0, 0, 1, 1, 1], [0], [0]>} : vector<2x8x8xbf16>, vector<2x8x8xbf16>, vector<2x8x8xf32> -> vector<2x8x8xf32>
    "tpu.trace_stop"() : () -> ()
    %cst_215 = arith.constant 0.353553385 : f32
    %510 = vector.broadcast %cst_215 : f32 to vector<2x8x8xf32>
    %511 = arith.mulf %509, %510 : vector<2x8x8xf32>
    %512 = arith.addf %511, %1 : vector<2x8x8xf32>
    %cst_216 = arith.constant dense<0xFF800000> : vector<2x8xf32>
    %513 = vector.multi_reduction <maximumf>, %512, %cst_216 [2] : vector<2x8x8xf32> to vector<2x8xf32>
    %514 = vector.shape_cast %513 : vector<2x8xf32> to vector<2x8x1xf32>
    %515 = vector.broadcast %514 : vector<2x8x1xf32> to vector<2x8x8xf32>
    %516 = arith.subf %512, %515 : vector<2x8x8xf32>
    %517 = math.exp %516 : vector<2x8x8xf32>
    %cst_217 = arith.constant dense<0.000000e+00> : vector<2x8xf32>
    %518 = vector.multi_reduction <add>, %517, %cst_217 [2] : vector<2x8x8xf32> to vector<2x8xf32>
    %519 = vector.shape_cast %518 : vector<2x8xf32> to vector<2x8x1xf32>
    %520 = tpu.reciprocal %519 {approx = true} : vector<2x8x1xf32> -> vector<2x8x1xf32>
    %521 = vector.broadcast %520 : vector<2x8x1xf32> to vector<2x8x8xf32>
    %522 = arith.mulf %517, %521 : vector<2x8x8xf32>
    %523 = arith.truncf %522 : vector<2x8x8xf32> to vector<2x8x8xbf16>
    %524 = vector.extract_strided_slice %468 {offsets = [0, 0, 16], sizes = [2, 8, 8], strides = [1, 1, 1]} : vector<2x8x32xbf16> to vector<2x8x8xbf16>
    "tpu.trace_start"() <{level = 10 : i32, message = "bqk,bkd->bqd"}> : () -> ()
    %cst_218 = arith.constant dense<0.000000e+00> : vector<2x8x8xf32>
    %525 = tpu.matmul %523, %524, %cst_218 {dimension_numbers = #tpu.dot_dimension_numbers<[2], [1], [1], [2], [0, 0, 0, 1, 1, 2], [0], [0]>} : vector<2x8x8xbf16>, vector<2x8x8xbf16>, vector<2x8x8xf32> -> vector<2x8x8xf32>
    "tpu.trace_stop"() : () -> ()
    %526 = vector.extract_strided_slice %464 {offsets = [0, 0, 24], sizes = [2, 8, 8], strides = [1, 1, 1]} : vector<2x8x32xbf16> to vector<2x8x8xbf16>
    %527 = vector.extract_strided_slice %466 {offsets = [0, 0, 24], sizes = [2, 8, 8], strides = [1, 1, 1]} : vector<2x8x32xbf16> to vector<2x8x8xbf16>
    "tpu.trace_start"() <{level = 10 : i32, message = "bqd,bkd->bqk"}> : () -> ()
    %cst_219 = arith.constant dense<0.000000e+00> : vector<2x8x8xf32>
    %528 = tpu.matmul %526, %527, %cst_219 {dimension_numbers = #tpu.dot_dimension_numbers<[2], [2], [1], [1], [0, 0, 0, 1, 1, 1], [0], [0]>} : vector<2x8x8xbf16>, vector<2x8x8xbf16>, vector<2x8x8xf32> -> vector<2x8x8xf32>
    "tpu.trace_stop"() : () -> ()
    %cst_220 = arith.constant 0.353553385 : f32
    %529 = vector.broadcast %cst_220 : f32 to vector<2x8x8xf32>
    %530 = arith.mulf %528, %529 : vector<2x8x8xf32>
    %531 = arith.addf %530, %1 : vector<2x8x8xf32>
    %cst_221 = arith.constant dense<0xFF800000> : vector<2x8xf32>
    %532 = vector.multi_reduction <maximumf>, %531, %cst_221 [2] : vector<2x8x8xf32> to vector<2x8xf32>
    %533 = vector.shape_cast %532 : vector<2x8xf32> to vector<2x8x1xf32>
    %534 = vector.broadcast %533 : vector<2x8x1xf32> to vector<2x8x8xf32>
    %535 = arith.subf %531, %534 : vector<2x8x8xf32>
    %536 = math.exp %535 : vector<2x8x8xf32>
    %cst_222 = arith.constant dense<0.000000e+00> : vector<2x8xf32>
    %537 = vector.multi_reduction <add>, %536, %cst_222 [2] : vector<2x8x8xf32> to vector<2x8xf32>
    %538 = vector.shape_cast %537 : vector<2x8xf32> to vector<2x8x1xf32>
    %539 = tpu.reciprocal %538 {approx = true} : vector<2x8x1xf32> -> vector<2x8x1xf32>
    %540 = vector.broadcast %539 : vector<2x8x1xf32> to vector<2x8x8xf32>
    %541 = arith.mulf %536, %540 : vector<2x8x8xf32>
    %542 = arith.truncf %541 : vector<2x8x8xf32> to vector<2x8x8xbf16>
    %543 = vector.extract_strided_slice %468 {offsets = [0, 0, 24], sizes = [2, 8, 8], strides = [1, 1, 1]} : vector<2x8x32xbf16> to vector<2x8x8xbf16>
    "tpu.trace_start"() <{level = 10 : i32, message = "bqk,bkd->bqd"}> : () -> ()
    %cst_223 = arith.constant dense<0.000000e+00> : vector<2x8x8xf32>
    %544 = tpu.matmul %542, %543, %cst_223 {dimension_numbers = #tpu.dot_dimension_numbers<[2], [1], [1], [2], [0, 0, 0, 1, 1, 2], [0], [0]>} : vector<2x8x8xbf16>, vector<2x8x8xbf16>, vector<2x8x8xf32> -> vector<2x8x8xf32>
    "tpu.trace_stop"() : () -> ()
    %545 = tpu.concatenate %487, %506, %525, %544 in 2 : vector<2x8x8xf32>, vector<2x8x8xf32>, vector<2x8x8xf32>, vector<2x8x8xf32> -> vector<2x8x32xf32>
    %546 = vector.shape_cast %545 : vector<2x8x32xf32> to vector<16x32xf32>
    %c0_224 = arith.constant 0 : index
    %c0_225 = arith.constant 0 : index
    %c0_226 = arith.constant 0 : index
    %547 = vector.load %arg26[%c0_224, %c0_225, %c0_226] : memref<2x32x32xbf16, #tpu.memory_space<vmem>>, vector<1x32x32xbf16>
    %548 = vector.shape_cast %547 : vector<1x32x32xbf16> to vector<32x32xbf16>
    %c0_227 = arith.constant 0 : index
    %c0_228 = arith.constant 0 : index
    %c0_229 = arith.constant 0 : index
    %549 = vector.load %arg25[%c0_227, %c0_228, %c0_229] : memref<2x1x32xf32, #tpu.memory_space<vmem>>, vector<1x1x32xf32>
    %550 = vector.shape_cast %549 : vector<1x1x32xf32> to vector<1x32xf32>
    %551 = arith.truncf %546 : vector<16x32xf32> to vector<16x32xbf16>
    %cst_230 = arith.constant dense<0.000000e+00> : vector<16x32xf32>
    %552 = tpu.matmul %551, %548, %cst_230 {dimension_numbers = #tpu.dot_dimension_numbers<[1], [0], [0], [1], [0, 0, 1, 1], [], []>} : vector<16x32xbf16>, vector<32x32xbf16>, vector<16x32xf32> -> vector<16x32xf32>
    %553 = vector.broadcast %550 : vector<1x32xf32> to vector<16x32xf32>
    %554 = arith.addf %552, %553 : vector<16x32xf32>
    %555 = arith.addf %445, %554 : vector<16x32xf32>
    %c0_231 = arith.constant 0 : index
    %c0_232 = arith.constant 0 : index
    %c0_233 = arith.constant 0 : index
    %556 = vector.load %arg20[%c0_231, %c0_232, %c0_233] : memref<2x1x32xf32, #tpu.memory_space<vmem>>, vector<1x1x32xf32>
    %557 = vector.shape_cast %556 : vector<1x1x32xf32> to vector<1x32xf32>
    %c0_234 = arith.constant 0 : index
    %c0_235 = arith.constant 0 : index
    %c0_236 = arith.constant 0 : index
    %558 = vector.load %arg19[%c0_234, %c0_235, %c0_236] : memref<2x1x32xf32, #tpu.memory_space<vmem>>, vector<1x1x32xf32>
    %559 = vector.shape_cast %558 : vector<1x1x32xf32> to vector<1x32xf32>
    %cst_237 = arith.constant dense<0.000000e+00> : vector<16xf32>
    %560 = vector.multi_reduction <add>, %555, %cst_237 [1] : vector<16x32xf32> to vector<16xf32>
    %561 = vector.shape_cast %560 : vector<16xf32> to vector<16x1xf32>
    %cst_238 = arith.constant 3.200000e+01 : f32
    %562 = vector.broadcast %cst_238 : f32 to vector<16x1xf32>
    %563 = arith.divf %561, %562 : vector<16x1xf32>
    %564 = vector.broadcast %563 : vector<16x1xf32> to vector<16x32xf32>
    %565 = arith.subf %555, %564 : vector<16x32xf32>
    %566 = arith.mulf %565, %565 : vector<16x32xf32>
    %cst_239 = arith.constant dense<0.000000e+00> : vector<16xf32>
    %567 = vector.multi_reduction <add>, %566, %cst_239 [1] : vector<16x32xf32> to vector<16xf32>
    %568 = vector.shape_cast %567 : vector<16xf32> to vector<16x1xf32>
    %cst_240 = arith.constant 3.200000e+01 : f32
    %569 = vector.broadcast %cst_240 : f32 to vector<16x1xf32>
    %570 = arith.divf %568, %569 : vector<16x1xf32>
    %cst_241 = arith.constant 9.99999974E-6 : f32
    %571 = vector.broadcast %cst_241 : f32 to vector<16x1xf32>
    %572 = arith.addf %570, %571 : vector<16x1xf32>
    %573 = math.rsqrt %572 : vector<16x1xf32>
    %574 = vector.broadcast %573 : vector<16x1xf32> to vector<16x32xf32>
    %575 = arith.mulf %565, %574 : vector<16x32xf32>
    %576 = vector.broadcast %557 : vector<1x32xf32> to vector<16x32xf32>
    %577 = arith.mulf %575, %576 : vector<16x32xf32>
    %578 = vector.broadcast %559 : vector<1x32xf32> to vector<16x32xf32>
    %579 = arith.addf %577, %578 : vector<16x32xf32>
    %c0_242 = arith.constant 0 : index
    %c0_243 = arith.constant 0 : index
    %c0_244 = arith.constant 0 : index
    %580 = vector.load %arg14[%c0_242, %c0_243, %c0_244] : memref<2x32x32xbf16, #tpu.memory_space<vmem>>, vector<1x32x32xbf16>
    %581 = vector.shape_cast %580 : vector<1x32x32xbf16> to vector<32x32xbf16>
    %c0_245 = arith.constant 0 : index
    %c0_246 = arith.constant 0 : index
    %c0_247 = arith.constant 0 : index
    %582 = vector.load %arg13[%c0_245, %c0_246, %c0_247] : memref<2x1x32xf32, #tpu.memory_space<vmem>>, vector<1x1x32xf32>
    %583 = vector.shape_cast %582 : vector<1x1x32xf32> to vector<1x32xf32>
    %584 = arith.truncf %579 : vector<16x32xf32> to vector<16x32xbf16>
    %cst_248 = arith.constant dense<0.000000e+00> : vector<16x32xf32>
    %585 = tpu.matmul %584, %581, %cst_248 {dimension_numbers = #tpu.dot_dimension_numbers<[1], [0], [0], [1], [0, 0, 1, 1], [], []>} : vector<16x32xbf16>, vector<32x32xbf16>, vector<16x32xf32> -> vector<16x32xf32>
    %586 = vector.broadcast %583 : vector<1x32xf32> to vector<16x32xf32>
    %587 = arith.addf %585, %586 : vector<16x32xf32>
    %588 = vector.extract_strided_slice %451 {offsets = [0, 0], sizes = [32, 32], strides = [1, 1]} : vector<32x128xf32> to vector<32x32xf32>
    %589 = vector.extract_strided_slice %451 {offsets = [0, 32], sizes = [32, 32], strides = [1, 1]} : vector<32x128xf32> to vector<32x32xf32>
    %590 = vector.shape_cast %587 : vector<16x32xf32> to vector<2x8x32xf32>
    %591 = arith.truncf %590 : vector<2x8x32xf32> to vector<2x8x32xbf16>
    %592 = vector.shape_cast %588 : vector<32x32xf32> to vector<2x16x32xf32>
    %593 = arith.truncf %592 : vector<2x16x32xf32> to vector<2x16x32xbf16>
    %594 = vector.shape_cast %589 : vector<32x32xf32> to vector<2x16x32xf32>
    %595 = arith.truncf %594 : vector<2x16x32xf32> to vector<2x16x32xbf16>
    %596 = vector.extract_strided_slice %591 {offsets = [0, 0, 0], sizes = [2, 8, 8], strides = [1, 1, 1]} : vector<2x8x32xbf16> to vector<2x8x8xbf16>
    %597 = vector.extract_strided_slice %593 {offsets = [0, 0, 0], sizes = [2, 16, 8], strides = [1, 1, 1]} : vector<2x16x32xbf16> to vector<2x16x8xbf16>
    "tpu.trace_start"() <{level = 10 : i32, message = "bqd,bkd->bqk"}> : () -> ()
    %cst_249 = arith.constant dense<0.000000e+00> : vector<2x8x16xf32>
    %598 = tpu.matmul %596, %597, %cst_249 {dimension_numbers = #tpu.dot_dimension_numbers<[2], [2], [1], [1], [0, 0, 0, 1, 1, 1], [0], [0]>} : vector<2x8x8xbf16>, vector<2x16x8xbf16>, vector<2x8x16xf32> -> vector<2x8x16xf32>
    "tpu.trace_stop"() : () -> ()
    %cst_250 = arith.constant 0.353553385 : f32
    %599 = vector.broadcast %cst_250 : f32 to vector<2x8x16xf32>
    %600 = arith.mulf %598, %599 : vector<2x8x16xf32>
    %601 = vector.broadcast %0 : vector<2x1x16xf32> to vector<2x8x16xf32>
    %602 = arith.addf %600, %601 : vector<2x8x16xf32>
    %cst_251 = arith.constant dense<0xFF800000> : vector<2x8xf32>
    %603 = vector.multi_reduction <maximumf>, %602, %cst_251 [2] : vector<2x8x16xf32> to vector<2x8xf32>
    %604 = vector.shape_cast %603 : vector<2x8xf32> to vector<2x8x1xf32>
    %605 = vector.broadcast %604 : vector<2x8x1xf32> to vector<2x8x16xf32>
    %606 = arith.subf %602, %605 : vector<2x8x16xf32>
    %607 = math.exp %606 : vector<2x8x16xf32>
    %cst_252 = arith.constant dense<0.000000e+00> : vector<2x8xf32>
    %608 = vector.multi_reduction <add>, %607, %cst_252 [2] : vector<2x8x16xf32> to vector<2x8xf32>
    %609 = vector.shape_cast %608 : vector<2x8xf32> to vector<2x8x1xf32>
    %610 = tpu.reciprocal %609 {approx = true} : vector<2x8x1xf32> -> vector<2x8x1xf32>
    %611 = vector.broadcast %610 : vector<2x8x1xf32> to vector<2x8x16xf32>
    %612 = arith.mulf %607, %611 : vector<2x8x16xf32>
    %613 = arith.truncf %612 : vector<2x8x16xf32> to vector<2x8x16xbf16>
    %614 = vector.extract_strided_slice %595 {offsets = [0, 0, 0], sizes = [2, 16, 8], strides = [1, 1, 1]} : vector<2x16x32xbf16> to vector<2x16x8xbf16>
    "tpu.trace_start"() <{level = 10 : i32, message = "bqk,bkd->bqd"}> : () -> ()
    %cst_253 = arith.constant dense<0.000000e+00> : vector<2x8x8xf32>
    %615 = tpu.matmul %613, %614, %cst_253 {dimension_numbers = #tpu.dot_dimension_numbers<[2], [1], [1], [2], [0, 0, 0, 1, 1, 2], [0], [0]>} : vector<2x8x16xbf16>, vector<2x16x8xbf16>, vector<2x8x8xf32> -> vector<2x8x8xf32>
    "tpu.trace_stop"() : () -> ()
    %616 = vector.extract_strided_slice %591 {offsets = [0, 0, 8], sizes = [2, 8, 8], strides = [1, 1, 1]} : vector<2x8x32xbf16> to vector<2x8x8xbf16>
    %617 = vector.extract_strided_slice %593 {offsets = [0, 0, 8], sizes = [2, 16, 8], strides = [1, 1, 1]} : vector<2x16x32xbf16> to vector<2x16x8xbf16>
    "tpu.trace_start"() <{level = 10 : i32, message = "bqd,bkd->bqk"}> : () -> ()
    %cst_254 = arith.constant dense<0.000000e+00> : vector<2x8x16xf32>
    %618 = tpu.matmul %616, %617, %cst_254 {dimension_numbers = #tpu.dot_dimension_numbers<[2], [2], [1], [1], [0, 0, 0, 1, 1, 1], [0], [0]>} : vector<2x8x8xbf16>, vector<2x16x8xbf16>, vector<2x8x16xf32> -> vector<2x8x16xf32>
    "tpu.trace_stop"() : () -> ()
    %cst_255 = arith.constant 0.353553385 : f32
    %619 = vector.broadcast %cst_255 : f32 to vector<2x8x16xf32>
    %620 = arith.mulf %618, %619 : vector<2x8x16xf32>
    %621 = vector.broadcast %0 : vector<2x1x16xf32> to vector<2x8x16xf32>
    %622 = arith.addf %620, %621 : vector<2x8x16xf32>
    %cst_256 = arith.constant dense<0xFF800000> : vector<2x8xf32>
    %623 = vector.multi_reduction <maximumf>, %622, %cst_256 [2] : vector<2x8x16xf32> to vector<2x8xf32>
    %624 = vector.shape_cast %623 : vector<2x8xf32> to vector<2x8x1xf32>
    %625 = vector.broadcast %624 : vector<2x8x1xf32> to vector<2x8x16xf32>
    %626 = arith.subf %622, %625 : vector<2x8x16xf32>
    %627 = math.exp %626 : vector<2x8x16xf32>
    %cst_257 = arith.constant dense<0.000000e+00> : vector<2x8xf32>
    %628 = vector.multi_reduction <add>, %627, %cst_257 [2] : vector<2x8x16xf32> to vector<2x8xf32>
    %629 = vector.shape_cast %628 : vector<2x8xf32> to vector<2x8x1xf32>
    %630 = tpu.reciprocal %629 {approx = true} : vector<2x8x1xf32> -> vector<2x8x1xf32>
    %631 = vector.broadcast %630 : vector<2x8x1xf32> to vector<2x8x16xf32>
    %632 = arith.mulf %627, %631 : vector<2x8x16xf32>
    %633 = arith.truncf %632 : vector<2x8x16xf32> to vector<2x8x16xbf16>
    %634 = vector.extract_strided_slice %595 {offsets = [0, 0, 8], sizes = [2, 16, 8], strides = [1, 1, 1]} : vector<2x16x32xbf16> to vector<2x16x8xbf16>
    "tpu.trace_start"() <{level = 10 : i32, message = "bqk,bkd->bqd"}> : () -> ()
    %cst_258 = arith.constant dense<0.000000e+00> : vector<2x8x8xf32>
    %635 = tpu.matmul %633, %634, %cst_258 {dimension_numbers = #tpu.dot_dimension_numbers<[2], [1], [1], [2], [0, 0, 0, 1, 1, 2], [0], [0]>} : vector<2x8x16xbf16>, vector<2x16x8xbf16>, vector<2x8x8xf32> -> vector<2x8x8xf32>
    "tpu.trace_stop"() : () -> ()
    %636 = vector.extract_strided_slice %591 {offsets = [0, 0, 16], sizes = [2, 8, 8], strides = [1, 1, 1]} : vector<2x8x32xbf16> to vector<2x8x8xbf16>
    %637 = vector.extract_strided_slice %593 {offsets = [0, 0, 16], sizes = [2, 16, 8], strides = [1, 1, 1]} : vector<2x16x32xbf16> to vector<2x16x8xbf16>
    "tpu.trace_start"() <{level = 10 : i32, message = "bqd,bkd->bqk"}> : () -> ()
    %cst_259 = arith.constant dense<0.000000e+00> : vector<2x8x16xf32>
    %638 = tpu.matmul %636, %637, %cst_259 {dimension_numbers = #tpu.dot_dimension_numbers<[2], [2], [1], [1], [0, 0, 0, 1, 1, 1], [0], [0]>} : vector<2x8x8xbf16>, vector<2x16x8xbf16>, vector<2x8x16xf32> -> vector<2x8x16xf32>
    "tpu.trace_stop"() : () -> ()
    %cst_260 = arith.constant 0.353553385 : f32
    %639 = vector.broadcast %cst_260 : f32 to vector<2x8x16xf32>
    %640 = arith.mulf %638, %639 : vector<2x8x16xf32>
    %641 = vector.broadcast %0 : vector<2x1x16xf32> to vector<2x8x16xf32>
    %642 = arith.addf %640, %641 : vector<2x8x16xf32>
    %cst_261 = arith.constant dense<0xFF800000> : vector<2x8xf32>
    %643 = vector.multi_reduction <maximumf>, %642, %cst_261 [2] : vector<2x8x16xf32> to vector<2x8xf32>
    %644 = vector.shape_cast %643 : vector<2x8xf32> to vector<2x8x1xf32>
    %645 = vector.broadcast %644 : vector<2x8x1xf32> to vector<2x8x16xf32>
    %646 = arith.subf %642, %645 : vector<2x8x16xf32>
    %647 = math.exp %646 : vector<2x8x16xf32>
    %cst_262 = arith.constant dense<0.000000e+00> : vector<2x8xf32>
    %648 = vector.multi_reduction <add>, %647, %cst_262 [2] : vector<2x8x16xf32> to vector<2x8xf32>
    %649 = vector.shape_cast %648 : vector<2x8xf32> to vector<2x8x1xf32>
    %650 = tpu.reciprocal %649 {approx = true} : vector<2x8x1xf32> -> vector<2x8x1xf32>
    %651 = vector.broadcast %650 : vector<2x8x1xf32> to vector<2x8x16xf32>
    %652 = arith.mulf %647, %651 : vector<2x8x16xf32>
    %653 = arith.truncf %652 : vector<2x8x16xf32> to vector<2x8x16xbf16>
    %654 = vector.extract_strided_slice %595 {offsets = [0, 0, 16], sizes = [2, 16, 8], strides = [1, 1, 1]} : vector<2x16x32xbf16> to vector<2x16x8xbf16>
    "tpu.trace_start"() <{level = 10 : i32, message = "bqk,bkd->bqd"}> : () -> ()
    %cst_263 = arith.constant dense<0.000000e+00> : vector<2x8x8xf32>
    %655 = tpu.matmul %653, %654, %cst_263 {dimension_numbers = #tpu.dot_dimension_numbers<[2], [1], [1], [2], [0, 0, 0, 1, 1, 2], [0], [0]>} : vector<2x8x16xbf16>, vector<2x16x8xbf16>, vector<2x8x8xf32> -> vector<2x8x8xf32>
    "tpu.trace_stop"() : () -> ()
    %656 = vector.extract_strided_slice %591 {offsets = [0, 0, 24], sizes = [2, 8, 8], strides = [1, 1, 1]} : vector<2x8x32xbf16> to vector<2x8x8xbf16>
    %657 = vector.extract_strided_slice %593 {offsets = [0, 0, 24], sizes = [2, 16, 8], strides = [1, 1, 1]} : vector<2x16x32xbf16> to vector<2x16x8xbf16>
    "tpu.trace_start"() <{level = 10 : i32, message = "bqd,bkd->bqk"}> : () -> ()
    %cst_264 = arith.constant dense<0.000000e+00> : vector<2x8x16xf32>
    %658 = tpu.matmul %656, %657, %cst_264 {dimension_numbers = #tpu.dot_dimension_numbers<[2], [2], [1], [1], [0, 0, 0, 1, 1, 1], [0], [0]>} : vector<2x8x8xbf16>, vector<2x16x8xbf16>, vector<2x8x16xf32> -> vector<2x8x16xf32>
    "tpu.trace_stop"() : () -> ()
    %cst_265 = arith.constant 0.353553385 : f32
    %659 = vector.broadcast %cst_265 : f32 to vector<2x8x16xf32>
    %660 = arith.mulf %658, %659 : vector<2x8x16xf32>
    %661 = vector.broadcast %0 : vector<2x1x16xf32> to vector<2x8x16xf32>
    %662 = arith.addf %660, %661 : vector<2x8x16xf32>
    %cst_266 = arith.constant dense<0xFF800000> : vector<2x8xf32>
    %663 = vector.multi_reduction <maximumf>, %662, %cst_266 [2] : vector<2x8x16xf32> to vector<2x8xf32>
    %664 = vector.shape_cast %663 : vector<2x8xf32> to vector<2x8x1xf32>
    %665 = vector.broadcast %664 : vector<2x8x1xf32> to vector<2x8x16xf32>
    %666 = arith.subf %662, %665 : vector<2x8x16xf32>
    %667 = math.exp %666 : vector<2x8x16xf32>
    %cst_267 = arith.constant dense<0.000000e+00> : vector<2x8xf32>
    %668 = vector.multi_reduction <add>, %667, %cst_267 [2] : vector<2x8x16xf32> to vector<2x8xf32>
    %669 = vector.shape_cast %668 : vector<2x8xf32> to vector<2x8x1xf32>
    %670 = tpu.reciprocal %669 {approx = true} : vector<2x8x1xf32> -> vector<2x8x1xf32>
    %671 = vector.broadcast %670 : vector<2x8x1xf32> to vector<2x8x16xf32>
    %672 = arith.mulf %667, %671 : vector<2x8x16xf32>
    %673 = arith.truncf %672 : vector<2x8x16xf32> to vector<2x8x16xbf16>
    %674 = vector.extract_strided_slice %595 {offsets = [0, 0, 24], sizes = [2, 16, 8], strides = [1, 1, 1]} : vector<2x16x32xbf16> to vector<2x16x8xbf16>
    "tpu.trace_start"() <{level = 10 : i32, message = "bqk,bkd->bqd"}> : () -> ()
    %cst_268 = arith.constant dense<0.000000e+00> : vector<2x8x8xf32>
    %675 = tpu.matmul %673, %674, %cst_268 {dimension_numbers = #tpu.dot_dimension_numbers<[2], [1], [1], [2], [0, 0, 0, 1, 1, 2], [0], [0]>} : vector<2x8x16xbf16>, vector<2x16x8xbf16>, vector<2x8x8xf32> -> vector<2x8x8xf32>
    "tpu.trace_stop"() : () -> ()
    %676 = tpu.concatenate %615, %635, %655, %675 in 2 : vector<2x8x8xf32>, vector<2x8x8xf32>, vector<2x8x8xf32>, vector<2x8x8xf32> -> vector<2x8x32xf32>
    %677 = vector.shape_cast %676 : vector<2x8x32xf32> to vector<16x32xf32>
    %c0_269 = arith.constant 0 : index
    %c0_270 = arith.constant 0 : index
    %c0_271 = arith.constant 0 : index
    %678 = vector.load %arg12[%c0_269, %c0_270, %c0_271] : memref<2x32x32xbf16, #tpu.memory_space<vmem>>, vector<1x32x32xbf16>
    %679 = vector.shape_cast %678 : vector<1x32x32xbf16> to vector<32x32xbf16>
    %c0_272 = arith.constant 0 : index
    %c0_273 = arith.constant 0 : index
    %c0_274 = arith.constant 0 : index
    %680 = vector.load %arg11[%c0_272, %c0_273, %c0_274] : memref<2x1x32xf32, #tpu.memory_space<vmem>>, vector<1x1x32xf32>
    %681 = vector.shape_cast %680 : vector<1x1x32xf32> to vector<1x32xf32>
    %682 = arith.truncf %677 : vector<16x32xf32> to vector<16x32xbf16>
    %cst_275 = arith.constant dense<0.000000e+00> : vector<16x32xf32>
    %683 = tpu.matmul %682, %679, %cst_275 {dimension_numbers = #tpu.dot_dimension_numbers<[1], [0], [0], [1], [0, 0, 1, 1], [], []>} : vector<16x32xbf16>, vector<32x32xbf16>, vector<16x32xf32> -> vector<16x32xf32>
    %684 = vector.broadcast %681 : vector<1x32xf32> to vector<16x32xf32>
    %685 = arith.addf %683, %684 : vector<16x32xf32>
    %686 = arith.addf %579, %685 : vector<16x32xf32>
    %c0_276 = arith.constant 0 : index
    %c0_277 = arith.constant 0 : index
    %c0_278 = arith.constant 0 : index
    %687 = vector.load %arg22[%c0_276, %c0_277, %c0_278] : memref<2x1x32xf32, #tpu.memory_space<vmem>>, vector<1x1x32xf32>
    %688 = vector.shape_cast %687 : vector<1x1x32xf32> to vector<1x32xf32>
    %c0_279 = arith.constant 0 : index
    %c0_280 = arith.constant 0 : index
    %c0_281 = arith.constant 0 : index
    %689 = vector.load %arg21[%c0_279, %c0_280, %c0_281] : memref<2x1x32xf32, #tpu.memory_space<vmem>>, vector<1x1x32xf32>
    %690 = vector.shape_cast %689 : vector<1x1x32xf32> to vector<1x32xf32>
    %cst_282 = arith.constant dense<0.000000e+00> : vector<16xf32>
    %691 = vector.multi_reduction <add>, %686, %cst_282 [1] : vector<16x32xf32> to vector<16xf32>
    %692 = vector.shape_cast %691 : vector<16xf32> to vector<16x1xf32>
    %cst_283 = arith.constant 3.200000e+01 : f32
    %693 = vector.broadcast %cst_283 : f32 to vector<16x1xf32>
    %694 = arith.divf %692, %693 : vector<16x1xf32>
    %695 = vector.broadcast %694 : vector<16x1xf32> to vector<16x32xf32>
    %696 = arith.subf %686, %695 : vector<16x32xf32>
    %697 = arith.mulf %696, %696 : vector<16x32xf32>
    %cst_284 = arith.constant dense<0.000000e+00> : vector<16xf32>
    %698 = vector.multi_reduction <add>, %697, %cst_284 [1] : vector<16x32xf32> to vector<16xf32>
    %699 = vector.shape_cast %698 : vector<16xf32> to vector<16x1xf32>
    %cst_285 = arith.constant 3.200000e+01 : f32
    %700 = vector.broadcast %cst_285 : f32 to vector<16x1xf32>
    %701 = arith.divf %699, %700 : vector<16x1xf32>
    %cst_286 = arith.constant 9.99999974E-6 : f32
    %702 = vector.broadcast %cst_286 : f32 to vector<16x1xf32>
    %703 = arith.addf %701, %702 : vector<16x1xf32>
    %704 = math.rsqrt %703 : vector<16x1xf32>
    %705 = vector.broadcast %704 : vector<16x1xf32> to vector<16x32xf32>
    %706 = arith.mulf %696, %705 : vector<16x32xf32>
    %707 = vector.broadcast %688 : vector<1x32xf32> to vector<16x32xf32>
    %708 = arith.mulf %706, %707 : vector<16x32xf32>
    %709 = vector.broadcast %690 : vector<1x32xf32> to vector<16x32xf32>
    %710 = arith.addf %708, %709 : vector<16x32xf32>
    %c0_287 = arith.constant 0 : index
    %c0_288 = arith.constant 0 : index
    %c0_289 = arith.constant 0 : index
    %711 = vector.load %arg16[%c0_287, %c0_288, %c0_289] : memref<2x32x64xbf16, #tpu.memory_space<vmem>>, vector<1x32x64xbf16>
    %712 = vector.shape_cast %711 : vector<1x32x64xbf16> to vector<32x64xbf16>
    %c0_290 = arith.constant 0 : index
    %c0_291 = arith.constant 0 : index
    %c0_292 = arith.constant 0 : index
    %713 = vector.load %arg15[%c0_290, %c0_291, %c0_292] : memref<2x1x64xf32, #tpu.memory_space<vmem>>, vector<1x1x64xf32>
    %714 = vector.shape_cast %713 : vector<1x1x64xf32> to vector<1x64xf32>
    %715 = arith.truncf %710 : vector<16x32xf32> to vector<16x32xbf16>
    %cst_293 = arith.constant dense<0.000000e+00> : vector<16x64xf32>
    %716 = tpu.matmul %715, %712, %cst_293 {dimension_numbers = #tpu.dot_dimension_numbers<[1], [0], [0], [1], [0, 0, 1, 1], [], []>} : vector<16x32xbf16>, vector<32x64xbf16>, vector<16x64xf32> -> vector<16x64xf32>
    %717 = vector.broadcast %714 : vector<1x64xf32> to vector<16x64xf32>
    %718 = arith.addf %716, %717 : vector<16x64xf32>
    %cst_294 = arith.constant 0.000000e+00 : f32
    %719 = vector.broadcast %cst_294 : f32 to vector<16x64xf32>
    %720 = arith.maximumf %718, %719 : vector<16x64xf32>
    %c0_295 = arith.constant 0 : index
    %c0_296 = arith.constant 0 : index
    %c0_297 = arith.constant 0 : index
    %721 = vector.load %arg18[%c0_295, %c0_296, %c0_297] : memref<2x64x32xbf16, #tpu.memory_space<vmem>>, vector<1x64x32xbf16>
    %722 = vector.shape_cast %721 : vector<1x64x32xbf16> to vector<64x32xbf16>
    %c0_298 = arith.constant 0 : index
    %c0_299 = arith.constant 0 : index
    %c0_300 = arith.constant 0 : index
    %723 = vector.load %arg17[%c0_298, %c0_299, %c0_300] : memref<2x1x32xf32, #tpu.memory_space<vmem>>, vector<1x1x32xf32>
    %724 = vector.shape_cast %723 : vector<1x1x32xf32> to vector<1x32xf32>
    %725 = arith.truncf %720 : vector<16x64xf32> to vector<16x64xbf16>
    %cst_301 = arith.constant dense<0.000000e+00> : vector<16x32xf32>
    %726 = tpu.matmul %725, %722, %cst_301 {dimension_numbers = #tpu.dot_dimension_numbers<[1], [0], [0], [1], [0, 0, 1, 1], [], []>} : vector<16x64xbf16>, vector<64x32xbf16>, vector<16x32xf32> -> vector<16x32xf32>
    %727 = vector.broadcast %724 : vector<1x32xf32> to vector<16x32xf32>
    %728 = arith.addf %726, %727 : vector<16x32xf32>
    %729 = arith.addf %710, %728 : vector<16x32xf32>
    %c0_302 = arith.constant 0 : index
    %c0_303 = arith.constant 0 : index
    %c0_304 = arith.constant 0 : index
    %730 = vector.load %arg24[%c0_302, %c0_303, %c0_304] : memref<2x1x32xf32, #tpu.memory_space<vmem>>, vector<1x1x32xf32>
    %731 = vector.shape_cast %730 : vector<1x1x32xf32> to vector<1x32xf32>
    %c0_305 = arith.constant 0 : index
    %c0_306 = arith.constant 0 : index
    %c0_307 = arith.constant 0 : index
    %732 = vector.load %arg23[%c0_305, %c0_306, %c0_307] : memref<2x1x32xf32, #tpu.memory_space<vmem>>, vector<1x1x32xf32>
    %733 = vector.shape_cast %732 : vector<1x1x32xf32> to vector<1x32xf32>
    %cst_308 = arith.constant dense<0.000000e+00> : vector<16xf32>
    %734 = vector.multi_reduction <add>, %729, %cst_308 [1] : vector<16x32xf32> to vector<16xf32>
    %735 = vector.shape_cast %734 : vector<16xf32> to vector<16x1xf32>
    %cst_309 = arith.constant 3.200000e+01 : f32
    %736 = vector.broadcast %cst_309 : f32 to vector<16x1xf32>
    %737 = arith.divf %735, %736 : vector<16x1xf32>
    %738 = vector.broadcast %737 : vector<16x1xf32> to vector<16x32xf32>
    %739 = arith.subf %729, %738 : vector<16x32xf32>
    %740 = arith.mulf %739, %739 : vector<16x32xf32>
    %cst_310 = arith.constant dense<0.000000e+00> : vector<16xf32>
    %741 = vector.multi_reduction <add>, %740, %cst_310 [1] : vector<16x32xf32> to vector<16xf32>
    %742 = vector.shape_cast %741 : vector<16xf32> to vector<16x1xf32>
    %cst_311 = arith.constant 3.200000e+01 : f32
    %743 = vector.broadcast %cst_311 : f32 to vector<16x1xf32>
    %744 = arith.divf %742, %743 : vector<16x1xf32>
    %cst_312 = arith.constant 9.99999974E-6 : f32
    %745 = vector.broadcast %cst_312 : f32 to vector<16x1xf32>
    %746 = arith.addf %744, %745 : vector<16x1xf32>
    %747 = math.rsqrt %746 : vector<16x1xf32>
    %748 = vector.broadcast %747 : vector<16x1xf32> to vector<16x32xf32>
    %749 = arith.mulf %739, %748 : vector<16x32xf32>
    %750 = vector.broadcast %731 : vector<1x32xf32> to vector<16x32xf32>
    %751 = arith.mulf %749, %750 : vector<16x32xf32>
    %752 = vector.broadcast %733 : vector<1x32xf32> to vector<16x32xf32>
    %753 = arith.addf %751, %752 : vector<16x32xf32>
    %c1_313 = arith.constant 1 : index
    %c0_314 = arith.constant 0 : index
    %c0_315 = arith.constant 0 : index
    %754 = vector.load %arg28[%c1_313, %c0_314, %c0_315] : memref<2x32x96xbf16, #tpu.memory_space<vmem>>, vector<1x32x96xbf16>
    %755 = vector.shape_cast %754 : vector<1x32x96xbf16> to vector<32x96xbf16>
    %c1_316 = arith.constant 1 : index
    %c0_317 = arith.constant 0 : index
    %c0_318 = arith.constant 0 : index
    %756 = vector.load %arg27[%c1_316, %c0_317, %c0_318] : memref<2x1x96xf32, #tpu.memory_space<vmem>>, vector<1x1x96xf32>
    %757 = vector.shape_cast %756 : vector<1x1x96xf32> to vector<1x96xf32>
    %758 = arith.truncf %753 : vector<16x32xf32> to vector<16x32xbf16>
    %cst_319 = arith.constant dense<0.000000e+00> : vector<16x96xf32>
    %759 = tpu.matmul %758, %755, %cst_319 {dimension_numbers = #tpu.dot_dimension_numbers<[1], [0], [0], [1], [0, 0, 1, 1], [], []>} : vector<16x32xbf16>, vector<32x96xbf16>, vector<16x96xf32> -> vector<16x96xf32>
    %760 = vector.broadcast %757 : vector<1x96xf32> to vector<16x96xf32>
    %761 = arith.addf %759, %760 : vector<16x96xf32>
    %762 = vector.extract_strided_slice %761 {offsets = [0, 0], sizes = [16, 32], strides = [1, 1]} : vector<16x96xf32> to vector<16x32xf32>
    %763 = vector.extract_strided_slice %761 {offsets = [0, 32], sizes = [16, 32], strides = [1, 1]} : vector<16x96xf32> to vector<16x32xf32>
    %764 = vector.extract_strided_slice %761 {offsets = [0, 64], sizes = [16, 32], strides = [1, 1]} : vector<16x96xf32> to vector<16x32xf32>
    %765 = vector.shape_cast %762 : vector<16x32xf32> to vector<2x8x32xf32>
    %766 = arith.truncf %765 : vector<2x8x32xf32> to vector<2x8x32xbf16>
    %767 = vector.shape_cast %763 : vector<16x32xf32> to vector<2x8x32xf32>
    %768 = arith.truncf %767 : vector<2x8x32xf32> to vector<2x8x32xbf16>
    %769 = vector.shape_cast %764 : vector<16x32xf32> to vector<2x8x32xf32>
    %770 = arith.truncf %769 : vector<2x8x32xf32> to vector<2x8x32xbf16>
    %771 = vector.extract_strided_slice %766 {offsets = [0, 0, 0], sizes = [2, 8, 8], strides = [1, 1, 1]} : vector<2x8x32xbf16> to vector<2x8x8xbf16>
    %772 = vector.extract_strided_slice %768 {offsets = [0, 0, 0], sizes = [2, 8, 8], strides = [1, 1, 1]} : vector<2x8x32xbf16> to vector<2x8x8xbf16>
    "tpu.trace_start"() <{level = 10 : i32, message = "bqd,bkd->bqk"}> : () -> ()
    %cst_320 = arith.constant dense<0.000000e+00> : vector<2x8x8xf32>
    %773 = tpu.matmul %771, %772, %cst_320 {dimension_numbers = #tpu.dot_dimension_numbers<[2], [2], [1], [1], [0, 0, 0, 1, 1, 1], [0], [0]>} : vector<2x8x8xbf16>, vector<2x8x8xbf16>, vector<2x8x8xf32> -> vector<2x8x8xf32>
    "tpu.trace_stop"() : () -> ()
    %cst_321 = arith.constant 0.353553385 : f32
    %774 = vector.broadcast %cst_321 : f32 to vector<2x8x8xf32>
    %775 = arith.mulf %773, %774 : vector<2x8x8xf32>
    %776 = arith.addf %775, %1 : vector<2x8x8xf32>
    %cst_322 = arith.constant dense<0xFF800000> : vector<2x8xf32>
    %777 = vector.multi_reduction <maximumf>, %776, %cst_322 [2] : vector<2x8x8xf32> to vector<2x8xf32>
    %778 = vector.shape_cast %777 : vector<2x8xf32> to vector<2x8x1xf32>
    %779 = vector.broadcast %778 : vector<2x8x1xf32> to vector<2x8x8xf32>
    %780 = arith.subf %776, %779 : vector<2x8x8xf32>
    %781 = math.exp %780 : vector<2x8x8xf32>
    %cst_323 = arith.constant dense<0.000000e+00> : vector<2x8xf32>
    %782 = vector.multi_reduction <add>, %781, %cst_323 [2] : vector<2x8x8xf32> to vector<2x8xf32>
    %783 = vector.shape_cast %782 : vector<2x8xf32> to vector<2x8x1xf32>
    %784 = tpu.reciprocal %783 {approx = true} : vector<2x8x1xf32> -> vector<2x8x1xf32>
    %785 = vector.broadcast %784 : vector<2x8x1xf32> to vector<2x8x8xf32>
    %786 = arith.mulf %781, %785 : vector<2x8x8xf32>
    %787 = arith.truncf %786 : vector<2x8x8xf32> to vector<2x8x8xbf16>
    %788 = vector.extract_strided_slice %770 {offsets = [0, 0, 0], sizes = [2, 8, 8], strides = [1, 1, 1]} : vector<2x8x32xbf16> to vector<2x8x8xbf16>
    "tpu.trace_start"() <{level = 10 : i32, message = "bqk,bkd->bqd"}> : () -> ()
    %cst_324 = arith.constant dense<0.000000e+00> : vector<2x8x8xf32>
    %789 = tpu.matmul %787, %788, %cst_324 {dimension_numbers = #tpu.dot_dimension_numbers<[2], [1], [1], [2], [0, 0, 0, 1, 1, 2], [0], [0]>} : vector<2x8x8xbf16>, vector<2x8x8xbf16>, vector<2x8x8xf32> -> vector<2x8x8xf32>
    "tpu.trace_stop"() : () -> ()
    %790 = vector.extract_strided_slice %766 {offsets = [0, 0, 8], sizes = [2, 8, 8], strides = [1, 1, 1]} : vector<2x8x32xbf16> to vector<2x8x8xbf16>
    %791 = vector.extract_strided_slice %768 {offsets = [0, 0, 8], sizes = [2, 8, 8], strides = [1, 1, 1]} : vector<2x8x32xbf16> to vector<2x8x8xbf16>
    "tpu.trace_start"() <{level = 10 : i32, message = "bqd,bkd->bqk"}> : () -> ()
    %cst_325 = arith.constant dense<0.000000e+00> : vector<2x8x8xf32>
    %792 = tpu.matmul %790, %791, %cst_325 {dimension_numbers = #tpu.dot_dimension_numbers<[2], [2], [1], [1], [0, 0, 0, 1, 1, 1], [0], [0]>} : vector<2x8x8xbf16>, vector<2x8x8xbf16>, vector<2x8x8xf32> -> vector<2x8x8xf32>
    "tpu.trace_stop"() : () -> ()
    %cst_326 = arith.constant 0.353553385 : f32
    %793 = vector.broadcast %cst_326 : f32 to vector<2x8x8xf32>
    %794 = arith.mulf %792, %793 : vector<2x8x8xf32>
    %795 = arith.addf %794, %1 : vector<2x8x8xf32>
    %cst_327 = arith.constant dense<0xFF800000> : vector<2x8xf32>
    %796 = vector.multi_reduction <maximumf>, %795, %cst_327 [2] : vector<2x8x8xf32> to vector<2x8xf32>
    %797 = vector.shape_cast %796 : vector<2x8xf32> to vector<2x8x1xf32>
    %798 = vector.broadcast %797 : vector<2x8x1xf32> to vector<2x8x8xf32>
    %799 = arith.subf %795, %798 : vector<2x8x8xf32>
    %800 = math.exp %799 : vector<2x8x8xf32>
    %cst_328 = arith.constant dense<0.000000e+00> : vector<2x8xf32>
    %801 = vector.multi_reduction <add>, %800, %cst_328 [2] : vector<2x8x8xf32> to vector<2x8xf32>
    %802 = vector.shape_cast %801 : vector<2x8xf32> to vector<2x8x1xf32>
    %803 = tpu.reciprocal %802 {approx = true} : vector<2x8x1xf32> -> vector<2x8x1xf32>
    %804 = vector.broadcast %803 : vector<2x8x1xf32> to vector<2x8x8xf32>
    %805 = arith.mulf %800, %804 : vector<2x8x8xf32>
    %806 = arith.truncf %805 : vector<2x8x8xf32> to vector<2x8x8xbf16>
    %807 = vector.extract_strided_slice %770 {offsets = [0, 0, 8], sizes = [2, 8, 8], strides = [1, 1, 1]} : vector<2x8x32xbf16> to vector<2x8x8xbf16>
    "tpu.trace_start"() <{level = 10 : i32, message = "bqk,bkd->bqd"}> : () -> ()
    %cst_329 = arith.constant dense<0.000000e+00> : vector<2x8x8xf32>
    %808 = tpu.matmul %806, %807, %cst_329 {dimension_numbers = #tpu.dot_dimension_numbers<[2], [1], [1], [2], [0, 0, 0, 1, 1, 2], [0], [0]>} : vector<2x8x8xbf16>, vector<2x8x8xbf16>, vector<2x8x8xf32> -> vector<2x8x8xf32>
    "tpu.trace_stop"() : () -> ()
    %809 = vector.extract_strided_slice %766 {offsets = [0, 0, 16], sizes = [2, 8, 8], strides = [1, 1, 1]} : vector<2x8x32xbf16> to vector<2x8x8xbf16>
    %810 = vector.extract_strided_slice %768 {offsets = [0, 0, 16], sizes = [2, 8, 8], strides = [1, 1, 1]} : vector<2x8x32xbf16> to vector<2x8x8xbf16>
    "tpu.trace_start"() <{level = 10 : i32, message = "bqd,bkd->bqk"}> : () -> ()
    %cst_330 = arith.constant dense<0.000000e+00> : vector<2x8x8xf32>
    %811 = tpu.matmul %809, %810, %cst_330 {dimension_numbers = #tpu.dot_dimension_numbers<[2], [2], [1], [1], [0, 0, 0, 1, 1, 1], [0], [0]>} : vector<2x8x8xbf16>, vector<2x8x8xbf16>, vector<2x8x8xf32> -> vector<2x8x8xf32>
    "tpu.trace_stop"() : () -> ()
    %cst_331 = arith.constant 0.353553385 : f32
    %812 = vector.broadcast %cst_331 : f32 to vector<2x8x8xf32>
    %813 = arith.mulf %811, %812 : vector<2x8x8xf32>
    %814 = arith.addf %813, %1 : vector<2x8x8xf32>
    %cst_332 = arith.constant dense<0xFF800000> : vector<2x8xf32>
    %815 = vector.multi_reduction <maximumf>, %814, %cst_332 [2] : vector<2x8x8xf32> to vector<2x8xf32>
    %816 = vector.shape_cast %815 : vector<2x8xf32> to vector<2x8x1xf32>
    %817 = vector.broadcast %816 : vector<2x8x1xf32> to vector<2x8x8xf32>
    %818 = arith.subf %814, %817 : vector<2x8x8xf32>
    %819 = math.exp %818 : vector<2x8x8xf32>
    %cst_333 = arith.constant dense<0.000000e+00> : vector<2x8xf32>
    %820 = vector.multi_reduction <add>, %819, %cst_333 [2] : vector<2x8x8xf32> to vector<2x8xf32>
    %821 = vector.shape_cast %820 : vector<2x8xf32> to vector<2x8x1xf32>
    %822 = tpu.reciprocal %821 {approx = true} : vector<2x8x1xf32> -> vector<2x8x1xf32>
    %823 = vector.broadcast %822 : vector<2x8x1xf32> to vector<2x8x8xf32>
    %824 = arith.mulf %819, %823 : vector<2x8x8xf32>
    %825 = arith.truncf %824 : vector<2x8x8xf32> to vector<2x8x8xbf16>
    %826 = vector.extract_strided_slice %770 {offsets = [0, 0, 16], sizes = [2, 8, 8], strides = [1, 1, 1]} : vector<2x8x32xbf16> to vector<2x8x8xbf16>
    "tpu.trace_start"() <{level = 10 : i32, message = "bqk,bkd->bqd"}> : () -> ()
    %cst_334 = arith.constant dense<0.000000e+00> : vector<2x8x8xf32>
    %827 = tpu.matmul %825, %826, %cst_334 {dimension_numbers = #tpu.dot_dimension_numbers<[2], [1], [1], [2], [0, 0, 0, 1, 1, 2], [0], [0]>} : vector<2x8x8xbf16>, vector<2x8x8xbf16>, vector<2x8x8xf32> -> vector<2x8x8xf32>
    "tpu.trace_stop"() : () -> ()
    %828 = vector.extract_strided_slice %766 {offsets = [0, 0, 24], sizes = [2, 8, 8], strides = [1, 1, 1]} : vector<2x8x32xbf16> to vector<2x8x8xbf16>
    %829 = vector.extract_strided_slice %768 {offsets = [0, 0, 24], sizes = [2, 8, 8], strides = [1, 1, 1]} : vector<2x8x32xbf16> to vector<2x8x8xbf16>
    "tpu.trace_start"() <{level = 10 : i32, message = "bqd,bkd->bqk"}> : () -> ()
    %cst_335 = arith.constant dense<0.000000e+00> : vector<2x8x8xf32>
    %830 = tpu.matmul %828, %829, %cst_335 {dimension_numbers = #tpu.dot_dimension_numbers<[2], [2], [1], [1], [0, 0, 0, 1, 1, 1], [0], [0]>} : vector<2x8x8xbf16>, vector<2x8x8xbf16>, vector<2x8x8xf32> -> vector<2x8x8xf32>
    "tpu.trace_stop"() : () -> ()
    %cst_336 = arith.constant 0.353553385 : f32
    %831 = vector.broadcast %cst_336 : f32 to vector<2x8x8xf32>
    %832 = arith.mulf %830, %831 : vector<2x8x8xf32>
    %833 = arith.addf %832, %1 : vector<2x8x8xf32>
    %cst_337 = arith.constant dense<0xFF800000> : vector<2x8xf32>
    %834 = vector.multi_reduction <maximumf>, %833, %cst_337 [2] : vector<2x8x8xf32> to vector<2x8xf32>
    %835 = vector.shape_cast %834 : vector<2x8xf32> to vector<2x8x1xf32>
    %836 = vector.broadcast %835 : vector<2x8x1xf32> to vector<2x8x8xf32>
    %837 = arith.subf %833, %836 : vector<2x8x8xf32>
    %838 = math.exp %837 : vector<2x8x8xf32>
    %cst_338 = arith.constant dense<0.000000e+00> : vector<2x8xf32>
    %839 = vector.multi_reduction <add>, %838, %cst_338 [2] : vector<2x8x8xf32> to vector<2x8xf32>
    %840 = vector.shape_cast %839 : vector<2x8xf32> to vector<2x8x1xf32>
    %841 = tpu.reciprocal %840 {approx = true} : vector<2x8x1xf32> -> vector<2x8x1xf32>
    %842 = vector.broadcast %841 : vector<2x8x1xf32> to vector<2x8x8xf32>
    %843 = arith.mulf %838, %842 : vector<2x8x8xf32>
    %844 = arith.truncf %843 : vector<2x8x8xf32> to vector<2x8x8xbf16>
    %845 = vector.extract_strided_slice %770 {offsets = [0, 0, 24], sizes = [2, 8, 8], strides = [1, 1, 1]} : vector<2x8x32xbf16> to vector<2x8x8xbf16>
    "tpu.trace_start"() <{level = 10 : i32, message = "bqk,bkd->bqd"}> : () -> ()
    %cst_339 = arith.constant dense<0.000000e+00> : vector<2x8x8xf32>
    %846 = tpu.matmul %844, %845, %cst_339 {dimension_numbers = #tpu.dot_dimension_numbers<[2], [1], [1], [2], [0, 0, 0, 1, 1, 2], [0], [0]>} : vector<2x8x8xbf16>, vector<2x8x8xbf16>, vector<2x8x8xf32> -> vector<2x8x8xf32>
    "tpu.trace_stop"() : () -> ()
    %847 = tpu.concatenate %789, %808, %827, %846 in 2 : vector<2x8x8xf32>, vector<2x8x8xf32>, vector<2x8x8xf32>, vector<2x8x8xf32> -> vector<2x8x32xf32>
    %848 = vector.shape_cast %847 : vector<2x8x32xf32> to vector<16x32xf32>
    %c1_340 = arith.constant 1 : index
    %c0_341 = arith.constant 0 : index
    %c0_342 = arith.constant 0 : index
    %849 = vector.load %arg26[%c1_340, %c0_341, %c0_342] : memref<2x32x32xbf16, #tpu.memory_space<vmem>>, vector<1x32x32xbf16>
    %850 = vector.shape_cast %849 : vector<1x32x32xbf16> to vector<32x32xbf16>
    %c1_343 = arith.constant 1 : index
    %c0_344 = arith.constant 0 : index
    %c0_345 = arith.constant 0 : index
    %851 = vector.load %arg25[%c1_343, %c0_344, %c0_345] : memref<2x1x32xf32, #tpu.memory_space<vmem>>, vector<1x1x32xf32>
    %852 = vector.shape_cast %851 : vector<1x1x32xf32> to vector<1x32xf32>
    %853 = arith.truncf %848 : vector<16x32xf32> to vector<16x32xbf16>
    %cst_346 = arith.constant dense<0.000000e+00> : vector<16x32xf32>
    %854 = tpu.matmul %853, %850, %cst_346 {dimension_numbers = #tpu.dot_dimension_numbers<[1], [0], [0], [1], [0, 0, 1, 1], [], []>} : vector<16x32xbf16>, vector<32x32xbf16>, vector<16x32xf32> -> vector<16x32xf32>
    %855 = vector.broadcast %852 : vector<1x32xf32> to vector<16x32xf32>
    %856 = arith.addf %854, %855 : vector<16x32xf32>
    %857 = arith.addf %753, %856 : vector<16x32xf32>
    %c1_347 = arith.constant 1 : index
    %c0_348 = arith.constant 0 : index
    %c0_349 = arith.constant 0 : index
    %858 = vector.load %arg20[%c1_347, %c0_348, %c0_349] : memref<2x1x32xf32, #tpu.memory_space<vmem>>, vector<1x1x32xf32>
    %859 = vector.shape_cast %858 : vector<1x1x32xf32> to vector<1x32xf32>
    %c1_350 = arith.constant 1 : index
    %c0_351 = arith.constant 0 : index
    %c0_352 = arith.constant 0 : index
    %860 = vector.load %arg19[%c1_350, %c0_351, %c0_352] : memref<2x1x32xf32, #tpu.memory_space<vmem>>, vector<1x1x32xf32>
    %861 = vector.shape_cast %860 : vector<1x1x32xf32> to vector<1x32xf32>
    %cst_353 = arith.constant dense<0.000000e+00> : vector<16xf32>
    %862 = vector.multi_reduction <add>, %857, %cst_353 [1] : vector<16x32xf32> to vector<16xf32>
    %863 = vector.shape_cast %862 : vector<16xf32> to vector<16x1xf32>
    %cst_354 = arith.constant 3.200000e+01 : f32
    %864 = vector.broadcast %cst_354 : f32 to vector<16x1xf32>
    %865 = arith.divf %863, %864 : vector<16x1xf32>
    %866 = vector.broadcast %865 : vector<16x1xf32> to vector<16x32xf32>
    %867 = arith.subf %857, %866 : vector<16x32xf32>
    %868 = arith.mulf %867, %867 : vector<16x32xf32>
    %cst_355 = arith.constant dense<0.000000e+00> : vector<16xf32>
    %869 = vector.multi_reduction <add>, %868, %cst_355 [1] : vector<16x32xf32> to vector<16xf32>
    %870 = vector.shape_cast %869 : vector<16xf32> to vector<16x1xf32>
    %cst_356 = arith.constant 3.200000e+01 : f32
    %871 = vector.broadcast %cst_356 : f32 to vector<16x1xf32>
    %872 = arith.divf %870, %871 : vector<16x1xf32>
    %cst_357 = arith.constant 9.99999974E-6 : f32
    %873 = vector.broadcast %cst_357 : f32 to vector<16x1xf32>
    %874 = arith.addf %872, %873 : vector<16x1xf32>
    %875 = math.rsqrt %874 : vector<16x1xf32>
    %876 = vector.broadcast %875 : vector<16x1xf32> to vector<16x32xf32>
    %877 = arith.mulf %867, %876 : vector<16x32xf32>
    %878 = vector.broadcast %859 : vector<1x32xf32> to vector<16x32xf32>
    %879 = arith.mulf %877, %878 : vector<16x32xf32>
    %880 = vector.broadcast %861 : vector<1x32xf32> to vector<16x32xf32>
    %881 = arith.addf %879, %880 : vector<16x32xf32>
    %c1_358 = arith.constant 1 : index
    %c0_359 = arith.constant 0 : index
    %c0_360 = arith.constant 0 : index
    %882 = vector.load %arg14[%c1_358, %c0_359, %c0_360] : memref<2x32x32xbf16, #tpu.memory_space<vmem>>, vector<1x32x32xbf16>
    %883 = vector.shape_cast %882 : vector<1x32x32xbf16> to vector<32x32xbf16>
    %c1_361 = arith.constant 1 : index
    %c0_362 = arith.constant 0 : index
    %c0_363 = arith.constant 0 : index
    %884 = vector.load %arg13[%c1_361, %c0_362, %c0_363] : memref<2x1x32xf32, #tpu.memory_space<vmem>>, vector<1x1x32xf32>
    %885 = vector.shape_cast %884 : vector<1x1x32xf32> to vector<1x32xf32>
    %886 = arith.truncf %881 : vector<16x32xf32> to vector<16x32xbf16>
    %cst_364 = arith.constant dense<0.000000e+00> : vector<16x32xf32>
    %887 = tpu.matmul %886, %883, %cst_364 {dimension_numbers = #tpu.dot_dimension_numbers<[1], [0], [0], [1], [0, 0, 1, 1], [], []>} : vector<16x32xbf16>, vector<32x32xbf16>, vector<16x32xf32> -> vector<16x32xf32>
    %888 = vector.broadcast %885 : vector<1x32xf32> to vector<16x32xf32>
    %889 = arith.addf %887, %888 : vector<16x32xf32>
    %890 = vector.extract_strided_slice %451 {offsets = [0, 64], sizes = [32, 32], strides = [1, 1]} : vector<32x128xf32> to vector<32x32xf32>
    %891 = vector.extract_strided_slice %451 {offsets = [0, 96], sizes = [32, 32], strides = [1, 1]} : vector<32x128xf32> to vector<32x32xf32>
    %892 = vector.shape_cast %889 : vector<16x32xf32> to vector<2x8x32xf32>
    %893 = arith.truncf %892 : vector<2x8x32xf32> to vector<2x8x32xbf16>
    %894 = vector.shape_cast %890 : vector<32x32xf32> to vector<2x16x32xf32>
    %895 = arith.truncf %894 : vector<2x16x32xf32> to vector<2x16x32xbf16>
    %896 = vector.shape_cast %891 : vector<32x32xf32> to vector<2x16x32xf32>
    %897 = arith.truncf %896 : vector<2x16x32xf32> to vector<2x16x32xbf16>
    %898 = vector.extract_strided_slice %893 {offsets = [0, 0, 0], sizes = [2, 8, 8], strides = [1, 1, 1]} : vector<2x8x32xbf16> to vector<2x8x8xbf16>
    %899 = vector.extract_strided_slice %895 {offsets = [0, 0, 0], sizes = [2, 16, 8], strides = [1, 1, 1]} : vector<2x16x32xbf16> to vector<2x16x8xbf16>
    "tpu.trace_start"() <{level = 10 : i32, message = "bqd,bkd->bqk"}> : () -> ()
    %cst_365 = arith.constant dense<0.000000e+00> : vector<2x8x16xf32>
    %900 = tpu.matmul %898, %899, %cst_365 {dimension_numbers = #tpu.dot_dimension_numbers<[2], [2], [1], [1], [0, 0, 0, 1, 1, 1], [0], [0]>} : vector<2x8x8xbf16>, vector<2x16x8xbf16>, vector<2x8x16xf32> -> vector<2x8x16xf32>
    "tpu.trace_stop"() : () -> ()
    %cst_366 = arith.constant 0.353553385 : f32
    %901 = vector.broadcast %cst_366 : f32 to vector<2x8x16xf32>
    %902 = arith.mulf %900, %901 : vector<2x8x16xf32>
    %903 = vector.broadcast %0 : vector<2x1x16xf32> to vector<2x8x16xf32>
    %904 = arith.addf %902, %903 : vector<2x8x16xf32>
    %cst_367 = arith.constant dense<0xFF800000> : vector<2x8xf32>
    %905 = vector.multi_reduction <maximumf>, %904, %cst_367 [2] : vector<2x8x16xf32> to vector<2x8xf32>
    %906 = vector.shape_cast %905 : vector<2x8xf32> to vector<2x8x1xf32>
    %907 = vector.broadcast %906 : vector<2x8x1xf32> to vector<2x8x16xf32>
    %908 = arith.subf %904, %907 : vector<2x8x16xf32>
    %909 = math.exp %908 : vector<2x8x16xf32>
    %cst_368 = arith.constant dense<0.000000e+00> : vector<2x8xf32>
    %910 = vector.multi_reduction <add>, %909, %cst_368 [2] : vector<2x8x16xf32> to vector<2x8xf32>
    %911 = vector.shape_cast %910 : vector<2x8xf32> to vector<2x8x1xf32>
    %912 = tpu.reciprocal %911 {approx = true} : vector<2x8x1xf32> -> vector<2x8x1xf32>
    %913 = vector.broadcast %912 : vector<2x8x1xf32> to vector<2x8x16xf32>
    %914 = arith.mulf %909, %913 : vector<2x8x16xf32>
    %915 = arith.truncf %914 : vector<2x8x16xf32> to vector<2x8x16xbf16>
    %916 = vector.extract_strided_slice %897 {offsets = [0, 0, 0], sizes = [2, 16, 8], strides = [1, 1, 1]} : vector<2x16x32xbf16> to vector<2x16x8xbf16>
    "tpu.trace_start"() <{level = 10 : i32, message = "bqk,bkd->bqd"}> : () -> ()
    %cst_369 = arith.constant dense<0.000000e+00> : vector<2x8x8xf32>
    %917 = tpu.matmul %915, %916, %cst_369 {dimension_numbers = #tpu.dot_dimension_numbers<[2], [1], [1], [2], [0, 0, 0, 1, 1, 2], [0], [0]>} : vector<2x8x16xbf16>, vector<2x16x8xbf16>, vector<2x8x8xf32> -> vector<2x8x8xf32>
    "tpu.trace_stop"() : () -> ()
    %918 = vector.extract_strided_slice %893 {offsets = [0, 0, 8], sizes = [2, 8, 8], strides = [1, 1, 1]} : vector<2x8x32xbf16> to vector<2x8x8xbf16>
    %919 = vector.extract_strided_slice %895 {offsets = [0, 0, 8], sizes = [2, 16, 8], strides = [1, 1, 1]} : vector<2x16x32xbf16> to vector<2x16x8xbf16>
    "tpu.trace_start"() <{level = 10 : i32, message = "bqd,bkd->bqk"}> : () -> ()
    %cst_370 = arith.constant dense<0.000000e+00> : vector<2x8x16xf32>
    %920 = tpu.matmul %918, %919, %cst_370 {dimension_numbers = #tpu.dot_dimension_numbers<[2], [2], [1], [1], [0, 0, 0, 1, 1, 1], [0], [0]>} : vector<2x8x8xbf16>, vector<2x16x8xbf16>, vector<2x8x16xf32> -> vector<2x8x16xf32>
    "tpu.trace_stop"() : () -> ()
    %cst_371 = arith.constant 0.353553385 : f32
    %921 = vector.broadcast %cst_371 : f32 to vector<2x8x16xf32>
    %922 = arith.mulf %920, %921 : vector<2x8x16xf32>
    %923 = vector.broadcast %0 : vector<2x1x16xf32> to vector<2x8x16xf32>
    %924 = arith.addf %922, %923 : vector<2x8x16xf32>
    %cst_372 = arith.constant dense<0xFF800000> : vector<2x8xf32>
    %925 = vector.multi_reduction <maximumf>, %924, %cst_372 [2] : vector<2x8x16xf32> to vector<2x8xf32>
    %926 = vector.shape_cast %925 : vector<2x8xf32> to vector<2x8x1xf32>
    %927 = vector.broadcast %926 : vector<2x8x1xf32> to vector<2x8x16xf32>
    %928 = arith.subf %924, %927 : vector<2x8x16xf32>
    %929 = math.exp %928 : vector<2x8x16xf32>
    %cst_373 = arith.constant dense<0.000000e+00> : vector<2x8xf32>
    %930 = vector.multi_reduction <add>, %929, %cst_373 [2] : vector<2x8x16xf32> to vector<2x8xf32>
    %931 = vector.shape_cast %930 : vector<2x8xf32> to vector<2x8x1xf32>
    %932 = tpu.reciprocal %931 {approx = true} : vector<2x8x1xf32> -> vector<2x8x1xf32>
    %933 = vector.broadcast %932 : vector<2x8x1xf32> to vector<2x8x16xf32>
    %934 = arith.mulf %929, %933 : vector<2x8x16xf32>
    %935 = arith.truncf %934 : vector<2x8x16xf32> to vector<2x8x16xbf16>
    %936 = vector.extract_strided_slice %897 {offsets = [0, 0, 8], sizes = [2, 16, 8], strides = [1, 1, 1]} : vector<2x16x32xbf16> to vector<2x16x8xbf16>
    "tpu.trace_start"() <{level = 10 : i32, message = "bqk,bkd->bqd"}> : () -> ()
    %cst_374 = arith.constant dense<0.000000e+00> : vector<2x8x8xf32>
    %937 = tpu.matmul %935, %936, %cst_374 {dimension_numbers = #tpu.dot_dimension_numbers<[2], [1], [1], [2], [0, 0, 0, 1, 1, 2], [0], [0]>} : vector<2x8x16xbf16>, vector<2x16x8xbf16>, vector<2x8x8xf32> -> vector<2x8x8xf32>
    "tpu.trace_stop"() : () -> ()
    %938 = vector.extract_strided_slice %893 {offsets = [0, 0, 16], sizes = [2, 8, 8], strides = [1, 1, 1]} : vector<2x8x32xbf16> to vector<2x8x8xbf16>
    %939 = vector.extract_strided_slice %895 {offsets = [0, 0, 16], sizes = [2, 16, 8], strides = [1, 1, 1]} : vector<2x16x32xbf16> to vector<2x16x8xbf16>
    "tpu.trace_start"() <{level = 10 : i32, message = "bqd,bkd->bqk"}> : () -> ()
    %cst_375 = arith.constant dense<0.000000e+00> : vector<2x8x16xf32>
    %940 = tpu.matmul %938, %939, %cst_375 {dimension_numbers = #tpu.dot_dimension_numbers<[2], [2], [1], [1], [0, 0, 0, 1, 1, 1], [0], [0]>} : vector<2x8x8xbf16>, vector<2x16x8xbf16>, vector<2x8x16xf32> -> vector<2x8x16xf32>
    "tpu.trace_stop"() : () -> ()
    %cst_376 = arith.constant 0.353553385 : f32
    %941 = vector.broadcast %cst_376 : f32 to vector<2x8x16xf32>
    %942 = arith.mulf %940, %941 : vector<2x8x16xf32>
    %943 = vector.broadcast %0 : vector<2x1x16xf32> to vector<2x8x16xf32>
    %944 = arith.addf %942, %943 : vector<2x8x16xf32>
    %cst_377 = arith.constant dense<0xFF800000> : vector<2x8xf32>
    %945 = vector.multi_reduction <maximumf>, %944, %cst_377 [2] : vector<2x8x16xf32> to vector<2x8xf32>
    %946 = vector.shape_cast %945 : vector<2x8xf32> to vector<2x8x1xf32>
    %947 = vector.broadcast %946 : vector<2x8x1xf32> to vector<2x8x16xf32>
    %948 = arith.subf %944, %947 : vector<2x8x16xf32>
    %949 = math.exp %948 : vector<2x8x16xf32>
    %cst_378 = arith.constant dense<0.000000e+00> : vector<2x8xf32>
    %950 = vector.multi_reduction <add>, %949, %cst_378 [2] : vector<2x8x16xf32> to vector<2x8xf32>
    %951 = vector.shape_cast %950 : vector<2x8xf32> to vector<2x8x1xf32>
    %952 = tpu.reciprocal %951 {approx = true} : vector<2x8x1xf32> -> vector<2x8x1xf32>
    %953 = vector.broadcast %952 : vector<2x8x1xf32> to vector<2x8x16xf32>
    %954 = arith.mulf %949, %953 : vector<2x8x16xf32>
    %955 = arith.truncf %954 : vector<2x8x16xf32> to vector<2x8x16xbf16>
    %956 = vector.extract_strided_slice %897 {offsets = [0, 0, 16], sizes = [2, 16, 8], strides = [1, 1, 1]} : vector<2x16x32xbf16> to vector<2x16x8xbf16>
    "tpu.trace_start"() <{level = 10 : i32, message = "bqk,bkd->bqd"}> : () -> ()
    %cst_379 = arith.constant dense<0.000000e+00> : vector<2x8x8xf32>
    %957 = tpu.matmul %955, %956, %cst_379 {dimension_numbers = #tpu.dot_dimension_numbers<[2], [1], [1], [2], [0, 0, 0, 1, 1, 2], [0], [0]>} : vector<2x8x16xbf16>, vector<2x16x8xbf16>, vector<2x8x8xf32> -> vector<2x8x8xf32>
    "tpu.trace_stop"() : () -> ()
    %958 = vector.extract_strided_slice %893 {offsets = [0, 0, 24], sizes = [2, 8, 8], strides = [1, 1, 1]} : vector<2x8x32xbf16> to vector<2x8x8xbf16>
    %959 = vector.extract_strided_slice %895 {offsets = [0, 0, 24], sizes = [2, 16, 8], strides = [1, 1, 1]} : vector<2x16x32xbf16> to vector<2x16x8xbf16>
    "tpu.trace_start"() <{level = 10 : i32, message = "bqd,bkd->bqk"}> : () -> ()
    %cst_380 = arith.constant dense<0.000000e+00> : vector<2x8x16xf32>
    %960 = tpu.matmul %958, %959, %cst_380 {dimension_numbers = #tpu.dot_dimension_numbers<[2], [2], [1], [1], [0, 0, 0, 1, 1, 1], [0], [0]>} : vector<2x8x8xbf16>, vector<2x16x8xbf16>, vector<2x8x16xf32> -> vector<2x8x16xf32>
    "tpu.trace_stop"() : () -> ()
    %cst_381 = arith.constant 0.353553385 : f32
    %961 = vector.broadcast %cst_381 : f32 to vector<2x8x16xf32>
    %962 = arith.mulf %960, %961 : vector<2x8x16xf32>
    %963 = vector.broadcast %0 : vector<2x1x16xf32> to vector<2x8x16xf32>
    %964 = arith.addf %962, %963 : vector<2x8x16xf32>
    %cst_382 = arith.constant dense<0xFF800000> : vector<2x8xf32>
    %965 = vector.multi_reduction <maximumf>, %964, %cst_382 [2] : vector<2x8x16xf32> to vector<2x8xf32>
    %966 = vector.shape_cast %965 : vector<2x8xf32> to vector<2x8x1xf32>
    %967 = vector.broadcast %966 : vector<2x8x1xf32> to vector<2x8x16xf32>
    %968 = arith.subf %964, %967 : vector<2x8x16xf32>
    %969 = math.exp %968 : vector<2x8x16xf32>
    %cst_383 = arith.constant dense<0.000000e+00> : vector<2x8xf32>
    %970 = vector.multi_reduction <add>, %969, %cst_383 [2] : vector<2x8x16xf32> to vector<2x8xf32>
    %971 = vector.shape_cast %970 : vector<2x8xf32> to vector<2x8x1xf32>
    %972 = tpu.reciprocal %971 {approx = true} : vector<2x8x1xf32> -> vector<2x8x1xf32>
    %973 = vector.broadcast %972 : vector<2x8x1xf32> to vector<2x8x16xf32>
    %974 = arith.mulf %969, %973 : vector<2x8x16xf32>
    %975 = arith.truncf %974 : vector<2x8x16xf32> to vector<2x8x16xbf16>
    %976 = vector.extract_strided_slice %897 {offsets = [0, 0, 24], sizes = [2, 16, 8], strides = [1, 1, 1]} : vector<2x16x32xbf16> to vector<2x16x8xbf16>
    "tpu.trace_start"() <{level = 10 : i32, message = "bqk,bkd->bqd"}> : () -> ()
    %cst_384 = arith.constant dense<0.000000e+00> : vector<2x8x8xf32>
    %977 = tpu.matmul %975, %976, %cst_384 {dimension_numbers = #tpu.dot_dimension_numbers<[2], [1], [1], [2], [0, 0, 0, 1, 1, 2], [0], [0]>} : vector<2x8x16xbf16>, vector<2x16x8xbf16>, vector<2x8x8xf32> -> vector<2x8x8xf32>
    "tpu.trace_stop"() : () -> ()
    %978 = tpu.concatenate %917, %937, %957, %977 in 2 : vector<2x8x8xf32>, vector<2x8x8xf32>, vector<2x8x8xf32>, vector<2x8x8xf32> -> vector<2x8x32xf32>
    %979 = vector.shape_cast %978 : vector<2x8x32xf32> to vector<16x32xf32>
    %c1_385 = arith.constant 1 : index
    %c0_386 = arith.constant 0 : index
    %c0_387 = arith.constant 0 : index
    %980 = vector.load %arg12[%c1_385, %c0_386, %c0_387] : memref<2x32x32xbf16, #tpu.memory_space<vmem>>, vector<1x32x32xbf16>
    %981 = vector.shape_cast %980 : vector<1x32x32xbf16> to vector<32x32xbf16>
    %c1_388 = arith.constant 1 : index
    %c0_389 = arith.constant 0 : index
    %c0_390 = arith.constant 0 : index
    %982 = vector.load %arg11[%c1_388, %c0_389, %c0_390] : memref<2x1x32xf32, #tpu.memory_space<vmem>>, vector<1x1x32xf32>
    %983 = vector.shape_cast %982 : vector<1x1x32xf32> to vector<1x32xf32>
    %984 = arith.truncf %979 : vector<16x32xf32> to vector<16x32xbf16>
    %cst_391 = arith.constant dense<0.000000e+00> : vector<16x32xf32>
    %985 = tpu.matmul %984, %981, %cst_391 {dimension_numbers = #tpu.dot_dimension_numbers<[1], [0], [0], [1], [0, 0, 1, 1], [], []>} : vector<16x32xbf16>, vector<32x32xbf16>, vector<16x32xf32> -> vector<16x32xf32>
    %986 = vector.broadcast %983 : vector<1x32xf32> to vector<16x32xf32>
    %987 = arith.addf %985, %986 : vector<16x32xf32>
    %988 = arith.addf %881, %987 : vector<16x32xf32>
    %c1_392 = arith.constant 1 : index
    %c0_393 = arith.constant 0 : index
    %c0_394 = arith.constant 0 : index
    %989 = vector.load %arg22[%c1_392, %c0_393, %c0_394] : memref<2x1x32xf32, #tpu.memory_space<vmem>>, vector<1x1x32xf32>
    %990 = vector.shape_cast %989 : vector<1x1x32xf32> to vector<1x32xf32>
    %c1_395 = arith.constant 1 : index
    %c0_396 = arith.constant 0 : index
    %c0_397 = arith.constant 0 : index
    %991 = vector.load %arg21[%c1_395, %c0_396, %c0_397] : memref<2x1x32xf32, #tpu.memory_space<vmem>>, vector<1x1x32xf32>
    %992 = vector.shape_cast %991 : vector<1x1x32xf32> to vector<1x32xf32>
    %cst_398 = arith.constant dense<0.000000e+00> : vector<16xf32>
    %993 = vector.multi_reduction <add>, %988, %cst_398 [1] : vector<16x32xf32> to vector<16xf32>
    %994 = vector.shape_cast %993 : vector<16xf32> to vector<16x1xf32>
    %cst_399 = arith.constant 3.200000e+01 : f32
    %995 = vector.broadcast %cst_399 : f32 to vector<16x1xf32>
    %996 = arith.divf %994, %995 : vector<16x1xf32>
    %997 = vector.broadcast %996 : vector<16x1xf32> to vector<16x32xf32>
    %998 = arith.subf %988, %997 : vector<16x32xf32>
    %999 = arith.mulf %998, %998 : vector<16x32xf32>
    %cst_400 = arith.constant dense<0.000000e+00> : vector<16xf32>
    %1000 = vector.multi_reduction <add>, %999, %cst_400 [1] : vector<16x32xf32> to vector<16xf32>
    %1001 = vector.shape_cast %1000 : vector<16xf32> to vector<16x1xf32>
    %cst_401 = arith.constant 3.200000e+01 : f32
    %1002 = vector.broadcast %cst_401 : f32 to vector<16x1xf32>
    %1003 = arith.divf %1001, %1002 : vector<16x1xf32>
    %cst_402 = arith.constant 9.99999974E-6 : f32
    %1004 = vector.broadcast %cst_402 : f32 to vector<16x1xf32>
    %1005 = arith.addf %1003, %1004 : vector<16x1xf32>
    %1006 = math.rsqrt %1005 : vector<16x1xf32>
    %1007 = vector.broadcast %1006 : vector<16x1xf32> to vector<16x32xf32>
    %1008 = arith.mulf %998, %1007 : vector<16x32xf32>
    %1009 = vector.broadcast %990 : vector<1x32xf32> to vector<16x32xf32>
    %1010 = arith.mulf %1008, %1009 : vector<16x32xf32>
    %1011 = vector.broadcast %992 : vector<1x32xf32> to vector<16x32xf32>
    %1012 = arith.addf %1010, %1011 : vector<16x32xf32>
    %c1_403 = arith.constant 1 : index
    %c0_404 = arith.constant 0 : index
    %c0_405 = arith.constant 0 : index
    %1013 = vector.load %arg16[%c1_403, %c0_404, %c0_405] : memref<2x32x64xbf16, #tpu.memory_space<vmem>>, vector<1x32x64xbf16>
    %1014 = vector.shape_cast %1013 : vector<1x32x64xbf16> to vector<32x64xbf16>
    %c1_406 = arith.constant 1 : index
    %c0_407 = arith.constant 0 : index
    %c0_408 = arith.constant 0 : index
    %1015 = vector.load %arg15[%c1_406, %c0_407, %c0_408] : memref<2x1x64xf32, #tpu.memory_space<vmem>>, vector<1x1x64xf32>
    %1016 = vector.shape_cast %1015 : vector<1x1x64xf32> to vector<1x64xf32>
    %1017 = arith.truncf %1012 : vector<16x32xf32> to vector<16x32xbf16>
    %cst_409 = arith.constant dense<0.000000e+00> : vector<16x64xf32>
    %1018 = tpu.matmul %1017, %1014, %cst_409 {dimension_numbers = #tpu.dot_dimension_numbers<[1], [0], [0], [1], [0, 0, 1, 1], [], []>} : vector<16x32xbf16>, vector<32x64xbf16>, vector<16x64xf32> -> vector<16x64xf32>
    %1019 = vector.broadcast %1016 : vector<1x64xf32> to vector<16x64xf32>
    %1020 = arith.addf %1018, %1019 : vector<16x64xf32>
    %cst_410 = arith.constant 0.000000e+00 : f32
    %1021 = vector.broadcast %cst_410 : f32 to vector<16x64xf32>
    %1022 = arith.maximumf %1020, %1021 : vector<16x64xf32>
    %c1_411 = arith.constant 1 : index
    %c0_412 = arith.constant 0 : index
    %c0_413 = arith.constant 0 : index
    %1023 = vector.load %arg18[%c1_411, %c0_412, %c0_413] : memref<2x64x32xbf16, #tpu.memory_space<vmem>>, vector<1x64x32xbf16>
    %1024 = vector.shape_cast %1023 : vector<1x64x32xbf16> to vector<64x32xbf16>
    %c1_414 = arith.constant 1 : index
    %c0_415 = arith.constant 0 : index
    %c0_416 = arith.constant 0 : index
    %1025 = vector.load %arg17[%c1_414, %c0_415, %c0_416] : memref<2x1x32xf32, #tpu.memory_space<vmem>>, vector<1x1x32xf32>
    %1026 = vector.shape_cast %1025 : vector<1x1x32xf32> to vector<1x32xf32>
    %1027 = arith.truncf %1022 : vector<16x64xf32> to vector<16x64xbf16>
    %cst_417 = arith.constant dense<0.000000e+00> : vector<16x32xf32>
    %1028 = tpu.matmul %1027, %1024, %cst_417 {dimension_numbers = #tpu.dot_dimension_numbers<[1], [0], [0], [1], [0, 0, 1, 1], [], []>} : vector<16x64xbf16>, vector<64x32xbf16>, vector<16x32xf32> -> vector<16x32xf32>
    %1029 = vector.broadcast %1026 : vector<1x32xf32> to vector<16x32xf32>
    %1030 = arith.addf %1028, %1029 : vector<16x32xf32>
    %1031 = arith.addf %1012, %1030 : vector<16x32xf32>
    %c1_418 = arith.constant 1 : index
    %c0_419 = arith.constant 0 : index
    %c0_420 = arith.constant 0 : index
    %1032 = vector.load %arg24[%c1_418, %c0_419, %c0_420] : memref<2x1x32xf32, #tpu.memory_space<vmem>>, vector<1x1x32xf32>
    %1033 = vector.shape_cast %1032 : vector<1x1x32xf32> to vector<1x32xf32>
    %c1_421 = arith.constant 1 : index
    %c0_422 = arith.constant 0 : index
    %c0_423 = arith.constant 0 : index
    %1034 = vector.load %arg23[%c1_421, %c0_422, %c0_423] : memref<2x1x32xf32, #tpu.memory_space<vmem>>, vector<1x1x32xf32>
    %1035 = vector.shape_cast %1034 : vector<1x1x32xf32> to vector<1x32xf32>
    %cst_424 = arith.constant dense<0.000000e+00> : vector<16xf32>
    %1036 = vector.multi_reduction <add>, %1031, %cst_424 [1] : vector<16x32xf32> to vector<16xf32>
    %1037 = vector.shape_cast %1036 : vector<16xf32> to vector<16x1xf32>
    %cst_425 = arith.constant 3.200000e+01 : f32
    %1038 = vector.broadcast %cst_425 : f32 to vector<16x1xf32>
    %1039 = arith.divf %1037, %1038 : vector<16x1xf32>
    %1040 = vector.broadcast %1039 : vector<16x1xf32> to vector<16x32xf32>
    %1041 = arith.subf %1031, %1040 : vector<16x32xf32>
    %1042 = arith.mulf %1041, %1041 : vector<16x32xf32>
    %cst_426 = arith.constant dense<0.000000e+00> : vector<16xf32>
    %1043 = vector.multi_reduction <add>, %1042, %cst_426 [1] : vector<16x32xf32> to vector<16xf32>
    %1044 = vector.shape_cast %1043 : vector<16xf32> to vector<16x1xf32>
    %cst_427 = arith.constant 3.200000e+01 : f32
    %1045 = vector.broadcast %cst_427 : f32 to vector<16x1xf32>
    %1046 = arith.divf %1044, %1045 : vector<16x1xf32>
    %cst_428 = arith.constant 9.99999974E-6 : f32
    %1047 = vector.broadcast %cst_428 : f32 to vector<16x1xf32>
    %1048 = arith.addf %1046, %1047 : vector<16x1xf32>
    %1049 = math.rsqrt %1048 : vector<16x1xf32>
    %1050 = vector.broadcast %1049 : vector<16x1xf32> to vector<16x32xf32>
    %1051 = arith.mulf %1041, %1050 : vector<16x32xf32>
    %1052 = vector.broadcast %1033 : vector<1x32xf32> to vector<16x32xf32>
    %1053 = arith.mulf %1051, %1052 : vector<16x32xf32>
    %1054 = vector.broadcast %1035 : vector<1x32xf32> to vector<16x32xf32>
    %1055 = arith.addf %1053, %1054 : vector<16x32xf32>
    %c0_429 = arith.constant 0 : index
    %c0_430 = arith.constant 0 : index
    %1056 = vector.load %arg30[%c0_429, %c0_430] : memref<1x32xf32, #tpu.memory_space<vmem>>, vector<1x32xf32>
    %c0_431 = arith.constant 0 : index
    %c0_432 = arith.constant 0 : index
    %1057 = vector.load %arg29[%c0_431, %c0_432] : memref<1x32xf32, #tpu.memory_space<vmem>>, vector<1x32xf32>
    %cst_433 = arith.constant dense<0.000000e+00> : vector<16xf32>
    %1058 = vector.multi_reduction <add>, %1055, %cst_433 [1] : vector<16x32xf32> to vector<16xf32>
    %1059 = vector.shape_cast %1058 : vector<16xf32> to vector<16x1xf32>
    %cst_434 = arith.constant 3.200000e+01 : f32
    %1060 = vector.broadcast %cst_434 : f32 to vector<16x1xf32>
    %1061 = arith.divf %1059, %1060 : vector<16x1xf32>
    %1062 = vector.broadcast %1061 : vector<16x1xf32> to vector<16x32xf32>
    %1063 = arith.subf %1055, %1062 : vector<16x32xf32>
    %1064 = arith.mulf %1063, %1063 : vector<16x32xf32>
    %cst_435 = arith.constant dense<0.000000e+00> : vector<16xf32>
    %1065 = vector.multi_reduction <add>, %1064, %cst_435 [1] : vector<16x32xf32> to vector<16xf32>
    %1066 = vector.shape_cast %1065 : vector<16xf32> to vector<16x1xf32>
    %cst_436 = arith.constant 3.200000e+01 : f32
    %1067 = vector.broadcast %cst_436 : f32 to vector<16x1xf32>
    %1068 = arith.divf %1066, %1067 : vector<16x1xf32>
    %cst_437 = arith.constant 9.99999974E-6 : f32
    %1069 = vector.broadcast %cst_437 : f32 to vector<16x1xf32>
    %1070 = arith.addf %1068, %1069 : vector<16x1xf32>
    %1071 = math.rsqrt %1070 : vector<16x1xf32>
    %1072 = vector.broadcast %1071 : vector<16x1xf32> to vector<16x32xf32>
    %1073 = arith.mulf %1063, %1072 : vector<16x32xf32>
    %1074 = vector.broadcast %1056 : vector<1x32xf32> to vector<16x32xf32>
    %1075 = arith.mulf %1073, %1074 : vector<16x32xf32>
    %1076 = vector.broadcast %1057 : vector<1x32xf32> to vector<16x32xf32>
    %1077 = arith.addf %1075, %1076 : vector<16x32xf32>
    %c0_438 = arith.constant 0 : index
    %c0_439 = arith.constant 0 : index
    %1078 = vector.load %arg48[%c0_438, %c0_439] : memref<32x128xbf16, #tpu.memory_space<vmem>>, vector<32x128xbf16>
    %c0_440 = arith.constant 0 : index
    %c0_441 = arith.constant 0 : index
    %1079 = vector.load %arg47[%c0_440, %c0_441] : memref<1x128xf32, #tpu.memory_space<vmem>>, vector<1x128xf32>
    %1080 = arith.truncf %1077 : vector<16x32xf32> to vector<16x32xbf16>
    %cst_442 = arith.constant dense<0.000000e+00> : vector<16x128xf32>
    %1081 = tpu.matmul %1080, %1078, %cst_442 {dimension_numbers = #tpu.dot_dimension_numbers<[1], [0], [0], [1], [0, 0, 1, 1], [], []>} : vector<16x32xbf16>, vector<32x128xbf16>, vector<16x128xf32> -> vector<16x128xf32>
    %1082 = vector.broadcast %1079 : vector<1x128xf32> to vector<16x128xf32>
    %1083 = arith.addf %1081, %1082 : vector<16x128xf32>
    %1084 = vector.shape_cast %1083 : vector<16x128xf32> to vector<2x8x128xf32>
    %c0_443 = arith.constant 0 : index
    %c0_444 = arith.constant 0 : index
    %c0_445 = arith.constant 0 : index
    %1085 = vector.load %arg53[%c0_443, %c0_444, %c0_445] : memref<2x8x128xf32, #tpu.memory_space<vmem>>, vector<2x8x128xf32>
    tpu.vector_store %arg53[%c0_443, %c0_444, %c0_445], %1084 {strides = array<i32>} : memref<2x8x128xf32, #tpu.memory_space<vmem>>, vector<2x8x128xf32>,
    return
  }
  func.func @transform_0(%arg0: i32) -> (i32, i32, i32) {
    %c0_i32 = arith.constant 0 : i32
    %c0_i32_0 = arith.constant 0 : i32
    %c0_i32_1 = arith.constant 0 : i32
    return %arg0, %c0_i32, %c0_i32_0 : i32, i32, i32
  }
  func.func @transform_1(%arg0: i32) -> (i32, i32, i32) {
    %c0_i32 = arith.constant 0 : i32
    %c0_i32_0 = arith.constant 0 : i32
    %c0_i32_1 = arith.constant 0 : i32
    return %arg0, %c0_i32, %c0_i32_0 : i32, i32, i32
  }
  func.func @transform_2(%arg0: i32) -> (i32, i32, i32) {
    %c0_i32 = arith.constant 0 : i32
    %c0_i32_0 = arith.constant 0 : i32
    %c0_i32_1 = arith.constant 0 : i32
    return %arg0, %c0_i32, %c0_i32_0 : i32, i32, i32
  }
  func.func @transform_3(%arg0: i32) -> (i32, i32, i32) {
    %c0_i32 = arith.constant 0 : i32
    %c0_i32_0 = arith.constant 0 : i32
    %c0_i32_1 = arith.constant 0 : i32
    return %arg0, %c0_i32, %c0_i32_0 : i32, i32, i32
  }
  func.func @transform_4(%arg0: i32) -> (i32, i32) {
    %c0_i32 = arith.constant 0 : i32
    %c0_i32_0 = arith.constant 0 : i32
    %c0_i32_1 = arith.constant 0 : i32
    return %c0_i32, %c0_i32_0 : i32, i32
  }
  func.func @transform_5(%arg0: i32) -> (i32, i32) {
    %c0_i32 = arith.constant 0 : i32
    %c0_i32_0 = arith.constant 0 : i32
    %c0_i32_1 = arith.constant 0 : i32
    return %c0_i32, %c0_i32_0 : i32, i32
  }
  func.func @transform_6(%arg0: i32) -> (i32, i32) {
    %c0_i32 = arith.constant 0 : i32
    %c0_i32_0 = arith.constant 0 : i32
    %c0_i32_1 = arith.constant 0 : i32
    return %c0_i32, %c0_i32_0 : i32, i32
  }
  func.func @transform_7(%arg0: i32) -> (i32, i32) {
    %c0_i32 = arith.constant 0 : i32
    %c0_i32_0 = arith.constant 0 : i32
    %c0_i32_1 = arith.constant 0 : i32
    return %c0_i32, %c0_i32_0 : i32, i32
  }
  func.func @transform_8(%arg0: i32) -> (i32, i32) {
    %c0_i32 = arith.constant 0 : i32
    %c0_i32_0 = arith.constant 0 : i32
    %c0_i32_1 = arith.constant 0 : i32
    return %c0_i32, %c0_i32_0 : i32, i32
  }
  func.func @transform_9(%arg0: i32) -> (i32, i32) {
    %c0_i32 = arith.constant 0 : i32
    %c0_i32_0 = arith.constant 0 : i32
    %c0_i32_1 = arith.constant 0 : i32
    return %c0_i32, %c0_i32_0 : i32, i32
  }
  func.func @transform_10(%arg0: i32) -> (i32, i32, i32) {
    %c0_i32 = arith.constant 0 : i32
    %c0_i32_0 = arith.constant 0 : i32
    %c0_i32_1 = arith.constant 0 : i32
    %c0_i32_2 = arith.constant 0 : i32
    return %c0_i32, %c0_i32_0, %c0_i32_1 : i32, i32, i32
  }
  func.func @transform_11(%arg0: i32) -> (i32, i32, i32) {
    %c0_i32 = arith.constant 0 : i32
    %c0_i32_0 = arith.constant 0 : i32
    %c0_i32_1 = arith.constant 0 : i32
    %c0_i32_2 = arith.constant 0 : i32
    return %c0_i32, %c0_i32_0, %c0_i32_1 : i32, i32, i32
  }
  func.func @transform_12(%arg0: i32) -> (i32, i32, i32) {
    %c0_i32 = arith.constant 0 : i32
    %c0_i32_0 = arith.constant 0 : i32
    %c0_i32_1 = arith.constant 0 : i32
    %c0_i32_2 = arith.constant 0 : i32
    return %c0_i32, %c0_i32_0, %c0_i32_1 : i32, i32, i32
  }
  func.func @transform_13(%arg0: i32) -> (i32, i32, i32) {
    %c0_i32 = arith.constant 0 : i32
    %c0_i32_0 = arith.constant 0 : i32
    %c0_i32_1 = arith.constant 0 : i32
    %c0_i32_2 = arith.constant 0 : i32
    return %c0_i32, %c0_i32_0, %c0_i32_1 : i32, i32, i32
  }
  func.func @transform_14(%arg0: i32) -> (i32, i32, i32) {
    %c0_i32 = arith.constant 0 : i32
    %c0_i32_0 = arith.constant 0 : i32
    %c0_i32_1 = arith.constant 0 : i32
    %c0_i32_2 = arith.constant 0 : i32
    return %c0_i32, %c0_i32_0, %c0_i32_1 : i32, i32, i32
  }
  func.func @transform_15(%arg0: i32) -> (i32, i32, i32) {
    %c0_i32 = arith.constant 0 : i32
    %c0_i32_0 = arith.constant 0 : i32
    %c0_i32_1 = arith.constant 0 : i32
    %c0_i32_2 = arith.constant 0 : i32
    return %c0_i32, %c0_i32_0, %c0_i32_1 : i32, i32, i32
  }
  func.func @transform_16(%arg0: i32) -> (i32, i32, i32) {
    %c0_i32 = arith.constant 0 : i32
    %c0_i32_0 = arith.constant 0 : i32
    %c0_i32_1 = arith.constant 0 : i32
    %c0_i32_2 = arith.constant 0 : i32
    return %c0_i32, %c0_i32_0, %c0_i32_1 : i32, i32, i32
  }
  func.func @transform_17(%arg0: i32) -> (i32, i32, i32) {
    %c0_i32 = arith.constant 0 : i32
    %c0_i32_0 = arith.constant 0 : i32
    %c0_i32_1 = arith.constant 0 : i32
    %c0_i32_2 = arith.constant 0 : i32
    return %c0_i32, %c0_i32_0, %c0_i32_1 : i32, i32, i32
  }
  func.func @transform_18(%arg0: i32) -> (i32, i32, i32) {
    %c0_i32 = arith.constant 0 : i32
    %c0_i32_0 = arith.constant 0 : i32
    %c0_i32_1 = arith.constant 0 : i32
    %c0_i32_2 = arith.constant 0 : i32
    return %c0_i32, %c0_i32_0, %c0_i32_1 : i32, i32, i32
  }
  func.func @transform_19(%arg0: i32) -> (i32, i32, i32) {
    %c0_i32 = arith.constant 0 : i32
    %c0_i32_0 = arith.constant 0 : i32
    %c0_i32_1 = arith.constant 0 : i32
    %c0_i32_2 = arith.constant 0 : i32
    return %c0_i32, %c0_i32_0, %c0_i32_1 : i32, i32, i32
  }
  func.func @transform_20(%arg0: i32) -> (i32, i32, i32) {
    %c0_i32 = arith.constant 0 : i32
    %c0_i32_0 = arith.constant 0 : i32
    %c0_i32_1 = arith.constant 0 : i32
    %c0_i32_2 = arith.constant 0 : i32
    return %c0_i32, %c0_i32_0, %c0_i32_1 : i32, i32, i32
  }
  func.func @transform_21(%arg0: i32) -> (i32, i32, i32) {
    %c0_i32 = arith.constant 0 : i32
    %c0_i32_0 = arith.constant 0 : i32
    %c0_i32_1 = arith.constant 0 : i32
    %c0_i32_2 = arith.constant 0 : i32
    return %c0_i32, %c0_i32_0, %c0_i32_1 : i32, i32, i32
  }
  func.func @transform_22(%arg0: i32) -> (i32, i32, i32) {
    %c0_i32 = arith.constant 0 : i32
    %c0_i32_0 = arith.constant 0 : i32
    %c0_i32_1 = arith.constant 0 : i32
    %c0_i32_2 = arith.constant 0 : i32
    return %c0_i32, %c0_i32_0, %c0_i32_1 : i32, i32, i32
  }
  func.func @transform_23(%arg0: i32) -> (i32, i32, i32) {
    %c0_i32 = arith.constant 0 : i32
    %c0_i32_0 = arith.constant 0 : i32
    %c0_i32_1 = arith.constant 0 : i32
    %c0_i32_2 = arith.constant 0 : i32
    return %c0_i32, %c0_i32_0, %c0_i32_1 : i32, i32, i32
  }
  func.func @transform_24(%arg0: i32) -> (i32, i32, i32) {
    %c0_i32 = arith.constant 0 : i32
    %c0_i32_0 = arith.constant 0 : i32
    %c0_i32_1 = arith.constant 0 : i32
    %c0_i32_2 = arith.constant 0 : i32
    return %c0_i32, %c0_i32_0, %c0_i32_1 : i32, i32, i32
  }
  func.func @transform_25(%arg0: i32) -> (i32, i32, i32) {
    %c0_i32 = arith.constant 0 : i32
    %c0_i32_0 = arith.constant 0 : i32
    %c0_i32_1 = arith.constant 0 : i32
    %c0_i32_2 = arith.constant 0 : i32
    return %c0_i32, %c0_i32_0, %c0_i32_1 : i32, i32, i32
  }
  func.func @transform_26(%arg0: i32) -> (i32, i32, i32) {
    %c0_i32 = arith.constant 0 : i32
    %c0_i32_0 = arith.constant 0 : i32
    %c0_i32_1 = arith.constant 0 : i32
    %c0_i32_2 = arith.constant 0 : i32
    return %c0_i32, %c0_i32_0, %c0_i32_1 : i32, i32, i32
  }
  func.func @transform_27(%arg0: i32) -> (i32, i32, i32) {
    %c0_i32 = arith.constant 0 : i32
    %c0_i32_0 = arith.constant 0 : i32
    %c0_i32_1 = arith.constant 0 : i32
    %c0_i32_2 = arith.constant 0 : i32
    return %c0_i32, %c0_i32_0, %c0_i32_1 : i32, i32, i32
  }
  func.func @transform_28(%arg0: i32) -> (i32, i32) {
    %c0_i32 = arith.constant 0 : i32
    %c0_i32_0 = arith.constant 0 : i32
    %c0_i32_1 = arith.constant 0 : i32
    return %c0_i32, %c0_i32_0 : i32, i32
  }
  func.func @transform_29(%arg0: i32) -> (i32, i32) {
    %c0_i32 = arith.constant 0 : i32
    %c0_i32_0 = arith.constant 0 : i32
    %c0_i32_1 = arith.constant 0 : i32
    return %c0_i32, %c0_i32_0 : i32, i32
  }
  func.func @transform_30(%arg0: i32) -> (i32, i32) {
    %c0_i32 = arith.constant 0 : i32
    %c0_i32_0 = arith.constant 0 : i32
    %c0_i32_1 = arith.constant 0 : i32
    return %c0_i32, %c0_i32_0 : i32, i32
  }
  func.func @transform_31(%arg0: i32) -> (i32, i32) {
    %c0_i32 = arith.constant 0 : i32
    %c0_i32_0 = arith.constant 0 : i32
    %c0_i32_1 = arith.constant 0 : i32
    return %c0_i32, %c0_i32_0 : i32, i32
  }
  func.func @transform_32(%arg0: i32) -> (i32, i32, i32) {
    %c0_i32 = arith.constant 0 : i32
    %c0_i32_0 = arith.constant 0 : i32
    %c0_i32_1 = arith.constant 0 : i32
    %c0_i32_2 = arith.constant 0 : i32
    return %c0_i32, %c0_i32_0, %c0_i32_1 : i32, i32, i32
  }
  func.func @transform_33(%arg0: i32) -> (i32, i32, i32) {
    %c0_i32 = arith.constant 0 : i32
    %c0_i32_0 = arith.constant 0 : i32
    %c0_i32_1 = arith.constant 0 : i32
    %c0_i32_2 = arith.constant 0 : i32
    return %c0_i32, %c0_i32_0, %c0_i32_1 : i32, i32, i32
  }
  func.func @transform_34(%arg0: i32) -> (i32, i32, i32) {
    %c0_i32 = arith.constant 0 : i32
    %c0_i32_0 = arith.constant 0 : i32
    %c0_i32_1 = arith.constant 0 : i32
    %c0_i32_2 = arith.constant 0 : i32
    return %c0_i32, %c0_i32_0, %c0_i32_1 : i32, i32, i32
  }
  func.func @transform_35(%arg0: i32) -> (i32, i32, i32) {
    %c0_i32 = arith.constant 0 : i32
    %c0_i32_0 = arith.constant 0 : i32
    %c0_i32_1 = arith.constant 0 : i32
    %c0_i32_2 = arith.constant 0 : i32
    return %c0_i32, %c0_i32_0, %c0_i32_1 : i32, i32, i32
  }
  func.func @transform_36(%arg0: i32) -> (i32, i32, i32) {
    %c0_i32 = arith.constant 0 : i32
    %c0_i32_0 = arith.constant 0 : i32
    %c0_i32_1 = arith.constant 0 : i32
    %c0_i32_2 = arith.constant 0 : i32
    return %c0_i32, %c0_i32_0, %c0_i32_1 : i32, i32, i32
  }
  func.func @transform_37(%arg0: i32) -> (i32, i32, i32) {
    %c0_i32 = arith.constant 0 : i32
    %c0_i32_0 = arith.constant 0 : i32
    %c0_i32_1 = arith.constant 0 : i32
    %c0_i32_2 = arith.constant 0 : i32
    return %c0_i32, %c0_i32_0, %c0_i32_1 : i32, i32, i32
  }
  func.func @transform_38(%arg0: i32) -> (i32, i32, i32) {
    %c0_i32 = arith.constant 0 : i32
    %c0_i32_0 = arith.constant 0 : i32
    %c0_i32_1 = arith.constant 0 : i32
    %c0_i32_2 = arith.constant 0 : i32
    return %c0_i32, %c0_i32_0, %c0_i32_1 : i32, i32, i32
  }
  func.func @transform_39(%arg0: i32) -> (i32, i32, i32) {
    %c0_i32 = arith.constant 0 : i32
    %c0_i32_0 = arith.constant 0 : i32
    %c0_i32_1 = arith.constant 0 : i32
    %c0_i32_2 = arith.constant 0 : i32
    return %c0_i32, %c0_i32_0, %c0_i32_1 : i32, i32, i32
  }
  func.func @transform_40(%arg0: i32) -> (i32, i32, i32) {
    %c0_i32 = arith.constant 0 : i32
    %c0_i32_0 = arith.constant 0 : i32
    %c0_i32_1 = arith.constant 0 : i32
    %c0_i32_2 = arith.constant 0 : i32
    return %c0_i32, %c0_i32_0, %c0_i32_1 : i32, i32, i32
  }
  func.func @transform_41(%arg0: i32) -> (i32, i32, i32) {
    %c0_i32 = arith.constant 0 : i32
    %c0_i32_0 = arith.constant 0 : i32
    %c0_i32_1 = arith.constant 0 : i32
    %c0_i32_2 = arith.constant 0 : i32
    return %c0_i32, %c0_i32_0, %c0_i32_1 : i32, i32, i32
  }
  func.func @transform_42(%arg0: i32) -> (i32, i32, i32) {
    %c0_i32 = arith.constant 0 : i32
    %c0_i32_0 = arith.constant 0 : i32
    %c0_i32_1 = arith.constant 0 : i32
    %c0_i32_2 = arith.constant 0 : i32
    return %c0_i32, %c0_i32_0, %c0_i32_1 : i32, i32, i32
  }
  func.func @transform_43(%arg0: i32) -> (i32, i32, i32) {
    %c0_i32 = arith.constant 0 : i32
    %c0_i32_0 = arith.constant 0 : i32
    %c0_i32_1 = arith.constant 0 : i32
    %c0_i32_2 = arith.constant 0 : i32
    return %c0_i32, %c0_i32_0, %c0_i32_1 : i32, i32, i32
  }
  func.func @transform_44(%arg0: i32) -> (i32, i32) {
    %c0_i32 = arith.constant 0 : i32
    %c0_i32_0 = arith.constant 0 : i32
    %c0_i32_1 = arith.constant 0 : i32
    return %c0_i32, %c0_i32_0 : i32, i32
  }
  func.func @transform_45(%arg0: i32) -> (i32, i32) {
    %c0_i32 = arith.constant 0 : i32
    %c0_i32_0 = arith.constant 0 : i32
    %c0_i32_1 = arith.constant 0 : i32
    return %c0_i32, %c0_i32_0 : i32, i32
  }
  func.func @transform_46(%arg0: i32) -> (i32, i32) {
    %c0_i32 = arith.constant 0 : i32
    %c0_i32_0 = arith.constant 0 : i32
    %c0_i32_1 = arith.constant 0 : i32
    return %c0_i32, %c0_i32_0 : i32, i32
  }
  func.func @transform_47(%arg0: i32) -> (i32, i32) {
    %c0_i32 = arith.constant 0 : i32
    %c0_i32_0 = arith.constant 0 : i32
    %c0_i32_1 = arith.constant 0 : i32
    return %c0_i32, %c0_i32_0 : i32, i32
  }
  func.func @transform_48(%arg0: i32) -> (i32, i32) {
    %c0_i32 = arith.constant 0 : i32
    %c0_i32_0 = arith.constant 0 : i32
    %c0_i32_1 = arith.constant 0 : i32
    return %c0_i32, %c0_i32_0 : i32, i32
  }
  func.func @transform_49(%arg0: i32) -> (i32, i32) {
    %c0_i32 = arith.constant 0 : i32
    %c0_i32_0 = arith.constant 0 : i32
    %c0_i32_1 = arith.constant 0 : i32
    return %c0_i32, %c0_i32_0 : i32, i32
  }
  func.func @transform_50(%arg0: i32) -> (i32, i32) {
    %c0_i32 = arith.constant 0 : i32
    %c0_i32_0 = arith.constant 0 : i32
    %c0_i32_1 = arith.constant 0 : i32
    return %c0_i32, %c0_i32_0 : i32, i32
  }
  func.func @transform_51(%arg0: i32) -> (i32, i32) {
    %c0_i32 = arith.constant 0 : i32
    %c0_i32_0 = arith.constant 0 : i32
    %c0_i32_1 = arith.constant 0 : i32
    return %c0_i32, %c0_i32_0 : i32, i32
  }
  func.func @transform_52(%arg0: i32) -> (i32, i32, i32) {
    %c0_i32 = arith.constant 0 : i32
    %c0_i32_0 = arith.constant 0 : i32
    %c0_i32_1 = arith.constant 0 : i32
    return %arg0, %c0_i32, %c0_i32_0 : i32, i32, i32
  }
}

</mosaic_0001>

<llo_original>
// kernel: machine_translation_forward.1
$region0: #{machine_translation_forward.1}
  #allocation0 [shape = 'u32[]', space=smem, size = 0x4, offset = 0x4, fixed_abs, tag = 'smem constant byte address 0x4 - core index']
  #allocation1 [shape = 'u32[144,128]{1,0:T(1,128)}', space=vmem, size = 0x12000, scoped, tag = 'internal scratch']
  %s0 = inlined_call_operand.smem [shape: u32[53], index: -1, kind: input, shape index: {}]
  %s1 = sld [smem:[%s0]]
  %s2 = scalar_lea.smem %s0, 1
  %s3 = sld [smem:[%s2]]
  %s4 = scalar_lea.smem %s0, 2
  %s5 = sld [smem:[%s4]]
  %s6 = scalar_lea.smem %s0, 3
  %s7 = sld [smem:[%s6]]
  %s8 = scalar_lea.smem %s0, 4
  %s9 = sld [smem:[%s8]]
  %s10 = scalar_lea.smem %s0, 5
  %s11 = sld [smem:[%s10]]
  %s12 = scalar_lea.smem %s0, 6
  %s13 = sld [smem:[%s12]]
  %s14 = scalar_lea.smem %s0, 7
  %s15 = sld [smem:[%s14]]
  %s16 = scalar_lea.smem %s0, 8
  %s17 = sld [smem:[%s16]]
  %s18 = scalar_lea.smem %s0, 9
  %s19 = sld [smem:[%s18]]
  %s20 = scalar_lea.smem %s0, 10
  %s21 = sld [smem:[%s20]]
  %s22 = scalar_lea.smem %s0, 11
  %s23 = sld [smem:[%s22]]
  %s24 = scalar_lea.smem %s0, 12
  %s25 = sld [smem:[%s24]]
  %s26 = scalar_lea.smem %s0, 13
  %s27 = sld [smem:[%s26]]
  %s28 = scalar_lea.smem %s0, 14
  %s29 = sld [smem:[%s28]]
  %s30 = scalar_lea.smem %s0, 15
  %s31 = sld [smem:[%s30]]
  %s32 = scalar_lea.smem %s0, 16
  %s33 = sld [smem:[%s32]]
  %s34 = scalar_lea.smem %s0, 17
  %s35 = sld [smem:[%s34]]
  %s36 = scalar_lea.smem %s0, 18
  %s37 = sld [smem:[%s36]]
  %s38 = scalar_lea.smem %s0, 19
  %s39 = sld [smem:[%s38]]
  %s40 = scalar_lea.smem %s0, 20
  %s41 = sld [smem:[%s40]]
  %s42 = scalar_lea.smem %s0, 21
  %s43 = sld [smem:[%s42]]
  %s44 = scalar_lea.smem %s0, 22
  %s45 = sld [smem:[%s44]]
  %s46 = scalar_lea.smem %s0, 23
  %s47 = sld [smem:[%s46]]
  %s48 = scalar_lea.smem %s0, 24
  %s49 = sld [smem:[%s48]]
  %s50 = scalar_lea.smem %s0, 25
  %s51 = sld [smem:[%s50]]
  %s52 = scalar_lea.smem %s0, 26
  %s53 = sld [smem:[%s52]]
  %s54 = scalar_lea.smem %s0, 27
  %s55 = sld [smem:[%s54]]
  %s56 = scalar_lea.smem %s0, 28
  %s57 = sld [smem:[%s56]]
  %s58 = scalar_lea.smem %s0, 29
  %s59 = sld [smem:[%s58]]
  %s60 = scalar_lea.smem %s0, 30
  %s61 = sld [smem:[%s60]]
  %s62 = scalar_lea.smem %s0, 31
  %s63 = sld [smem:[%s62]]
  %s64 = scalar_lea.smem %s0, 32
  %s65 = sld [smem:[%s64]]
  %s66 = scalar_lea.smem %s0, 33
  %s67 = sld [smem:[%s66]]
  %s68 = scalar_lea.smem %s0, 34
  %s69 = sld [smem:[%s68]]
  %s70 = scalar_lea.smem %s0, 35
  %s71 = sld [smem:[%s70]]
  %s72 = scalar_lea.smem %s0, 36
  %s73 = sld [smem:[%s72]]
  %s74 = scalar_lea.smem %s0, 37
  %s75 = sld [smem:[%s74]]
  %s76 = scalar_lea.smem %s0, 38
  %s77 = sld [smem:[%s76]]
  %s78 = scalar_lea.smem %s0, 39
  %s79 = sld [smem:[%s78]]
  %s80 = scalar_lea.smem %s0, 40
  %s81 = sld [smem:[%s80]]
  %s82 = scalar_lea.smem %s0, 41
  %s83 = sld [smem:[%s82]]
  %s84 = scalar_lea.smem %s0, 42
  %s85 = sld [smem:[%s84]]
  %s86 = scalar_lea.smem %s0, 43
  %s87 = sld [smem:[%s86]]
  %s88 = scalar_lea.smem %s0, 44
  %s89 = sld [smem:[%s88]]
  %s90 = scalar_lea.smem %s0, 45
  %s91 = sld [smem:[%s90]]
  %s92 = scalar_lea.smem %s0, 46
  %s93 = sld [smem:[%s92]]
  %s94 = scalar_lea.smem %s0, 47
  %s95 = sld [smem:[%s94]]
  %s96 = scalar_lea.smem %s0, 48
  %s97 = sld [smem:[%s96]]
  %s98 = scalar_lea.smem %s0, 49
  %s99 = sld [smem:[%s98]]
  %s100 = scalar_lea.smem %s0, 50
  %s101 = sld [smem:[%s100]]
  %s102 = scalar_lea.smem %s0, 51
  %s103 = sld [smem:[%s102]]
  %s104 = scalar_lea.smem %s0, 52
  %s105 = sld [smem:[%s104]]
  %s106 = sld [smem:[#allocation0]]
  $region262: #{machine_translation_forward.1} parent=0
    _
  %s108 = ssub.s32 1, %s106
  %s109 = scalar_select 0, %s108, %s106
  $region1: #{machine_translation_forward.1} parent=0
    #allocation2 [shape = 'u8[512]{0}', space=vmem, size = 0x400, scoped, tag = 'input window, operand 8, single buffered']
    #allocation3 [shape = 's32[1]{0}', space=sflag, size = 0x4, scoped, tag = 'scoped memory for machine_translation_forward.1']
    #allocation4 [shape = 's32[1]{0}', space=sflag, size = 0x4, scoped, tag = 'scoped memory for machine_translation_forward.1']
    #allocation5 [shape = 'u8[512]{0}', space=vmem, size = 0x400, scoped, tag = 'input window, operand 28, single buffered']
    #allocation6 [shape = 's32[1]{0}', space=sflag, size = 0x4, scoped, tag = 'scoped memory for machine_translation_forward.1']
    #allocation7 [shape = 'u8[512]{0}', space=vmem, size = 0x400, scoped, tag = 'input window, operand 29, single buffered']
    #allocation8 [shape = 'u8[512]{0}', space=vmem, size = 0x400, scoped, tag = 'input window, operand 30, single buffered']
    #allocation9 [shape = 's32[1]{0}', space=sflag, size = 0x4, scoped, tag = 'scoped memory for machine_translation_forward.1']
    #allocation10 [shape = 'u8[512]{0}', space=vmem, size = 0x400, scoped, tag = 'input window, operand 44, single buffered']
    #allocation11 [shape = 'u8[512]{0}', space=vmem, size = 0x400, scoped, tag = 'input window, operand 45, single buffered']
    #allocation12 [shape = 's32[1]{0}', space=sflag, size = 0x4, scoped, tag = 'scoped memory for machine_translation_forward.1']
    #allocation13 [shape = 'u8[512]{0}', space=vmem, size = 0x400, scoped, tag = 'input window, operand 46, single buffered']
    #allocation14 [shape = 'u8[512]{0}', space=vmem, size = 0x400, scoped, tag = 'input window, operand 48, single buffered']
    #allocation15 [shape = 's32[1]{0}', space=sflag, size = 0x4, scoped, tag = 'scoped memory for machine_translation_forward.1']
    #allocation16 [shape = 'u8[512]{0}', space=vmem, size = 0x400, scoped, tag = 'input window, operand 49, single buffered']
    #allocation17 [shape = 'u8[512]{0}', space=vmem, size = 0x400, scoped, tag = 'input window, operand 50, single buffered']
    #allocation18 [shape = 's32[1]{0}', space=sflag, size = 0x4, scoped, tag = 'scoped memory for machine_translation_forward.1']
    #allocation19 [shape = 'u8[512]{0}', space=vmem, size = 0x400, scoped, tag = 'input window, operand 51, single buffered']
    #allocation20 [shape = 'u8[8192]{0}', space=vmem, size = 0x2000, scoped, tag = 'output window, operand 0, single buffered']
    %110 = vsyncpa [#allocation3], 0
    %111 = vsyncpa [#allocation6], 0
    %112 = vsyncpa [#allocation9], 0
    %113 = vsyncpa [#allocation12], 0
    %114 = vsyncpa [#allocation15], 0
    %115 = vsyncpa [#allocation18], 0
    %116 = vsyncpa [#allocation4], 0
    // Predicated region
    $region2: #{machine_translation_forward.1} parent=1 // pred_check
      _
    $region3: #{machine_translation_forward.1} parent=1 // pred_check_branch
      %118 = sbr.rel (0) target = $region5
    $region4: #{machine_translation_forward.1} parent=1 // pred_region
      _
    $region5: #{machine_translation_forward.1} parent=1 // pred_fallthru
      _
    // Predicated region
    $region6: #{machine_translation_forward.1} parent=1 // pred_check
      _
    $region7: #{machine_translation_forward.1} parent=1 // pred_check_branch
      %120 = sbr.rel (0) target = $region9
    $region8: #{machine_translation_forward.1} parent=1 // pred_region
      _
    $region9: #{machine_translation_forward.1} parent=1 // pred_fallthru
      _
    // Predicated region
    $region10: #{machine_translation_forward.1} parent=1 // pred_check
      _
    $region11: #{machine_translation_forward.1} parent=1 // pred_check_branch
      %122 = sbr.rel (0) target = $region13
    $region12: #{machine_translation_forward.1} parent=1 // pred_region
      _
    $region13: #{machine_translation_forward.1} parent=1 // pred_fallthru
      _
    // Predicated region
    $region14: #{machine_translation_forward.1} parent=1 // pred_check
      _
    $region15: #{machine_translation_forward.1} parent=1 // pred_check_branch
      %124 = sbr.rel (0) target = $region17
    $region16: #{machine_translation_forward.1} parent=1 // pred_region
      _
    $region17: #{machine_translation_forward.1} parent=1 // pred_fallthru
      _
    // Predicated region
    $region18: #{machine_translation_forward.1} parent=1 // pred_check
      _
    $region19: #{machine_translation_forward.1} parent=1 // pred_check_branch
      %126 = sbr.rel (0) target = $region21
    $region20: #{machine_translation_forward.1} parent=1 // pred_region
      _
    $region21: #{machine_translation_forward.1} parent=1 // pred_fallthru
      _
    // Predicated region
    $region22: #{machine_translation_forward.1} parent=1 // pred_check
      _
    $region23: #{machine_translation_forward.1} parent=1 // pred_check_branch
      %128 = sbr.rel (0) target = $region25
    $region24: #{machine_translation_forward.1} parent=1 // pred_region
      _
    $region25: #{machine_translation_forward.1} parent=1 // pred_fallthru
      _
    // Predicated region
    $region26: #{machine_translation_forward.1} parent=1 // pred_check
      _
    $region27: #{machine_translation_forward.1} parent=1 // pred_check_branch
      %130 = sbr.rel (0) target = $region29
    $region28: #{machine_translation_forward.1} parent=1 // pred_region
      _
    $region29: #{machine_translation_forward.1} parent=1 // pred_fallthru
      _
    // Predicated region
    $region30: #{machine_translation_forward.1} parent=1 // pred_check
      _
    $region31: #{machine_translation_forward.1} parent=1 // pred_check_branch
      %132 = sbr.rel (0) target = $region33
    $region32: #{machine_translation_forward.1} parent=1 // pred_region
      _
    $region33: #{machine_translation_forward.1} parent=1 // pred_fallthru
      _
    // Predicated region
    $region34: #{machine_translation_forward.1} parent=1 // pred_check
      _
    $region35: #{machine_translation_forward.1} parent=1 // pred_check_branch
      %134 = sbr.rel (0) target = $region37
    $region36: #{machine_translation_forward.1} parent=1 // pred_region
      %s136 = ssub.s32 16, 16
      %137 = vsyncadd [#allocation3], %s136
      %s139 = sshll.u32 [#allocation2], 4
      %s140 = int_to_ptr.vmem [resolvable:$true] %s139
      %142 = dma.hbm_to_vmem [thread:$0]  %s17, 16, %s140, [#allocation3]
    $region37: #{machine_translation_forward.1} parent=1 // pred_fallthru
      _
    // Predicated region
    $region38: #{machine_translation_forward.1} parent=1 // pred_check
      _
    $region39: #{machine_translation_forward.1} parent=1 // pred_check_branch
      %144 = sbr.rel (0) target = $region41
    $region40: #{machine_translation_forward.1} parent=1 // pred_region
      _
    $region41: #{machine_translation_forward.1} parent=1 // pred_fallthru
      _
    // Predicated region
    $region42: #{machine_translation_forward.1} parent=1 // pred_check
      _
    $region43: #{machine_translation_forward.1} parent=1 // pred_check_branch
      %146 = sbr.rel (0) target = $region45
    $region44: #{machine_translation_forward.1} parent=1 // pred_region
      _
    $region45: #{machine_translation_forward.1} parent=1 // pred_fallthru
      _
    // Predicated region
    $region46: #{machine_translation_forward.1} parent=1 // pred_check
      _
    $region47: #{machine_translation_forward.1} parent=1 // pred_check_branch
      %148 = sbr.rel (0) target = $region49
    $region48: #{machine_translation_forward.1} parent=1 // pred_region
      _
    $region49: #{machine_translation_forward.1} parent=1 // pred_fallthru
      _
    // Predicated region
    $region50: #{machine_translation_forward.1} parent=1 // pred_check
      _
    $region51: #{machine_translation_forward.1} parent=1 // pred_check_branch
      %150 = sbr.rel (0) target = $region53
    $region52: #{machine_translation_forward.1} parent=1 // pred_region
      _
    $region53: #{machine_translation_forward.1} parent=1 // pred_fallthru
      _
    // Predicated region
    $region54: #{machine_translation_forward.1} parent=1 // pred_check
      _
    $region55: #{machine_translation_forward.1} parent=1 // pred_check_branch
      %152 = sbr.rel (0) target = $region57
    $region56: #{machine_translation_forward.1} parent=1 // pred_region
      _
    $region57: #{machine_translation_forward.1} parent=1 // pred_fallthru
      _
    // Predicated region
    $region58: #{machine_translation_forward.1} parent=1 // pred_check
      _
    $region59: #{machine_translation_forward.1} parent=1 // pred_check_branch
      %154 = sbr.rel (0) target = $region61
    $region60: #{machine_translation_forward.1} parent=1 // pred_region
      _
    $region61: #{machine_translation_forward.1} parent=1 // pred_fallthru
      _
    // Predicated region
    $region62: #{machine_translation_forward.1} parent=1 // pred_check
      _
    $region63: #{machine_translation_forward.1} parent=1 // pred_check_branch
      %156 = sbr.rel (0) target = $region65
    $region64: #{machine_translation_forward.1} parent=1 // pred_region
      _
    $region65: #{machine_translation_forward.1} parent=1 // pred_fallthru
      _
    // Predicated region
    $region66: #{machine_translation_forward.1} parent=1 // pred_check
      _
    $region67: #{machine_translation_forward.1} parent=1 // pred_check_branch
      %158 = sbr.rel (0) target = $region69
    $region68: #{machine_translation_forward.1} parent=1 // pred_region
      _
    $region69: #{machine_translation_forward.1} parent=1 // pred_fallthru
      _
    // Predicated region
    $region70: #{machine_translation_forward.1} parent=1 // pred_check
      _
    $region71: #{machine_translation_forward.1} parent=1 // pred_check_branch
      %160 = sbr.rel (0) target = $region73
    $region72: #{machine_translation_forward.1} parent=1 // pred_region
      _
    $region73: #{machine_translation_forward.1} parent=1 // pred_fallthru
      _
    // Predicated region
    $region74: #{machine_translation_forward.1} parent=1 // pred_check
      _
    $region75: #{machine_translation_forward.1} parent=1 // pred_check_branch
      %162 = sbr.rel (0) target = $region77
    $region76: #{machine_translation_forward.1} parent=1 // pred_region
      _
    $region77: #{machine_translation_forward.1} parent=1 // pred_fallthru
      _
    // Predicated region
    $region78: #{machine_translation_forward.1} parent=1 // pred_check
      _
    $region79: #{machine_translation_forward.1} parent=1 // pred_check_branch
      %164 = sbr.rel (0) target = $region81
    $region80: #{machine_translation_forward.1} parent=1 // pred_region
      _
    $region81: #{machine_translation_forward.1} parent=1 // pred_fallthru
      _
    // Predicated region
    $region82: #{machine_translation_forward.1} parent=1 // pred_check
      _
    $region83: #{machine_translation_forward.1} parent=1 // pred_check_branch
      %166 = sbr.rel (0) target = $region85
    $region84: #{machine_translation_forward.1} parent=1 // pred_region
      _
    $region85: #{machine_translation_forward.1} parent=1 // pred_fallthru
      _
    // Predicated region
    $region86: #{machine_translation_forward.1} parent=1 // pred_check
      _
    $region87: #{machine_translation_forward.1} parent=1 // pred_check_branch
      %168 = sbr.rel (0) target = $region89
    $region88: #{machine_translation_forward.1} parent=1 // pred_region
      _
    $region89: #{machine_translation_forward.1} parent=1 // pred_fallthru
      _
    // Predicated region
    $region90: #{machine_translation_forward.1} parent=1 // pred_check
      _
    $region91: #{machine_translation_forward.1} parent=1 // pred_check_branch
      %170 = sbr.rel (0) target = $region93
    $region92: #{machine_translation_forward.1} parent=1 // pred_region
      _
    $region93: #{machine_translation_forward.1} parent=1 // pred_fallthru
      _
    // Predicated region
    $region94: #{machine_translation_forward.1} parent=1 // pred_check
      _
    $region95: #{machine_translation_forward.1} parent=1 // pred_check_branch
      %172 = sbr.rel (0) target = $region97
    $region96: #{machine_translation_forward.1} parent=1 // pred_region
      _
    $region97: #{machine_translation_forward.1} parent=1 // pred_fallthru
      _
    // Predicated region
    $region98: #{machine_translation_forward.1} parent=1 // pred_check
      _
    $region99: #{machine_translation_forward.1} parent=1 // pred_check_branch
      %174 = sbr.rel (0) target = $region101
    $region100: #{machine_translation_forward.1} parent=1 // pred_region
      _
    $region101: #{machine_translation_forward.1} parent=1 // pred_fallthru
      _
    // Predicated region
    $region102: #{machine_translation_forward.1} parent=1 // pred_check
      _
    $region103: #{machine_translation_forward.1} parent=1 // pred_check_branch
      %176 = sbr.rel (0) target = $region105
    $region104: #{machine_translation_forward.1} parent=1 // pred_region
      _
    $region105: #{machine_translation_forward.1} parent=1 // pred_fallthru
      _
    // Predicated region
    $region106: #{machine_translation_forward.1} parent=1 // pred_check
      _
    $region107: #{machine_translation_forward.1} parent=1 // pred_check_branch
      %178 = sbr.rel (0) target = $region109
    $region108: #{machine_translation_forward.1} parent=1 // pred_region
      _
    $region109: #{machine_translation_forward.1} parent=1 // pred_fallthru
      _
    // Predicated region
    $region110: #{machine_translation_forward.1} parent=1 // pred_check
      _
    $region111: #{machine_translation_forward.1} parent=1 // pred_check_branch
      %180 = sbr.rel (0) target = $region113
    $region112: #{machine_translation_forward.1} parent=1 // pred_region
      _
    $region113: #{machine_translation_forward.1} parent=1 // pred_fallthru
      _
    // Predicated region
    $region114: #{machine_translation_forward.1} parent=1 // pred_check
      _
    $region115: #{machine_translation_forward.1} parent=1 // pred_check_branch
      %182 = sbr.rel (0) target = $region117
    $region116: #{machine_translation_forward.1} parent=1 // pred_region
      %s184 = ssub.s32 16, 16
      %185 = vsyncadd [#allocation6], %s184
      %s187 = sshll.u32 [#allocation5], 4
      %s188 = int_to_ptr.vmem [resolvable:$true] %s187
      %190 = dma.hbm_to_vmem [thread:$0]  %s57, 16, %s188, [#allocation6]
    $region117: #{machine_translation_forward.1} parent=1 // pred_fallthru
      _
    // Predicated region
    $region118: #{machine_translation_forward.1} parent=1 // pred_check
      _
    $region119: #{machine_translation_forward.1} parent=1 // pred_check_branch
      %192 = sbr.rel (0) target = $region121
    $region120: #{machine_translation_forward.1} parent=1 // pred_region
      %s194 = ssub.s32 16, 16
      %195 = vsyncadd [#allocation6], %s194
      %s197 = sshll.u32 [#allocation7], 4
      %s198 = int_to_ptr.vmem [resolvable:$true] %s197
      %200 = dma.hbm_to_vmem [thread:$0]  %s59, 16, %s198, [#allocation6]
    $region121: #{machine_translation_forward.1} parent=1 // pred_fallthru
      _
    // Predicated region
    $region122: #{machine_translation_forward.1} parent=1 // pred_check
      _
    $region123: #{machine_translation_forward.1} parent=1 // pred_check_branch
      %202 = sbr.rel (0) target = $region125
    $region124: #{machine_translation_forward.1} parent=1 // pred_region
      %s204 = ssub.s32 16, 16
      %205 = vsyncadd [#allocation9], %s204
      %s207 = sshll.u32 [#allocation8], 4
      %s208 = int_to_ptr.vmem [resolvable:$true] %s207
      %210 = dma.hbm_to_vmem [thread:$0]  %s61, 16, %s208, [#allocation9]
    $region125: #{machine_translation_forward.1} parent=1 // pred_fallthru
      _
    // Predicated region
    $region126: #{machine_translation_forward.1} parent=1 // pred_check
      _
    $region127: #{machine_translation_forward.1} parent=1 // pred_check_branch
      %212 = sbr.rel (0) target = $region129
    $region128: #{machine_translation_forward.1} parent=1 // pred_region
      _
    $region129: #{machine_translation_forward.1} parent=1 // pred_fallthru
      _
    // Predicated region
    $region130: #{machine_translation_forward.1} parent=1 // pred_check
      _
    $region131: #{machine_translation_forward.1} parent=1 // pred_check_branch
      %214 = sbr.rel (0) target = $region133
    $region132: #{machine_translation_forward.1} parent=1 // pred_region
      _
    $region133: #{machine_translation_forward.1} parent=1 // pred_fallthru
      _
    // Predicated region
    $region134: #{machine_translation_forward.1} parent=1 // pred_check
      _
    $region135: #{machine_translation_forward.1} parent=1 // pred_check_branch
      %216 = sbr.rel (0) target = $region137
    $region136: #{machine_translation_forward.1} parent=1 // pred_region
      _
    $region137: #{machine_translation_forward.1} parent=1 // pred_fallthru
      _
    // Predicated region
    $region138: #{machine_translation_forward.1} parent=1 // pred_check
      _
    $region139: #{machine_translation_forward.1} parent=1 // pred_check_branch
      %218 = sbr.rel (0) target = $region141
    $region140: #{machine_translation_forward.1} parent=1 // pred_region
      _
    $region141: #{machine_translation_forward.1} parent=1 // pred_fallthru
      _
    // Predicated region
    $region142: #{machine_translation_forward.1} parent=1 // pred_check
      _
    $region143: #{machine_translation_forward.1} parent=1 // pred_check_branch
      %220 = sbr.rel (0) target = $region145
    $region144: #{machine_translation_forward.1} parent=1 // pred_region
      _
    $region145: #{machine_translation_forward.1} parent=1 // pred_fallthru
      _
    // Predicated region
    $region146: #{machine_translation_forward.1} parent=1 // pred_check
      _
    $region147: #{machine_translation_forward.1} parent=1 // pred_check_branch
      %222 = sbr.rel (0) target = $region149
    $region148: #{machine_translation_forward.1} parent=1 // pred_region
      _
    $region149: #{machine_translation_forward.1} parent=1 // pred_fallthru
      _
    // Predicated region
    $region150: #{machine_translation_forward.1} parent=1 // pred_check
      _
    $region151: #{machine_translation_forward.1} parent=1 // pred_check_branch
      %224 = sbr.rel (0) target = $region153
    $region152: #{machine_translation_forward.1} parent=1 // pred_region
      _
    $region153: #{machine_translation_forward.1} parent=1 // pred_fallthru
      _
    // Predicated region
    $region154: #{machine_translation_forward.1} parent=1 // pred_check
      _
    $region155: #{machine_translation_forward.1} parent=1 // pred_check_branch
      %226 = sbr.rel (0) target = $region157
    $region156: #{machine_translation_forward.1} parent=1 // pred_region
      _
    $region157: #{machine_translation_forward.1} parent=1 // pred_fallthru
      _
    // Predicated region
    $region158: #{machine_translation_forward.1} parent=1 // pred_check
      _
    $region159: #{machine_translation_forward.1} parent=1 // pred_check_branch
      %228 = sbr.rel (0) target = $region161
    $region160: #{machine_translation_forward.1} parent=1 // pred_region
      _
    $region161: #{machine_translation_forward.1} parent=1 // pred_fallthru
      _
    // Predicated region
    $region162: #{machine_translation_forward.1} parent=1 // pred_check
      _
    $region163: #{machine_translation_forward.1} parent=1 // pred_check_branch
      %230 = sbr.rel (0) target = $region165
    $region164: #{machine_translation_forward.1} parent=1 // pred_region
      _
    $region165: #{machine_translation_forward.1} parent=1 // pred_fallthru
      _
    // Predicated region
    $region166: #{machine_translation_forward.1} parent=1 // pred_check
      _
    $region167: #{machine_translation_forward.1} parent=1 // pred_check_branch
      %232 = sbr.rel (0) target = $region169
    $region168: #{machine_translation_forward.1} parent=1 // pred_region
      _
    $region169: #{machine_translation_forward.1} parent=1 // pred_fallthru
      _
    // Predicated region
    $region170: #{machine_translation_forward.1} parent=1 // pred_check
      _
    $region171: #{machine_translation_forward.1} parent=1 // pred_check_branch
      %234 = sbr.rel (0) target = $region173
    $region172: #{machine_translation_forward.1} parent=1 // pred_region
      _
    $region173: #{machine_translation_forward.1} parent=1 // pred_fallthru
      _
    // Predicated region
    $region174: #{machine_translation_forward.1} parent=1 // pred_check
      _
    $region175: #{machine_translation_forward.1} parent=1 // pred_check_branch
      %236 = sbr.rel (0) target = $region177
    $region176: #{machine_translation_forward.1} parent=1 // pred_region
      _
    $region177: #{machine_translation_forward.1} parent=1 // pred_fallthru
      _
    // Predicated region
    $region178: #{machine_translation_forward.1} parent=1 // pred_check
      _
    $region179: #{machine_translation_forward.1} parent=1 // pred_check_branch
      %238 = sbr.rel (0) target = $region181
    $region180: #{machine_translation_forward.1} parent=1 // pred_region
      %s240 = ssub.s32 16, 16
      %241 = vsyncadd [#allocation9], %s240
      %s243 = sshll.u32 [#allocation10], 4
      %s244 = int_to_ptr.vmem [resolvable:$true] %s243
      %246 = dma.hbm_to_vmem [thread:$0]  %s89, 16, %s244, [#allocation9]
    $region181: #{machine_translation_forward.1} parent=1 // pred_fallthru
      _
    // Predicated region
    $region182: #{machine_translation_forward.1} parent=1 // pred_check
      _
    $region183: #{machine_translation_forward.1} parent=1 // pred_check_branch
      %248 = sbr.rel (0) target = $region185
    $region184: #{machine_translation_forward.1} parent=1 // pred_region
      %s250 = ssub.s32 16, 16
      %251 = vsyncadd [#allocation12], %s250
      %s253 = sshll.u32 [#allocation11], 4
      %s254 = int_to_ptr.vmem [resolvable:$true] %s253
      %256 = dma.hbm_to_vmem [thread:$0]  %s91, 16, %s254, [#allocation12]
    $region185: #{machine_translation_forward.1} parent=1 // pred_fallthru
      _
    // Predicated region
    $region186: #{machine_translation_forward.1} parent=1 // pred_check
      _
    $region187: #{machine_translation_forward.1} parent=1 // pred_check_branch
      %258 = sbr.rel (0) target = $region189
    $region188: #{machine_translation_forward.1} parent=1 // pred_region
      %s260 = ssub.s32 16, 16
      %261 = vsyncadd [#allocation12], %s260
      %s263 = sshll.u32 [#allocation13], 4
      %s264 = int_to_ptr.vmem [resolvable:$true] %s263
      %266 = dma.hbm_to_vmem [thread:$0]  %s93, 16, %s264, [#allocation12]
    $region189: #{machine_translation_forward.1} parent=1 // pred_fallthru
      _
    // Predicated region
    $region190: #{machine_translation_forward.1} parent=1 // pred_check
      _
    $region191: #{machine_translation_forward.1} parent=1 // pred_check_branch
      %268 = sbr.rel (0) target = $region193
    $region192: #{machine_translation_forward.1} parent=1 // pred_region
      _
    $region193: #{machine_translation_forward.1} parent=1 // pred_fallthru
      _
    // Predicated region
    $region194: #{machine_translation_forward.1} parent=1 // pred_check
      _
    $region195: #{machine_translation_forward.1} parent=1 // pred_check_branch
      %270 = sbr.rel (0) target = $region197
    $region196: #{machine_translation_forward.1} parent=1 // pred_region
      %s272 = ssub.s32 16, 16
      %273 = vsyncadd [#allocation15], %s272
      %s275 = sshll.u32 [#allocation14], 4
      %s276 = int_to_ptr.vmem [resolvable:$true] %s275
      %278 = dma.hbm_to_vmem [thread:$0]  %s97, 16, %s276, [#allocation15]
    $region197: #{machine_translation_forward.1} parent=1 // pred_fallthru
      _
    // Predicated region
    $region198: #{machine_translation_forward.1} parent=1 // pred_check
      _
    $region199: #{machine_translation_forward.1} parent=1 // pred_check_branch
      %280 = sbr.rel (0) target = $region201
    $region200: #{machine_translation_forward.1} parent=1 // pred_region
      %s282 = ssub.s32 16, 16
      %283 = vsyncadd [#allocation15], %s282
      %s285 = sshll.u32 [#allocation16], 4
      %s286 = int_to_ptr.vmem [resolvable:$true] %s285
      %288 = dma.hbm_to_vmem [thread:$0]  %s99, 16, %s286, [#allocation15]
    $region201: #{machine_translation_forward.1} parent=1 // pred_fallthru
      _
    // Predicated region
    $region202: #{machine_translation_forward.1} parent=1 // pred_check
      _
    $region203: #{machine_translation_forward.1} parent=1 // pred_check_branch
      %290 = sbr.rel (0) target = $region205
    $region204: #{machine_translation_forward.1} parent=1 // pred_region
      %s292 = ssub.s32 16, 16
      %293 = vsyncadd [#allocation18], %s292
      %s295 = sshll.u32 [#allocation17], 4
      %s296 = int_to_ptr.vmem [resolvable:$true] %s295
      %298 = dma.hbm_to_vmem [thread:$0]  %s101, 16, %s296, [#allocation18]
    $region205: #{machine_translation_forward.1} parent=1 // pred_fallthru
      _
    // Predicated region
    $region206: #{machine_translation_forward.1} parent=1 // pred_check
      _
    $region207: #{machine_translation_forward.1} parent=1 // pred_check_branch
      %300 = sbr.rel (0) target = $region209
    $region208: #{machine_translation_forward.1} parent=1 // pred_region
      %s302 = ssub.s32 16, 16
      %303 = vsyncadd [#allocation18], %s302
      %s305 = sshll.u32 [#allocation19], 4
      %s306 = int_to_ptr.vmem [resolvable:$true] %s305
      %308 = dma.hbm_to_vmem [thread:$0]  %s103, 16, %s306, [#allocation18]
    $region209: #{machine_translation_forward.1} parent=1 // pred_fallthru
      _
    // Predicated region
    $region210: #{machine_translation_forward.1} parent=1 // pred_check
      _
    $region211: #{machine_translation_forward.1} parent=1 // pred_check_branch
      %310 = sbr.rel (0) target = $region213
    $region212: #{machine_translation_forward.1} parent=1 // pred_region
      %311 = dma.done [#allocation3], 16
    $region213: #{machine_translation_forward.1} parent=1 // pred_fallthru
      _
    // Predicated region
    $region214: #{machine_translation_forward.1} parent=1 // pred_check
      _
    $region215: #{machine_translation_forward.1} parent=1 // pred_check_branch
      %313 = sbr.rel (0) target = $region217
    $region216: #{machine_translation_forward.1} parent=1 // pred_region
      %314 = dma.done [#allocation6], 16
    $region217: #{machine_translation_forward.1} parent=1 // pred_fallthru
      _
    // Predicated region
    $region218: #{machine_translation_forward.1} parent=1 // pred_check
      _
    $region219: #{machine_translation_forward.1} parent=1 // pred_check_branch
      %316 = sbr.rel (0) target = $region221
    $region220: #{machine_translation_forward.1} parent=1 // pred_region
      %317 = dma.done [#allocation6], 16
    $region221: #{machine_translation_forward.1} parent=1 // pred_fallthru
      _
    // Predicated region
    $region222: #{machine_translation_forward.1} parent=1 // pred_check
      _
    $region223: #{machine_translation_forward.1} parent=1 // pred_check_branch
      %319 = sbr.rel (0) target = $region225
    $region224: #{machine_translation_forward.1} parent=1 // pred_region
      %320 = dma.done [#allocation9], 16
    $region225: #{machine_translation_forward.1} parent=1 // pred_fallthru
      _
    // Predicated region
    $region226: #{machine_translation_forward.1} parent=1 // pred_check
      _
    $region227: #{machine_translation_forward.1} parent=1 // pred_check_branch
      %322 = sbr.rel (0) target = $region229
    $region228: #{machine_translation_forward.1} parent=1 // pred_region
      %323 = dma.done [#allocation9], 16
    $region229: #{machine_translation_forward.1} parent=1 // pred_fallthru
      _
    // Predicated region
    $region230: #{machine_translation_forward.1} parent=1 // pred_check
      _
    $region231: #{machine_translation_forward.1} parent=1 // pred_check_branch
      %325 = sbr.rel (0) target = $region233
    $region232: #{machine_translation_forward.1} parent=1 // pred_region
      %326 = dma.done [#allocation12], 16
    $region233: #{machine_translation_forward.1} parent=1 // pred_fallthru
      _
    // Predicated region
    $region234: #{machine_translation_forward.1} parent=1 // pred_check
      _
    $region235: #{machine_translation_forward.1} parent=1 // pred_check_branch
      %328 = sbr.rel (0) target = $region237
    $region236: #{machine_translation_forward.1} parent=1 // pred_region
      %329 = dma.done [#allocation12], 16
    $region237: #{machine_translation_forward.1} parent=1 // pred_fallthru
      _
    // Predicated region
    $region238: #{machine_translation_forward.1} parent=1 // pred_check
      _
    $region239: #{machine_translation_forward.1} parent=1 // pred_check_branch
      %331 = sbr.rel (0) target = $region241
    $region240: #{machine_translation_forward.1} parent=1 // pred_region
      %332 = dma.done [#allocation15], 16
    $region241: #{machine_translation_forward.1} parent=1 // pred_fallthru
      _
    // Predicated region
    $region242: #{machine_translation_forward.1} parent=1 // pred_check
      _
    $region243: #{machine_translation_forward.1} parent=1 // pred_check_branch
      %334 = sbr.rel (0) target = $region245
    $region244: #{machine_translation_forward.1} parent=1 // pred_region
      %335 = dma.done [#allocation15], 16
    $region245: #{machine_translation_forward.1} parent=1 // pred_fallthru
      _
    // Predicated region
    $region246: #{machine_translation_forward.1} parent=1 // pred_check
      _
    $region247: #{machine_translation_forward.1} parent=1 // pred_check_branch
      %337 = sbr.rel (0) target = $region249
    $region248: #{machine_translation_forward.1} parent=1 // pred_region
      %338 = dma.done [#allocation18], 16
    $region249: #{machine_translation_forward.1} parent=1 // pred_fallthru
      _
    // Predicated region
    $region250: #{machine_translation_forward.1} parent=1 // pred_check
      _
    $region251: #{machine_translation_forward.1} parent=1 // pred_check_branch
      %340 = sbr.rel (0) target = $region253
    $region252: #{machine_translation_forward.1} parent=1 // pred_region
      %341 = dma.done [#allocation18], 16
    $region253: #{machine_translation_forward.1} parent=1 // pred_fallthru
      _
    %v343 = vld [vmem:[%s5] sm:$0x1]
    %v344 = vld [vmem:[%s5 + $0x1] sm:$0x1]
    %v345 = vld [vmem:[%s7] sm:$0xff]
    %v346 = vld [vmem:[%s7 + $0x8] sm:$0xff]
    %v347 = vld [vmem:[%s1] sm:$0xff]
    %v348 = vld [vmem:[%s1 + $0x8] sm:$0xff]
    %v349 = vld [vmem:[%s1 + $0x10] sm:$0xff]
    %v350 = vld [vmem:[%s1 + $0x18] sm:$0xff]
    %v351 = vld [vmem:[#allocation16] sm:$0x1]
    %v352 = vld [vmem:[#allocation14] sm:$0x1]
    %vm353 = vcmask 392192
    %v354 = vsel %vm353, %v347, 0.0
    %355 = vadd.xlane.f32.xlu0 %v354
    %v356 = vpop.xlane.xlu0 %355
    %v357 = vsel %vm353, %v348, 0.0
    %358 = vadd.xlane.f32.xlu0 %v357
    %v359 = vpop.xlane.xlu0 %358
    %v360 = vsel %vm353, %v349, 0.0
    %361 = vadd.xlane.f32.xlu0 %v360
    %v362 = vpop.xlane.xlu0 %361
    %v363 = vsel %vm353, %v350, 0.0
    %364 = vadd.xlane.f32.xlu0 %v363
    %v365 = vpop.xlane.xlu0 %364
    %v366 = vrcp.pop 48.0
    %v367 = vmul.f32 %v356, %v366
    %v368 = vmul.f32 %v359, %v366
    %v369 = vmul.f32 %v362, %v366
    %v370 = vmul.f32 %v365, %v366
    %v371 = vsub.f32 %v347, %v367
    %v372 = vsub.f32 %v348, %v368
    %v373 = vsub.f32 %v349, %v369
    %v374 = vsub.f32 %v350, %v370
    %v375 = vmul.f32 %v371, %v371
    %v376 = vmul.f32 %v372, %v372
    %v377 = vmul.f32 %v373, %v373
    %v378 = vmul.f32 %v374, %v374
    %v379 = vsel %vm353, %v375, 0.0
    %380 = vadd.xlane.f32.xlu0 %v379
    %v381 = vpop.xlane.xlu0 %380
    %v382 = vsel %vm353, %v376, 0.0
    %383 = vadd.xlane.f32.xlu0 %v382
    %v384 = vpop.xlane.xlu0 %383
    %v385 = vsel %vm353, %v377, 0.0
    %386 = vadd.xlane.f32.xlu0 %v385
    %v387 = vpop.xlane.xlu0 %386
    %v388 = vsel %vm353, %v378, 0.0
    %389 = vadd.xlane.f32.xlu0 %v388
    %v390 = vpop.xlane.xlu0 %389
    %v391 = vmul.f32 %v381, %v366
    %v392 = vmul.f32 %v384, %v366
    %v393 = vmul.f32 %v387, %v366
    %v394 = vmul.f32 %v390, %v366
    %v395 = vadd.f32 %v391, 1e-12
    %v396 = vadd.f32 %v392, 1e-12
    %v397 = vadd.f32 %v393, 1e-12
    %v398 = vadd.f32 %v394, 1e-12
    %v399 = vrsqrt.pop %v395
    %v400 = vrsqrt.pop %v396
    %v401 = vrsqrt.pop %v397
    %v402 = vrsqrt.pop %v398
    %v403 = vmul.f32 %v371, %v399
    %v404 = vmul.f32 %v372, %v400
    %v405 = vmul.f32 %v373, %v401
    %v406 = vmul.f32 %v374, %v402
    %v408 = vlaneseq
    %v409 = vshrl.u32 %v408, 7
    %v410 = vsub.s32 0, %v409
    %v411 = vrot.slane %v351, %v410
    %v413 = vmul.f32 %v403, %v411
    %v414 = vmul.f32 %v404, %v411
    %v415 = vmul.f32 %v405, %v411
    %v416 = vmul.f32 %v406, %v411
    %v418 = vlaneseq
    %v419 = vshrl.u32 %v418, 7
    %v420 = vsub.s32 0, %v419
    %v421 = vrot.slane %v352, %v420
    %v423 = vadd.f32 %v413, %v421
    %v424 = vadd.f32 %v414, %v421
    %v425 = vadd.f32 %v415, %v421
    %v426 = vadd.f32 %v416, %v421
    %v427 = vld [vmem:[%s63] sm:$0xf]
    %v428 = vld [vmem:[%s63 + $0x4] sm:$0xf]
    %v429 = vld [vmem:[%s63 + $0x8] sm:$0xf]
    %v430 = vld [vmem:[%s63 + $0xc] sm:$0xf]
    %v431 = vld [vmem:[%s63 + $0x10] sm:$0xf]
    %v432 = vld [vmem:[%s63 + $0x14] sm:$0xf]
    %v433 = vld [vmem:[#allocation8] sm:$0x1]
    %v434 = vpack.c.bf16 %v424, %v423
    %v435 = vpack.c.bf16 %v426, %v425
    %v437 = vlaneseq
    %v438 = vshrl.u32 %v437, 7
    %v439 = vsub.s32 0, %v438
    %v440 = vrot.slane %v433, %v439
    %v448 = vunpack.c.l.b16 %v427
    %v449 = vunpack.c.l.b16 %v428
    %v450 = vunpack.c.l.b16 %v429
    %v451 = vunpack.c.l.b16 %v430
    %v452 = vunpack.c.l.b16 %v431
    %v453 = vunpack.c.l.b16 %v432
    %v454 = vpack.c.b16 %v449, %v448
    %v455 = vpack.c.b16 %v451, %v450
    %v456 = vpack.c.b16 %v453, %v452
    %v461 = vsel %vm353, %v434, 0
    %v464 = vsel %vm353, %v435, 0
    %466 = vmatprep.subr.bf16.mxu0 0
    %467 = vmatpush1.bf16.msra.mxu0 0
    %468 = vmatprep.subr.bf16.mxu0 0
    %469 = vmatpush1.bf16.msra.mxu0 0
    %470 = vmatprep.subr.bf16.mxu0 0
    %471 = vmatpush1.bf16.msra.mxu0 0
    %472 = vmatprep.subr.bf16.mxu0 0
    %473 = vmatpush1.bf16.msra.mxu0 0
    %474 = vmatprep.subr.bf16.mxu0 0
    %475 = vmatpush1.bf16.msra.mxu0 0
    %476 = vmatprep.subr.bf16.mxu0 0
    %477 = vmatpush1.bf16.msra.mxu0 %v456
    %478 = vmatprep.subr.bf16.mxu0 0
    %479 = vmatpush1.bf16.msra.mxu0 %v455
    %480 = vmatprep.subr.bf16.mxu0 0
    %481 = vmatpush1.bf16.msra.mxu0 %v454
    %482 = vmatprep.subr.bf16.mxu0 0
    %483 = vmatpush2.bf16.msra.mxu0 0
    %484 = vmatprep.subr.bf16.mxu0 0
    %485 = vmatpush2.bf16.msra.mxu0 0
    %486 = vmatprep.subr.bf16.mxu0 0
    %487 = vmatpush2.bf16.msra.mxu0 0
    %488 = vmatprep.subr.bf16.mxu0 0
    %489 = vmatpush2.bf16.msra.mxu0 0
    %490 = vmatprep.subr.bf16.mxu0 0
    %491 = vmatpush2.bf16.msra.mxu0 0
    %492 = vmatprep.subr.bf16.mxu0 0
    %493 = vmatpush2.bf16.msra.mxu0 0
    %494 = vmatprep.subr.bf16.mxu0 0
    %495 = vmatpush2.bf16.msra.mxu0 0
    %496 = vmatprep.subr.bf16.mxu0 0
    %497 = vmatpush2.bf16.msra.mxu0 0
    %498 = vmatprep.mubr.bf16.mxu0 0
    %499 = vmatmul.mubr.bf16.gmra.mxu0 %v461
    %v500 = vpop.f32.mrf.mxu0
    %v501 = vadd.f32 %v440, %v500
    %v502 = vpop.f32.mrf.mxu0
    %v503 = vpop.f32.mrf.mxu0
    %v504 = vadd.f32 %v440, %v503
    %v505 = vpop.f32.mrf.mxu0
    %506 = vmatprep.mubr.bf16.mxu0 0
    %507 = vmatmul.mubr.bf16.gmra.mxu0 %v464
    %v508 = vpop.f32.mrf.mxu0
    %v509 = vadd.f32 %v440, %v508
    %v510 = vpop.f32.mrf.mxu0
    %v511 = vpop.f32.mrf.mxu0
    %v512 = vadd.f32 %v440, %v511
    %v513 = vpop.f32.mrf.mxu0
    %514 = vdwg.mxu0
    %v515 = vld [vmem:[%s9] sm:$0xff]
    %v516 = vld [vmem:[%s9 + $0x8] sm:$0xff]
    %v517 = vadd.f32 %v501, %v515
    %v518 = vadd.f32 %v504, %v516
    %v519 = vadd.f32 %v509, %v515
    %v520 = vadd.f32 %v512, %v516
    %v521 = vld [vmem:[%s87] sm:$0xf]
    %v522 = vld [vmem:[%s87 + $0x4] sm:$0xf]
    %v523 = vld [vmem:[%s87 + $0x8] sm:$0xf]
    %v524 = vld [vmem:[%s87 + $0xc] sm:$0xf]
    %v525 = vld [vmem:[%s85] sm:$0x1]
    %v526 = vpack.c.bf16 %v518, %v517
    %v527 = vpack.c.bf16 %v520, %v519
    %v529 = vlaneseq
    %v530 = vshrl.u32 %v529, 7
    %v531 = vsub.s32 0, %v530
    %v532 = vrot.slane %v525, %v531
    %v538 = vunpack.c.l.b16 %v521
    %v539 = vunpack.c.l.b16 %v522
    %v540 = vunpack.c.l.b16 %v523
    %v541 = vunpack.c.l.b16 %v524
    %v542 = vpack.c.b16 %v539, %v538
    %v543 = vpack.c.b16 %v541, %v540
    %vm546 = vcmask 261120
    %v548 = vsel %vm546, %v526, 0
    %v551 = vsel %vm546, %v527, 0
    %553 = vmatprep.subr.bf16.mxu0 0
    %554 = vmatpush1.bf16.msra.mxu0 0
    %555 = vmatprep.subr.bf16.mxu0 0
    %556 = vmatpush1.bf16.msra.mxu0 0
    %557 = vmatprep.subr.bf16.mxu0 0
    %558 = vmatpush1.bf16.msra.mxu0 0
    %559 = vmatprep.subr.bf16.mxu0 0
    %560 = vmatpush1.bf16.msra.mxu0 0
    %561 = vmatprep.subr.bf16.mxu0 0
    %562 = vmatpush1.bf16.msra.mxu0 0
    %563 = vmatprep.subr.bf16.mxu0 0
    %564 = vmatpush1.bf16.msra.mxu0 0
    %565 = vmatprep.subr.bf16.mxu0 0
    %566 = vmatpush1.bf16.msra.mxu0 %v543
    %567 = vmatprep.subr.bf16.mxu0 0
    %568 = vmatpush1.bf16.msra.mxu0 %v542
    %569 = vmatprep.subr.bf16.mxu0 0
    %570 = vmatpush2.bf16.msra.mxu0 0
    %571 = vmatprep.subr.bf16.mxu0 0
    %572 = vmatpush2.bf16.msra.mxu0 0
    %573 = vmatprep.subr.bf16.mxu0 0
    %574 = vmatpush2.bf16.msra.mxu0 0
    %575 = vmatprep.subr.bf16.mxu0 0
    %576 = vmatpush2.bf16.msra.mxu0 0
    %577 = vmatprep.subr.bf16.mxu0 0
    %578 = vmatpush2.bf16.msra.mxu0 0
    %579 = vmatprep.subr.bf16.mxu0 0
    %580 = vmatpush2.bf16.msra.mxu0 0
    %581 = vmatprep.subr.bf16.mxu0 0
    %582 = vmatpush2.bf16.msra.mxu0 0
    %583 = vmatprep.subr.bf16.mxu0 0
    %584 = vmatpush2.bf16.msra.mxu0 0
    %585 = vmatprep.mubr.bf16.mxu0 0
    %586 = vmatmul.mubr.bf16.gmra.mxu0 %v548
    %v587 = vpop.f32.mrf.mxu0
    %v588 = vadd.f32 %v532, %v587
    %v589 = vpop.f32.mrf.mxu0
    %v590 = vpop.f32.mrf.mxu0
    %v591 = vadd.f32 %v532, %v590
    %v592 = vpop.f32.mrf.mxu0
    %593 = vmatprep.mubr.bf16.mxu0 0
    %594 = vmatmul.mubr.bf16.gmra.mxu0 %v551
    %v595 = vpop.f32.mrf.mxu0
    %v596 = vadd.f32 %v532, %v595
    %v597 = vpop.f32.mrf.mxu0
    %v598 = vpop.f32.mrf.mxu0
    %v599 = vadd.f32 %v532, %v598
    %v600 = vpop.f32.mrf.mxu0
    %601 = vdwg.mxu0
    %v602 = vpack.c.bf16 %v591, %v588
    %v603 = vpack.c.bf16 %v599, %v596
    %605 = vrot.lane.b32.xlu0 %v602, 96
    %v606 = vpop.permute.xlu0 %605
    %vm607 = vcmask 64512
    %v609 = vsel %vm607, %v602, 0
    %v612 = vsel %vm607, %v606, 0
    %614 = vmatprep.subr.bf16.mxu0 0
    %615 = vmatpush1.bf16.xpose.msra.mxu0 0
    %616 = vmatprep.subr.bf16.mxu0 0
    %617 = vmatpush1.bf16.xpose.msra.mxu0 0
    %618 = vmatprep.subr.bf16.mxu0 0
    %619 = vmatpush1.bf16.xpose.msra.mxu0 0
    %620 = vmatprep.subr.bf16.mxu0 0
    %621 = vmatpush1.bf16.xpose.msra.mxu0 0
    %622 = vmatprep.subr.bf16.mxu0 0
    %623 = vmatpush1.bf16.xpose.msra.mxu0 0
    %624 = vmatprep.subr.bf16.mxu0 0
    %625 = vmatpush1.bf16.xpose.msra.mxu0 0
    %626 = vmatprep.subr.bf16.mxu0 0
    %627 = vmatpush1.bf16.xpose.msra.mxu0 0
    %628 = vmatprep.subr.bf16.mxu0 0
    %629 = vmatpush1.bf16.xpose.msra.mxu0 %v612
    %630 = vmatprep.subr.bf16.mxu0 0
    %631 = vmatpush2.bf16.xpose.msra.mxu0 0
    %632 = vmatprep.subr.bf16.mxu0 0
    %633 = vmatpush2.bf16.xpose.msra.mxu0 0
    %634 = vmatprep.subr.bf16.mxu0 0
    %635 = vmatpush2.bf16.xpose.msra.mxu0 0
    %636 = vmatprep.subr.bf16.mxu0 0
    %637 = vmatpush2.bf16.xpose.msra.mxu0 0
    %638 = vmatprep.subr.bf16.mxu0 0
    %639 = vmatpush2.bf16.xpose.msra.mxu0 0
    %640 = vmatprep.subr.bf16.mxu0 0
    %641 = vmatpush2.bf16.xpose.msra.mxu0 0
    %642 = vmatprep.subr.bf16.mxu0 0
    %643 = vmatpush2.bf16.xpose.msra.mxu0 0
    %644 = vmatprep.subr.bf16.mxu0 0
    %645 = vmatpush2.bf16.xpose.msra.mxu0 0
    %646 = vmatprep.mubr.bf16.mxu0 0
    %647 = vmatmul.mubr.bf16.gmra.mxu0 %v609
    %v648 = vpop.f32.mrf.mxu0
    %v649 = vadd.f32 0.0, %v648
    %v650 = vpop.f32.mrf.mxu0
    %v651 = vpop.f32.mrf.mxu0
    %v652 = vadd.f32 0.0, %v651
    %v653 = vpop.f32.mrf.mxu0
    %654 = vdwg.mxu0
    %656 = vrot.lane.b32.xlu0 %v603, 96
    %v657 = vpop.permute.xlu0 %656
    %v659 = vsel %vm607, %v603, 0
    %v662 = vsel %vm607, %v657, 0
    %664 = vmatprep.subr.bf16.mxu0 0
    %665 = vmatpush1.bf16.xpose.msra.mxu0 0
    %666 = vmatprep.subr.bf16.mxu0 0
    %667 = vmatpush1.bf16.xpose.msra.mxu0 0
    %668 = vmatprep.subr.bf16.mxu0 0
    %669 = vmatpush1.bf16.xpose.msra.mxu0 0
    %670 = vmatprep.subr.bf16.mxu0 0
    %671 = vmatpush1.bf16.xpose.msra.mxu0 0
    %672 = vmatprep.subr.bf16.mxu0 0
    %673 = vmatpush1.bf16.xpose.msra.mxu0 0
    %674 = vmatprep.subr.bf16.mxu0 0
    %675 = vmatpush1.bf16.xpose.msra.mxu0 0
    %676 = vmatprep.subr.bf16.mxu0 0
    %677 = vmatpush1.bf16.xpose.msra.mxu0 0
    %678 = vmatprep.subr.bf16.mxu0 0
    %679 = vmatpush1.bf16.xpose.msra.mxu0 %v662
    %680 = vmatprep.subr.bf16.mxu0 0
    %681 = vmatpush2.bf16.xpose.msra.mxu0 0
    %682 = vmatprep.subr.bf16.mxu0 0
    %683 = vmatpush2.bf16.xpose.msra.mxu0 0
    %684 = vmatprep.subr.bf16.mxu0 0
    %685 = vmatpush2.bf16.xpose.msra.mxu0 0
    %686 = vmatprep.subr.bf16.mxu0 0
    %687 = vmatpush2.bf16.xpose.msra.mxu0 0
    %688 = vmatprep.subr.bf16.mxu0 0
    %689 = vmatpush2.bf16.xpose.msra.mxu0 0
    %690 = vmatprep.subr.bf16.mxu0 0
    %691 = vmatpush2.bf16.xpose.msra.mxu0 0
    %692 = vmatprep.subr.bf16.mxu0 0
    %693 = vmatpush2.bf16.xpose.msra.mxu0 0
    %694 = vmatprep.subr.bf16.mxu0 0
    %695 = vmatpush2.bf16.xpose.msra.mxu0 0
    %696 = vmatprep.mubr.bf16.mxu0 0
    %697 = vmatmul.mubr.bf16.gmra.mxu0 %v659
    %v698 = vpop.f32.mrf.mxu0
    %v699 = vadd.f32 0.0, %v698
    %v700 = vpop.f32.mrf.mxu0
    %v701 = vpop.f32.mrf.mxu0
    %v702 = vadd.f32 0.0, %v701
    %v703 = vpop.f32.mrf.mxu0
    %704 = vdwg.mxu0
    %v705 = vmul.f32 %v649, 0.35355338
    %v706 = vmul.f32 %v652, 0.35355338
    %v707 = vmul.f32 %v699, 0.35355338
    %v708 = vmul.f32 %v702, 0.35355338
    %v711 = vlaneseq
    %v712 = vshrl.u32 %v711, 7
    %v713 = vsub.s32 0, %v712
    %v714 = vrot.slane %v343, %v713
    %v715 = vlaneseq
    %v716 = vshrl.u32 %v715, 7
    %v717 = vsub.s32 0, %v716
    %v718 = vrot.slane %v344, %v717
    %v721 = vadd.f32 %v705, %v714
    %v722 = vadd.f32 %v706, %v714
    %v723 = vadd.f32 %v707, %v718
    %v724 = vadd.f32 %v708, %v718
    %vm725 = vcmask 130048
    %v726 = vsel %vm725, %v721, -inf
    %727 = vmax.xlane.f32.xlu0 %v726
    %v728 = vpop.xlane.xlu0 %727
    %v729 = vsel %vm725, %v722, -inf
    %730 = vmax.xlane.f32.xlu0 %v729
    %v731 = vpop.xlane.xlu0 %730
    %v732 = vsel %vm725, %v723, -inf
    %733 = vmax.xlane.f32.xlu0 %v732
    %v734 = vpop.xlane.xlu0 %733
    %v735 = vsel %vm725, %v724, -inf
    %736 = vmax.xlane.f32.xlu0 %v735
    %v737 = vpop.xlane.xlu0 %736
    %v738 = vsub.f32 %v721, %v728
    %v739 = vsub.f32 %v722, %v731
    %v740 = vsub.f32 %v723, %v734
    %v741 = vsub.f32 %v724, %v737
    %v742 = vmul.f32 %v738, 1.442695
    %v743 = vpow.pop %v742
    %v744 = vmul.f32 %v739, 1.442695
    %v745 = vpow.pop %v744
    %v746 = vmul.f32 %v740, 1.442695
    %v747 = vpow.pop %v746
    %v748 = vmul.f32 %v741, 1.442695
    %v749 = vpow.pop %v748
    %v750 = vsel %vm725, %v743, 0.0
    %751 = vadd.xlane.f32.xlu0 %v750
    %v752 = vpop.xlane.xlu0 %751
    %v753 = vsel %vm725, %v745, 0.0
    %754 = vadd.xlane.f32.xlu0 %v753
    %v755 = vpop.xlane.xlu0 %754
    %v756 = vsel %vm725, %v747, 0.0
    %757 = vadd.xlane.f32.xlu0 %v756
    %v758 = vpop.xlane.xlu0 %757
    %v759 = vsel %vm725, %v749, 0.0
    %760 = vadd.xlane.f32.xlu0 %v759
    %v761 = vpop.xlane.xlu0 %760
    %v762 = vrcp.pop %v752
    %v763 = vrcp.pop %v755
    %v764 = vrcp.pop %v758
    %v765 = vrcp.pop %v761
    %v766 = vmul.f32 %v743, %v762
    %v767 = vmul.f32 %v745, %v763
    %v768 = vmul.f32 %v747, %v764
    %v769 = vmul.f32 %v749, %v765
    %v770 = vpack.c.bf16 %v767, %v766
    %v771 = vpack.c.bf16 %v769, %v768
    %772 = vrot.lane.b32.xlu0 %v602, 64
    %v773 = vpop.permute.xlu0 %772
    %v776 = vsel %vm725, %v770, 0
    %778 = vmatprep.subr.bf16.mxu0 0
    %779 = vmatpush1.bf16.msra.mxu0 0
    %780 = vmatprep.subr.bf16.mxu0 0
    %781 = vmatpush1.bf16.msra.mxu0 0
    %782 = vmatprep.subr.bf16.mxu0 0
    %783 = vmatpush1.bf16.msra.mxu0 0
    %784 = vmatprep.subr.bf16.mxu0 0
    %785 = vmatpush1.bf16.msra.mxu0 0
    %786 = vmatprep.subr.bf16.mxu0 0
    %787 = vmatpush1.bf16.msra.mxu0 0
    %788 = vmatprep.subr.bf16.mxu0 0
    %789 = vmatpush1.bf16.msra.mxu0 0
    %790 = vmatprep.subr.bf16.mxu0 0
    %791 = vmatpush1.bf16.msra.mxu0 0
    %792 = vmatprep.subr.bf16.mxu0 0
    %793 = vmatpush1.bf16.msra.mxu0 %v773
    %794 = vmatprep.subr.bf16.mxu0 0
    %795 = vmatpush2.bf16.msra.mxu0 0
    %796 = vmatprep.subr.bf16.mxu0 0
    %797 = vmatpush2.bf16.msra.mxu0 0
    %798 = vmatprep.subr.bf16.mxu0 0
    %799 = vmatpush2.bf16.msra.mxu0 0
    %800 = vmatprep.subr.bf16.mxu0 0
    %801 = vmatpush2.bf16.msra.mxu0 0
    %802 = vmatprep.subr.bf16.mxu0 0
    %803 = vmatpush2.bf16.msra.mxu0 0
    %804 = vmatprep.subr.bf16.mxu0 0
    %805 = vmatpush2.bf16.msra.mxu0 0
    %806 = vmatprep.subr.bf16.mxu0 0
    %807 = vmatpush2.bf16.msra.mxu0 0
    %808 = vmatprep.subr.bf16.mxu0 0
    %809 = vmatpush2.bf16.msra.mxu0 0
    %810 = vmatprep.mubr.bf16.mxu0 0
    %811 = vmatmul.mubr.bf16.gmra.mxu0 %v776
    %v812 = vpop.f32.mrf.mxu0
    %v813 = vadd.f32 0.0, %v812
    %v814 = vpop.f32.mrf.mxu0
    %v815 = vpop.f32.mrf.mxu0
    %v816 = vadd.f32 0.0, %v815
    %v817 = vpop.f32.mrf.mxu0
    %818 = vdwg.mxu0
    %819 = vrot.lane.b32.xlu0 %v603, 64
    %v820 = vpop.permute.xlu0 %819
    %v823 = vsel %vm725, %v771, 0
    %825 = vmatprep.subr.bf16.mxu0 0
    %826 = vmatpush1.bf16.msra.mxu0 0
    %827 = vmatprep.subr.bf16.mxu0 0
    %828 = vmatpush1.bf16.msra.mxu0 0
    %829 = vmatprep.subr.bf16.mxu0 0
    %830 = vmatpush1.bf16.msra.mxu0 0
    %831 = vmatprep.subr.bf16.mxu0 0
    %832 = vmatpush1.bf16.msra.mxu0 0
    %833 = vmatprep.subr.bf16.mxu0 0
    %834 = vmatpush1.bf16.msra.mxu0 0
    %835 = vmatprep.subr.bf16.mxu0 0
    %836 = vmatpush1.bf16.msra.mxu0 0
    %837 = vmatprep.subr.bf16.mxu0 0
    %838 = vmatpush1.bf16.msra.mxu0 0
    %839 = vmatprep.subr.bf16.mxu0 0
    %840 = vmatpush1.bf16.msra.mxu0 %v820
    %841 = vmatprep.subr.bf16.mxu0 0
    %842 = vmatpush2.bf16.msra.mxu0 0
    %843 = vmatprep.subr.bf16.mxu0 0
    %844 = vmatpush2.bf16.msra.mxu0 0
    %845 = vmatprep.subr.bf16.mxu0 0
    %846 = vmatpush2.bf16.msra.mxu0 0
    %847 = vmatprep.subr.bf16.mxu0 0
    %848 = vmatpush2.bf16.msra.mxu0 0
    %849 = vmatprep.subr.bf16.mxu0 0
    %850 = vmatpush2.bf16.msra.mxu0 0
    %851 = vmatprep.subr.bf16.mxu0 0
    %852 = vmatpush2.bf16.msra.mxu0 0
    %853 = vmatprep.subr.bf16.mxu0 0
    %854 = vmatpush2.bf16.msra.mxu0 0
    %855 = vmatprep.subr.bf16.mxu0 0
    %856 = vmatpush2.bf16.msra.mxu0 0
    %857 = vmatprep.mubr.bf16.mxu0 0
    %858 = vmatmul.mubr.bf16.gmra.mxu0 %v823
    %v859 = vpop.f32.mrf.mxu0
    %v860 = vadd.f32 0.0, %v859
    %v861 = vpop.f32.mrf.mxu0
    %v862 = vpop.f32.mrf.mxu0
    %v863 = vadd.f32 0.0, %v862
    %v864 = vpop.f32.mrf.mxu0
    %865 = vdwg.mxu0
    %866 = vrot.lane.b32.xlu0 %v602, 120
    %v867 = vpop.permute.xlu0 %866
    %868 = vrot.lane.b32.xlu0 %v602, 88
    %v869 = vpop.permute.xlu0 %868
    %v871 = vsel %vm607, %v867, 0
    %v874 = vsel %vm607, %v869, 0
    %876 = vmatprep.subr.bf16.mxu0 0
    %877 = vmatpush1.bf16.xpose.msra.mxu0 0
    %878 = vmatprep.subr.bf16.mxu0 0
    %879 = vmatpush1.bf16.xpose.msra.mxu0 0
    %880 = vmatprep.subr.bf16.mxu0 0
    %881 = vmatpush1.bf16.xpose.msra.mxu0 0
    %882 = vmatprep.subr.bf16.mxu0 0
    %883 = vmatpush1.bf16.xpose.msra.mxu0 0
    %884 = vmatprep.subr.bf16.mxu0 0
    %885 = vmatpush1.bf16.xpose.msra.mxu0 0
    %886 = vmatprep.subr.bf16.mxu0 0
    %887 = vmatpush1.bf16.xpose.msra.mxu0 0
    %888 = vmatprep.subr.bf16.mxu0 0
    %889 = vmatpush1.bf16.xpose.msra.mxu0 0
    %890 = vmatprep.subr.bf16.mxu0 0
    %891 = vmatpush1.bf16.xpose.msra.mxu0 %v874
    %892 = vmatprep.subr.bf16.mxu0 0
    %893 = vmatpush2.bf16.xpose.msra.mxu0 0
    %894 = vmatprep.subr.bf16.mxu0 0
    %895 = vmatpush2.bf16.xpose.msra.mxu0 0
    %896 = vmatprep.subr.bf16.mxu0 0
    %897 = vmatpush2.bf16.xpose.msra.mxu0 0
    %898 = vmatprep.subr.bf16.mxu0 0
    %899 = vmatpush2.bf16.xpose.msra.mxu0 0
    %900 = vmatprep.subr.bf16.mxu0 0
    %901 = vmatpush2.bf16.xpose.msra.mxu0 0
    %902 = vmatprep.subr.bf16.mxu0 0
    %903 = vmatpush2.bf16.xpose.msra.mxu0 0
    %904 = vmatprep.subr.bf16.mxu0 0
    %905 = vmatpush2.bf16.xpose.msra.mxu0 0
    %906 = vmatprep.subr.bf16.mxu0 0
    %907 = vmatpush2.bf16.xpose.msra.mxu0 0
    %908 = vmatprep.mubr.bf16.mxu0 0
    %909 = vmatmul.mubr.bf16.gmra.mxu0 %v871
    %v910 = vpop.f32.mrf.mxu0
    %v911 = vadd.f32 0.0, %v910
    %v912 = vpop.f32.mrf.mxu0
    %v913 = vpop.f32.mrf.mxu0
    %v914 = vadd.f32 0.0, %v913
    %v915 = vpop.f32.mrf.mxu0
    %916 = vdwg.mxu0
    %917 = vrot.lane.b32.xlu0 %v603, 120
    %v918 = vpop.permute.xlu0 %917
    %919 = vrot.lane.b32.xlu0 %v603, 88
    %v920 = vpop.permute.xlu0 %919
    %v922 = vsel %vm607, %v918, 0
    %v925 = vsel %vm607, %v920, 0
    %927 = vmatprep.subr.bf16.mxu0 0
    %928 = vmatpush1.bf16.xpose.msra.mxu0 0
    %929 = vmatprep.subr.bf16.mxu0 0
    %930 = vmatpush1.bf16.xpose.msra.mxu0 0
    %931 = vmatprep.subr.bf16.mxu0 0
    %932 = vmatpush1.bf16.xpose.msra.mxu0 0
    %933 = vmatprep.subr.bf16.mxu0 0
    %934 = vmatpush1.bf16.xpose.msra.mxu0 0
    %935 = vmatprep.subr.bf16.mxu0 0
    %936 = vmatpush1.bf16.xpose.msra.mxu0 0
    %937 = vmatprep.subr.bf16.mxu0 0
    %938 = vmatpush1.bf16.xpose.msra.mxu0 0
    %939 = vmatprep.subr.bf16.mxu0 0
    %940 = vmatpush1.bf16.xpose.msra.mxu0 0
    %941 = vmatprep.subr.bf16.mxu0 0
    %942 = vmatpush1.bf16.xpose.msra.mxu0 %v925
    %943 = vmatprep.subr.bf16.mxu0 0
    %944 = vmatpush2.bf16.xpose.msra.mxu0 0
    %945 = vmatprep.subr.bf16.mxu0 0
    %946 = vmatpush2.bf16.xpose.msra.mxu0 0
    %947 = vmatprep.subr.bf16.mxu0 0
    %948 = vmatpush2.bf16.xpose.msra.mxu0 0
    %949 = vmatprep.subr.bf16.mxu0 0
    %950 = vmatpush2.bf16.xpose.msra.mxu0 0
    %951 = vmatprep.subr.bf16.mxu0 0
    %952 = vmatpush2.bf16.xpose.msra.mxu0 0
    %953 = vmatprep.subr.bf16.mxu0 0
    %954 = vmatpush2.bf16.xpose.msra.mxu0 0
    %955 = vmatprep.subr.bf16.mxu0 0
    %956 = vmatpush2.bf16.xpose.msra.mxu0 0
    %957 = vmatprep.subr.bf16.mxu0 0
    %958 = vmatpush2.bf16.xpose.msra.mxu0 0
    %959 = vmatprep.mubr.bf16.mxu0 0
    %960 = vmatmul.mubr.bf16.gmra.mxu0 %v922
    %v961 = vpop.f32.mrf.mxu0
    %v962 = vadd.f32 0.0, %v961
    %v963 = vpop.f32.mrf.mxu0
    %v964 = vpop.f32.mrf.mxu0
    %v965 = vadd.f32 0.0, %v964
    %v966 = vpop.f32.mrf.mxu0
    %967 = vdwg.mxu0
    %v968 = vmul.f32 %v911, 0.35355338
    %v969 = vmul.f32 %v914, 0.35355338
    %v970 = vmul.f32 %v962, 0.35355338
    %v971 = vmul.f32 %v965, 0.35355338
    %v972 = vadd.f32 %v968, %v714
    %v973 = vadd.f32 %v969, %v714
    %v974 = vadd.f32 %v970, %v718
    %v975 = vadd.f32 %v971, %v718
    %v976 = vsel %vm725, %v972, -inf
    %977 = vmax.xlane.f32.xlu0 %v976
    %v978 = vpop.xlane.xlu0 %977
    %v979 = vsel %vm725, %v973, -inf
    %980 = vmax.xlane.f32.xlu0 %v979
    %v981 = vpop.xlane.xlu0 %980
    %v982 = vsel %vm725, %v974, -inf
    %983 = vmax.xlane.f32.xlu0 %v982
    %v984 = vpop.xlane.xlu0 %983
    %v985 = vsel %vm725, %v975, -inf
    %986 = vmax.xlane.f32.xlu0 %v985
    %v987 = vpop.xlane.xlu0 %986
    %v988 = vsub.f32 %v972, %v978
    %v989 = vsub.f32 %v973, %v981
    %v990 = vsub.f32 %v974, %v984
    %v991 = vsub.f32 %v975, %v987
    %v992 = vmul.f32 %v988, 1.442695
    %v993 = vpow.pop %v992
    %v994 = vmul.f32 %v989, 1.442695
    %v995 = vpow.pop %v994
    %v996 = vmul.f32 %v990, 1.442695
    %v997 = vpow.pop %v996
    %v998 = vmul.f32 %v991, 1.442695
    %v999 = vpow.pop %v998
    %v1000 = vsel %vm725, %v993, 0.0
    %1001 = vadd.xlane.f32.xlu0 %v1000
    %v1002 = vpop.xlane.xlu0 %1001
    %v1003 = vsel %vm725, %v995, 0.0
    %1004 = vadd.xlane.f32.xlu0 %v1003
    %v1005 = vpop.xlane.xlu0 %1004
    %v1006 = vsel %vm725, %v997, 0.0
    %1007 = vadd.xlane.f32.xlu0 %v1006
    %v1008 = vpop.xlane.xlu0 %1007
    %v1009 = vsel %vm725, %v999, 0.0
    %1010 = vadd.xlane.f32.xlu0 %v1009
    %v1011 = vpop.xlane.xlu0 %1010
    %v1012 = vrcp.pop %v1002
    %v1013 = vrcp.pop %v1005
    %v1014 = vrcp.pop %v1008
    %v1015 = vrcp.pop %v1011
    %v1016 = vmul.f32 %v993, %v1012
    %v1017 = vmul.f32 %v995, %v1013
    %v1018 = vmul.f32 %v997, %v1014
    %v1019 = vmul.f32 %v999, %v1015
    %v1020 = vpack.c.bf16 %v1017, %v1016
    %v1021 = vpack.c.bf16 %v1019, %v1018
    %1022 = vrot.lane.b32.xlu0 %v602, 56
    %v1023 = vpop.permute.xlu0 %1022
    %v1026 = vsel %vm725, %v1020, 0
    %1028 = vmatprep.subr.bf16.mxu0 0
    %1029 = vmatpush1.bf16.msra.mxu0 0
    %1030 = vmatprep.subr.bf16.mxu0 0
    %1031 = vmatpush1.bf16.msra.mxu0 0
    %1032 = vmatprep.subr.bf16.mxu0 0
    %1033 = vmatpush1.bf16.msra.mxu0 0
    %1034 = vmatprep.subr.bf16.mxu0 0
    %1035 = vmatpush1.bf16.msra.mxu0 0
    %1036 = vmatprep.subr.bf16.mxu0 0
    %1037 = vmatpush1.bf16.msra.mxu0 0
    %1038 = vmatprep.subr.bf16.mxu0 0
    %1039 = vmatpush1.bf16.msra.mxu0 0
    %1040 = vmatprep.subr.bf16.mxu0 0
    %1041 = vmatpush1.bf16.msra.mxu0 0
    %1042 = vmatprep.subr.bf16.mxu0 0
    %1043 = vmatpush1.bf16.msra.mxu0 %v1023
    %1044 = vmatprep.subr.bf16.mxu0 0
    %1045 = vmatpush2.bf16.msra.mxu0 0
    %1046 = vmatprep.subr.bf16.mxu0 0
    %1047 = vmatpush2.bf16.msra.mxu0 0
    %1048 = vmatprep.subr.bf16.mxu0 0
    %1049 = vmatpush2.bf16.msra.mxu0 0
    %1050 = vmatprep.subr.bf16.mxu0 0
    %1051 = vmatpush2.bf16.msra.mxu0 0
    %1052 = vmatprep.subr.bf16.mxu0 0
    %1053 = vmatpush2.bf16.msra.mxu0 0
    %1054 = vmatprep.subr.bf16.mxu0 0
    %1055 = vmatpush2.bf16.msra.mxu0 0
    %1056 = vmatprep.subr.bf16.mxu0 0
    %1057 = vmatpush2.bf16.msra.mxu0 0
    %1058 = vmatprep.subr.bf16.mxu0 0
    %1059 = vmatpush2.bf16.msra.mxu0 0
    %1060 = vmatprep.mubr.bf16.mxu0 0
    %1061 = vmatmul.mubr.bf16.gmra.mxu0 %v1026
    %v1062 = vpop.f32.mrf.mxu0
    %v1063 = vadd.f32 0.0, %v1062
    %v1064 = vpop.f32.mrf.mxu0
    %v1065 = vpop.f32.mrf.mxu0
    %v1066 = vadd.f32 0.0, %v1065
    %v1067 = vpop.f32.mrf.mxu0
    %1068 = vdwg.mxu0
    %1069 = vrot.lane.b32.xlu0 %v603, 56
    %v1070 = vpop.permute.xlu0 %1069
    %v1073 = vsel %vm725, %v1021, 0
    %1075 = vmatprep.subr.bf16.mxu0 0
    %1076 = vmatpush1.bf16.msra.mxu0 0
    %1077 = vmatprep.subr.bf16.mxu0 0
    %1078 = vmatpush1.bf16.msra.mxu0 0
    %1079 = vmatprep.subr.bf16.mxu0 0
    %1080 = vmatpush1.bf16.msra.mxu0 0
    %1081 = vmatprep.subr.bf16.mxu0 0
    %1082 = vmatpush1.bf16.msra.mxu0 0
    %1083 = vmatprep.subr.bf16.mxu0 0
    %1084 = vmatpush1.bf16.msra.mxu0 0
    %1085 = vmatprep.subr.bf16.mxu0 0
    %1086 = vmatpush1.bf16.msra.mxu0 0
    %1087 = vmatprep.subr.bf16.mxu0 0
    %1088 = vmatpush1.bf16.msra.mxu0 0
    %1089 = vmatprep.subr.bf16.mxu0 0
    %1090 = vmatpush1.bf16.msra.mxu0 %v1070
    %1091 = vmatprep.subr.bf16.mxu0 0
    %1092 = vmatpush2.bf16.msra.mxu0 0
    %1093 = vmatprep.subr.bf16.mxu0 0
    %1094 = vmatpush2.bf16.msra.mxu0 0
    %1095 = vmatprep.subr.bf16.mxu0 0
    %1096 = vmatpush2.bf16.msra.mxu0 0
    %1097 = vmatprep.subr.bf16.mxu0 0
    %1098 = vmatpush2.bf16.msra.mxu0 0
    %1099 = vmatprep.subr.bf16.mxu0 0
    %1100 = vmatpush2.bf16.msra.mxu0 0
    %1101 = vmatprep.subr.bf16.mxu0 0
    %1102 = vmatpush2.bf16.msra.mxu0 0
    %1103 = vmatprep.subr.bf16.mxu0 0
    %1104 = vmatpush2.bf16.msra.mxu0 0
    %1105 = vmatprep.subr.bf16.mxu0 0
    %1106 = vmatpush2.bf16.msra.mxu0 0
    %1107 = vmatprep.mubr.bf16.mxu0 0
    %1108 = vmatmul.mubr.bf16.gmra.mxu0 %v1073
    %v1109 = vpop.f32.mrf.mxu0
    %v1110 = vadd.f32 0.0, %v1109
    %v1111 = vpop.f32.mrf.mxu0
    %v1112 = vpop.f32.mrf.mxu0
    %v1113 = vadd.f32 0.0, %v1112
    %v1114 = vpop.f32.mrf.mxu0
    %1115 = vdwg.mxu0
    %1116 = vrot.lane.b32.xlu0 %v602, 112
    %v1117 = vpop.permute.xlu0 %1116
    %1118 = vrot.lane.b32.xlu0 %v602, 80
    %v1119 = vpop.permute.xlu0 %1118
    %v1121 = vsel %vm607, %v1117, 0
    %v1124 = vsel %vm607, %v1119, 0
    %1126 = vmatprep.subr.bf16.mxu0 0
    %1127 = vmatpush1.bf16.xpose.msra.mxu0 0
    %1128 = vmatprep.subr.bf16.mxu0 0
    %1129 = vmatpush1.bf16.xpose.msra.mxu0 0
    %1130 = vmatprep.subr.bf16.mxu0 0
    %1131 = vmatpush1.bf16.xpose.msra.mxu0 0
    %1132 = vmatprep.subr.bf16.mxu0 0
    %1133 = vmatpush1.bf16.xpose.msra.mxu0 0
    %1134 = vmatprep.subr.bf16.mxu0 0
    %1135 = vmatpush1.bf16.xpose.msra.mxu0 0
    %1136 = vmatprep.subr.bf16.mxu0 0
    %1137 = vmatpush1.bf16.xpose.msra.mxu0 0
    %1138 = vmatprep.subr.bf16.mxu0 0
    %1139 = vmatpush1.bf16.xpose.msra.mxu0 0
    %1140 = vmatprep.subr.bf16.mxu0 0
    %1141 = vmatpush1.bf16.xpose.msra.mxu0 %v1124
    %1142 = vmatprep.subr.bf16.mxu0 0
    %1143 = vmatpush2.bf16.xpose.msra.mxu0 0
    %1144 = vmatprep.subr.bf16.mxu0 0
    %1145 = vmatpush2.bf16.xpose.msra.mxu0 0
    %1146 = vmatprep.subr.bf16.mxu0 0
    %1147 = vmatpush2.bf16.xpose.msra.mxu0 0
    %1148 = vmatprep.subr.bf16.mxu0 0
    %1149 = vmatpush2.bf16.xpose.msra.mxu0 0
    %1150 = vmatprep.subr.bf16.mxu0 0
    %1151 = vmatpush2.bf16.xpose.msra.mxu0 0
    %1152 = vmatprep.subr.bf16.mxu0 0
    %1153 = vmatpush2.bf16.xpose.msra.mxu0 0
    %1154 = vmatprep.subr.bf16.mxu0 0
    %1155 = vmatpush2.bf16.xpose.msra.mxu0 0
    %1156 = vmatprep.subr.bf16.mxu0 0
    %1157 = vmatpush2.bf16.xpose.msra.mxu0 0
    %1158 = vmatprep.mubr.bf16.mxu0 0
    %1159 = vmatmul.mubr.bf16.gmra.mxu0 %v1121
    %v1160 = vpop.f32.mrf.mxu0
    %v1161 = vadd.f32 0.0, %v1160
    %v1162 = vpop.f32.mrf.mxu0
    %v1163 = vpop.f32.mrf.mxu0
    %v1164 = vadd.f32 0.0, %v1163
    %v1165 = vpop.f32.mrf.mxu0
    %1166 = vdwg.mxu0
    %1167 = vrot.lane.b32.xlu0 %v603, 112
    %v1168 = vpop.permute.xlu0 %1167
    %1169 = vrot.lane.b32.xlu0 %v603, 80
    %v1170 = vpop.permute.xlu0 %1169
    %v1172 = vsel %vm607, %v1168, 0
    %v1175 = vsel %vm607, %v1170, 0
    %1177 = vmatprep.subr.bf16.mxu0 0
    %1178 = vmatpush1.bf16.xpose.msra.mxu0 0
    %1179 = vmatprep.subr.bf16.mxu0 0
    %1180 = vmatpush1.bf16.xpose.msra.mxu0 0
    %1181 = vmatprep.subr.bf16.mxu0 0
    %1182 = vmatpush1.bf16.xpose.msra.mxu0 0
    %1183 = vmatprep.subr.bf16.mxu0 0
    %1184 = vmatpush1.bf16.xpose.msra.mxu0 0
    %1185 = vmatprep.subr.bf16.mxu0 0
    %1186 = vmatpush1.bf16.xpose.msra.mxu0 0
    %1187 = vmatprep.subr.bf16.mxu0 0
    %1188 = vmatpush1.bf16.xpose.msra.mxu0 0
    %1189 = vmatprep.subr.bf16.mxu0 0
    %1190 = vmatpush1.bf16.xpose.msra.mxu0 0
    %1191 = vmatprep.subr.bf16.mxu0 0
    %1192 = vmatpush1.bf16.xpose.msra.mxu0 %v1175
    %1193 = vmatprep.subr.bf16.mxu0 0
    %1194 = vmatpush2.bf16.xpose.msra.mxu0 0
    %1195 = vmatprep.subr.bf16.mxu0 0
    %1196 = vmatpush2.bf16.xpose.msra.mxu0 0
    %1197 = vmatprep.subr.bf16.mxu0 0
    %1198 = vmatpush2.bf16.xpose.msra.mxu0 0
    %1199 = vmatprep.subr.bf16.mxu0 0
    %1200 = vmatpush2.bf16.xpose.msra.mxu0 0
    %1201 = vmatprep.subr.bf16.mxu0 0
    %1202 = vmatpush2.bf16.xpose.msra.mxu0 0
    %1203 = vmatprep.subr.bf16.mxu0 0
    %1204 = vmatpush2.bf16.xpose.msra.mxu0 0
    %1205 = vmatprep.subr.bf16.mxu0 0
    %1206 = vmatpush2.bf16.xpose.msra.mxu0 0
    %1207 = vmatprep.subr.bf16.mxu0 0
    %1208 = vmatpush2.bf16.xpose.msra.mxu0 0
    %1209 = vmatprep.mubr.bf16.mxu0 0
    %1210 = vmatmul.mubr.bf16.gmra.mxu0 %v1172
    %v1211 = vpop.f32.mrf.mxu0
    %v1212 = vadd.f32 0.0, %v1211
    %v1213 = vpop.f32.mrf.mxu0
    %v1214 = vpop.f32.mrf.mxu0
    %v1215 = vadd.f32 0.0, %v1214
    %v1216 = vpop.f32.mrf.mxu0
    %1217 = vdwg.mxu0
    %v1218 = vmul.f32 %v1161, 0.35355338
    %v1219 = vmul.f32 %v1164, 0.35355338
    %v1220 = vmul.f32 %v1212, 0.35355338
    %v1221 = vmul.f32 %v1215, 0.35355338
    %v1222 = vadd.f32 %v1218, %v714
    %v1223 = vadd.f32 %v1219, %v714
    %v1224 = vadd.f32 %v1220, %v718
    %v1225 = vadd.f32 %v1221, %v718
    %v1226 = vsel %vm725, %v1222, -inf
    %1227 = vmax.xlane.f32.xlu0 %v1226
    %v1228 = vpop.xlane.xlu0 %1227
    %v1229 = vsel %vm725, %v1223, -inf
    %1230 = vmax.xlane.f32.xlu0 %v1229
    %v1231 = vpop.xlane.xlu0 %1230
    %v1232 = vsel %vm725, %v1224, -inf
    %1233 = vmax.xlane.f32.xlu0 %v1232
    %v1234 = vpop.xlane.xlu0 %1233
    %v1235 = vsel %vm725, %v1225, -inf
    %1236 = vmax.xlane.f32.xlu0 %v1235
    %v1237 = vpop.xlane.xlu0 %1236
    %v1238 = vsub.f32 %v1222, %v1228
    %v1239 = vsub.f32 %v1223, %v1231
    %v1240 = vsub.f32 %v1224, %v1234
    %v1241 = vsub.f32 %v1225, %v1237
    %v1242 = vmul.f32 %v1238, 1.442695
    %v1243 = vpow.pop %v1242
    %v1244 = vmul.f32 %v1239, 1.442695
    %v1245 = vpow.pop %v1244
    %v1246 = vmul.f32 %v1240, 1.442695
    %v1247 = vpow.pop %v1246
    %v1248 = vmul.f32 %v1241, 1.442695
    %v1249 = vpow.pop %v1248
    %v1250 = vsel %vm725, %v1243, 0.0
    %1251 = vadd.xlane.f32.xlu0 %v1250
    %v1252 = vpop.xlane.xlu0 %1251
    %v1253 = vsel %vm725, %v1245, 0.0
    %1254 = vadd.xlane.f32.xlu0 %v1253
    %v1255 = vpop.xlane.xlu0 %1254
    %v1256 = vsel %vm725, %v1247, 0.0
    %1257 = vadd.xlane.f32.xlu0 %v1256
    %v1258 = vpop.xlane.xlu0 %1257
    %v1259 = vsel %vm725, %v1249, 0.0
    %1260 = vadd.xlane.f32.xlu0 %v1259
    %v1261 = vpop.xlane.xlu0 %1260
    %v1262 = vrcp.pop %v1252
    %v1263 = vrcp.pop %v1255
    %v1264 = vrcp.pop %v1258
    %v1265 = vrcp.pop %v1261
    %v1266 = vmul.f32 %v1243, %v1262
    %v1267 = vmul.f32 %v1245, %v1263
    %v1268 = vmul.f32 %v1247, %v1264
    %v1269 = vmul.f32 %v1249, %v1265
    %v1270 = vpack.c.bf16 %v1267, %v1266
    %v1271 = vpack.c.bf16 %v1269, %v1268
    %1272 = vrot.lane.b32.xlu0 %v602, 48
    %v1273 = vpop.permute.xlu0 %1272
    %v1276 = vsel %vm725, %v1270, 0
    %1278 = vmatprep.subr.bf16.mxu0 0
    %1279 = vmatpush1.bf16.msra.mxu0 0
    %1280 = vmatprep.subr.bf16.mxu0 0
    %1281 = vmatpush1.bf16.msra.mxu0 0
    %1282 = vmatprep.subr.bf16.mxu0 0
    %1283 = vmatpush1.bf16.msra.mxu0 0
    %1284 = vmatprep.subr.bf16.mxu0 0
    %1285 = vmatpush1.bf16.msra.mxu0 0
    %1286 = vmatprep.subr.bf16.mxu0 0
    %1287 = vmatpush1.bf16.msra.mxu0 0
    %1288 = vmatprep.subr.bf16.mxu0 0
    %1289 = vmatpush1.bf16.msra.mxu0 0
    %1290 = vmatprep.subr.bf16.mxu0 0
    %1291 = vmatpush1.bf16.msra.mxu0 0
    %1292 = vmatprep.subr.bf16.mxu0 0
    %1293 = vmatpush1.bf16.msra.mxu0 %v1273
    %1294 = vmatprep.subr.bf16.mxu0 0
    %1295 = vmatpush2.bf16.msra.mxu0 0
    %1296 = vmatprep.subr.bf16.mxu0 0
    %1297 = vmatpush2.bf16.msra.mxu0 0
    %1298 = vmatprep.subr.bf16.mxu0 0
    %1299 = vmatpush2.bf16.msra.mxu0 0
    %1300 = vmatprep.subr.bf16.mxu0 0
    %1301 = vmatpush2.bf16.msra.mxu0 0
    %1302 = vmatprep.subr.bf16.mxu0 0
    %1303 = vmatpush2.bf16.msra.mxu0 0
    %1304 = vmatprep.subr.bf16.mxu0 0
    %1305 = vmatpush2.bf16.msra.mxu0 0
    %1306 = vmatprep.subr.bf16.mxu0 0
    %1307 = vmatpush2.bf16.msra.mxu0 0
    %1308 = vmatprep.subr.bf16.mxu0 0
    %1309 = vmatpush2.bf16.msra.mxu0 0
    %1310 = vmatprep.mubr.bf16.mxu0 0
    %1311 = vmatmul.mubr.bf16.gmra.mxu0 %v1276
    %v1312 = vpop.f32.mrf.mxu0
    %v1313 = vadd.f32 0.0, %v1312
    %v1314 = vpop.f32.mrf.mxu0
    %v1315 = vpop.f32.mrf.mxu0
    %v1316 = vadd.f32 0.0, %v1315
    %v1317 = vpop.f32.mrf.mxu0
    %1318 = vdwg.mxu0
    %1319 = vrot.lane.b32.xlu0 %v603, 48
    %v1320 = vpop.permute.xlu0 %1319
    %v1323 = vsel %vm725, %v1271, 0
    %1325 = vmatprep.subr.bf16.mxu0 0
    %1326 = vmatpush1.bf16.msra.mxu0 0
    %1327 = vmatprep.subr.bf16.mxu0 0
    %1328 = vmatpush1.bf16.msra.mxu0 0
    %1329 = vmatprep.subr.bf16.mxu0 0
    %1330 = vmatpush1.bf16.msra.mxu0 0
    %1331 = vmatprep.subr.bf16.mxu0 0
    %1332 = vmatpush1.bf16.msra.mxu0 0
    %1333 = vmatprep.subr.bf16.mxu0 0
    %1334 = vmatpush1.bf16.msra.mxu0 0
    %1335 = vmatprep.subr.bf16.mxu0 0
    %1336 = vmatpush1.bf16.msra.mxu0 0
    %1337 = vmatprep.subr.bf16.mxu0 0
    %1338 = vmatpush1.bf16.msra.mxu0 0
    %1339 = vmatprep.subr.bf16.mxu0 0
    %1340 = vmatpush1.bf16.msra.mxu0 %v1320
    %1341 = vmatprep.subr.bf16.mxu0 0
    %1342 = vmatpush2.bf16.msra.mxu0 0
    %1343 = vmatprep.subr.bf16.mxu0 0
    %1344 = vmatpush2.bf16.msra.mxu0 0
    %1345 = vmatprep.subr.bf16.mxu0 0
    %1346 = vmatpush2.bf16.msra.mxu0 0
    %1347 = vmatprep.subr.bf16.mxu0 0
    %1348 = vmatpush2.bf16.msra.mxu0 0
    %1349 = vmatprep.subr.bf16.mxu0 0
    %1350 = vmatpush2.bf16.msra.mxu0 0
    %1351 = vmatprep.subr.bf16.mxu0 0
    %1352 = vmatpush2.bf16.msra.mxu0 0
    %1353 = vmatprep.subr.bf16.mxu0 0
    %1354 = vmatpush2.bf16.msra.mxu0 0
    %1355 = vmatprep.subr.bf16.mxu0 0
    %1356 = vmatpush2.bf16.msra.mxu0 0
    %1357 = vmatprep.mubr.bf16.mxu0 0
    %1358 = vmatmul.mubr.bf16.gmra.mxu0 %v1323
    %v1359 = vpop.f32.mrf.mxu0
    %v1360 = vadd.f32 0.0, %v1359
    %v1361 = vpop.f32.mrf.mxu0
    %v1362 = vpop.f32.mrf.mxu0
    %v1363 = vadd.f32 0.0, %v1362
    %v1364 = vpop.f32.mrf.mxu0
    %1365 = vdwg.mxu0
    %1366 = vrot.lane.b32.xlu0 %v602, 104
    %v1367 = vpop.permute.xlu0 %1366
    %1368 = vrot.lane.b32.xlu0 %v602, 72
    %v1369 = vpop.permute.xlu0 %1368
    %v1371 = vsel %vm607, %v1367, 0
    %v1374 = vsel %vm607, %v1369, 0
    %1376 = vmatprep.subr.bf16.mxu0 0
    %1377 = vmatpush1.bf16.xpose.msra.mxu0 0
    %1378 = vmatprep.subr.bf16.mxu0 0
    %1379 = vmatpush1.bf16.xpose.msra.mxu0 0
    %1380 = vmatprep.subr.bf16.mxu0 0
    %1381 = vmatpush1.bf16.xpose.msra.mxu0 0
    %1382 = vmatprep.subr.bf16.mxu0 0
    %1383 = vmatpush1.bf16.xpose.msra.mxu0 0
    %1384 = vmatprep.subr.bf16.mxu0 0
    %1385 = vmatpush1.bf16.xpose.msra.mxu0 0
    %1386 = vmatprep.subr.bf16.mxu0 0
    %1387 = vmatpush1.bf16.xpose.msra.mxu0 0
    %1388 = vmatprep.subr.bf16.mxu0 0
    %1389 = vmatpush1.bf16.xpose.msra.mxu0 0
    %1390 = vmatprep.subr.bf16.mxu0 0
    %1391 = vmatpush1.bf16.xpose.msra.mxu0 %v1374
    %1392 = vmatprep.subr.bf16.mxu0 0
    %1393 = vmatpush2.bf16.xpose.msra.mxu0 0
    %1394 = vmatprep.subr.bf16.mxu0 0
    %1395 = vmatpush2.bf16.xpose.msra.mxu0 0
    %1396 = vmatprep.subr.bf16.mxu0 0
    %1397 = vmatpush2.bf16.xpose.msra.mxu0 0
    %1398 = vmatprep.subr.bf16.mxu0 0
    %1399 = vmatpush2.bf16.xpose.msra.mxu0 0
    %1400 = vmatprep.subr.bf16.mxu0 0
    %1401 = vmatpush2.bf16.xpose.msra.mxu0 0
    %1402 = vmatprep.subr.bf16.mxu0 0
    %1403 = vmatpush2.bf16.xpose.msra.mxu0 0
    %1404 = vmatprep.subr.bf16.mxu0 0
    %1405 = vmatpush2.bf16.xpose.msra.mxu0 0
    %1406 = vmatprep.subr.bf16.mxu0 0
    %1407 = vmatpush2.bf16.xpose.msra.mxu0 0
    %1408 = vmatprep.mubr.bf16.mxu0 0
    %1409 = vmatmul.mubr.bf16.gmra.mxu0 %v1371
    %v1410 = vpop.f32.mrf.mxu0
    %v1411 = vadd.f32 0.0, %v1410
    %v1412 = vpop.f32.mrf.mxu0
    %v1413 = vpop.f32.mrf.mxu0
    %v1414 = vadd.f32 0.0, %v1413
    %v1415 = vpop.f32.mrf.mxu0
    %1416 = vdwg.mxu0
    %1417 = vrot.lane.b32.xlu0 %v603, 104
    %v1418 = vpop.permute.xlu0 %1417
    %1419 = vrot.lane.b32.xlu0 %v603, 72
    %v1420 = vpop.permute.xlu0 %1419
    %v1422 = vsel %vm607, %v1418, 0
    %v1425 = vsel %vm607, %v1420, 0
    %1427 = vmatprep.subr.bf16.mxu0 0
    %1428 = vmatpush1.bf16.xpose.msra.mxu0 0
    %1429 = vmatprep.subr.bf16.mxu0 0
    %1430 = vmatpush1.bf16.xpose.msra.mxu0 0
    %1431 = vmatprep.subr.bf16.mxu0 0
    %1432 = vmatpush1.bf16.xpose.msra.mxu0 0
    %1433 = vmatprep.subr.bf16.mxu0 0
    %1434 = vmatpush1.bf16.xpose.msra.mxu0 0
    %1435 = vmatprep.subr.bf16.mxu0 0
    %1436 = vmatpush1.bf16.xpose.msra.mxu0 0
    %1437 = vmatprep.subr.bf16.mxu0 0
    %1438 = vmatpush1.bf16.xpose.msra.mxu0 0
    %1439 = vmatprep.subr.bf16.mxu0 0
    %1440 = vmatpush1.bf16.xpose.msra.mxu0 0
    %1441 = vmatprep.subr.bf16.mxu0 0
    %1442 = vmatpush1.bf16.xpose.msra.mxu0 %v1425
    %1443 = vmatprep.subr.bf16.mxu0 0
    %1444 = vmatpush2.bf16.xpose.msra.mxu0 0
    %1445 = vmatprep.subr.bf16.mxu0 0
    %1446 = vmatpush2.bf16.xpose.msra.mxu0 0
    %1447 = vmatprep.subr.bf16.mxu0 0
    %1448 = vmatpush2.bf16.xpose.msra.mxu0 0
    %1449 = vmatprep.subr.bf16.mxu0 0
    %1450 = vmatpush2.bf16.xpose.msra.mxu0 0
    %1451 = vmatprep.subr.bf16.mxu0 0
    %1452 = vmatpush2.bf16.xpose.msra.mxu0 0
    %1453 = vmatprep.subr.bf16.mxu0 0
    %1454 = vmatpush2.bf16.xpose.msra.mxu0 0
    %1455 = vmatprep.subr.bf16.mxu0 0
    %1456 = vmatpush2.bf16.xpose.msra.mxu0 0
    %1457 = vmatprep.subr.bf16.mxu0 0
    %1458 = vmatpush2.bf16.xpose.msra.mxu0 0
    %1459 = vmatprep.mubr.bf16.mxu0 0
    %1460 = vmatmul.mubr.bf16.gmra.mxu0 %v1422
    %v1461 = vpop.f32.mrf.mxu0
    %v1462 = vadd.f32 0.0, %v1461
    %v1463 = vpop.f32.mrf.mxu0
    %v1464 = vpop.f32.mrf.mxu0
    %v1465 = vadd.f32 0.0, %v1464
    %v1466 = vpop.f32.mrf.mxu0
    %1467 = vdwg.mxu0
    %v1468 = vmul.f32 %v1411, 0.35355338
    %v1469 = vmul.f32 %v1414, 0.35355338
    %v1470 = vmul.f32 %v1462, 0.35355338
    %v1471 = vmul.f32 %v1465, 0.35355338
    %v1472 = vadd.f32 %v1468, %v714
    %v1473 = vadd.f32 %v1469, %v714
    %v1474 = vadd.f32 %v1470, %v718
    %v1475 = vadd.f32 %v1471, %v718
    %v1476 = vsel %vm725, %v1472, -inf
    %1477 = vmax.xlane.f32.xlu0 %v1476
    %v1478 = vpop.xlane.xlu0 %1477
    %v1479 = vsel %vm725, %v1473, -inf
    %1480 = vmax.xlane.f32.xlu0 %v1479
    %v1481 = vpop.xlane.xlu0 %1480
    %v1482 = vsel %vm725, %v1474, -inf
    %1483 = vmax.xlane.f32.xlu0 %v1482
    %v1484 = vpop.xlane.xlu0 %1483
    %v1485 = vsel %vm725, %v1475, -inf
    %1486 = vmax.xlane.f32.xlu0 %v1485
    %v1487 = vpop.xlane.xlu0 %1486
    %v1488 = vsub.f32 %v1472, %v1478
    %v1489 = vsub.f32 %v1473, %v1481
    %v1490 = vsub.f32 %v1474, %v1484
    %v1491 = vsub.f32 %v1475, %v1487
    %v1492 = vmul.f32 %v1488, 1.442695
    %v1493 = vpow.pop %v1492
    %v1494 = vmul.f32 %v1489, 1.442695
    %v1495 = vpow.pop %v1494
    %v1496 = vmul.f32 %v1490, 1.442695
    %v1497 = vpow.pop %v1496
    %v1498 = vmul.f32 %v1491, 1.442695
    %v1499 = vpow.pop %v1498
    %v1500 = vsel %vm725, %v1493, 0.0
    %1501 = vadd.xlane.f32.xlu0 %v1500
    %v1502 = vpop.xlane.xlu0 %1501
    %v1503 = vsel %vm725, %v1495, 0.0
    %1504 = vadd.xlane.f32.xlu0 %v1503
    %v1505 = vpop.xlane.xlu0 %1504
    %v1506 = vsel %vm725, %v1497, 0.0
    %1507 = vadd.xlane.f32.xlu0 %v1506
    %v1508 = vpop.xlane.xlu0 %1507
    %v1509 = vsel %vm725, %v1499, 0.0
    %1510 = vadd.xlane.f32.xlu0 %v1509
    %v1511 = vpop.xlane.xlu0 %1510
    %v1512 = vrcp.pop %v1502
    %v1513 = vrcp.pop %v1505
    %v1514 = vrcp.pop %v1508
    %v1515 = vrcp.pop %v1511
    %v1516 = vmul.f32 %v1493, %v1512
    %v1517 = vmul.f32 %v1495, %v1513
    %v1518 = vmul.f32 %v1497, %v1514
    %v1519 = vmul.f32 %v1499, %v1515
    %v1520 = vpack.c.bf16 %v1517, %v1516
    %v1521 = vpack.c.bf16 %v1519, %v1518
    %1522 = vrot.lane.b32.xlu0 %v602, 40
    %v1523 = vpop.permute.xlu0 %1522
    %v1526 = vsel %vm725, %v1520, 0
    %1528 = vmatprep.subr.bf16.mxu0 0
    %1529 = vmatpush1.bf16.msra.mxu0 0
    %1530 = vmatprep.subr.bf16.mxu0 0
    %1531 = vmatpush1.bf16.msra.mxu0 0
    %1532 = vmatprep.subr.bf16.mxu0 0
    %1533 = vmatpush1.bf16.msra.mxu0 0
    %1534 = vmatprep.subr.bf16.mxu0 0
    %1535 = vmatpush1.bf16.msra.mxu0 0
    %1536 = vmatprep.subr.bf16.mxu0 0
    %1537 = vmatpush1.bf16.msra.mxu0 0
    %1538 = vmatprep.subr.bf16.mxu0 0
    %1539 = vmatpush1.bf16.msra.mxu0 0
    %1540 = vmatprep.subr.bf16.mxu0 0
    %1541 = vmatpush1.bf16.msra.mxu0 0
    %1542 = vmatprep.subr.bf16.mxu0 0
    %1543 = vmatpush1.bf16.msra.mxu0 %v1523
    %1544 = vmatprep.subr.bf16.mxu0 0
    %1545 = vmatpush2.bf16.msra.mxu0 0
    %1546 = vmatprep.subr.bf16.mxu0 0
    %1547 = vmatpush2.bf16.msra.mxu0 0
    %1548 = vmatprep.subr.bf16.mxu0 0
    %1549 = vmatpush2.bf16.msra.mxu0 0
    %1550 = vmatprep.subr.bf16.mxu0 0
    %1551 = vmatpush2.bf16.msra.mxu0 0
    %1552 = vmatprep.subr.bf16.mxu0 0
    %1553 = vmatpush2.bf16.msra.mxu0 0
    %1554 = vmatprep.subr.bf16.mxu0 0
    %1555 = vmatpush2.bf16.msra.mxu0 0
    %1556 = vmatprep.subr.bf16.mxu0 0
    %1557 = vmatpush2.bf16.msra.mxu0 0
    %1558 = vmatprep.subr.bf16.mxu0 0
    %1559 = vmatpush2.bf16.msra.mxu0 0
    %1560 = vmatprep.mubr.bf16.mxu0 0
    %1561 = vmatmul.mubr.bf16.gmra.mxu0 %v1526
    %v1562 = vpop.f32.mrf.mxu0
    %v1563 = vadd.f32 0.0, %v1562
    %v1564 = vpop.f32.mrf.mxu0
    %v1565 = vpop.f32.mrf.mxu0
    %v1566 = vadd.f32 0.0, %v1565
    %v1567 = vpop.f32.mrf.mxu0
    %1568 = vdwg.mxu0
    %1569 = vrot.lane.b32.xlu0 %v603, 40
    %v1570 = vpop.permute.xlu0 %1569
    %v1573 = vsel %vm725, %v1521, 0
    %1575 = vmatprep.subr.bf16.mxu0 0
    %1576 = vmatpush1.bf16.msra.mxu0 0
    %1577 = vmatprep.subr.bf16.mxu0 0
    %1578 = vmatpush1.bf16.msra.mxu0 0
    %1579 = vmatprep.subr.bf16.mxu0 0
    %1580 = vmatpush1.bf16.msra.mxu0 0
    %1581 = vmatprep.subr.bf16.mxu0 0
    %1582 = vmatpush1.bf16.msra.mxu0 0
    %1583 = vmatprep.subr.bf16.mxu0 0
    %1584 = vmatpush1.bf16.msra.mxu0 0
    %1585 = vmatprep.subr.bf16.mxu0 0
    %1586 = vmatpush1.bf16.msra.mxu0 0
    %1587 = vmatprep.subr.bf16.mxu0 0
    %1588 = vmatpush1.bf16.msra.mxu0 0
    %1589 = vmatprep.subr.bf16.mxu0 0
    %1590 = vmatpush1.bf16.msra.mxu0 %v1570
    %1591 = vmatprep.subr.bf16.mxu0 0
    %1592 = vmatpush2.bf16.msra.mxu0 0
    %1593 = vmatprep.subr.bf16.mxu0 0
    %1594 = vmatpush2.bf16.msra.mxu0 0
    %1595 = vmatprep.subr.bf16.mxu0 0
    %1596 = vmatpush2.bf16.msra.mxu0 0
    %1597 = vmatprep.subr.bf16.mxu0 0
    %1598 = vmatpush2.bf16.msra.mxu0 0
    %1599 = vmatprep.subr.bf16.mxu0 0
    %1600 = vmatpush2.bf16.msra.mxu0 0
    %1601 = vmatprep.subr.bf16.mxu0 0
    %1602 = vmatpush2.bf16.msra.mxu0 0
    %1603 = vmatprep.subr.bf16.mxu0 0
    %1604 = vmatpush2.bf16.msra.mxu0 0
    %1605 = vmatprep.subr.bf16.mxu0 0
    %1606 = vmatpush2.bf16.msra.mxu0 0
    %1607 = vmatprep.mubr.bf16.mxu0 0
    %1608 = vmatmul.mubr.bf16.gmra.mxu0 %v1573
    %v1609 = vpop.f32.mrf.mxu0
    %v1610 = vadd.f32 0.0, %v1609
    %v1611 = vpop.f32.mrf.mxu0
    %v1612 = vpop.f32.mrf.mxu0
    %v1613 = vadd.f32 0.0, %v1612
    %v1614 = vpop.f32.mrf.mxu0
    %1615 = vdwg.mxu0
    %1620 = vrot.lane.b32.xlu0 %v1063, 8
    %v1621 = vpop.permute.xlu0 %1620
    %1622 = vrot.lane.b32.xlu0 %v1066, 8
    %v1623 = vpop.permute.xlu0 %1622
    %1624 = vrot.lane.b32.xlu0 %v1110, 8
    %v1625 = vpop.permute.xlu0 %1624
    %1626 = vrot.lane.b32.xlu0 %v1113, 8
    %v1627 = vpop.permute.xlu0 %1626
    %1636 = vrot.lane.b32.xlu0 %v1313, 16
    %v1637 = vpop.permute.xlu0 %1636
    %1638 = vrot.lane.b32.xlu0 %v1316, 16
    %v1639 = vpop.permute.xlu0 %1638
    %1640 = vrot.lane.b32.xlu0 %v1360, 16
    %v1641 = vpop.permute.xlu0 %1640
    %1642 = vrot.lane.b32.xlu0 %v1363, 16
    %v1643 = vpop.permute.xlu0 %1642
    %1652 = vrot.lane.b32.xlu0 %v1563, 24
    %v1653 = vpop.permute.xlu0 %1652
    %1654 = vrot.lane.b32.xlu0 %v1566, 24
    %v1655 = vpop.permute.xlu0 %1654
    %1656 = vrot.lane.b32.xlu0 %v1610, 24
    %v1657 = vpop.permute.xlu0 %1656
    %1658 = vrot.lane.b32.xlu0 %v1613, 24
    %v1659 = vpop.permute.xlu0 %1658
    %v1664 = vsel %vm607, %v813, %v1621
    %v1665 = vsel %vm607, %v816, %v1623
    %v1666 = vsel %vm607, %v860, %v1625
    %v1667 = vsel %vm607, %v863, %v1627
    %v1668 = vsel %vm725, %v1664, %v1637
    %v1669 = vsel %vm725, %v1665, %v1639
    %v1670 = vsel %vm725, %v1666, %v1641
    %v1671 = vsel %vm725, %v1667, %v1643
    %vm1672 = vcmask 195584
    %v1673 = vsel %vm1672, %v1668, %v1653
    %v1674 = vsel %vm1672, %v1669, %v1655
    %v1675 = vsel %vm1672, %v1670, %v1657
    %v1676 = vsel %vm1672, %v1671, %v1659
    %v1677 = vld [vmem:[%s83] sm:$0xf]
    %v1678 = vld [vmem:[%s83 + $0x4] sm:$0xf]
    %v1679 = vld [vmem:[%s83 + $0x8] sm:$0xf]
    %v1680 = vld [vmem:[%s83 + $0xc] sm:$0xf]
    %v1681 = vld [vmem:[%s81] sm:$0x1]
    %v1682 = vpack.c.bf16 %v1674, %v1673
    %v1683 = vpack.c.bf16 %v1676, %v1675
    %v1685 = vlaneseq
    %v1686 = vshrl.u32 %v1685, 7
    %v1687 = vsub.s32 0, %v1686
    %v1688 = vrot.slane %v1681, %v1687
    %v1694 = vunpack.c.l.b16 %v1677
    %v1695 = vunpack.c.l.b16 %v1678
    %v1696 = vunpack.c.l.b16 %v1679
    %v1697 = vunpack.c.l.b16 %v1680
    %v1698 = vpack.c.b16 %v1695, %v1694
    %v1699 = vpack.c.b16 %v1697, %v1696
    %v1703 = vsel %vm546, %v1682, 0
    %v1706 = vsel %vm546, %v1683, 0
    %1708 = vmatprep.subr.bf16.mxu0 0
    %1709 = vmatpush1.bf16.msra.mxu0 0
    %1710 = vmatprep.subr.bf16.mxu0 0
    %1711 = vmatpush1.bf16.msra.mxu0 0
    %1712 = vmatprep.subr.bf16.mxu0 0
    %1713 = vmatpush1.bf16.msra.mxu0 0
    %1714 = vmatprep.subr.bf16.mxu0 0
    %1715 = vmatpush1.bf16.msra.mxu0 0
    %1716 = vmatprep.subr.bf16.mxu0 0
    %1717 = vmatpush1.bf16.msra.mxu0 0
    %1718 = vmatprep.subr.bf16.mxu0 0
    %1719 = vmatpush1.bf16.msra.mxu0 0
    %1720 = vmatprep.subr.bf16.mxu0 0
    %1721 = vmatpush1.bf16.msra.mxu0 %v1699
    %1722 = vmatprep.subr.bf16.mxu0 0
    %1723 = vmatpush1.bf16.msra.mxu0 %v1698
    %1724 = vmatprep.subr.bf16.mxu0 0
    %1725 = vmatpush2.bf16.msra.mxu0 0
    %1726 = vmatprep.subr.bf16.mxu0 0
    %1727 = vmatpush2.bf16.msra.mxu0 0
    %1728 = vmatprep.subr.bf16.mxu0 0
    %1729 = vmatpush2.bf16.msra.mxu0 0
    %1730 = vmatprep.subr.bf16.mxu0 0
    %1731 = vmatpush2.bf16.msra.mxu0 0
    %1732 = vmatprep.subr.bf16.mxu0 0
    %1733 = vmatpush2.bf16.msra.mxu0 0
    %1734 = vmatprep.subr.bf16.mxu0 0
    %1735 = vmatpush2.bf16.msra.mxu0 0
    %1736 = vmatprep.subr.bf16.mxu0 0
    %1737 = vmatpush2.bf16.msra.mxu0 0
    %1738 = vmatprep.subr.bf16.mxu0 0
    %1739 = vmatpush2.bf16.msra.mxu0 0
    %1740 = vmatprep.mubr.bf16.mxu0 0
    %1741 = vmatmul.mubr.bf16.gmra.mxu0 %v1703
    %v1742 = vpop.f32.mrf.mxu0
    %v1743 = vadd.f32 %v1688, %v1742
    %v1744 = vpop.f32.mrf.mxu0
    %v1745 = vpop.f32.mrf.mxu0
    %v1746 = vadd.f32 %v1688, %v1745
    %v1747 = vpop.f32.mrf.mxu0
    %1748 = vmatprep.mubr.bf16.mxu0 0
    %1749 = vmatmul.mubr.bf16.gmra.mxu0 %v1706
    %v1750 = vpop.f32.mrf.mxu0
    %v1751 = vadd.f32 %v1688, %v1750
    %v1752 = vpop.f32.mrf.mxu0
    %v1753 = vpop.f32.mrf.mxu0
    %v1754 = vadd.f32 %v1688, %v1753
    %v1755 = vpop.f32.mrf.mxu0
    %1756 = vdwg.mxu0
    %v1757 = vadd.f32 %v517, %v1743
    %v1758 = vadd.f32 %v518, %v1746
    %v1759 = vadd.f32 %v519, %v1751
    %v1760 = vadd.f32 %v520, %v1754
    %v1761 = vld [vmem:[%s75] sm:$0x1]
    %v1762 = vld [vmem:[%s73] sm:$0x1]
    %v1763 = vsel %vm546, %v1757, 0.0
    %1764 = vadd.xlane.f32.xlu0 %v1763
    %v1765 = vpop.xlane.xlu0 %1764
    %v1766 = vsel %vm546, %v1758, 0.0
    %1767 = vadd.xlane.f32.xlu0 %v1766
    %v1768 = vpop.xlane.xlu0 %1767
    %v1769 = vsel %vm546, %v1759, 0.0
    %1770 = vadd.xlane.f32.xlu0 %v1769
    %v1771 = vpop.xlane.xlu0 %1770
    %v1772 = vsel %vm546, %v1760, 0.0
    %1773 = vadd.xlane.f32.xlu0 %v1772
    %v1774 = vpop.xlane.xlu0 %1773
    %v1775 = vrcp.pop 32.0
    %v1776 = vmul.f32 %v1765, %v1775
    %v1777 = vmul.f32 %v1768, %v1775
    %v1778 = vmul.f32 %v1771, %v1775
    %v1779 = vmul.f32 %v1774, %v1775
    %v1780 = vsub.f32 %v1757, %v1776
    %v1781 = vsub.f32 %v1758, %v1777
    %v1782 = vsub.f32 %v1759, %v1778
    %v1783 = vsub.f32 %v1760, %v1779
    %v1784 = vmul.f32 %v1780, %v1780
    %v1785 = vmul.f32 %v1781, %v1781
    %v1786 = vmul.f32 %v1782, %v1782
    %v1787 = vmul.f32 %v1783, %v1783
    %v1788 = vsel %vm546, %v1784, 0.0
    %1789 = vadd.xlane.f32.xlu0 %v1788
    %v1790 = vpop.xlane.xlu0 %1789
    %v1791 = vsel %vm546, %v1785, 0.0
    %1792 = vadd.xlane.f32.xlu0 %v1791
    %v1793 = vpop.xlane.xlu0 %1792
    %v1794 = vsel %vm546, %v1786, 0.0
    %1795 = vadd.xlane.f32.xlu0 %v1794
    %v1796 = vpop.xlane.xlu0 %1795
    %v1797 = vsel %vm546, %v1787, 0.0
    %1798 = vadd.xlane.f32.xlu0 %v1797
    %v1799 = vpop.xlane.xlu0 %1798
    %v1800 = vmul.f32 %v1790, %v1775
    %v1801 = vmul.f32 %v1793, %v1775
    %v1802 = vmul.f32 %v1796, %v1775
    %v1803 = vmul.f32 %v1799, %v1775
    %v1804 = vadd.f32 %v1800, 1e-05
    %v1805 = vadd.f32 %v1801, 1e-05
    %v1806 = vadd.f32 %v1802, 1e-05
    %v1807 = vadd.f32 %v1803, 1e-05
    %v1808 = vrsqrt.pop %v1804
    %v1809 = vrsqrt.pop %v1805
    %v1810 = vrsqrt.pop %v1806
    %v1811 = vrsqrt.pop %v1807
    %v1812 = vmul.f32 %v1780, %v1808
    %v1813 = vmul.f32 %v1781, %v1809
    %v1814 = vmul.f32 %v1782, %v1810
    %v1815 = vmul.f32 %v1783, %v1811
    %v1817 = vlaneseq
    %v1818 = vshrl.u32 %v1817, 7
    %v1819 = vsub.s32 0, %v1818
    %v1820 = vrot.slane %v1761, %v1819
    %v1822 = vmul.f32 %v1812, %v1820
    %v1823 = vmul.f32 %v1813, %v1820
    %v1824 = vmul.f32 %v1814, %v1820
    %v1825 = vmul.f32 %v1815, %v1820
    %v1827 = vlaneseq
    %v1828 = vshrl.u32 %v1827, 7
    %v1829 = vsub.s32 0, %v1828
    %v1830 = vrot.slane %v1762, %v1829
    %v1832 = vadd.f32 %v1822, %v1830
    %v1833 = vadd.f32 %v1823, %v1830
    %v1834 = vadd.f32 %v1824, %v1830
    %v1835 = vadd.f32 %v1825, %v1830
    %v1836 = vld [vmem:[%s67] sm:$0xf]
    %v1837 = vld [vmem:[%s67 + $0x4] sm:$0xf]
    %v1838 = vld [vmem:[%s67 + $0x8] sm:$0xf]
    %v1839 = vld [vmem:[%s67 + $0xc] sm:$0xf]
    %v1840 = vld [vmem:[%s65] sm:$0x1]
    %v1841 = vpack.c.bf16 %v1833, %v1832
    %v1842 = vpack.c.bf16 %v1835, %v1834
    %v1844 = vlaneseq
    %v1845 = vshrl.u32 %v1844, 7
    %v1846 = vsub.s32 0, %v1845
    %v1847 = vrot.slane %v1840, %v1846
    %v1853 = vunpack.c.l.b16 %v1836
    %v1854 = vunpack.c.l.b16 %v1837
    %v1855 = vunpack.c.l.b16 %v1838
    %v1856 = vunpack.c.l.b16 %v1839
    %v1857 = vpack.c.b16 %v1854, %v1853
    %v1858 = vpack.c.b16 %v1856, %v1855
    %v1862 = vsel %vm546, %v1841, 0
    %v1865 = vsel %vm546, %v1842, 0
    %1867 = vmatprep.subr.bf16.mxu0 0
    %1868 = vmatpush1.bf16.msra.mxu0 0
    %1869 = vmatprep.subr.bf16.mxu0 0
    %1870 = vmatpush1.bf16.msra.mxu0 0
    %1871 = vmatprep.subr.bf16.mxu0 0
    %1872 = vmatpush1.bf16.msra.mxu0 0
    %1873 = vmatprep.subr.bf16.mxu0 0
    %1874 = vmatpush1.bf16.msra.mxu0 0
    %1875 = vmatprep.subr.bf16.mxu0 0
    %1876 = vmatpush1.bf16.msra.mxu0 0
    %1877 = vmatprep.subr.bf16.mxu0 0
    %1878 = vmatpush1.bf16.msra.mxu0 0
    %1879 = vmatprep.subr.bf16.mxu0 0
    %1880 = vmatpush1.bf16.msra.mxu0 %v1858
    %1881 = vmatprep.subr.bf16.mxu0 0
    %1882 = vmatpush1.bf16.msra.mxu0 %v1857
    %1883 = vmatprep.subr.bf16.mxu0 0
    %1884 = vmatpush2.bf16.msra.mxu0 0
    %1885 = vmatprep.subr.bf16.mxu0 0
    %1886 = vmatpush2.bf16.msra.mxu0 0
    %1887 = vmatprep.subr.bf16.mxu0 0
    %1888 = vmatpush2.bf16.msra.mxu0 0
    %1889 = vmatprep.subr.bf16.mxu0 0
    %1890 = vmatpush2.bf16.msra.mxu0 0
    %1891 = vmatprep.subr.bf16.mxu0 0
    %1892 = vmatpush2.bf16.msra.mxu0 0
    %1893 = vmatprep.subr.bf16.mxu0 0
    %1894 = vmatpush2.bf16.msra.mxu0 0
    %1895 = vmatprep.subr.bf16.mxu0 0
    %1896 = vmatpush2.bf16.msra.mxu0 0
    %1897 = vmatprep.subr.bf16.mxu0 0
    %1898 = vmatpush2.bf16.msra.mxu0 0
    %1899 = vmatprep.mubr.bf16.mxu0 0
    %1900 = vmatmul.mubr.bf16.gmra.mxu0 %v1862
    %v1901 = vpop.f32.mrf.mxu0
    %v1902 = vadd.f32 %v1847, %v1901
    %v1903 = vpop.f32.mrf.mxu0
    %v1904 = vpop.f32.mrf.mxu0
    %v1905 = vadd.f32 %v1847, %v1904
    %v1906 = vpop.f32.mrf.mxu0
    %1907 = vmatprep.mubr.bf16.mxu0 0
    %1908 = vmatmul.mubr.bf16.gmra.mxu0 %v1865
    %v1909 = vpop.f32.mrf.mxu0
    %v1910 = vadd.f32 %v1847, %v1909
    %v1911 = vpop.f32.mrf.mxu0
    %v1912 = vpop.f32.mrf.mxu0
    %v1913 = vadd.f32 %v1847, %v1912
    %v1914 = vpop.f32.mrf.mxu0
    %1915 = vdwg.mxu0
    %v1916 = vmax.f32 %v1902, 0.0
    %v1917 = vmax.f32 %v1905, 0.0
    %v1918 = vmax.f32 %v1910, 0.0
    %v1919 = vmax.f32 %v1913, 0.0
    %v1920 = vld [vmem:[%s71] sm:$0xf]
    %v1921 = vld [vmem:[%s71 + $0x4] sm:$0xf]
    %v1922 = vld [vmem:[%s71 + $0x8] sm:$0xf]
    %v1923 = vld [vmem:[%s71 + $0xc] sm:$0xf]
    %v1924 = vld [vmem:[%s71 + $0x10] sm:$0xf]
    %v1925 = vld [vmem:[%s71 + $0x14] sm:$0xf]
    %v1926 = vld [vmem:[%s71 + $0x18] sm:$0xf]
    %v1927 = vld [vmem:[%s71 + $0x1c] sm:$0xf]
    %v1928 = vld [vmem:[%s69] sm:$0x1]
    %v1929 = vpack.c.bf16 %v1917, %v1916
    %v1930 = vpack.c.bf16 %v1919, %v1918
    %v1932 = vlaneseq
    %v1933 = vshrl.u32 %v1932, 7
    %v1934 = vsub.s32 0, %v1933
    %v1935 = vrot.slane %v1928, %v1934
    %v1945 = vunpack.c.l.b16 %v1920
    %v1946 = vunpack.c.l.b16 %v1921
    %v1947 = vunpack.c.l.b16 %v1922
    %v1948 = vunpack.c.l.b16 %v1923
    %v1949 = vunpack.c.l.b16 %v1924
    %v1950 = vunpack.c.l.b16 %v1925
    %v1951 = vunpack.c.l.b16 %v1926
    %v1952 = vunpack.c.l.b16 %v1927
    %v1953 = vpack.c.b16 %v1946, %v1945
    %v1954 = vpack.c.b16 %v1948, %v1947
    %v1955 = vpack.c.b16 %v1950, %v1949
    %v1956 = vpack.c.b16 %v1952, %v1951
    %vm1961 = vcmask 523264
    %v1963 = vsel %vm1961, %v1929, 0
    %v1966 = vsel %vm1961, %v1930, 0
    %1968 = vmatprep.subr.bf16.mxu0 0
    %1969 = vmatpush1.bf16.msra.mxu0 0
    %1970 = vmatprep.subr.bf16.mxu0 0
    %1971 = vmatpush1.bf16.msra.mxu0 0
    %1972 = vmatprep.subr.bf16.mxu0 0
    %1973 = vmatpush1.bf16.msra.mxu0 0
    %1974 = vmatprep.subr.bf16.mxu0 0
    %1975 = vmatpush1.bf16.msra.mxu0 0
    %1976 = vmatprep.subr.bf16.mxu0 0
    %1977 = vmatpush1.bf16.msra.mxu0 %v1956
    %1978 = vmatprep.subr.bf16.mxu0 0
    %1979 = vmatpush1.bf16.msra.mxu0 %v1955
    %1980 = vmatprep.subr.bf16.mxu0 0
    %1981 = vmatpush1.bf16.msra.mxu0 %v1954
    %1982 = vmatprep.subr.bf16.mxu0 0
    %1983 = vmatpush1.bf16.msra.mxu0 %v1953
    %1984 = vmatprep.subr.bf16.mxu0 0
    %1985 = vmatpush2.bf16.msra.mxu0 0
    %1986 = vmatprep.subr.bf16.mxu0 0
    %1987 = vmatpush2.bf16.msra.mxu0 0
    %1988 = vmatprep.subr.bf16.mxu0 0
    %1989 = vmatpush2.bf16.msra.mxu0 0
    %1990 = vmatprep.subr.bf16.mxu0 0
    %1991 = vmatpush2.bf16.msra.mxu0 0
    %1992 = vmatprep.subr.bf16.mxu0 0
    %1993 = vmatpush2.bf16.msra.mxu0 0
    %1994 = vmatprep.subr.bf16.mxu0 0
    %1995 = vmatpush2.bf16.msra.mxu0 0
    %1996 = vmatprep.subr.bf16.mxu0 0
    %1997 = vmatpush2.bf16.msra.mxu0 0
    %1998 = vmatprep.subr.bf16.mxu0 0
    %1999 = vmatpush2.bf16.msra.mxu0 0
    %2000 = vmatprep.mubr.bf16.mxu0 0
    %2001 = vmatmul.mubr.bf16.gmra.mxu0 %v1963
    %v2002 = vpop.f32.mrf.mxu0
    %v2003 = vadd.f32 %v1935, %v2002
    %v2004 = vpop.f32.mrf.mxu0
    %v2005 = vpop.f32.mrf.mxu0
    %v2006 = vadd.f32 %v1935, %v2005
    %v2007 = vpop.f32.mrf.mxu0
    %2008 = vmatprep.mubr.bf16.mxu0 0
    %2009 = vmatmul.mubr.bf16.gmra.mxu0 %v1966
    %v2010 = vpop.f32.mrf.mxu0
    %v2011 = vadd.f32 %v1935, %v2010
    %v2012 = vpop.f32.mrf.mxu0
    %v2013 = vpop.f32.mrf.mxu0
    %v2014 = vadd.f32 %v1935, %v2013
    %v2015 = vpop.f32.mrf.mxu0
    %2016 = vdwg.mxu0
    %v2017 = vadd.f32 %v1832, %v2003
    %v2018 = vadd.f32 %v1833, %v2006
    %v2019 = vadd.f32 %v1834, %v2011
    %v2020 = vadd.f32 %v1835, %v2014
    %v2021 = vld [vmem:[%s79] sm:$0x1]
    %v2022 = vld [vmem:[%s77] sm:$0x1]
    %v2023 = vsel %vm546, %v2017, 0.0
    %2024 = vadd.xlane.f32.xlu0 %v2023
    %v2025 = vpop.xlane.xlu0 %2024
    %v2026 = vsel %vm546, %v2018, 0.0
    %2027 = vadd.xlane.f32.xlu0 %v2026
    %v2028 = vpop.xlane.xlu0 %2027
    %v2029 = vsel %vm546, %v2019, 0.0
    %2030 = vadd.xlane.f32.xlu0 %v2029
    %v2031 = vpop.xlane.xlu0 %2030
    %v2032 = vsel %vm546, %v2020, 0.0
    %2033 = vadd.xlane.f32.xlu0 %v2032
    %v2034 = vpop.xlane.xlu0 %2033
    %v2035 = vmul.f32 %v2025, %v1775
    %v2036 = vmul.f32 %v2028, %v1775
    %v2037 = vmul.f32 %v2031, %v1775
    %v2038 = vmul.f32 %v2034, %v1775
    %v2039 = vsub.f32 %v2017, %v2035
    %v2040 = vsub.f32 %v2018, %v2036
    %v2041 = vsub.f32 %v2019, %v2037
    %v2042 = vsub.f32 %v2020, %v2038
    %v2043 = vmul.f32 %v2039, %v2039
    %v2044 = vmul.f32 %v2040, %v2040
    %v2045 = vmul.f32 %v2041, %v2041
    %v2046 = vmul.f32 %v2042, %v2042
    %v2047 = vsel %vm546, %v2043, 0.0
    %2048 = vadd.xlane.f32.xlu0 %v2047
    %v2049 = vpop.xlane.xlu0 %2048
    %v2050 = vsel %vm546, %v2044, 0.0
    %2051 = vadd.xlane.f32.xlu0 %v2050
    %v2052 = vpop.xlane.xlu0 %2051
    %v2053 = vsel %vm546, %v2045, 0.0
    %2054 = vadd.xlane.f32.xlu0 %v2053
    %v2055 = vpop.xlane.xlu0 %2054
    %v2056 = vsel %vm546, %v2046, 0.0
    %2057 = vadd.xlane.f32.xlu0 %v2056
    %v2058 = vpop.xlane.xlu0 %2057
    %v2059 = vmul.f32 %v2049, %v1775
    %v2060 = vmul.f32 %v2052, %v1775
    %v2061 = vmul.f32 %v2055, %v1775
    %v2062 = vmul.f32 %v2058, %v1775
    %v2063 = vadd.f32 %v2059, 1e-05
    %v2064 = vadd.f32 %v2060, 1e-05
    %v2065 = vadd.f32 %v2061, 1e-05
    %v2066 = vadd.f32 %v2062, 1e-05
    %v2067 = vrsqrt.pop %v2063
    %v2068 = vrsqrt.pop %v2064
    %v2069 = vrsqrt.pop %v2065
    %v2070 = vrsqrt.pop %v2066
    %v2071 = vmul.f32 %v2039, %v2067
    %v2072 = vmul.f32 %v2040, %v2068
    %v2073 = vmul.f32 %v2041, %v2069
    %v2074 = vmul.f32 %v2042, %v2070
    %v2076 = vlaneseq
    %v2077 = vshrl.u32 %v2076, 7
    %v2078 = vsub.s32 0, %v2077
    %v2079 = vrot.slane %v2021, %v2078
    %v2081 = vmul.f32 %v2071, %v2079
    %v2082 = vmul.f32 %v2072, %v2079
    %v2083 = vmul.f32 %v2073, %v2079
    %v2084 = vmul.f32 %v2074, %v2079
    %v2086 = vlaneseq
    %v2087 = vshrl.u32 %v2086, 7
    %v2088 = vsub.s32 0, %v2087
    %v2089 = vrot.slane %v2022, %v2088
    %v2091 = vadd.f32 %v2081, %v2089
    %v2092 = vadd.f32 %v2082, %v2089
    %v2093 = vadd.f32 %v2083, %v2089
    %v2094 = vadd.f32 %v2084, %v2089
    %s2095 = scalar_lea.vmem %s87, 16
    %v2096 = vld [vmem:[%s2095] sm:$0xf]
    %v2097 = vld [vmem:[%s2095 + $0x4] sm:$0xf]
    %v2098 = vld [vmem:[%s2095 + $0x8] sm:$0xf]
    %v2099 = vld [vmem:[%s2095 + $0xc] sm:$0xf]
    %s2100 = scalar_lea.vmem %s85, 1
    %v2101 = vld [vmem:[%s2100] sm:$0x1]
    %v2102 = vpack.c.bf16 %v2092, %v2091
    %v2103 = vpack.c.bf16 %v2094, %v2093
    %v2105 = vlaneseq
    %v2106 = vshrl.u32 %v2105, 7
    %v2107 = vsub.s32 0, %v2106
    %v2108 = vrot.slane %v2101, %v2107
    %v2114 = vunpack.c.l.b16 %v2096
    %v2115 = vunpack.c.l.b16 %v2097
    %v2116 = vunpack.c.l.b16 %v2098
    %v2117 = vunpack.c.l.b16 %v2099
    %v2118 = vpack.c.b16 %v2115, %v2114
    %v2119 = vpack.c.b16 %v2117, %v2116
    %v2123 = vsel %vm546, %v2102, 0
    %v2126 = vsel %vm546, %v2103, 0
    %2128 = vmatprep.subr.bf16.mxu0 0
    %2129 = vmatpush1.bf16.msra.mxu0 0
    %2130 = vmatprep.subr.bf16.mxu0 0
    %2131 = vmatpush1.bf16.msra.mxu0 0
    %2132 = vmatprep.subr.bf16.mxu0 0
    %2133 = vmatpush1.bf16.msra.mxu0 0
    %2134 = vmatprep.subr.bf16.mxu0 0
    %2135 = vmatpush1.bf16.msra.mxu0 0
    %2136 = vmatprep.subr.bf16.mxu0 0
    %2137 = vmatpush1.bf16.msra.mxu0 0
    %2138 = vmatprep.subr.bf16.mxu0 0
    %2139 = vmatpush1.bf16.msra.mxu0 0
    %2140 = vmatprep.subr.bf16.mxu0 0
    %2141 = vmatpush1.bf16.msra.mxu0 %v2119
    %2142 = vmatprep.subr.bf16.mxu0 0
    %2143 = vmatpush1.bf16.msra.mxu0 %v2118
    %2144 = vmatprep.subr.bf16.mxu0 0
    %2145 = vmatpush2.bf16.msra.mxu0 0
    %2146 = vmatprep.subr.bf16.mxu0 0
    %2147 = vmatpush2.bf16.msra.mxu0 0
    %2148 = vmatprep.subr.bf16.mxu0 0
    %2149 = vmatpush2.bf16.msra.mxu0 0
    %2150 = vmatprep.subr.bf16.mxu0 0
    %2151 = vmatpush2.bf16.msra.mxu0 0
    %2152 = vmatprep.subr.bf16.mxu0 0
    %2153 = vmatpush2.bf16.msra.mxu0 0
    %2154 = vmatprep.subr.bf16.mxu0 0
    %2155 = vmatpush2.bf16.msra.mxu0 0
    %2156 = vmatprep.subr.bf16.mxu0 0
    %2157 = vmatpush2.bf16.msra.mxu0 0
    %2158 = vmatprep.subr.bf16.mxu0 0
    %2159 = vmatpush2.bf16.msra.mxu0 0
    %2160 = vmatprep.mubr.bf16.mxu0 0
    %2161 = vmatmul.mubr.bf16.gmra.mxu0 %v2123
    %v2162 = vpop.f32.mrf.mxu0
    %v2163 = vadd.f32 %v2108, %v2162
    %v2164 = vpop.f32.mrf.mxu0
    %v2165 = vpop.f32.mrf.mxu0
    %v2166 = vadd.f32 %v2108, %v2165
    %v2167 = vpop.f32.mrf.mxu0
    %2168 = vmatprep.mubr.bf16.mxu0 0
    %2169 = vmatmul.mubr.bf16.gmra.mxu0 %v2126
    %v2170 = vpop.f32.mrf.mxu0
    %v2171 = vadd.f32 %v2108, %v2170
    %v2172 = vpop.f32.mrf.mxu0
    %v2173 = vpop.f32.mrf.mxu0
    %v2174 = vadd.f32 %v2108, %v2173
    %v2175 = vpop.f32.mrf.mxu0
    %2176 = vdwg.mxu0
    %v2177 = vpack.c.bf16 %v2166, %v2163
    %v2178 = vpack.c.bf16 %v2174, %v2171
    %2180 = vrot.lane.b32.xlu0 %v2177, 96
    %v2181 = vpop.permute.xlu0 %2180
    %v2183 = vsel %vm607, %v2177, 0
    %v2186 = vsel %vm607, %v2181, 0
    %2188 = vmatprep.subr.bf16.mxu0 0
    %2189 = vmatpush1.bf16.xpose.msra.mxu0 0
    %2190 = vmatprep.subr.bf16.mxu0 0
    %2191 = vmatpush1.bf16.xpose.msra.mxu0 0
    %2192 = vmatprep.subr.bf16.mxu0 0
    %2193 = vmatpush1.bf16.xpose.msra.mxu0 0
    %2194 = vmatprep.subr.bf16.mxu0 0
    %2195 = vmatpush1.bf16.xpose.msra.mxu0 0
    %2196 = vmatprep.subr.bf16.mxu0 0
    %2197 = vmatpush1.bf16.xpose.msra.mxu0 0
    %2198 = vmatprep.subr.bf16.mxu0 0
    %2199 = vmatpush1.bf16.xpose.msra.mxu0 0
    %2200 = vmatprep.subr.bf16.mxu0 0
    %2201 = vmatpush1.bf16.xpose.msra.mxu0 0
    %2202 = vmatprep.subr.bf16.mxu0 0
    %2203 = vmatpush1.bf16.xpose.msra.mxu0 %v2186
    %2204 = vmatprep.subr.bf16.mxu0 0
    %2205 = vmatpush2.bf16.xpose.msra.mxu0 0
    %2206 = vmatprep.subr.bf16.mxu0 0
    %2207 = vmatpush2.bf16.xpose.msra.mxu0 0
    %2208 = vmatprep.subr.bf16.mxu0 0
    %2209 = vmatpush2.bf16.xpose.msra.mxu0 0
    %2210 = vmatprep.subr.bf16.mxu0 0
    %2211 = vmatpush2.bf16.xpose.msra.mxu0 0
    %2212 = vmatprep.subr.bf16.mxu0 0
    %2213 = vmatpush2.bf16.xpose.msra.mxu0 0
    %2214 = vmatprep.subr.bf16.mxu0 0
    %2215 = vmatpush2.bf16.xpose.msra.mxu0 0
    %2216 = vmatprep.subr.bf16.mxu0 0
    %2217 = vmatpush2.bf16.xpose.msra.mxu0 0
    %2218 = vmatprep.subr.bf16.mxu0 0
    %2219 = vmatpush2.bf16.xpose.msra.mxu0 0
    %2220 = vmatprep.mubr.bf16.mxu0 0
    %2221 = vmatmul.mubr.bf16.gmra.mxu0 %v2183
    %v2222 = vpop.f32.mrf.mxu0
    %v2223 = vadd.f32 0.0, %v2222
    %v2224 = vpop.f32.mrf.mxu0
    %v2225 = vpop.f32.mrf.mxu0
    %v2226 = vadd.f32 0.0, %v2225
    %v2227 = vpop.f32.mrf.mxu0
    %2228 = vdwg.mxu0
    %2230 = vrot.lane.b32.xlu0 %v2178, 96
    %v2231 = vpop.permute.xlu0 %2230
    %v2233 = vsel %vm607, %v2178, 0
    %v2236 = vsel %vm607, %v2231, 0
    %2238 = vmatprep.subr.bf16.mxu0 0
    %2239 = vmatpush1.bf16.xpose.msra.mxu0 0
    %2240 = vmatprep.subr.bf16.mxu0 0
    %2241 = vmatpush1.bf16.xpose.msra.mxu0 0
    %2242 = vmatprep.subr.bf16.mxu0 0
    %2243 = vmatpush1.bf16.xpose.msra.mxu0 0
    %2244 = vmatprep.subr.bf16.mxu0 0
    %2245 = vmatpush1.bf16.xpose.msra.mxu0 0
    %2246 = vmatprep.subr.bf16.mxu0 0
    %2247 = vmatpush1.bf16.xpose.msra.mxu0 0
    %2248 = vmatprep.subr.bf16.mxu0 0
    %2249 = vmatpush1.bf16.xpose.msra.mxu0 0
    %2250 = vmatprep.subr.bf16.mxu0 0
    %2251 = vmatpush1.bf16.xpose.msra.mxu0 0
    %2252 = vmatprep.subr.bf16.mxu0 0
    %2253 = vmatpush1.bf16.xpose.msra.mxu0 %v2236
    %2254 = vmatprep.subr.bf16.mxu0 0
    %2255 = vmatpush2.bf16.xpose.msra.mxu0 0
    %2256 = vmatprep.subr.bf16.mxu0 0
    %2257 = vmatpush2.bf16.xpose.msra.mxu0 0
    %2258 = vmatprep.subr.bf16.mxu0 0
    %2259 = vmatpush2.bf16.xpose.msra.mxu0 0
    %2260 = vmatprep.subr.bf16.mxu0 0
    %2261 = vmatpush2.bf16.xpose.msra.mxu0 0
    %2262 = vmatprep.subr.bf16.mxu0 0
    %2263 = vmatpush2.bf16.xpose.msra.mxu0 0
    %2264 = vmatprep.subr.bf16.mxu0 0
    %2265 = vmatpush2.bf16.xpose.msra.mxu0 0
    %2266 = vmatprep.subr.bf16.mxu0 0
    %2267 = vmatpush2.bf16.xpose.msra.mxu0 0
    %2268 = vmatprep.subr.bf16.mxu0 0
    %2269 = vmatpush2.bf16.xpose.msra.mxu0 0
    %2270 = vmatprep.mubr.bf16.mxu0 0
    %2271 = vmatmul.mubr.bf16.gmra.mxu0 %v2233
    %v2272 = vpop.f32.mrf.mxu0
    %v2273 = vadd.f32 0.0, %v2272
    %v2274 = vpop.f32.mrf.mxu0
    %v2275 = vpop.f32.mrf.mxu0
    %v2276 = vadd.f32 0.0, %v2275
    %v2277 = vpop.f32.mrf.mxu0
    %2278 = vdwg.mxu0
    %v2279 = vmul.f32 %v2223, 0.35355338
    %v2280 = vmul.f32 %v2226, 0.35355338
    %v2281 = vmul.f32 %v2273, 0.35355338
    %v2282 = vmul.f32 %v2276, 0.35355338
    %v2283 = vadd.f32 %v2279, %v714
    %v2284 = vadd.f32 %v2280, %v714
    %v2285 = vadd.f32 %v2281, %v718
    %v2286 = vadd.f32 %v2282, %v718
    %v2287 = vsel %vm725, %v2283, -inf
    %2288 = vmax.xlane.f32.xlu0 %v2287
    %v2289 = vpop.xlane.xlu0 %2288
    %v2290 = vsel %vm725, %v2284, -inf
    %2291 = vmax.xlane.f32.xlu0 %v2290
    %v2292 = vpop.xlane.xlu0 %2291
    %v2293 = vsel %vm725, %v2285, -inf
    %2294 = vmax.xlane.f32.xlu0 %v2293
    %v2295 = vpop.xlane.xlu0 %2294
    %v2296 = vsel %vm725, %v2286, -inf
    %2297 = vmax.xlane.f32.xlu0 %v2296
    %v2298 = vpop.xlane.xlu0 %2297
    %v2299 = vsub.f32 %v2283, %v2289
    %v2300 = vsub.f32 %v2284, %v2292
    %v2301 = vsub.f32 %v2285, %v2295
    %v2302 = vsub.f32 %v2286, %v2298
    %v2303 = vmul.f32 %v2299, 1.442695
    %v2304 = vpow.pop %v2303
    %v2305 = vmul.f32 %v2300, 1.442695
    %v2306 = vpow.pop %v2305
    %v2307 = vmul.f32 %v2301, 1.442695
    %v2308 = vpow.pop %v2307
    %v2309 = vmul.f32 %v2302, 1.442695
    %v2310 = vpow.pop %v2309
    %v2311 = vsel %vm725, %v2304, 0.0
    %2312 = vadd.xlane.f32.xlu0 %v2311
    %v2313 = vpop.xlane.xlu0 %2312
    %v2314 = vsel %vm725, %v2306, 0.0
    %2315 = vadd.xlane.f32.xlu0 %v2314
    %v2316 = vpop.xlane.xlu0 %2315
    %v2317 = vsel %vm725, %v2308, 0.0
    %2318 = vadd.xlane.f32.xlu0 %v2317
    %v2319 = vpop.xlane.xlu0 %2318
    %v2320 = vsel %vm725, %v2310, 0.0
    %2321 = vadd.xlane.f32.xlu0 %v2320
    %v2322 = vpop.xlane.xlu0 %2321
    %v2323 = vrcp.pop %v2313
    %v2324 = vrcp.pop %v2316
    %v2325 = vrcp.pop %v2319
    %v2326 = vrcp.pop %v2322
    %v2327 = vmul.f32 %v2304, %v2323
    %v2328 = vmul.f32 %v2306, %v2324
    %v2329 = vmul.f32 %v2308, %v2325
    %v2330 = vmul.f32 %v2310, %v2326
    %v2331 = vpack.c.bf16 %v2328, %v2327
    %v2332 = vpack.c.bf16 %v2330, %v2329
    %2333 = vrot.lane.b32.xlu0 %v2177, 64
    %v2334 = vpop.permute.xlu0 %2333
    %v2337 = vsel %vm725, %v2331, 0
    %2339 = vmatprep.subr.bf16.mxu0 0
    %2340 = vmatpush1.bf16.msra.mxu0 0
    %2341 = vmatprep.subr.bf16.mxu0 0
    %2342 = vmatpush1.bf16.msra.mxu0 0
    %2343 = vmatprep.subr.bf16.mxu0 0
    %2344 = vmatpush1.bf16.msra.mxu0 0
    %2345 = vmatprep.subr.bf16.mxu0 0
    %2346 = vmatpush1.bf16.msra.mxu0 0
    %2347 = vmatprep.subr.bf16.mxu0 0
    %2348 = vmatpush1.bf16.msra.mxu0 0
    %2349 = vmatprep.subr.bf16.mxu0 0
    %2350 = vmatpush1.bf16.msra.mxu0 0
    %2351 = vmatprep.subr.bf16.mxu0 0
    %2352 = vmatpush1.bf16.msra.mxu0 0
    %2353 = vmatprep.subr.bf16.mxu0 0
    %2354 = vmatpush1.bf16.msra.mxu0 %v2334
    %2355 = vmatprep.subr.bf16.mxu0 0
    %2356 = vmatpush2.bf16.msra.mxu0 0
    %2357 = vmatprep.subr.bf16.mxu0 0
    %2358 = vmatpush2.bf16.msra.mxu0 0
    %2359 = vmatprep.subr.bf16.mxu0 0
    %2360 = vmatpush2.bf16.msra.mxu0 0
    %2361 = vmatprep.subr.bf16.mxu0 0
    %2362 = vmatpush2.bf16.msra.mxu0 0
    %2363 = vmatprep.subr.bf16.mxu0 0
    %2364 = vmatpush2.bf16.msra.mxu0 0
    %2365 = vmatprep.subr.bf16.mxu0 0
    %2366 = vmatpush2.bf16.msra.mxu0 0
    %2367 = vmatprep.subr.bf16.mxu0 0
    %2368 = vmatpush2.bf16.msra.mxu0 0
    %2369 = vmatprep.subr.bf16.mxu0 0
    %2370 = vmatpush2.bf16.msra.mxu0 0
    %2371 = vmatprep.mubr.bf16.mxu0 0
    %2372 = vmatmul.mubr.bf16.gmra.mxu0 %v2337
    %v2373 = vpop.f32.mrf.mxu0
    %v2374 = vadd.f32 0.0, %v2373
    %v2375 = vpop.f32.mrf.mxu0
    %v2376 = vpop.f32.mrf.mxu0
    %v2377 = vadd.f32 0.0, %v2376
    %v2378 = vpop.f32.mrf.mxu0
    %2379 = vdwg.mxu0
    %2380 = vrot.lane.b32.xlu0 %v2178, 64
    %v2381 = vpop.permute.xlu0 %2380
    %v2384 = vsel %vm725, %v2332, 0
    %2386 = vmatprep.subr.bf16.mxu0 0
    %2387 = vmatpush1.bf16.msra.mxu0 0
    %2388 = vmatprep.subr.bf16.mxu0 0
    %2389 = vmatpush1.bf16.msra.mxu0 0
    %2390 = vmatprep.subr.bf16.mxu0 0
    %2391 = vmatpush1.bf16.msra.mxu0 0
    %2392 = vmatprep.subr.bf16.mxu0 0
    %2393 = vmatpush1.bf16.msra.mxu0 0
    %2394 = vmatprep.subr.bf16.mxu0 0
    %2395 = vmatpush1.bf16.msra.mxu0 0
    %2396 = vmatprep.subr.bf16.mxu0 0
    %2397 = vmatpush1.bf16.msra.mxu0 0
    %2398 = vmatprep.subr.bf16.mxu0 0
    %2399 = vmatpush1.bf16.msra.mxu0 0
    %2400 = vmatprep.subr.bf16.mxu0 0
    %2401 = vmatpush1.bf16.msra.mxu0 %v2381
    %2402 = vmatprep.subr.bf16.mxu0 0
    %2403 = vmatpush2.bf16.msra.mxu0 0
    %2404 = vmatprep.subr.bf16.mxu0 0
    %2405 = vmatpush2.bf16.msra.mxu0 0
    %2406 = vmatprep.subr.bf16.mxu0 0
    %2407 = vmatpush2.bf16.msra.mxu0 0
    %2408 = vmatprep.subr.bf16.mxu0 0
    %2409 = vmatpush2.bf16.msra.mxu0 0
    %2410 = vmatprep.subr.bf16.mxu0 0
    %2411 = vmatpush2.bf16.msra.mxu0 0
    %2412 = vmatprep.subr.bf16.mxu0 0
    %2413 = vmatpush2.bf16.msra.mxu0 0
    %2414 = vmatprep.subr.bf16.mxu0 0
    %2415 = vmatpush2.bf16.msra.mxu0 0
    %2416 = vmatprep.subr.bf16.mxu0 0
    %2417 = vmatpush2.bf16.msra.mxu0 0
    %2418 = vmatprep.mubr.bf16.mxu0 0
    %2419 = vmatmul.mubr.bf16.gmra.mxu0 %v2384
    %v2420 = vpop.f32.mrf.mxu0
    %v2421 = vadd.f32 0.0, %v2420
    %v2422 = vpop.f32.mrf.mxu0
    %v2423 = vpop.f32.mrf.mxu0
    %v2424 = vadd.f32 0.0, %v2423
    %v2425 = vpop.f32.mrf.mxu0
    %2426 = vdwg.mxu0
    %2427 = vrot.lane.b32.xlu0 %v2177, 120
    %v2428 = vpop.permute.xlu0 %2427
    %2429 = vrot.lane.b32.xlu0 %v2177, 88
    %v2430 = vpop.permute.xlu0 %2429
    %v2432 = vsel %vm607, %v2428, 0
    %v2435 = vsel %vm607, %v2430, 0
    %2437 = vmatprep.subr.bf16.mxu0 0
    %2438 = vmatpush1.bf16.xpose.msra.mxu0 0
    %2439 = vmatprep.subr.bf16.mxu0 0
    %2440 = vmatpush1.bf16.xpose.msra.mxu0 0
    %2441 = vmatprep.subr.bf16.mxu0 0
    %2442 = vmatpush1.bf16.xpose.msra.mxu0 0
    %2443 = vmatprep.subr.bf16.mxu0 0
    %2444 = vmatpush1.bf16.xpose.msra.mxu0 0
    %2445 = vmatprep.subr.bf16.mxu0 0
    %2446 = vmatpush1.bf16.xpose.msra.mxu0 0
    %2447 = vmatprep.subr.bf16.mxu0 0
    %2448 = vmatpush1.bf16.xpose.msra.mxu0 0
    %2449 = vmatprep.subr.bf16.mxu0 0
    %2450 = vmatpush1.bf16.xpose.msra.mxu0 0
    %2451 = vmatprep.subr.bf16.mxu0 0
    %2452 = vmatpush1.bf16.xpose.msra.mxu0 %v2435
    %2453 = vmatprep.subr.bf16.mxu0 0
    %2454 = vmatpush2.bf16.xpose.msra.mxu0 0
    %2455 = vmatprep.subr.bf16.mxu0 0
    %2456 = vmatpush2.bf16.xpose.msra.mxu0 0
    %2457 = vmatprep.subr.bf16.mxu0 0
    %2458 = vmatpush2.bf16.xpose.msra.mxu0 0
    %2459 = vmatprep.subr.bf16.mxu0 0
    %2460 = vmatpush2.bf16.xpose.msra.mxu0 0
    %2461 = vmatprep.subr.bf16.mxu0 0
    %2462 = vmatpush2.bf16.xpose.msra.mxu0 0
    %2463 = vmatprep.subr.bf16.mxu0 0
    %2464 = vmatpush2.bf16.xpose.msra.mxu0 0
    %2465 = vmatprep.subr.bf16.mxu0 0
    %2466 = vmatpush2.bf16.xpose.msra.mxu0 0
    %2467 = vmatprep.subr.bf16.mxu0 0
    %2468 = vmatpush2.bf16.xpose.msra.mxu0 0
    %2469 = vmatprep.mubr.bf16.mxu0 0
    %2470 = vmatmul.mubr.bf16.gmra.mxu0 %v2432
    %v2471 = vpop.f32.mrf.mxu0
    %v2472 = vadd.f32 0.0, %v2471
    %v2473 = vpop.f32.mrf.mxu0
    %v2474 = vpop.f32.mrf.mxu0
    %v2475 = vadd.f32 0.0, %v2474
    %v2476 = vpop.f32.mrf.mxu0
    %2477 = vdwg.mxu0
    %2478 = vrot.lane.b32.xlu0 %v2178, 120
    %v2479 = vpop.permute.xlu0 %2478
    %2480 = vrot.lane.b32.xlu0 %v2178, 88
    %v2481 = vpop.permute.xlu0 %2480
    %v2483 = vsel %vm607, %v2479, 0
    %v2486 = vsel %vm607, %v2481, 0
    %2488 = vmatprep.subr.bf16.mxu0 0
    %2489 = vmatpush1.bf16.xpose.msra.mxu0 0
    %2490 = vmatprep.subr.bf16.mxu0 0
    %2491 = vmatpush1.bf16.xpose.msra.mxu0 0
    %2492 = vmatprep.subr.bf16.mxu0 0
    %2493 = vmatpush1.bf16.xpose.msra.mxu0 0
    %2494 = vmatprep.subr.bf16.mxu0 0
    %2495 = vmatpush1.bf16.xpose.msra.mxu0 0
    %2496 = vmatprep.subr.bf16.mxu0 0
    %2497 = vmatpush1.bf16.xpose.msra.mxu0 0
    %2498 = vmatprep.subr.bf16.mxu0 0
    %2499 = vmatpush1.bf16.xpose.msra.mxu0 0
    %2500 = vmatprep.subr.bf16.mxu0 0
    %2501 = vmatpush1.bf16.xpose.msra.mxu0 0
    %2502 = vmatprep.subr.bf16.mxu0 0
    %2503 = vmatpush1.bf16.xpose.msra.mxu0 %v2486
    %2504 = vmatprep.subr.bf16.mxu0 0
    %2505 = vmatpush2.bf16.xpose.msra.mxu0 0
    %2506 = vmatprep.subr.bf16.mxu0 0
    %2507 = vmatpush2.bf16.xpose.msra.mxu0 0
    %2508 = vmatprep.subr.bf16.mxu0 0
    %2509 = vmatpush2.bf16.xpose.msra.mxu0 0
    %2510 = vmatprep.subr.bf16.mxu0 0
    %2511 = vmatpush2.bf16.xpose.msra.mxu0 0
    %2512 = vmatprep.subr.bf16.mxu0 0
    %2513 = vmatpush2.bf16.xpose.msra.mxu0 0
    %2514 = vmatprep.subr.bf16.mxu0 0
    %2515 = vmatpush2.bf16.xpose.msra.mxu0 0
    %2516 = vmatprep.subr.bf16.mxu0 0
    %2517 = vmatpush2.bf16.xpose.msra.mxu0 0
    %2518 = vmatprep.subr.bf16.mxu0 0
    %2519 = vmatpush2.bf16.xpose.msra.mxu0 0
    %2520 = vmatprep.mubr.bf16.mxu0 0
    %2521 = vmatmul.mubr.bf16.gmra.mxu0 %v2483
    %v2522 = vpop.f32.mrf.mxu0
    %v2523 = vadd.f32 0.0, %v2522
    %v2524 = vpop.f32.mrf.mxu0
    %v2525 = vpop.f32.mrf.mxu0
    %v2526 = vadd.f32 0.0, %v2525
    %v2527 = vpop.f32.mrf.mxu0
    %2528 = vdwg.mxu0
    %v2529 = vmul.f32 %v2472, 0.35355338
    %v2530 = vmul.f32 %v2475, 0.35355338
    %v2531 = vmul.f32 %v2523, 0.35355338
    %v2532 = vmul.f32 %v2526, 0.35355338
    %v2533 = vadd.f32 %v2529, %v714
    %v2534 = vadd.f32 %v2530, %v714
    %v2535 = vadd.f32 %v2531, %v718
    %v2536 = vadd.f32 %v2532, %v718
    %v2537 = vsel %vm725, %v2533, -inf
    %2538 = vmax.xlane.f32.xlu0 %v2537
    %v2539 = vpop.xlane.xlu0 %2538
    %v2540 = vsel %vm725, %v2534, -inf
    %2541 = vmax.xlane.f32.xlu0 %v2540
    %v2542 = vpop.xlane.xlu0 %2541
    %v2543 = vsel %vm725, %v2535, -inf
    %2544 = vmax.xlane.f32.xlu0 %v2543
    %v2545 = vpop.xlane.xlu0 %2544
    %v2546 = vsel %vm725, %v2536, -inf
    %2547 = vmax.xlane.f32.xlu0 %v2546
    %v2548 = vpop.xlane.xlu0 %2547
    %v2549 = vsub.f32 %v2533, %v2539
    %v2550 = vsub.f32 %v2534, %v2542
    %v2551 = vsub.f32 %v2535, %v2545
    %v2552 = vsub.f32 %v2536, %v2548
    %v2553 = vmul.f32 %v2549, 1.442695
    %v2554 = vpow.pop %v2553
    %v2555 = vmul.f32 %v2550, 1.442695
    %v2556 = vpow.pop %v2555
    %v2557 = vmul.f32 %v2551, 1.442695
    %v2558 = vpow.pop %v2557
    %v2559 = vmul.f32 %v2552, 1.442695
    %v2560 = vpow.pop %v2559
    %v2561 = vsel %vm725, %v2554, 0.0
    %2562 = vadd.xlane.f32.xlu0 %v2561
    %v2563 = vpop.xlane.xlu0 %2562
    %v2564 = vsel %vm725, %v2556, 0.0
    %2565 = vadd.xlane.f32.xlu0 %v2564
    %v2566 = vpop.xlane.xlu0 %2565
    %v2567 = vsel %vm725, %v2558, 0.0
    %2568 = vadd.xlane.f32.xlu0 %v2567
    %v2569 = vpop.xlane.xlu0 %2568
    %v2570 = vsel %vm725, %v2560, 0.0
    %2571 = vadd.xlane.f32.xlu0 %v2570
    %v2572 = vpop.xlane.xlu0 %2571
    %v2573 = vrcp.pop %v2563
    %v2574 = vrcp.pop %v2566
    %v2575 = vrcp.pop %v2569
    %v2576 = vrcp.pop %v2572
    %v2577 = vmul.f32 %v2554, %v2573
    %v2578 = vmul.f32 %v2556, %v2574
    %v2579 = vmul.f32 %v2558, %v2575
    %v2580 = vmul.f32 %v2560, %v2576
    %v2581 = vpack.c.bf16 %v2578, %v2577
    %v2582 = vpack.c.bf16 %v2580, %v2579
    %2583 = vrot.lane.b32.xlu0 %v2177, 56
    %v2584 = vpop.permute.xlu0 %2583
    %v2587 = vsel %vm725, %v2581, 0
    %2589 = vmatprep.subr.bf16.mxu0 0
    %2590 = vmatpush1.bf16.msra.mxu0 0
    %2591 = vmatprep.subr.bf16.mxu0 0
    %2592 = vmatpush1.bf16.msra.mxu0 0
    %2593 = vmatprep.subr.bf16.mxu0 0
    %2594 = vmatpush1.bf16.msra.mxu0 0
    %2595 = vmatprep.subr.bf16.mxu0 0
    %2596 = vmatpush1.bf16.msra.mxu0 0
    %2597 = vmatprep.subr.bf16.mxu0 0
    %2598 = vmatpush1.bf16.msra.mxu0 0
    %2599 = vmatprep.subr.bf16.mxu0 0
    %2600 = vmatpush1.bf16.msra.mxu0 0
    %2601 = vmatprep.subr.bf16.mxu0 0
    %2602 = vmatpush1.bf16.msra.mxu0 0
    %2603 = vmatprep.subr.bf16.mxu0 0
    %2604 = vmatpush1.bf16.msra.mxu0 %v2584
    %2605 = vmatprep.subr.bf16.mxu0 0
    %2606 = vmatpush2.bf16.msra.mxu0 0
    %2607 = vmatprep.subr.bf16.mxu0 0
    %2608 = vmatpush2.bf16.msra.mxu0 0
    %2609 = vmatprep.subr.bf16.mxu0 0
    %2610 = vmatpush2.bf16.msra.mxu0 0
    %2611 = vmatprep.subr.bf16.mxu0 0
    %2612 = vmatpush2.bf16.msra.mxu0 0
    %2613 = vmatprep.subr.bf16.mxu0 0
    %2614 = vmatpush2.bf16.msra.mxu0 0
    %2615 = vmatprep.subr.bf16.mxu0 0
    %2616 = vmatpush2.bf16.msra.mxu0 0
    %2617 = vmatprep.subr.bf16.mxu0 0
    %2618 = vmatpush2.bf16.msra.mxu0 0
    %2619 = vmatprep.subr.bf16.mxu0 0
    %2620 = vmatpush2.bf16.msra.mxu0 0
    %2621 = vmatprep.mubr.bf16.mxu0 0
    %2622 = vmatmul.mubr.bf16.gmra.mxu0 %v2587
    %v2623 = vpop.f32.mrf.mxu0
    %v2624 = vadd.f32 0.0, %v2623
    %v2625 = vpop.f32.mrf.mxu0
    %v2626 = vpop.f32.mrf.mxu0
    %v2627 = vadd.f32 0.0, %v2626
    %v2628 = vpop.f32.mrf.mxu0
    %2629 = vdwg.mxu0
    %2630 = vrot.lane.b32.xlu0 %v2178, 56
    %v2631 = vpop.permute.xlu0 %2630
    %v2634 = vsel %vm725, %v2582, 0
    %2636 = vmatprep.subr.bf16.mxu0 0
    %2637 = vmatpush1.bf16.msra.mxu0 0
    %2638 = vmatprep.subr.bf16.mxu0 0
    %2639 = vmatpush1.bf16.msra.mxu0 0
    %2640 = vmatprep.subr.bf16.mxu0 0
    %2641 = vmatpush1.bf16.msra.mxu0 0
    %2642 = vmatprep.subr.bf16.mxu0 0
    %2643 = vmatpush1.bf16.msra.mxu0 0
    %2644 = vmatprep.subr.bf16.mxu0 0
    %2645 = vmatpush1.bf16.msra.mxu0 0
    %2646 = vmatprep.subr.bf16.mxu0 0
    %2647 = vmatpush1.bf16.msra.mxu0 0
    %2648 = vmatprep.subr.bf16.mxu0 0
    %2649 = vmatpush1.bf16.msra.mxu0 0
    %2650 = vmatprep.subr.bf16.mxu0 0
    %2651 = vmatpush1.bf16.msra.mxu0 %v2631
    %2652 = vmatprep.subr.bf16.mxu0 0
    %2653 = vmatpush2.bf16.msra.mxu0 0
    %2654 = vmatprep.subr.bf16.mxu0 0
    %2655 = vmatpush2.bf16.msra.mxu0 0
    %2656 = vmatprep.subr.bf16.mxu0 0
    %2657 = vmatpush2.bf16.msra.mxu0 0
    %2658 = vmatprep.subr.bf16.mxu0 0
    %2659 = vmatpush2.bf16.msra.mxu0 0
    %2660 = vmatprep.subr.bf16.mxu0 0
    %2661 = vmatpush2.bf16.msra.mxu0 0
    %2662 = vmatprep.subr.bf16.mxu0 0
    %2663 = vmatpush2.bf16.msra.mxu0 0
    %2664 = vmatprep.subr.bf16.mxu0 0
    %2665 = vmatpush2.bf16.msra.mxu0 0
    %2666 = vmatprep.subr.bf16.mxu0 0
    %2667 = vmatpush2.bf16.msra.mxu0 0
    %2668 = vmatprep.mubr.bf16.mxu0 0
    %2669 = vmatmul.mubr.bf16.gmra.mxu0 %v2634
    %v2670 = vpop.f32.mrf.mxu0
    %v2671 = vadd.f32 0.0, %v2670
    %v2672 = vpop.f32.mrf.mxu0
    %v2673 = vpop.f32.mrf.mxu0
    %v2674 = vadd.f32 0.0, %v2673
    %v2675 = vpop.f32.mrf.mxu0
    %2676 = vdwg.mxu0
    %2677 = vrot.lane.b32.xlu0 %v2177, 112
    %v2678 = vpop.permute.xlu0 %2677
    %2679 = vrot.lane.b32.xlu0 %v2177, 80
    %v2680 = vpop.permute.xlu0 %2679
    %v2682 = vsel %vm607, %v2678, 0
    %v2685 = vsel %vm607, %v2680, 0
    %2687 = vmatprep.subr.bf16.mxu0 0
    %2688 = vmatpush1.bf16.xpose.msra.mxu0 0
    %2689 = vmatprep.subr.bf16.mxu0 0
    %2690 = vmatpush1.bf16.xpose.msra.mxu0 0
    %2691 = vmatprep.subr.bf16.mxu0 0
    %2692 = vmatpush1.bf16.xpose.msra.mxu0 0
    %2693 = vmatprep.subr.bf16.mxu0 0
    %2694 = vmatpush1.bf16.xpose.msra.mxu0 0
    %2695 = vmatprep.subr.bf16.mxu0 0
    %2696 = vmatpush1.bf16.xpose.msra.mxu0 0
    %2697 = vmatprep.subr.bf16.mxu0 0
    %2698 = vmatpush1.bf16.xpose.msra.mxu0 0
    %2699 = vmatprep.subr.bf16.mxu0 0
    %2700 = vmatpush1.bf16.xpose.msra.mxu0 0
    %2701 = vmatprep.subr.bf16.mxu0 0
    %2702 = vmatpush1.bf16.xpose.msra.mxu0 %v2685
    %2703 = vmatprep.subr.bf16.mxu0 0
    %2704 = vmatpush2.bf16.xpose.msra.mxu0 0
    %2705 = vmatprep.subr.bf16.mxu0 0
    %2706 = vmatpush2.bf16.xpose.msra.mxu0 0
    %2707 = vmatprep.subr.bf16.mxu0 0
    %2708 = vmatpush2.bf16.xpose.msra.mxu0 0
    %2709 = vmatprep.subr.bf16.mxu0 0
    %2710 = vmatpush2.bf16.xpose.msra.mxu0 0
    %2711 = vmatprep.subr.bf16.mxu0 0
    %2712 = vmatpush2.bf16.xpose.msra.mxu0 0
    %2713 = vmatprep.subr.bf16.mxu0 0
    %2714 = vmatpush2.bf16.xpose.msra.mxu0 0
    %2715 = vmatprep.subr.bf16.mxu0 0
    %2716 = vmatpush2.bf16.xpose.msra.mxu0 0
    %2717 = vmatprep.subr.bf16.mxu0 0
    %2718 = vmatpush2.bf16.xpose.msra.mxu0 0
    %2719 = vmatprep.mubr.bf16.mxu0 0
    %2720 = vmatmul.mubr.bf16.gmra.mxu0 %v2682
    %v2721 = vpop.f32.mrf.mxu0
    %v2722 = vadd.f32 0.0, %v2721
    %v2723 = vpop.f32.mrf.mxu0
    %v2724 = vpop.f32.mrf.mxu0
    %v2725 = vadd.f32 0.0, %v2724
    %v2726 = vpop.f32.mrf.mxu0
    %2727 = vdwg.mxu0
    %2728 = vrot.lane.b32.xlu0 %v2178, 112
    %v2729 = vpop.permute.xlu0 %2728
    %2730 = vrot.lane.b32.xlu0 %v2178, 80
    %v2731 = vpop.permute.xlu0 %2730
    %v2733 = vsel %vm607, %v2729, 0
    %v2736 = vsel %vm607, %v2731, 0
    %2738 = vmatprep.subr.bf16.mxu0 0
    %2739 = vmatpush1.bf16.xpose.msra.mxu0 0
    %2740 = vmatprep.subr.bf16.mxu0 0
    %2741 = vmatpush1.bf16.xpose.msra.mxu0 0
    %2742 = vmatprep.subr.bf16.mxu0 0
    %2743 = vmatpush1.bf16.xpose.msra.mxu0 0
    %2744 = vmatprep.subr.bf16.mxu0 0
    %2745 = vmatpush1.bf16.xpose.msra.mxu0 0
    %2746 = vmatprep.subr.bf16.mxu0 0
    %2747 = vmatpush1.bf16.xpose.msra.mxu0 0
    %2748 = vmatprep.subr.bf16.mxu0 0
    %2749 = vmatpush1.bf16.xpose.msra.mxu0 0
    %2750 = vmatprep.subr.bf16.mxu0 0
    %2751 = vmatpush1.bf16.xpose.msra.mxu0 0
    %2752 = vmatprep.subr.bf16.mxu0 0
    %2753 = vmatpush1.bf16.xpose.msra.mxu0 %v2736
    %2754 = vmatprep.subr.bf16.mxu0 0
    %2755 = vmatpush2.bf16.xpose.msra.mxu0 0
    %2756 = vmatprep.subr.bf16.mxu0 0
    %2757 = vmatpush2.bf16.xpose.msra.mxu0 0
    %2758 = vmatprep.subr.bf16.mxu0 0
    %2759 = vmatpush2.bf16.xpose.msra.mxu0 0
    %2760 = vmatprep.subr.bf16.mxu0 0
    %2761 = vmatpush2.bf16.xpose.msra.mxu0 0
    %2762 = vmatprep.subr.bf16.mxu0 0
    %2763 = vmatpush2.bf16.xpose.msra.mxu0 0
    %2764 = vmatprep.subr.bf16.mxu0 0
    %2765 = vmatpush2.bf16.xpose.msra.mxu0 0
    %2766 = vmatprep.subr.bf16.mxu0 0
    %2767 = vmatpush2.bf16.xpose.msra.mxu0 0
    %2768 = vmatprep.subr.bf16.mxu0 0
    %2769 = vmatpush2.bf16.xpose.msra.mxu0 0
    %2770 = vmatprep.mubr.bf16.mxu0 0
    %2771 = vmatmul.mubr.bf16.gmra.mxu0 %v2733
    %v2772 = vpop.f32.mrf.mxu0
    %v2773 = vadd.f32 0.0, %v2772
    %v2774 = vpop.f32.mrf.mxu0
    %v2775 = vpop.f32.mrf.mxu0
    %v2776 = vadd.f32 0.0, %v2775
    %v2777 = vpop.f32.mrf.mxu0
    %2778 = vdwg.mxu0
    %v2779 = vmul.f32 %v2722, 0.35355338
    %v2780 = vmul.f32 %v2725, 0.35355338
    %v2781 = vmul.f32 %v2773, 0.35355338
    %v2782 = vmul.f32 %v2776, 0.35355338
    %v2783 = vadd.f32 %v2779, %v714
    %v2784 = vadd.f32 %v2780, %v714
    %v2785 = vadd.f32 %v2781, %v718
    %v2786 = vadd.f32 %v2782, %v718
    %v2787 = vsel %vm725, %v2783, -inf
    %2788 = vmax.xlane.f32.xlu0 %v2787
    %v2789 = vpop.xlane.xlu0 %2788
    %v2790 = vsel %vm725, %v2784, -inf
    %2791 = vmax.xlane.f32.xlu0 %v2790
    %v2792 = vpop.xlane.xlu0 %2791
    %v2793 = vsel %vm725, %v2785, -inf
    %2794 = vmax.xlane.f32.xlu0 %v2793
    %v2795 = vpop.xlane.xlu0 %2794
    %v2796 = vsel %vm725, %v2786, -inf
    %2797 = vmax.xlane.f32.xlu0 %v2796
    %v2798 = vpop.xlane.xlu0 %2797
    %v2799 = vsub.f32 %v2783, %v2789
    %v2800 = vsub.f32 %v2784, %v2792
    %v2801 = vsub.f32 %v2785, %v2795
    %v2802 = vsub.f32 %v2786, %v2798
    %v2803 = vmul.f32 %v2799, 1.442695
    %v2804 = vpow.pop %v2803
    %v2805 = vmul.f32 %v2800, 1.442695
    %v2806 = vpow.pop %v2805
    %v2807 = vmul.f32 %v2801, 1.442695
    %v2808 = vpow.pop %v2807
    %v2809 = vmul.f32 %v2802, 1.442695
    %v2810 = vpow.pop %v2809
    %v2811 = vsel %vm725, %v2804, 0.0
    %2812 = vadd.xlane.f32.xlu0 %v2811
    %v2813 = vpop.xlane.xlu0 %2812
    %v2814 = vsel %vm725, %v2806, 0.0
    %2815 = vadd.xlane.f32.xlu0 %v2814
    %v2816 = vpop.xlane.xlu0 %2815
    %v2817 = vsel %vm725, %v2808, 0.0
    %2818 = vadd.xlane.f32.xlu0 %v2817
    %v2819 = vpop.xlane.xlu0 %2818
    %v2820 = vsel %vm725, %v2810, 0.0
    %2821 = vadd.xlane.f32.xlu0 %v2820
    %v2822 = vpop.xlane.xlu0 %2821
    %v2823 = vrcp.pop %v2813
    %v2824 = vrcp.pop %v2816
    %v2825 = vrcp.pop %v2819
    %v2826 = vrcp.pop %v2822
    %v2827 = vmul.f32 %v2804, %v2823
    %v2828 = vmul.f32 %v2806, %v2824
    %v2829 = vmul.f32 %v2808, %v2825
    %v2830 = vmul.f32 %v2810, %v2826
    %v2831 = vpack.c.bf16 %v2828, %v2827
    %v2832 = vpack.c.bf16 %v2830, %v2829
    %2833 = vrot.lane.b32.xlu0 %v2177, 48
    %v2834 = vpop.permute.xlu0 %2833
    %v2837 = vsel %vm725, %v2831, 0
    %2839 = vmatprep.subr.bf16.mxu0 0
    %2840 = vmatpush1.bf16.msra.mxu0 0
    %2841 = vmatprep.subr.bf16.mxu0 0
    %2842 = vmatpush1.bf16.msra.mxu0 0
    %2843 = vmatprep.subr.bf16.mxu0 0
    %2844 = vmatpush1.bf16.msra.mxu0 0
    %2845 = vmatprep.subr.bf16.mxu0 0
    %2846 = vmatpush1.bf16.msra.mxu0 0
    %2847 = vmatprep.subr.bf16.mxu0 0
    %2848 = vmatpush1.bf16.msra.mxu0 0
    %2849 = vmatprep.subr.bf16.mxu0 0
    %2850 = vmatpush1.bf16.msra.mxu0 0
    %2851 = vmatprep.subr.bf16.mxu0 0
    %2852 = vmatpush1.bf16.msra.mxu0 0
    %2853 = vmatprep.subr.bf16.mxu0 0
    %2854 = vmatpush1.bf16.msra.mxu0 %v2834
    %2855 = vmatprep.subr.bf16.mxu0 0
    %2856 = vmatpush2.bf16.msra.mxu0 0
    %2857 = vmatprep.subr.bf16.mxu0 0
    %2858 = vmatpush2.bf16.msra.mxu0 0
    %2859 = vmatprep.subr.bf16.mxu0 0
    %2860 = vmatpush2.bf16.msra.mxu0 0
    %2861 = vmatprep.subr.bf16.mxu0 0
    %2862 = vmatpush2.bf16.msra.mxu0 0
    %2863 = vmatprep.subr.bf16.mxu0 0
    %2864 = vmatpush2.bf16.msra.mxu0 0
    %2865 = vmatprep.subr.bf16.mxu0 0
    %2866 = vmatpush2.bf16.msra.mxu0 0
    %2867 = vmatprep.subr.bf16.mxu0 0
    %2868 = vmatpush2.bf16.msra.mxu0 0
    %2869 = vmatprep.subr.bf16.mxu0 0
    %2870 = vmatpush2.bf16.msra.mxu0 0
    %2871 = vmatprep.mubr.bf16.mxu0 0
    %2872 = vmatmul.mubr.bf16.gmra.mxu0 %v2837
    %v2873 = vpop.f32.mrf.mxu0
    %v2874 = vadd.f32 0.0, %v2873
    %v2875 = vpop.f32.mrf.mxu0
    %v2876 = vpop.f32.mrf.mxu0
    %v2877 = vadd.f32 0.0, %v2876
    %v2878 = vpop.f32.mrf.mxu0
    %2879 = vdwg.mxu0
    %2880 = vrot.lane.b32.xlu0 %v2178, 48
    %v2881 = vpop.permute.xlu0 %2880
    %v2884 = vsel %vm725, %v2832, 0
    %2886 = vmatprep.subr.bf16.mxu0 0
    %2887 = vmatpush1.bf16.msra.mxu0 0
    %2888 = vmatprep.subr.bf16.mxu0 0
    %2889 = vmatpush1.bf16.msra.mxu0 0
    %2890 = vmatprep.subr.bf16.mxu0 0
    %2891 = vmatpush1.bf16.msra.mxu0 0
    %2892 = vmatprep.subr.bf16.mxu0 0
    %2893 = vmatpush1.bf16.msra.mxu0 0
    %2894 = vmatprep.subr.bf16.mxu0 0
    %2895 = vmatpush1.bf16.msra.mxu0 0
    %2896 = vmatprep.subr.bf16.mxu0 0
    %2897 = vmatpush1.bf16.msra.mxu0 0
    %2898 = vmatprep.subr.bf16.mxu0 0
    %2899 = vmatpush1.bf16.msra.mxu0 0
    %2900 = vmatprep.subr.bf16.mxu0 0
    %2901 = vmatpush1.bf16.msra.mxu0 %v2881
    %2902 = vmatprep.subr.bf16.mxu0 0
    %2903 = vmatpush2.bf16.msra.mxu0 0
    %2904 = vmatprep.subr.bf16.mxu0 0
    %2905 = vmatpush2.bf16.msra.mxu0 0
    %2906 = vmatprep.subr.bf16.mxu0 0
    %2907 = vmatpush2.bf16.msra.mxu0 0
    %2908 = vmatprep.subr.bf16.mxu0 0
    %2909 = vmatpush2.bf16.msra.mxu0 0
    %2910 = vmatprep.subr.bf16.mxu0 0
    %2911 = vmatpush2.bf16.msra.mxu0 0
    %2912 = vmatprep.subr.bf16.mxu0 0
    %2913 = vmatpush2.bf16.msra.mxu0 0
    %2914 = vmatprep.subr.bf16.mxu0 0
    %2915 = vmatpush2.bf16.msra.mxu0 0
    %2916 = vmatprep.subr.bf16.mxu0 0
    %2917 = vmatpush2.bf16.msra.mxu0 0
    %2918 = vmatprep.mubr.bf16.mxu0 0
    %2919 = vmatmul.mubr.bf16.gmra.mxu0 %v2884
    %v2920 = vpop.f32.mrf.mxu0
    %v2921 = vadd.f32 0.0, %v2920
    %v2922 = vpop.f32.mrf.mxu0
    %v2923 = vpop.f32.mrf.mxu0
    %v2924 = vadd.f32 0.0, %v2923
    %v2925 = vpop.f32.mrf.mxu0
    %2926 = vdwg.mxu0
    %2927 = vrot.lane.b32.xlu0 %v2177, 104
    %v2928 = vpop.permute.xlu0 %2927
    %2929 = vrot.lane.b32.xlu0 %v2177, 72
    %v2930 = vpop.permute.xlu0 %2929
    %v2932 = vsel %vm607, %v2928, 0
    %v2935 = vsel %vm607, %v2930, 0
    %2937 = vmatprep.subr.bf16.mxu0 0
    %2938 = vmatpush1.bf16.xpose.msra.mxu0 0
    %2939 = vmatprep.subr.bf16.mxu0 0
    %2940 = vmatpush1.bf16.xpose.msra.mxu0 0
    %2941 = vmatprep.subr.bf16.mxu0 0
    %2942 = vmatpush1.bf16.xpose.msra.mxu0 0
    %2943 = vmatprep.subr.bf16.mxu0 0
    %2944 = vmatpush1.bf16.xpose.msra.mxu0 0
    %2945 = vmatprep.subr.bf16.mxu0 0
    %2946 = vmatpush1.bf16.xpose.msra.mxu0 0
    %2947 = vmatprep.subr.bf16.mxu0 0
    %2948 = vmatpush1.bf16.xpose.msra.mxu0 0
    %2949 = vmatprep.subr.bf16.mxu0 0
    %2950 = vmatpush1.bf16.xpose.msra.mxu0 0
    %2951 = vmatprep.subr.bf16.mxu0 0
    %2952 = vmatpush1.bf16.xpose.msra.mxu0 %v2935
    %2953 = vmatprep.subr.bf16.mxu0 0
    %2954 = vmatpush2.bf16.xpose.msra.mxu0 0
    %2955 = vmatprep.subr.bf16.mxu0 0
    %2956 = vmatpush2.bf16.xpose.msra.mxu0 0
    %2957 = vmatprep.subr.bf16.mxu0 0
    %2958 = vmatpush2.bf16.xpose.msra.mxu0 0
    %2959 = vmatprep.subr.bf16.mxu0 0
    %2960 = vmatpush2.bf16.xpose.msra.mxu0 0
    %2961 = vmatprep.subr.bf16.mxu0 0
    %2962 = vmatpush2.bf16.xpose.msra.mxu0 0
    %2963 = vmatprep.subr.bf16.mxu0 0
    %2964 = vmatpush2.bf16.xpose.msra.mxu0 0
    %2965 = vmatprep.subr.bf16.mxu0 0
    %2966 = vmatpush2.bf16.xpose.msra.mxu0 0
    %2967 = vmatprep.subr.bf16.mxu0 0
    %2968 = vmatpush2.bf16.xpose.msra.mxu0 0
    %2969 = vmatprep.mubr.bf16.mxu0 0
    %2970 = vmatmul.mubr.bf16.gmra.mxu0 %v2932
    %v2971 = vpop.f32.mrf.mxu0
    %v2972 = vadd.f32 0.0, %v2971
    %v2973 = vpop.f32.mrf.mxu0
    %v2974 = vpop.f32.mrf.mxu0
    %v2975 = vadd.f32 0.0, %v2974
    %v2976 = vpop.f32.mrf.mxu0
    %2977 = vdwg.mxu0
    %2978 = vrot.lane.b32.xlu0 %v2178, 104
    %v2979 = vpop.permute.xlu0 %2978
    %2980 = vrot.lane.b32.xlu0 %v2178, 72
    %v2981 = vpop.permute.xlu0 %2980
    %v2983 = vsel %vm607, %v2979, 0
    %v2986 = vsel %vm607, %v2981, 0
    %2988 = vmatprep.subr.bf16.mxu0 0
    %2989 = vmatpush1.bf16.xpose.msra.mxu0 0
    %2990 = vmatprep.subr.bf16.mxu0 0
    %2991 = vmatpush1.bf16.xpose.msra.mxu0 0
    %2992 = vmatprep.subr.bf16.mxu0 0
    %2993 = vmatpush1.bf16.xpose.msra.mxu0 0
    %2994 = vmatprep.subr.bf16.mxu0 0
    %2995 = vmatpush1.bf16.xpose.msra.mxu0 0
    %2996 = vmatprep.subr.bf16.mxu0 0
    %2997 = vmatpush1.bf16.xpose.msra.mxu0 0
    %2998 = vmatprep.subr.bf16.mxu0 0
    %2999 = vmatpush1.bf16.xpose.msra.mxu0 0
    %3000 = vmatprep.subr.bf16.mxu0 0
    %3001 = vmatpush1.bf16.xpose.msra.mxu0 0
    %3002 = vmatprep.subr.bf16.mxu0 0
    %3003 = vmatpush1.bf16.xpose.msra.mxu0 %v2986
    %3004 = vmatprep.subr.bf16.mxu0 0
    %3005 = vmatpush2.bf16.xpose.msra.mxu0 0
    %3006 = vmatprep.subr.bf16.mxu0 0
    %3007 = vmatpush2.bf16.xpose.msra.mxu0 0
    %3008 = vmatprep.subr.bf16.mxu0 0
    %3009 = vmatpush2.bf16.xpose.msra.mxu0 0
    %3010 = vmatprep.subr.bf16.mxu0 0
    %3011 = vmatpush2.bf16.xpose.msra.mxu0 0
    %3012 = vmatprep.subr.bf16.mxu0 0
    %3013 = vmatpush2.bf16.xpose.msra.mxu0 0
    %3014 = vmatprep.subr.bf16.mxu0 0
    %3015 = vmatpush2.bf16.xpose.msra.mxu0 0
    %3016 = vmatprep.subr.bf16.mxu0 0
    %3017 = vmatpush2.bf16.xpose.msra.mxu0 0
    %3018 = vmatprep.subr.bf16.mxu0 0
    %3019 = vmatpush2.bf16.xpose.msra.mxu0 0
    %3020 = vmatprep.mubr.bf16.mxu0 0
    %3021 = vmatmul.mubr.bf16.gmra.mxu0 %v2983
    %v3022 = vpop.f32.mrf.mxu0
    %v3023 = vadd.f32 0.0, %v3022
    %v3024 = vpop.f32.mrf.mxu0
    %v3025 = vpop.f32.mrf.mxu0
    %v3026 = vadd.f32 0.0, %v3025
    %v3027 = vpop.f32.mrf.mxu0
    %3028 = vdwg.mxu0
    %v3029 = vmul.f32 %v2972, 0.35355338
    %v3030 = vmul.f32 %v2975, 0.35355338
    %v3031 = vmul.f32 %v3023, 0.35355338
    %v3032 = vmul.f32 %v3026, 0.35355338
    %v3033 = vadd.f32 %v3029, %v714
    %v3034 = vadd.f32 %v3030, %v714
    %v3035 = vadd.f32 %v3031, %v718
    %v3036 = vadd.f32 %v3032, %v718
    %v3037 = vsel %vm725, %v3033, -inf
    %3038 = vmax.xlane.f32.xlu0 %v3037
    %v3039 = vpop.xlane.xlu0 %3038
    %v3040 = vsel %vm725, %v3034, -inf
    %3041 = vmax.xlane.f32.xlu0 %v3040
    %v3042 = vpop.xlane.xlu0 %3041
    %v3043 = vsel %vm725, %v3035, -inf
    %3044 = vmax.xlane.f32.xlu0 %v3043
    %v3045 = vpop.xlane.xlu0 %3044
    %v3046 = vsel %vm725, %v3036, -inf
    %3047 = vmax.xlane.f32.xlu0 %v3046
    %v3048 = vpop.xlane.xlu0 %3047
    %v3049 = vsub.f32 %v3033, %v3039
    %v3050 = vsub.f32 %v3034, %v3042
    %v3051 = vsub.f32 %v3035, %v3045
    %v3052 = vsub.f32 %v3036, %v3048
    %v3053 = vmul.f32 %v3049, 1.442695
    %v3054 = vpow.pop %v3053
    %v3055 = vmul.f32 %v3050, 1.442695
    %v3056 = vpow.pop %v3055
    %v3057 = vmul.f32 %v3051, 1.442695
    %v3058 = vpow.pop %v3057
    %v3059 = vmul.f32 %v3052, 1.442695
    %v3060 = vpow.pop %v3059
    %v3061 = vsel %vm725, %v3054, 0.0
    %3062 = vadd.xlane.f32.xlu0 %v3061
    %v3063 = vpop.xlane.xlu0 %3062
    %v3064 = vsel %vm725, %v3056, 0.0
    %3065 = vadd.xlane.f32.xlu0 %v3064
    %v3066 = vpop.xlane.xlu0 %3065
    %v3067 = vsel %vm725, %v3058, 0.0
    %3068 = vadd.xlane.f32.xlu0 %v3067
    %v3069 = vpop.xlane.xlu0 %3068
    %v3070 = vsel %vm725, %v3060, 0.0
    %3071 = vadd.xlane.f32.xlu0 %v3070
    %v3072 = vpop.xlane.xlu0 %3071
    %v3073 = vrcp.pop %v3063
    %v3074 = vrcp.pop %v3066
    %v3075 = vrcp.pop %v3069
    %v3076 = vrcp.pop %v3072
    %v3077 = vmul.f32 %v3054, %v3073
    %v3078 = vmul.f32 %v3056, %v3074
    %v3079 = vmul.f32 %v3058, %v3075
    %v3080 = vmul.f32 %v3060, %v3076
    %v3081 = vpack.c.bf16 %v3078, %v3077
    %v3082 = vpack.c.bf16 %v3080, %v3079
    %3083 = vrot.lane.b32.xlu0 %v2177, 40
    %v3084 = vpop.permute.xlu0 %3083
    %v3087 = vsel %vm725, %v3081, 0
    %3089 = vmatprep.subr.bf16.mxu0 0
    %3090 = vmatpush1.bf16.msra.mxu0 0
    %3091 = vmatprep.subr.bf16.mxu0 0
    %3092 = vmatpush1.bf16.msra.mxu0 0
    %3093 = vmatprep.subr.bf16.mxu0 0
    %3094 = vmatpush1.bf16.msra.mxu0 0
    %3095 = vmatprep.subr.bf16.mxu0 0
    %3096 = vmatpush1.bf16.msra.mxu0 0
    %3097 = vmatprep.subr.bf16.mxu0 0
    %3098 = vmatpush1.bf16.msra.mxu0 0
    %3099 = vmatprep.subr.bf16.mxu0 0
    %3100 = vmatpush1.bf16.msra.mxu0 0
    %3101 = vmatprep.subr.bf16.mxu0 0
    %3102 = vmatpush1.bf16.msra.mxu0 0
    %3103 = vmatprep.subr.bf16.mxu0 0
    %3104 = vmatpush1.bf16.msra.mxu0 %v3084
    %3105 = vmatprep.subr.bf16.mxu0 0
    %3106 = vmatpush2.bf16.msra.mxu0 0
    %3107 = vmatprep.subr.bf16.mxu0 0
    %3108 = vmatpush2.bf16.msra.mxu0 0
    %3109 = vmatprep.subr.bf16.mxu0 0
    %3110 = vmatpush2.bf16.msra.mxu0 0
    %3111 = vmatprep.subr.bf16.mxu0 0
    %3112 = vmatpush2.bf16.msra.mxu0 0
    %3113 = vmatprep.subr.bf16.mxu0 0
    %3114 = vmatpush2.bf16.msra.mxu0 0
    %3115 = vmatprep.subr.bf16.mxu0 0
    %3116 = vmatpush2.bf16.msra.mxu0 0
    %3117 = vmatprep.subr.bf16.mxu0 0
    %3118 = vmatpush2.bf16.msra.mxu0 0
    %3119 = vmatprep.subr.bf16.mxu0 0
    %3120 = vmatpush2.bf16.msra.mxu0 0
    %3121 = vmatprep.mubr.bf16.mxu0 0
    %3122 = vmatmul.mubr.bf16.gmra.mxu0 %v3087
    %v3123 = vpop.f32.mrf.mxu0
    %v3124 = vadd.f32 0.0, %v3123
    %v3125 = vpop.f32.mrf.mxu0
    %v3126 = vpop.f32.mrf.mxu0
    %v3127 = vadd.f32 0.0, %v3126
    %v3128 = vpop.f32.mrf.mxu0
    %3129 = vdwg.mxu0
    %3130 = vrot.lane.b32.xlu0 %v2178, 40
    %v3131 = vpop.permute.xlu0 %3130
    %v3134 = vsel %vm725, %v3082, 0
    %3136 = vmatprep.subr.bf16.mxu0 0
    %3137 = vmatpush1.bf16.msra.mxu0 0
    %3138 = vmatprep.subr.bf16.mxu0 0
    %3139 = vmatpush1.bf16.msra.mxu0 0
    %3140 = vmatprep.subr.bf16.mxu0 0
    %3141 = vmatpush1.bf16.msra.mxu0 0
    %3142 = vmatprep.subr.bf16.mxu0 0
    %3143 = vmatpush1.bf16.msra.mxu0 0
    %3144 = vmatprep.subr.bf16.mxu0 0
    %3145 = vmatpush1.bf16.msra.mxu0 0
    %3146 = vmatprep.subr.bf16.mxu0 0
    %3147 = vmatpush1.bf16.msra.mxu0 0
    %3148 = vmatprep.subr.bf16.mxu0 0
    %3149 = vmatpush1.bf16.msra.mxu0 0
    %3150 = vmatprep.subr.bf16.mxu0 0
    %3151 = vmatpush1.bf16.msra.mxu0 %v3131
    %3152 = vmatprep.subr.bf16.mxu0 0
    %3153 = vmatpush2.bf16.msra.mxu0 0
    %3154 = vmatprep.subr.bf16.mxu0 0
    %3155 = vmatpush2.bf16.msra.mxu0 0
    %3156 = vmatprep.subr.bf16.mxu0 0
    %3157 = vmatpush2.bf16.msra.mxu0 0
    %3158 = vmatprep.subr.bf16.mxu0 0
    %3159 = vmatpush2.bf16.msra.mxu0 0
    %3160 = vmatprep.subr.bf16.mxu0 0
    %3161 = vmatpush2.bf16.msra.mxu0 0
    %3162 = vmatprep.subr.bf16.mxu0 0
    %3163 = vmatpush2.bf16.msra.mxu0 0
    %3164 = vmatprep.subr.bf16.mxu0 0
    %3165 = vmatpush2.bf16.msra.mxu0 0
    %3166 = vmatprep.subr.bf16.mxu0 0
    %3167 = vmatpush2.bf16.msra.mxu0 0
    %3168 = vmatprep.mubr.bf16.mxu0 0
    %3169 = vmatmul.mubr.bf16.gmra.mxu0 %v3134
    %v3170 = vpop.f32.mrf.mxu0
    %v3171 = vadd.f32 0.0, %v3170
    %v3172 = vpop.f32.mrf.mxu0
    %v3173 = vpop.f32.mrf.mxu0
    %v3174 = vadd.f32 0.0, %v3173
    %v3175 = vpop.f32.mrf.mxu0
    %3176 = vdwg.mxu0
    %3181 = vrot.lane.b32.xlu0 %v2624, 8
    %v3182 = vpop.permute.xlu0 %3181
    %3183 = vrot.lane.b32.xlu0 %v2627, 8
    %v3184 = vpop.permute.xlu0 %3183
    %3185 = vrot.lane.b32.xlu0 %v2671, 8
    %v3186 = vpop.permute.xlu0 %3185
    %3187 = vrot.lane.b32.xlu0 %v2674, 8
    %v3188 = vpop.permute.xlu0 %3187
    %3197 = vrot.lane.b32.xlu0 %v2874, 16
    %v3198 = vpop.permute.xlu0 %3197
    %3199 = vrot.lane.b32.xlu0 %v2877, 16
    %v3200 = vpop.permute.xlu0 %3199
    %3201 = vrot.lane.b32.xlu0 %v2921, 16
    %v3202 = vpop.permute.xlu0 %3201
    %3203 = vrot.lane.b32.xlu0 %v2924, 16
    %v3204 = vpop.permute.xlu0 %3203
    %3213 = vrot.lane.b32.xlu0 %v3124, 24
    %v3214 = vpop.permute.xlu0 %3213
    %3215 = vrot.lane.b32.xlu0 %v3127, 24
    %v3216 = vpop.permute.xlu0 %3215
    %3217 = vrot.lane.b32.xlu0 %v3171, 24
    %v3218 = vpop.permute.xlu0 %3217
    %3219 = vrot.lane.b32.xlu0 %v3174, 24
    %v3220 = vpop.permute.xlu0 %3219
    %v3225 = vsel %vm607, %v2374, %v3182
    %v3226 = vsel %vm607, %v2377, %v3184
    %v3227 = vsel %vm607, %v2421, %v3186
    %v3228 = vsel %vm607, %v2424, %v3188
    %v3229 = vsel %vm725, %v3225, %v3198
    %v3230 = vsel %vm725, %v3226, %v3200
    %v3231 = vsel %vm725, %v3227, %v3202
    %v3232 = vsel %vm725, %v3228, %v3204
    %v3233 = vsel %vm1672, %v3229, %v3214
    %v3234 = vsel %vm1672, %v3230, %v3216
    %v3235 = vsel %vm1672, %v3231, %v3218
    %v3236 = vsel %vm1672, %v3232, %v3220
    %s3237 = scalar_lea.vmem %s83, 16
    %v3238 = vld [vmem:[%s3237] sm:$0xf]
    %v3239 = vld [vmem:[%s3237 + $0x4] sm:$0xf]
    %v3240 = vld [vmem:[%s3237 + $0x8] sm:$0xf]
    %v3241 = vld [vmem:[%s3237 + $0xc] sm:$0xf]
    %s3242 = scalar_lea.vmem %s81, 1
    %v3243 = vld [vmem:[%s3242] sm:$0x1]
    %v3244 = vpack.c.bf16 %v3234, %v3233
    %v3245 = vpack.c.bf16 %v3236, %v3235
    %v3247 = vlaneseq
    %v3248 = vshrl.u32 %v3247, 7
    %v3249 = vsub.s32 0, %v3248
    %v3250 = vrot.slane %v3243, %v3249
    %v3256 = vunpack.c.l.b16 %v3238
    %v3257 = vunpack.c.l.b16 %v3239
    %v3258 = vunpack.c.l.b16 %v3240
    %v3259 = vunpack.c.l.b16 %v3241
    %v3260 = vpack.c.b16 %v3257, %v3256
    %v3261 = vpack.c.b16 %v3259, %v3258
    %v3265 = vsel %vm546, %v3244, 0
    %v3268 = vsel %vm546, %v3245, 0
    %3270 = vmatprep.subr.bf16.mxu0 0
    %3271 = vmatpush1.bf16.msra.mxu0 0
    %3272 = vmatprep.subr.bf16.mxu0 0
    %3273 = vmatpush1.bf16.msra.mxu0 0
    %3274 = vmatprep.subr.bf16.mxu0 0
    %3275 = vmatpush1.bf16.msra.mxu0 0
    %3276 = vmatprep.subr.bf16.mxu0 0
    %3277 = vmatpush1.bf16.msra.mxu0 0
    %3278 = vmatprep.subr.bf16.mxu0 0
    %3279 = vmatpush1.bf16.msra.mxu0 0
    %3280 = vmatprep.subr.bf16.mxu0 0
    %3281 = vmatpush1.bf16.msra.mxu0 0
    %3282 = vmatprep.subr.bf16.mxu0 0
    %3283 = vmatpush1.bf16.msra.mxu0 %v3261
    %3284 = vmatprep.subr.bf16.mxu0 0
    %3285 = vmatpush1.bf16.msra.mxu0 %v3260
    %3286 = vmatprep.subr.bf16.mxu0 0
    %3287 = vmatpush2.bf16.msra.mxu0 0
    %3288 = vmatprep.subr.bf16.mxu0 0
    %3289 = vmatpush2.bf16.msra.mxu0 0
    %3290 = vmatprep.subr.bf16.mxu0 0
    %3291 = vmatpush2.bf16.msra.mxu0 0
    %3292 = vmatprep.subr.bf16.mxu0 0
    %3293 = vmatpush2.bf16.msra.mxu0 0
    %3294 = vmatprep.subr.bf16.mxu0 0
    %3295 = vmatpush2.bf16.msra.mxu0 0
    %3296 = vmatprep.subr.bf16.mxu0 0
    %3297 = vmatpush2.bf16.msra.mxu0 0
    %3298 = vmatprep.subr.bf16.mxu0 0
    %3299 = vmatpush2.bf16.msra.mxu0 0
    %3300 = vmatprep.subr.bf16.mxu0 0
    %3301 = vmatpush2.bf16.msra.mxu0 0
    %3302 = vmatprep.mubr.bf16.mxu0 0
    %3303 = vmatmul.mubr.bf16.gmra.mxu0 %v3265
    %v3304 = vpop.f32.mrf.mxu0
    %v3305 = vadd.f32 %v3250, %v3304
    %v3306 = vpop.f32.mrf.mxu0
    %v3307 = vpop.f32.mrf.mxu0
    %v3308 = vadd.f32 %v3250, %v3307
    %v3309 = vpop.f32.mrf.mxu0
    %3310 = vmatprep.mubr.bf16.mxu0 0
    %3311 = vmatmul.mubr.bf16.gmra.mxu0 %v3268
    %v3312 = vpop.f32.mrf.mxu0
    %v3313 = vadd.f32 %v3250, %v3312
    %v3314 = vpop.f32.mrf.mxu0
    %v3315 = vpop.f32.mrf.mxu0
    %v3316 = vadd.f32 %v3250, %v3315
    %v3317 = vpop.f32.mrf.mxu0
    %3318 = vdwg.mxu0
    %v3319 = vadd.f32 %v2091, %v3305
    %v3320 = vadd.f32 %v2092, %v3308
    %v3321 = vadd.f32 %v2093, %v3313
    %v3322 = vadd.f32 %v2094, %v3316
    %s3323 = scalar_lea.vmem %s75, 1
    %v3324 = vld [vmem:[%s3323] sm:$0x1]
    %s3325 = scalar_lea.vmem %s73, 1
    %v3326 = vld [vmem:[%s3325] sm:$0x1]
    %v3327 = vsel %vm546, %v3319, 0.0
    %3328 = vadd.xlane.f32.xlu0 %v3327
    %v3329 = vpop.xlane.xlu0 %3328
    %v3330 = vsel %vm546, %v3320, 0.0
    %3331 = vadd.xlane.f32.xlu0 %v3330
    %v3332 = vpop.xlane.xlu0 %3331
    %v3333 = vsel %vm546, %v3321, 0.0
    %3334 = vadd.xlane.f32.xlu0 %v3333
    %v3335 = vpop.xlane.xlu0 %3334
    %v3336 = vsel %vm546, %v3322, 0.0
    %3337 = vadd.xlane.f32.xlu0 %v3336
    %v3338 = vpop.xlane.xlu0 %3337
    %v3339 = vmul.f32 %v3329, %v1775
    %v3340 = vmul.f32 %v3332, %v1775
    %v3341 = vmul.f32 %v3335, %v1775
    %v3342 = vmul.f32 %v3338, %v1775
    %v3343 = vsub.f32 %v3319, %v3339
    %v3344 = vsub.f32 %v3320, %v3340
    %v3345 = vsub.f32 %v3321, %v3341
    %v3346 = vsub.f32 %v3322, %v3342
    %v3347 = vmul.f32 %v3343, %v3343
    %v3348 = vmul.f32 %v3344, %v3344
    %v3349 = vmul.f32 %v3345, %v3345
    %v3350 = vmul.f32 %v3346, %v3346
    %v3351 = vsel %vm546, %v3347, 0.0
    %3352 = vadd.xlane.f32.xlu0 %v3351
    %v3353 = vpop.xlane.xlu0 %3352
    %v3354 = vsel %vm546, %v3348, 0.0
    %3355 = vadd.xlane.f32.xlu0 %v3354
    %v3356 = vpop.xlane.xlu0 %3355
    %v3357 = vsel %vm546, %v3349, 0.0
    %3358 = vadd.xlane.f32.xlu0 %v3357
    %v3359 = vpop.xlane.xlu0 %3358
    %v3360 = vsel %vm546, %v3350, 0.0
    %3361 = vadd.xlane.f32.xlu0 %v3360
    %v3362 = vpop.xlane.xlu0 %3361
    %v3363 = vmul.f32 %v3353, %v1775
    %v3364 = vmul.f32 %v3356, %v1775
    %v3365 = vmul.f32 %v3359, %v1775
    %v3366 = vmul.f32 %v3362, %v1775
    %v3367 = vadd.f32 %v3363, 1e-05
    %v3368 = vadd.f32 %v3364, 1e-05
    %v3369 = vadd.f32 %v3365, 1e-05
    %v3370 = vadd.f32 %v3366, 1e-05
    %v3371 = vrsqrt.pop %v3367
    %v3372 = vrsqrt.pop %v3368
    %v3373 = vrsqrt.pop %v3369
    %v3374 = vrsqrt.pop %v3370
    %v3375 = vmul.f32 %v3343, %v3371
    %v3376 = vmul.f32 %v3344, %v3372
    %v3377 = vmul.f32 %v3345, %v3373
    %v3378 = vmul.f32 %v3346, %v3374
    %v3380 = vlaneseq
    %v3381 = vshrl.u32 %v3380, 7
    %v3382 = vsub.s32 0, %v3381
    %v3383 = vrot.slane %v3324, %v3382
    %v3385 = vmul.f32 %v3375, %v3383
    %v3386 = vmul.f32 %v3376, %v3383
    %v3387 = vmul.f32 %v3377, %v3383
    %v3388 = vmul.f32 %v3378, %v3383
    %v3390 = vlaneseq
    %v3391 = vshrl.u32 %v3390, 7
    %v3392 = vsub.s32 0, %v3391
    %v3393 = vrot.slane %v3326, %v3392
    %v3395 = vadd.f32 %v3385, %v3393
    %v3396 = vadd.f32 %v3386, %v3393
    %v3397 = vadd.f32 %v3387, %v3393
    %v3398 = vadd.f32 %v3388, %v3393
    %s3399 = scalar_lea.vmem %s67, 16
    %v3400 = vld [vmem:[%s3399] sm:$0xf]
    %v3401 = vld [vmem:[%s3399 + $0x4] sm:$0xf]
    %v3402 = vld [vmem:[%s3399 + $0x8] sm:$0xf]
    %v3403 = vld [vmem:[%s3399 + $0xc] sm:$0xf]
    %s3404 = scalar_lea.vmem %s65, 1
    %v3405 = vld [vmem:[%s3404] sm:$0x1]
    %v3406 = vpack.c.bf16 %v3396, %v3395
    %v3407 = vpack.c.bf16 %v3398, %v3397
    %v3409 = vlaneseq
    %v3410 = vshrl.u32 %v3409, 7
    %v3411 = vsub.s32 0, %v3410
    %v3412 = vrot.slane %v3405, %v3411
    %v3418 = vunpack.c.l.b16 %v3400
    %v3419 = vunpack.c.l.b16 %v3401
    %v3420 = vunpack.c.l.b16 %v3402
    %v3421 = vunpack.c.l.b16 %v3403
    %v3422 = vpack.c.b16 %v3419, %v3418
    %v3423 = vpack.c.b16 %v3421, %v3420
    %v3427 = vsel %vm546, %v3406, 0
    %v3430 = vsel %vm546, %v3407, 0
    %3432 = vmatprep.subr.bf16.mxu0 0
    %3433 = vmatpush1.bf16.msra.mxu0 0
    %3434 = vmatprep.subr.bf16.mxu0 0
    %3435 = vmatpush1.bf16.msra.mxu0 0
    %3436 = vmatprep.subr.bf16.mxu0 0
    %3437 = vmatpush1.bf16.msra.mxu0 0
    %3438 = vmatprep.subr.bf16.mxu0 0
    %3439 = vmatpush1.bf16.msra.mxu0 0
    %3440 = vmatprep.subr.bf16.mxu0 0
    %3441 = vmatpush1.bf16.msra.mxu0 0
    %3442 = vmatprep.subr.bf16.mxu0 0
    %3443 = vmatpush1.bf16.msra.mxu0 0
    %3444 = vmatprep.subr.bf16.mxu0 0
    %3445 = vmatpush1.bf16.msra.mxu0 %v3423
    %3446 = vmatprep.subr.bf16.mxu0 0
    %3447 = vmatpush1.bf16.msra.mxu0 %v3422
    %3448 = vmatprep.subr.bf16.mxu0 0
    %3449 = vmatpush2.bf16.msra.mxu0 0
    %3450 = vmatprep.subr.bf16.mxu0 0
    %3451 = vmatpush2.bf16.msra.mxu0 0
    %3452 = vmatprep.subr.bf16.mxu0 0
    %3453 = vmatpush2.bf16.msra.mxu0 0
    %3454 = vmatprep.subr.bf16.mxu0 0
    %3455 = vmatpush2.bf16.msra.mxu0 0
    %3456 = vmatprep.subr.bf16.mxu0 0
    %3457 = vmatpush2.bf16.msra.mxu0 0
    %3458 = vmatprep.subr.bf16.mxu0 0
    %3459 = vmatpush2.bf16.msra.mxu0 0
    %3460 = vmatprep.subr.bf16.mxu0 0
    %3461 = vmatpush2.bf16.msra.mxu0 0
    %3462 = vmatprep.subr.bf16.mxu0 0
    %3463 = vmatpush2.bf16.msra.mxu0 0
    %3464 = vmatprep.mubr.bf16.mxu0 0
    %3465 = vmatmul.mubr.bf16.gmra.mxu0 %v3427
    %v3466 = vpop.f32.mrf.mxu0
    %v3467 = vadd.f32 %v3412, %v3466
    %v3468 = vpop.f32.mrf.mxu0
    %v3469 = vpop.f32.mrf.mxu0
    %v3470 = vadd.f32 %v3412, %v3469
    %v3471 = vpop.f32.mrf.mxu0
    %3472 = vmatprep.mubr.bf16.mxu0 0
    %3473 = vmatmul.mubr.bf16.gmra.mxu0 %v3430
    %v3474 = vpop.f32.mrf.mxu0
    %v3475 = vadd.f32 %v3412, %v3474
    %v3476 = vpop.f32.mrf.mxu0
    %v3477 = vpop.f32.mrf.mxu0
    %v3478 = vadd.f32 %v3412, %v3477
    %v3479 = vpop.f32.mrf.mxu0
    %3480 = vdwg.mxu0
    %v3481 = vmax.f32 %v3467, 0.0
    %v3482 = vmax.f32 %v3470, 0.0
    %v3483 = vmax.f32 %v3475, 0.0
    %v3484 = vmax.f32 %v3478, 0.0
    %s3485 = scalar_lea.vmem %s71, 32
    %v3486 = vld [vmem:[%s3485] sm:$0xf]
    %v3487 = vld [vmem:[%s3485 + $0x4] sm:$0xf]
    %v3488 = vld [vmem:[%s3485 + $0x8] sm:$0xf]
    %v3489 = vld [vmem:[%s3485 + $0xc] sm:$0xf]
    %v3490 = vld [vmem:[%s3485 + $0x10] sm:$0xf]
    %v3491 = vld [vmem:[%s3485 + $0x14] sm:$0xf]
    %v3492 = vld [vmem:[%s3485 + $0x18] sm:$0xf]
    %v3493 = vld [vmem:[%s3485 + $0x1c] sm:$0xf]
    %s3494 = scalar_lea.vmem %s69, 1
    %v3495 = vld [vmem:[%s3494] sm:$0x1]
    %v3496 = vpack.c.bf16 %v3482, %v3481
    %v3497 = vpack.c.bf16 %v3484, %v3483
    %v3499 = vlaneseq
    %v3500 = vshrl.u32 %v3499, 7
    %v3501 = vsub.s32 0, %v3500
    %v3502 = vrot.slane %v3495, %v3501
    %v3512 = vunpack.c.l.b16 %v3486
    %v3513 = vunpack.c.l.b16 %v3487
    %v3514 = vunpack.c.l.b16 %v3488
    %v3515 = vunpack.c.l.b16 %v3489
    %v3516 = vunpack.c.l.b16 %v3490
    %v3517 = vunpack.c.l.b16 %v3491
    %v3518 = vunpack.c.l.b16 %v3492
    %v3519 = vunpack.c.l.b16 %v3493
    %v3520 = vpack.c.b16 %v3513, %v3512
    %v3521 = vpack.c.b16 %v3515, %v3514
    %v3522 = vpack.c.b16 %v3517, %v3516
    %v3523 = vpack.c.b16 %v3519, %v3518
    %v3529 = vsel %vm1961, %v3496, 0
    %v3532 = vsel %vm1961, %v3497, 0
    %3534 = vmatprep.subr.bf16.mxu0 0
    %3535 = vmatpush1.bf16.msra.mxu0 0
    %3536 = vmatprep.subr.bf16.mxu0 0
    %3537 = vmatpush1.bf16.msra.mxu0 0
    %3538 = vmatprep.subr.bf16.mxu0 0
    %3539 = vmatpush1.bf16.msra.mxu0 0
    %3540 = vmatprep.subr.bf16.mxu0 0
    %3541 = vmatpush1.bf16.msra.mxu0 0
    %3542 = vmatprep.subr.bf16.mxu0 0
    %3543 = vmatpush1.bf16.msra.mxu0 %v3523
    %3544 = vmatprep.subr.bf16.mxu0 0
    %3545 = vmatpush1.bf16.msra.mxu0 %v3522
    %3546 = vmatprep.subr.bf16.mxu0 0
    %3547 = vmatpush1.bf16.msra.mxu0 %v3521
    %3548 = vmatprep.subr.bf16.mxu0 0
    %3549 = vmatpush1.bf16.msra.mxu0 %v3520
    %3550 = vmatprep.subr.bf16.mxu0 0
    %3551 = vmatpush2.bf16.msra.mxu0 0
    %3552 = vmatprep.subr.bf16.mxu0 0
    %3553 = vmatpush2.bf16.msra.mxu0 0
    %3554 = vmatprep.subr.bf16.mxu0 0
    %3555 = vmatpush2.bf16.msra.mxu0 0
    %3556 = vmatprep.subr.bf16.mxu0 0
    %3557 = vmatpush2.bf16.msra.mxu0 0
    %3558 = vmatprep.subr.bf16.mxu0 0
    %3559 = vmatpush2.bf16.msra.mxu0 0
    %3560 = vmatprep.subr.bf16.mxu0 0
    %3561 = vmatpush2.bf16.msra.mxu0 0
    %3562 = vmatprep.subr.bf16.mxu0 0
    %3563 = vmatpush2.bf16.msra.mxu0 0
    %3564 = vmatprep.subr.bf16.mxu0 0
    %3565 = vmatpush2.bf16.msra.mxu0 0
    %3566 = vmatprep.mubr.bf16.mxu0 0
    %3567 = vmatmul.mubr.bf16.gmra.mxu0 %v3529
    %v3568 = vpop.f32.mrf.mxu0
    %v3569 = vadd.f32 %v3502, %v3568
    %v3570 = vpop.f32.mrf.mxu0
    %v3571 = vpop.f32.mrf.mxu0
    %v3572 = vadd.f32 %v3502, %v3571
    %v3573 = vpop.f32.mrf.mxu0
    %3574 = vmatprep.mubr.bf16.mxu0 0
    %3575 = vmatmul.mubr.bf16.gmra.mxu0 %v3532
    %v3576 = vpop.f32.mrf.mxu0
    %v3577 = vadd.f32 %v3502, %v3576
    %v3578 = vpop.f32.mrf.mxu0
    %v3579 = vpop.f32.mrf.mxu0
    %v3580 = vadd.f32 %v3502, %v3579
    %v3581 = vpop.f32.mrf.mxu0
    %3582 = vdwg.mxu0
    %v3583 = vadd.f32 %v3395, %v3569
    %v3584 = vadd.f32 %v3396, %v3572
    %v3585 = vadd.f32 %v3397, %v3577
    %v3586 = vadd.f32 %v3398, %v3580
    %s3587 = scalar_lea.vmem %s79, 1
    %v3588 = vld [vmem:[%s3587] sm:$0x1]
    %s3589 = scalar_lea.vmem %s77, 1
    %v3590 = vld [vmem:[%s3589] sm:$0x1]
    %v3591 = vsel %vm546, %v3583, 0.0
    %3592 = vadd.xlane.f32.xlu0 %v3591
    %v3593 = vpop.xlane.xlu0 %3592
    %v3594 = vsel %vm546, %v3584, 0.0
    %3595 = vadd.xlane.f32.xlu0 %v3594
    %v3596 = vpop.xlane.xlu0 %3595
    %v3597 = vsel %vm546, %v3585, 0.0
    %3598 = vadd.xlane.f32.xlu0 %v3597
    %v3599 = vpop.xlane.xlu0 %3598
    %v3600 = vsel %vm546, %v3586, 0.0
    %3601 = vadd.xlane.f32.xlu0 %v3600
    %v3602 = vpop.xlane.xlu0 %3601
    %v3603 = vmul.f32 %v3593, %v1775
    %v3604 = vmul.f32 %v3596, %v1775
    %v3605 = vmul.f32 %v3599, %v1775
    %v3606 = vmul.f32 %v3602, %v1775
    %v3607 = vsub.f32 %v3583, %v3603
    %v3608 = vsub.f32 %v3584, %v3604
    %v3609 = vsub.f32 %v3585, %v3605
    %v3610 = vsub.f32 %v3586, %v3606
    %v3611 = vmul.f32 %v3607, %v3607
    %v3612 = vmul.f32 %v3608, %v3608
    %v3613 = vmul.f32 %v3609, %v3609
    %v3614 = vmul.f32 %v3610, %v3610
    %v3615 = vsel %vm546, %v3611, 0.0
    %3616 = vadd.xlane.f32.xlu0 %v3615
    %v3617 = vpop.xlane.xlu0 %3616
    %v3618 = vsel %vm546, %v3612, 0.0
    %3619 = vadd.xlane.f32.xlu0 %v3618
    %v3620 = vpop.xlane.xlu0 %3619
    %v3621 = vsel %vm546, %v3613, 0.0
    %3622 = vadd.xlane.f32.xlu0 %v3621
    %v3623 = vpop.xlane.xlu0 %3622
    %v3624 = vsel %vm546, %v3614, 0.0
    %3625 = vadd.xlane.f32.xlu0 %v3624
    %v3626 = vpop.xlane.xlu0 %3625
    %v3627 = vmul.f32 %v3617, %v1775
    %v3628 = vmul.f32 %v3620, %v1775
    %v3629 = vmul.f32 %v3623, %v1775
    %v3630 = vmul.f32 %v3626, %v1775
    %v3631 = vadd.f32 %v3627, 1e-05
    %v3632 = vadd.f32 %v3628, 1e-05
    %v3633 = vadd.f32 %v3629, 1e-05
    %v3634 = vadd.f32 %v3630, 1e-05
    %v3635 = vrsqrt.pop %v3631
    %v3636 = vrsqrt.pop %v3632
    %v3637 = vrsqrt.pop %v3633
    %v3638 = vrsqrt.pop %v3634
    %v3639 = vmul.f32 %v3607, %v3635
    %v3640 = vmul.f32 %v3608, %v3636
    %v3641 = vmul.f32 %v3609, %v3637
    %v3642 = vmul.f32 %v3610, %v3638
    %v3644 = vlaneseq
    %v3645 = vshrl.u32 %v3644, 7
    %v3646 = vsub.s32 0, %v3645
    %v3647 = vrot.slane %v3588, %v3646
    %v3649 = vmul.f32 %v3639, %v3647
    %v3650 = vmul.f32 %v3640, %v3647
    %v3651 = vmul.f32 %v3641, %v3647
    %v3652 = vmul.f32 %v3642, %v3647
    %v3654 = vlaneseq
    %v3655 = vshrl.u32 %v3654, 7
    %v3656 = vsub.s32 0, %v3655
    %v3657 = vrot.slane %v3590, %v3656
    %v3659 = vadd.f32 %v3649, %v3657
    %v3660 = vadd.f32 %v3650, %v3657
    %v3661 = vadd.f32 %v3651, %v3657
    %v3662 = vadd.f32 %v3652, %v3657
    %v3663 = vld [vmem:[#allocation11] sm:$0x1]
    %v3664 = vld [vmem:[#allocation10] sm:$0x1]
    %v3665 = vsel %vm546, %v3659, 0.0
    %3666 = vadd.xlane.f32.xlu0 %v3665
    %v3667 = vpop.xlane.xlu0 %3666
    %v3668 = vsel %vm546, %v3660, 0.0
    %3669 = vadd.xlane.f32.xlu0 %v3668
    %v3670 = vpop.xlane.xlu0 %3669
    %v3671 = vsel %vm546, %v3661, 0.0
    %3672 = vadd.xlane.f32.xlu0 %v3671
    %v3673 = vpop.xlane.xlu0 %3672
    %v3674 = vsel %vm546, %v3662, 0.0
    %3675 = vadd.xlane.f32.xlu0 %v3674
    %v3676 = vpop.xlane.xlu0 %3675
    %v3677 = vmul.f32 %v3667, %v1775
    %v3678 = vmul.f32 %v3670, %v1775
    %v3679 = vmul.f32 %v3673, %v1775
    %v3680 = vmul.f32 %v3676, %v1775
    %v3681 = vsub.f32 %v3659, %v3677
    %v3682 = vsub.f32 %v3660, %v3678
    %v3683 = vsub.f32 %v3661, %v3679
    %v3684 = vsub.f32 %v3662, %v3680
    %v3685 = vmul.f32 %v3681, %v3681
    %v3686 = vmul.f32 %v3682, %v3682
    %v3687 = vmul.f32 %v3683, %v3683
    %v3688 = vmul.f32 %v3684, %v3684
    %v3689 = vsel %vm546, %v3685, 0.0
    %3690 = vadd.xlane.f32.xlu0 %v3689
    %v3691 = vpop.xlane.xlu0 %3690
    %v3692 = vsel %vm546, %v3686, 0.0
    %3693 = vadd.xlane.f32.xlu0 %v3692
    %v3694 = vpop.xlane.xlu0 %3693
    %v3695 = vsel %vm546, %v3687, 0.0
    %3696 = vadd.xlane.f32.xlu0 %v3695
    %v3697 = vpop.xlane.xlu0 %3696
    %v3698 = vsel %vm546, %v3688, 0.0
    %3699 = vadd.xlane.f32.xlu0 %v3698
    %v3700 = vpop.xlane.xlu0 %3699
    %v3701 = vmul.f32 %v3691, %v1775
    %v3702 = vmul.f32 %v3694, %v1775
    %v3703 = vmul.f32 %v3697, %v1775
    %v3704 = vmul.f32 %v3700, %v1775
    %v3705 = vadd.f32 %v3701, 1e-05
    %v3706 = vadd.f32 %v3702, 1e-05
    %v3707 = vadd.f32 %v3703, 1e-05
    %v3708 = vadd.f32 %v3704, 1e-05
    %v3709 = vrsqrt.pop %v3705
    %v3710 = vrsqrt.pop %v3706
    %v3711 = vrsqrt.pop %v3707
    %v3712 = vrsqrt.pop %v3708
    %v3713 = vmul.f32 %v3681, %v3709
    %v3714 = vmul.f32 %v3682, %v3710
    %v3715 = vmul.f32 %v3683, %v3711
    %v3716 = vmul.f32 %v3684, %v3712
    %v3718 = vlaneseq
    %v3719 = vshrl.u32 %v3718, 7
    %v3720 = vsub.s32 0, %v3719
    %v3721 = vrot.slane %v3663, %v3720
    %v3723 = vmul.f32 %v3713, %v3721
    %v3724 = vmul.f32 %v3714, %v3721
    %v3725 = vmul.f32 %v3715, %v3721
    %v3726 = vmul.f32 %v3716, %v3721
    %v3728 = vlaneseq
    %v3729 = vshrl.u32 %v3728, 7
    %v3730 = vsub.s32 0, %v3729
    %v3731 = vrot.slane %v3664, %v3730
    %v3733 = vadd.f32 %v3723, %v3731
    %v3734 = vadd.f32 %v3724, %v3731
    %v3735 = vadd.f32 %v3725, %v3731
    %v3736 = vadd.f32 %v3726, %v3731
    %v3737 = vld [vmem:[%s3] sm:$0xff]
    %v3738 = vld [vmem:[%s3 + $0x8] sm:$0xff]
    %v3739 = vld [vmem:[#allocation19] sm:$0x1]
    %v3740 = vld [vmem:[#allocation17] sm:$0x1]
    %v3741 = vsel %vm353, %v3737, 0.0
    %3742 = vadd.xlane.f32.xlu0 %v3741
    %v3743 = vpop.xlane.xlu0 %3742
    %v3744 = vsel %vm353, %v3738, 0.0
    %3745 = vadd.xlane.f32.xlu0 %v3744
    %v3746 = vpop.xlane.xlu0 %3745
    %v3747 = vmul.f32 %v3743, %v366
    %v3748 = vmul.f32 %v3746, %v366
    %v3749 = vsub.f32 %v3737, %v3747
    %v3750 = vsub.f32 %v3738, %v3748
    %v3751 = vmul.f32 %v3749, %v3749
    %v3752 = vmul.f32 %v3750, %v3750
    %v3753 = vsel %vm353, %v3751, 0.0
    %3754 = vadd.xlane.f32.xlu0 %v3753
    %v3755 = vpop.xlane.xlu0 %3754
    %v3756 = vsel %vm353, %v3752, 0.0
    %3757 = vadd.xlane.f32.xlu0 %v3756
    %v3758 = vpop.xlane.xlu0 %3757
    %v3759 = vmul.f32 %v3755, %v366
    %v3760 = vmul.f32 %v3758, %v366
    %v3761 = vadd.f32 %v3759, 1e-12
    %v3762 = vadd.f32 %v3760, 1e-12
    %v3763 = vrsqrt.pop %v3761
    %v3764 = vrsqrt.pop %v3762
    %v3765 = vmul.f32 %v3749, %v3763
    %v3766 = vmul.f32 %v3750, %v3764
    %v3768 = vlaneseq
    %v3769 = vshrl.u32 %v3768, 7
    %v3770 = vsub.s32 0, %v3769
    %v3771 = vrot.slane %v3739, %v3770
    %v3773 = vmul.f32 %v3765, %v3771
    %v3774 = vmul.f32 %v3766, %v3771
    %v3776 = vlaneseq
    %v3777 = vshrl.u32 %v3776, 7
    %v3778 = vsub.s32 0, %v3777
    %v3779 = vrot.slane %v3740, %v3778
    %v3781 = vadd.f32 %v3773, %v3779
    %v3782 = vadd.f32 %v3774, %v3779
    %v3783 = vld [vmem:[%s15] sm:$0xf]
    %v3784 = vld [vmem:[%s15 + $0x4] sm:$0xf]
    %v3785 = vld [vmem:[%s15 + $0x8] sm:$0xf]
    %v3786 = vld [vmem:[%s15 + $0xc] sm:$0xf]
    %v3787 = vld [vmem:[%s15 + $0x10] sm:$0xf]
    %v3788 = vld [vmem:[%s15 + $0x14] sm:$0xf]
    %v3789 = vld [vmem:[%s13] sm:$0x1]
    %v3790 = vpack.c.bf16 %v3782, %v3781
    %v3792 = vlaneseq
    %v3793 = vshrl.u32 %v3792, 7
    %v3794 = vsub.s32 0, %v3793
    %v3795 = vrot.slane %v3789, %v3794
    %v3803 = vunpack.c.l.b16 %v3783
    %v3804 = vunpack.c.l.b16 %v3784
    %v3805 = vunpack.c.l.b16 %v3785
    %v3806 = vunpack.c.l.b16 %v3786
    %v3807 = vunpack.c.l.b16 %v3787
    %v3808 = vunpack.c.l.b16 %v3788
    %v3809 = vpack.c.b16 %v3804, %v3803
    %v3810 = vpack.c.b16 %v3806, %v3805
    %v3811 = vpack.c.b16 %v3808, %v3807
    %v3816 = vsel %vm353, %v3790, 0
    %3818 = vmatprep.subr.bf16.mxu0 0
    %3819 = vmatpush1.bf16.msra.mxu0 0
    %3820 = vmatprep.subr.bf16.mxu0 0
    %3821 = vmatpush1.bf16.msra.mxu0 0
    %3822 = vmatprep.subr.bf16.mxu0 0
    %3823 = vmatpush1.bf16.msra.mxu0 0
    %3824 = vmatprep.subr.bf16.mxu0 0
    %3825 = vmatpush1.bf16.msra.mxu0 0
    %3826 = vmatprep.subr.bf16.mxu0 0
    %3827 = vmatpush1.bf16.msra.mxu0 0
    %3828 = vmatprep.subr.bf16.mxu0 0
    %3829 = vmatpush1.bf16.msra.mxu0 %v3811
    %3830 = vmatprep.subr.bf16.mxu0 0
    %3831 = vmatpush1.bf16.msra.mxu0 %v3810
    %3832 = vmatprep.subr.bf16.mxu0 0
    %3833 = vmatpush1.bf16.msra.mxu0 %v3809
    %3834 = vmatprep.subr.bf16.mxu0 0
    %3835 = vmatpush2.bf16.msra.mxu0 0
    %3836 = vmatprep.subr.bf16.mxu0 0
    %3837 = vmatpush2.bf16.msra.mxu0 0
    %3838 = vmatprep.subr.bf16.mxu0 0
    %3839 = vmatpush2.bf16.msra.mxu0 0
    %3840 = vmatprep.subr.bf16.mxu0 0
    %3841 = vmatpush2.bf16.msra.mxu0 0
    %3842 = vmatprep.subr.bf16.mxu0 0
    %3843 = vmatpush2.bf16.msra.mxu0 0
    %3844 = vmatprep.subr.bf16.mxu0 0
    %3845 = vmatpush2.bf16.msra.mxu0 0
    %3846 = vmatprep.subr.bf16.mxu0 0
    %3847 = vmatpush2.bf16.msra.mxu0 0
    %3848 = vmatprep.subr.bf16.mxu0 0
    %3849 = vmatpush2.bf16.msra.mxu0 0
    %3850 = vmatprep.mubr.bf16.mxu0 0
    %3851 = vmatmul.mubr.bf16.gmra.mxu0 %v3816
    %v3852 = vpop.f32.mrf.mxu0
    %v3853 = vadd.f32 %v3795, %v3852
    %v3854 = vpop.f32.mrf.mxu0
    %v3855 = vpop.f32.mrf.mxu0
    %v3856 = vadd.f32 %v3795, %v3855
    %v3857 = vpop.f32.mrf.mxu0
    %3858 = vdwg.mxu0
    %v3859 = vld [vmem:[%s11] sm:$0xff]
    %v3860 = vadd.f32 %v3853, %v3859
    %v3861 = vadd.f32 %v3856, %v3859
    %v3862 = vld [vmem:[%s19] sm:$0xf]
    %v3863 = vld [vmem:[%s19 + $0x4] sm:$0xf]
    %v3864 = vld [vmem:[%s19 + $0x8] sm:$0xf]
    %v3865 = vld [vmem:[%s19 + $0xc] sm:$0xf]
    %v3866 = vld [vmem:[#allocation2] sm:$0x1]
    %v3867 = vpack.c.bf16 %v3734, %v3733
    %v3868 = vpack.c.bf16 %v3736, %v3735
    %v3870 = vlaneseq
    %v3871 = vshrl.u32 %v3870, 7
    %v3872 = vsub.s32 0, %v3871
    %v3873 = vrot.slane %v3866, %v3872
    %v3879 = vunpack.c.l.b16 %v3862
    %v3880 = vunpack.c.l.b16 %v3863
    %v3881 = vunpack.c.l.b16 %v3864
    %v3882 = vunpack.c.l.b16 %v3865
    %v3883 = vpack.c.b16 %v3880, %v3879
    %v3884 = vpack.c.b16 %v3882, %v3881
    %v3888 = vsel %vm546, %v3867, 0
    %v3891 = vsel %vm546, %v3868, 0
    %3893 = vmatprep.subr.bf16.mxu0 0
    %3894 = vmatpush1.bf16.msra.mxu0 0
    %3895 = vmatprep.subr.bf16.mxu0 0
    %3896 = vmatpush1.bf16.msra.mxu0 0
    %3897 = vmatprep.subr.bf16.mxu0 0
    %3898 = vmatpush1.bf16.msra.mxu0 0
    %3899 = vmatprep.subr.bf16.mxu0 0
    %3900 = vmatpush1.bf16.msra.mxu0 0
    %3901 = vmatprep.subr.bf16.mxu0 0
    %3902 = vmatpush1.bf16.msra.mxu0 0
    %3903 = vmatprep.subr.bf16.mxu0 0
    %3904 = vmatpush1.bf16.msra.mxu0 0
    %3905 = vmatprep.subr.bf16.mxu0 0
    %3906 = vmatpush1.bf16.msra.mxu0 %v3884
    %3907 = vmatprep.subr.bf16.mxu0 0
    %3908 = vmatpush1.bf16.msra.mxu0 %v3883
    %3909 = vmatprep.subr.bf16.mxu0 0
    %3910 = vmatpush2.bf16.msra.mxu0 0
    %3911 = vmatprep.subr.bf16.mxu0 0
    %3912 = vmatpush2.bf16.msra.mxu0 0
    %3913 = vmatprep.subr.bf16.mxu0 0
    %3914 = vmatpush2.bf16.msra.mxu0 0
    %3915 = vmatprep.subr.bf16.mxu0 0
    %3916 = vmatpush2.bf16.msra.mxu0 0
    %3917 = vmatprep.subr.bf16.mxu0 0
    %3918 = vmatpush2.bf16.msra.mxu0 0
    %3919 = vmatprep.subr.bf16.mxu0 0
    %3920 = vmatpush2.bf16.msra.mxu0 0
    %3921 = vmatprep.subr.bf16.mxu0 0
    %3922 = vmatpush2.bf16.msra.mxu0 0
    %3923 = vmatprep.subr.bf16.mxu0 0
    %3924 = vmatpush2.bf16.msra.mxu0 0
    %3925 = vmatprep.mubr.bf16.mxu0 0
    %3926 = vmatmul.mubr.bf16.gmra.mxu0 %v3888
    %v3927 = vpop.f32.mrf.mxu0
    %v3928 = vadd.f32 %v3873, %v3927
    %v3929 = vpop.f32.mrf.mxu0
    %v3930 = vpop.f32.mrf.mxu0
    %v3931 = vadd.f32 %v3873, %v3930
    %v3932 = vpop.f32.mrf.mxu0
    %3933 = vmatprep.mubr.bf16.mxu0 0
    %3934 = vmatmul.mubr.bf16.gmra.mxu0 %v3891
    %v3935 = vpop.f32.mrf.mxu0
    %v3936 = vadd.f32 %v3873, %v3935
    %v3937 = vpop.f32.mrf.mxu0
    %v3938 = vpop.f32.mrf.mxu0
    %v3939 = vadd.f32 %v3873, %v3938
    %v3940 = vpop.f32.mrf.mxu0
    %3941 = vdwg.mxu0
    %v3942 = vld [vmem:[%s55] sm:$0xf]
    %v3943 = vld [vmem:[%s55 + $0x4] sm:$0xf]
    %v3944 = vld [vmem:[%s55 + $0x8] sm:$0xf]
    %v3945 = vld [vmem:[%s55 + $0xc] sm:$0xf]
    %v3946 = vld [vmem:[%s53] sm:$0x1]
    %v3947 = vpack.c.bf16 %v3861, %v3860
    %v3949 = vlaneseq
    %v3950 = vshrl.u32 %v3949, 7
    %v3951 = vsub.s32 0, %v3950
    %v3952 = vrot.slane %v3946, %v3951
    %v3958 = vunpack.c.l.b16 %v3942
    %v3959 = vunpack.c.l.b16 %v3943
    %v3960 = vunpack.c.l.b16 %v3944
    %v3961 = vunpack.c.l.b16 %v3945
    %v3962 = vpack.c.b16 %v3959, %v3958
    %v3963 = vpack.c.b16 %v3961, %v3960
    %v3967 = vsel %vm546, %v3947, 0
    %3969 = vmatprep.subr.bf16.mxu0 0
    %3970 = vmatpush1.bf16.msra.mxu0 0
    %3971 = vmatprep.subr.bf16.mxu0 0
    %3972 = vmatpush1.bf16.msra.mxu0 0
    %3973 = vmatprep.subr.bf16.mxu0 0
    %3974 = vmatpush1.bf16.msra.mxu0 0
    %3975 = vmatprep.subr.bf16.mxu0 0
    %3976 = vmatpush1.bf16.msra.mxu0 0
    %3977 = vmatprep.subr.bf16.mxu0 0
    %3978 = vmatpush1.bf16.msra.mxu0 0
    %3979 = vmatprep.subr.bf16.mxu0 0
    %3980 = vmatpush1.bf16.msra.mxu0 0
    %3981 = vmatprep.subr.bf16.mxu0 0
    %3982 = vmatpush1.bf16.msra.mxu0 %v3963
    %3983 = vmatprep.subr.bf16.mxu0 0
    %3984 = vmatpush1.bf16.msra.mxu0 %v3962
    %3985 = vmatprep.subr.bf16.mxu0 0
    %3986 = vmatpush2.bf16.msra.mxu0 0
    %3987 = vmatprep.subr.bf16.mxu0 0
    %3988 = vmatpush2.bf16.msra.mxu0 0
    %3989 = vmatprep.subr.bf16.mxu0 0
    %3990 = vmatpush2.bf16.msra.mxu0 0
    %3991 = vmatprep.subr.bf16.mxu0 0
    %3992 = vmatpush2.bf16.msra.mxu0 0
    %3993 = vmatprep.subr.bf16.mxu0 0
    %3994 = vmatpush2.bf16.msra.mxu0 0
    %3995 = vmatprep.subr.bf16.mxu0 0
    %3996 = vmatpush2.bf16.msra.mxu0 0
    %3997 = vmatprep.subr.bf16.mxu0 0
    %3998 = vmatpush2.bf16.msra.mxu0 0
    %3999 = vmatprep.subr.bf16.mxu0 0
    %4000 = vmatpush2.bf16.msra.mxu0 0
    %4001 = vmatprep.mubr.bf16.mxu0 0
    %4002 = vmatmul.mubr.bf16.gmra.mxu0 %v3967
    %v4003 = vpop.f32.mrf.mxu0
    %v4004 = vadd.f32 %v3952, %v4003
    %v4005 = vpop.f32.mrf.mxu0
    %v4006 = vpop.f32.mrf.mxu0
    %v4007 = vadd.f32 %v3952, %v4006
    %v4008 = vpop.f32.mrf.mxu0
    %4009 = vdwg.mxu0
    %v4010 = vpack.c.bf16 %v4004, %v4004
    %v4011 = vpack.c.bf16 %v4007, %v4007
    %4013 = vrot.lane.b32.xlu0 %v4010, 96
    %v4014 = vpop.permute.xlu0 %4013
    %v4016 = vsel %vm607, %v4010, 0
    %v4019 = vsel %vm607, %v4014, 0
    %4021 = vmatprep.subr.bf16.mxu0 0
    %4022 = vmatpush1.bf16.xpose.msra.mxu0 0
    %4023 = vmatprep.subr.bf16.mxu0 0
    %4024 = vmatpush1.bf16.xpose.msra.mxu0 0
    %4025 = vmatprep.subr.bf16.mxu0 0
    %4026 = vmatpush1.bf16.xpose.msra.mxu0 0
    %4027 = vmatprep.subr.bf16.mxu0 0
    %4028 = vmatpush1.bf16.xpose.msra.mxu0 0
    %4029 = vmatprep.subr.bf16.mxu0 0
    %4030 = vmatpush1.bf16.xpose.msra.mxu0 0
    %4031 = vmatprep.subr.bf16.mxu0 0
    %4032 = vmatpush1.bf16.xpose.msra.mxu0 0
    %4033 = vmatprep.subr.bf16.mxu0 0
    %4034 = vmatpush1.bf16.xpose.msra.mxu0 0
    %4035 = vmatprep.subr.bf16.mxu0 0
    %4036 = vmatpush1.bf16.xpose.msra.mxu0 %v4019
    %4037 = vmatprep.subr.bf16.mxu0 0
    %4038 = vmatpush2.bf16.xpose.msra.mxu0 0
    %4039 = vmatprep.subr.bf16.mxu0 0
    %4040 = vmatpush2.bf16.xpose.msra.mxu0 0
    %4041 = vmatprep.subr.bf16.mxu0 0
    %4042 = vmatpush2.bf16.xpose.msra.mxu0 0
    %4043 = vmatprep.subr.bf16.mxu0 0
    %4044 = vmatpush2.bf16.xpose.msra.mxu0 0
    %4045 = vmatprep.subr.bf16.mxu0 0
    %4046 = vmatpush2.bf16.xpose.msra.mxu0 0
    %4047 = vmatprep.subr.bf16.mxu0 0
    %4048 = vmatpush2.bf16.xpose.msra.mxu0 0
    %4049 = vmatprep.subr.bf16.mxu0 0
    %4050 = vmatpush2.bf16.xpose.msra.mxu0 0
    %4051 = vmatprep.subr.bf16.mxu0 0
    %4052 = vmatpush2.bf16.xpose.msra.mxu0 0
    %4053 = vmatprep.mubr.bf16.mxu0 0
    %4054 = vmatmul.mubr.bf16.gmra.mxu0 %v4016
    %v4055 = vpop.f32.mrf.mxu0
    %v4056 = vadd.f32 0.0, %v4055
    %v4057 = vpop.f32.mrf.mxu0
    %v4058 = vpop.f32.mrf.mxu0
    %v4059 = vpop.f32.mrf.mxu0
    %4060 = vdwg.mxu0
    %4062 = vrot.lane.b32.xlu0 %v4011, 96
    %v4063 = vpop.permute.xlu0 %4062
    %v4065 = vsel %vm607, %v4011, 0
    %v4068 = vsel %vm607, %v4063, 0
    %4070 = vmatprep.subr.bf16.mxu0 0
    %4071 = vmatpush1.bf16.xpose.msra.mxu0 0
    %4072 = vmatprep.subr.bf16.mxu0 0
    %4073 = vmatpush1.bf16.xpose.msra.mxu0 0
    %4074 = vmatprep.subr.bf16.mxu0 0
    %4075 = vmatpush1.bf16.xpose.msra.mxu0 0
    %4076 = vmatprep.subr.bf16.mxu0 0
    %4077 = vmatpush1.bf16.xpose.msra.mxu0 0
    %4078 = vmatprep.subr.bf16.mxu0 0
    %4079 = vmatpush1.bf16.xpose.msra.mxu0 0
    %4080 = vmatprep.subr.bf16.mxu0 0
    %4081 = vmatpush1.bf16.xpose.msra.mxu0 0
    %4082 = vmatprep.subr.bf16.mxu0 0
    %4083 = vmatpush1.bf16.xpose.msra.mxu0 0
    %4084 = vmatprep.subr.bf16.mxu0 0
    %4085 = vmatpush1.bf16.xpose.msra.mxu0 %v4068
    %4086 = vmatprep.subr.bf16.mxu0 0
    %4087 = vmatpush2.bf16.xpose.msra.mxu0 0
    %4088 = vmatprep.subr.bf16.mxu0 0
    %4089 = vmatpush2.bf16.xpose.msra.mxu0 0
    %4090 = vmatprep.subr.bf16.mxu0 0
    %4091 = vmatpush2.bf16.xpose.msra.mxu0 0
    %4092 = vmatprep.subr.bf16.mxu0 0
    %4093 = vmatpush2.bf16.xpose.msra.mxu0 0
    %4094 = vmatprep.subr.bf16.mxu0 0
    %4095 = vmatpush2.bf16.xpose.msra.mxu0 0
    %4096 = vmatprep.subr.bf16.mxu0 0
    %4097 = vmatpush2.bf16.xpose.msra.mxu0 0
    %4098 = vmatprep.subr.bf16.mxu0 0
    %4099 = vmatpush2.bf16.xpose.msra.mxu0 0
    %4100 = vmatprep.subr.bf16.mxu0 0
    %4101 = vmatpush2.bf16.xpose.msra.mxu0 0
    %4102 = vmatprep.mubr.bf16.mxu0 0
    %4103 = vmatmul.mubr.bf16.gmra.mxu0 %v4065
    %v4104 = vpop.f32.mrf.mxu0
    %v4105 = vadd.f32 0.0, %v4104
    %v4106 = vpop.f32.mrf.mxu0
    %v4107 = vpop.f32.mrf.mxu0
    %v4108 = vpop.f32.mrf.mxu0
    %4109 = vdwg.mxu0
    %v4110 = vmul.f32 %v4056, 0.35355338
    %v4111 = vmul.f32 %v4105, 0.35355338
    %v4112 = vadd.f32 %v4110, %v345
    %v4113 = vadd.f32 %v4111, %v346
    %v4114 = vsel %vm607, %v4112, -inf
    %4115 = vmax.xlane.f32.xlu0 %v4114
    %v4116 = vpop.xlane.xlu0 %4115
    %v4117 = vsel %vm607, %v4113, -inf
    %4118 = vmax.xlane.f32.xlu0 %v4117
    %v4119 = vpop.xlane.xlu0 %4118
    %v4120 = vsub.f32 %v4112, %v4116
    %v4121 = vsub.f32 %v4113, %v4119
    %v4122 = vmul.f32 %v4120, 1.442695
    %v4123 = vpow.pop %v4122
    %v4124 = vmul.f32 %v4121, 1.442695
    %v4125 = vpow.pop %v4124
    %v4126 = vsel %vm607, %v4123, 0.0
    %4127 = vadd.xlane.f32.xlu0 %v4126
    %v4128 = vpop.xlane.xlu0 %4127
    %v4129 = vsel %vm607, %v4125, 0.0
    %4130 = vadd.xlane.f32.xlu0 %v4129
    %v4131 = vpop.xlane.xlu0 %4130
    %v4132 = vrcp.pop %v4128
    %v4133 = vrcp.pop %v4131
    %v4134 = vmul.f32 %v4123, %v4132
    %v4135 = vmul.f32 %v4125, %v4133
    %v4136 = vpack.c.bf16 %v4134, %v4134
    %v4137 = vpack.c.bf16 %v4135, %v4135
    %4138 = vrot.lane.b32.xlu0 %v4010, 64
    %v4139 = vpop.permute.xlu0 %4138
    %v4141 = vsel %vm607, %v4136, 0
    %vm4143 = vcmask 1043456
    %v4145 = vsel %vm4143, %v4139, 0
    %4147 = vmatprep.subr.bf16.mxu0 0
    %4148 = vmatpush1.bf16.msra.mxu0 0
    %4149 = vmatprep.subr.bf16.mxu0 0
    %4150 = vmatpush1.bf16.msra.mxu0 0
    %4151 = vmatprep.subr.bf16.mxu0 0
    %4152 = vmatpush1.bf16.msra.mxu0 0
    %4153 = vmatprep.subr.bf16.mxu0 0
    %4154 = vmatpush1.bf16.msra.mxu0 0
    %4155 = vmatprep.subr.bf16.mxu0 0
    %4156 = vmatpush1.bf16.msra.mxu0 0
    %4157 = vmatprep.subr.bf16.mxu0 0
    %4158 = vmatpush1.bf16.msra.mxu0 0
    %4159 = vmatprep.subr.bf16.mxu0 0
    %4160 = vmatpush1.bf16.msra.mxu0 0
    %4161 = vmatprep.subr.bf16.mxu0 0
    %4162 = vmatpush1.bf16.msra.mxu0 %v4145
    %4163 = vmatprep.subr.bf16.mxu0 0
    %4164 = vmatpush2.bf16.msra.mxu0 0
    %4165 = vmatprep.subr.bf16.mxu0 0
    %4166 = vmatpush2.bf16.msra.mxu0 0
    %4167 = vmatprep.subr.bf16.mxu0 0
    %4168 = vmatpush2.bf16.msra.mxu0 0
    %4169 = vmatprep.subr.bf16.mxu0 0
    %4170 = vmatpush2.bf16.msra.mxu0 0
    %4171 = vmatprep.subr.bf16.mxu0 0
    %4172 = vmatpush2.bf16.msra.mxu0 0
    %4173 = vmatprep.subr.bf16.mxu0 0
    %4174 = vmatpush2.bf16.msra.mxu0 0
    %4175 = vmatprep.subr.bf16.mxu0 0
    %4176 = vmatpush2.bf16.msra.mxu0 0
    %4177 = vmatprep.subr.bf16.mxu0 0
    %4178 = vmatpush2.bf16.msra.mxu0 0
    %4179 = vmatprep.mubr.bf16.mxu0 0
    %4180 = vmatmul.mubr.bf16.gmra.mxu0 %v4141
    %v4181 = vpop.f32.mrf.mxu0
    %v4182 = vadd.f32 0.0, %v4181
    %v4183 = vpop.f32.mrf.mxu0
    %v4184 = vpop.f32.mrf.mxu0
    %v4185 = vpop.f32.mrf.mxu0
    %4186 = vdwg.mxu0
    %4187 = vrot.lane.b32.xlu0 %v4011, 64
    %v4188 = vpop.permute.xlu0 %4187
    %v4190 = vsel %vm607, %v4137, 0
    %v4193 = vsel %vm4143, %v4188, 0
    %4195 = vmatprep.subr.bf16.mxu0 0
    %4196 = vmatpush1.bf16.msra.mxu0 0
    %4197 = vmatprep.subr.bf16.mxu0 0
    %4198 = vmatpush1.bf16.msra.mxu0 0
    %4199 = vmatprep.subr.bf16.mxu0 0
    %4200 = vmatpush1.bf16.msra.mxu0 0
    %4201 = vmatprep.subr.bf16.mxu0 0
    %4202 = vmatpush1.bf16.msra.mxu0 0
    %4203 = vmatprep.subr.bf16.mxu0 0
    %4204 = vmatpush1.bf16.msra.mxu0 0
    %4205 = vmatprep.subr.bf16.mxu0 0
    %4206 = vmatpush1.bf16.msra.mxu0 0
    %4207 = vmatprep.subr.bf16.mxu0 0
    %4208 = vmatpush1.bf16.msra.mxu0 0
    %4209 = vmatprep.subr.bf16.mxu0 0
    %4210 = vmatpush1.bf16.msra.mxu0 %v4193
    %4211 = vmatprep.subr.bf16.mxu0 0
    %4212 = vmatpush2.bf16.msra.mxu0 0
    %4213 = vmatprep.subr.bf16.mxu0 0
    %4214 = vmatpush2.bf16.msra.mxu0 0
    %4215 = vmatprep.subr.bf16.mxu0 0
    %4216 = vmatpush2.bf16.msra.mxu0 0
    %4217 = vmatprep.subr.bf16.mxu0 0
    %4218 = vmatpush2.bf16.msra.mxu0 0
    %4219 = vmatprep.subr.bf16.mxu0 0
    %4220 = vmatpush2.bf16.msra.mxu0 0
    %4221 = vmatprep.subr.bf16.mxu0 0
    %4222 = vmatpush2.bf16.msra.mxu0 0
    %4223 = vmatprep.subr.bf16.mxu0 0
    %4224 = vmatpush2.bf16.msra.mxu0 0
    %4225 = vmatprep.subr.bf16.mxu0 0
    %4226 = vmatpush2.bf16.msra.mxu0 0
    %4227 = vmatprep.mubr.bf16.mxu0 0
    %4228 = vmatmul.mubr.bf16.gmra.mxu0 %v4190
    %v4229 = vpop.f32.mrf.mxu0
    %v4230 = vadd.f32 0.0, %v4229
    %v4231 = vpop.f32.mrf.mxu0
    %v4232 = vpop.f32.mrf.mxu0
    %v4233 = vpop.f32.mrf.mxu0
    %4234 = vdwg.mxu0
    %4235 = vrot.lane.b32.xlu0 %v4010, 120
    %v4236 = vpop.permute.xlu0 %4235
    %4237 = vrot.lane.b32.xlu0 %v4010, 88
    %v4238 = vpop.permute.xlu0 %4237
    %v4240 = vsel %vm607, %v4236, 0
    %v4243 = vsel %vm607, %v4238, 0
    %4245 = vmatprep.subr.bf16.mxu0 0
    %4246 = vmatpush1.bf16.xpose.msra.mxu0 0
    %4247 = vmatprep.subr.bf16.mxu0 0
    %4248 = vmatpush1.bf16.xpose.msra.mxu0 0
    %4249 = vmatprep.subr.bf16.mxu0 0
    %4250 = vmatpush1.bf16.xpose.msra.mxu0 0
    %4251 = vmatprep.subr.bf16.mxu0 0
    %4252 = vmatpush1.bf16.xpose.msra.mxu0 0
    %4253 = vmatprep.subr.bf16.mxu0 0
    %4254 = vmatpush1.bf16.xpose.msra.mxu0 0
    %4255 = vmatprep.subr.bf16.mxu0 0
    %4256 = vmatpush1.bf16.xpose.msra.mxu0 0
    %4257 = vmatprep.subr.bf16.mxu0 0
    %4258 = vmatpush1.bf16.xpose.msra.mxu0 0
    %4259 = vmatprep.subr.bf16.mxu0 0
    %4260 = vmatpush1.bf16.xpose.msra.mxu0 %v4243
    %4261 = vmatprep.subr.bf16.mxu0 0
    %4262 = vmatpush2.bf16.xpose.msra.mxu0 0
    %4263 = vmatprep.subr.bf16.mxu0 0
    %4264 = vmatpush2.bf16.xpose.msra.mxu0 0
    %4265 = vmatprep.subr.bf16.mxu0 0
    %4266 = vmatpush2.bf16.xpose.msra.mxu0 0
    %4267 = vmatprep.subr.bf16.mxu0 0
    %4268 = vmatpush2.bf16.xpose.msra.mxu0 0
    %4269 = vmatprep.subr.bf16.mxu0 0
    %4270 = vmatpush2.bf16.xpose.msra.mxu0 0
    %4271 = vmatprep.subr.bf16.mxu0 0
    %4272 = vmatpush2.bf16.xpose.msra.mxu0 0
    %4273 = vmatprep.subr.bf16.mxu0 0
    %4274 = vmatpush2.bf16.xpose.msra.mxu0 0
    %4275 = vmatprep.subr.bf16.mxu0 0
    %4276 = vmatpush2.bf16.xpose.msra.mxu0 0
    %4277 = vmatprep.mubr.bf16.mxu0 0
    %4278 = vmatmul.mubr.bf16.gmra.mxu0 %v4240
    %v4279 = vpop.f32.mrf.mxu0
    %v4280 = vadd.f32 0.0, %v4279
    %v4281 = vpop.f32.mrf.mxu0
    %v4282 = vpop.f32.mrf.mxu0
    %v4283 = vpop.f32.mrf.mxu0
    %4284 = vdwg.mxu0
    %4285 = vrot.lane.b32.xlu0 %v4011, 120
    %v4286 = vpop.permute.xlu0 %4285
    %4287 = vrot.lane.b32.xlu0 %v4011, 88
    %v4288 = vpop.permute.xlu0 %4287
    %v4290 = vsel %vm607, %v4286, 0
    %v4293 = vsel %vm607, %v4288, 0
    %4295 = vmatprep.subr.bf16.mxu0 0
    %4296 = vmatpush1.bf16.xpose.msra.mxu0 0
    %4297 = vmatprep.subr.bf16.mxu0 0
    %4298 = vmatpush1.bf16.xpose.msra.mxu0 0
    %4299 = vmatprep.subr.bf16.mxu0 0
    %4300 = vmatpush1.bf16.xpose.msra.mxu0 0
    %4301 = vmatprep.subr.bf16.mxu0 0
    %4302 = vmatpush1.bf16.xpose.msra.mxu0 0
    %4303 = vmatprep.subr.bf16.mxu0 0
    %4304 = vmatpush1.bf16.xpose.msra.mxu0 0
    %4305 = vmatprep.subr.bf16.mxu0 0
    %4306 = vmatpush1.bf16.xpose.msra.mxu0 0
    %4307 = vmatprep.subr.bf16.mxu0 0
    %4308 = vmatpush1.bf16.xpose.msra.mxu0 0
    %4309 = vmatprep.subr.bf16.mxu0 0
    %4310 = vmatpush1.bf16.xpose.msra.mxu0 %v4293
    %4311 = vmatprep.subr.bf16.mxu0 0
    %4312 = vmatpush2.bf16.xpose.msra.mxu0 0
    %4313 = vmatprep.subr.bf16.mxu0 0
    %4314 = vmatpush2.bf16.xpose.msra.mxu0 0
    %4315 = vmatprep.subr.bf16.mxu0 0
    %4316 = vmatpush2.bf16.xpose.msra.mxu0 0
    %4317 = vmatprep.subr.bf16.mxu0 0
    %4318 = vmatpush2.bf16.xpose.msra.mxu0 0
    %4319 = vmatprep.subr.bf16.mxu0 0
    %4320 = vmatpush2.bf16.xpose.msra.mxu0 0
    %4321 = vmatprep.subr.bf16.mxu0 0
    %4322 = vmatpush2.bf16.xpose.msra.mxu0 0
    %4323 = vmatprep.subr.bf16.mxu0 0
    %4324 = vmatpush2.bf16.xpose.msra.mxu0 0
    %4325 = vmatprep.subr.bf16.mxu0 0
    %4326 = vmatpush2.bf16.xpose.msra.mxu0 0
    %4327 = vmatprep.mubr.bf16.mxu0 0
    %4328 = vmatmul.mubr.bf16.gmra.mxu0 %v4290
    %v4329 = vpop.f32.mrf.mxu0
    %v4330 = vadd.f32 0.0, %v4329
    %v4331 = vpop.f32.mrf.mxu0
    %v4332 = vpop.f32.mrf.mxu0
    %v4333 = vpop.f32.mrf.mxu0
    %4334 = vdwg.mxu0
    %v4335 = vmul.f32 %v4280, 0.35355338
    %v4336 = vmul.f32 %v4330, 0.35355338
    %v4337 = vadd.f32 %v4335, %v345
    %v4338 = vadd.f32 %v4336, %v346
    %v4339 = vsel %vm607, %v4337, -inf
    %4340 = vmax.xlane.f32.xlu0 %v4339
    %v4341 = vpop.xlane.xlu0 %4340
    %v4342 = vsel %vm607, %v4338, -inf
    %4343 = vmax.xlane.f32.xlu0 %v4342
    %v4344 = vpop.xlane.xlu0 %4343
    %v4345 = vsub.f32 %v4337, %v4341
    %v4346 = vsub.f32 %v4338, %v4344
    %v4347 = vmul.f32 %v4345, 1.442695
    %v4348 = vpow.pop %v4347
    %v4349 = vmul.f32 %v4346, 1.442695
    %v4350 = vpow.pop %v4349
    %v4351 = vsel %vm607, %v4348, 0.0
    %4352 = vadd.xlane.f32.xlu0 %v4351
    %v4353 = vpop.xlane.xlu0 %4352
    %v4354 = vsel %vm607, %v4350, 0.0
    %4355 = vadd.xlane.f32.xlu0 %v4354
    %v4356 = vpop.xlane.xlu0 %4355
    %v4357 = vrcp.pop %v4353
    %v4358 = vrcp.pop %v4356
    %v4359 = vmul.f32 %v4348, %v4357
    %v4360 = vmul.f32 %v4350, %v4358
    %v4361 = vpack.c.bf16 %v4359, %v4359
    %v4362 = vpack.c.bf16 %v4360, %v4360
    %4363 = vrot.lane.b32.xlu0 %v4010, 56
    %v4364 = vpop.permute.xlu0 %4363
    %v4366 = vsel %vm607, %v4361, 0
    %v4369 = vsel %vm4143, %v4364, 0
    %4371 = vmatprep.subr.bf16.mxu0 0
    %4372 = vmatpush1.bf16.msra.mxu0 0
    %4373 = vmatprep.subr.bf16.mxu0 0
    %4374 = vmatpush1.bf16.msra.mxu0 0
    %4375 = vmatprep.subr.bf16.mxu0 0
    %4376 = vmatpush1.bf16.msra.mxu0 0
    %4377 = vmatprep.subr.bf16.mxu0 0
    %4378 = vmatpush1.bf16.msra.mxu0 0
    %4379 = vmatprep.subr.bf16.mxu0 0
    %4380 = vmatpush1.bf16.msra.mxu0 0
    %4381 = vmatprep.subr.bf16.mxu0 0
    %4382 = vmatpush1.bf16.msra.mxu0 0
    %4383 = vmatprep.subr.bf16.mxu0 0
    %4384 = vmatpush1.bf16.msra.mxu0 0
    %4385 = vmatprep.subr.bf16.mxu0 0
    %4386 = vmatpush1.bf16.msra.mxu0 %v4369
    %4387 = vmatprep.subr.bf16.mxu0 0
    %4388 = vmatpush2.bf16.msra.mxu0 0
    %4389 = vmatprep.subr.bf16.mxu0 0
    %4390 = vmatpush2.bf16.msra.mxu0 0
    %4391 = vmatprep.subr.bf16.mxu0 0
    %4392 = vmatpush2.bf16.msra.mxu0 0
    %4393 = vmatprep.subr.bf16.mxu0 0
    %4394 = vmatpush2.bf16.msra.mxu0 0
    %4395 = vmatprep.subr.bf16.mxu0 0
    %4396 = vmatpush2.bf16.msra.mxu0 0
    %4397 = vmatprep.subr.bf16.mxu0 0
    %4398 = vmatpush2.bf16.msra.mxu0 0
    %4399 = vmatprep.subr.bf16.mxu0 0
    %4400 = vmatpush2.bf16.msra.mxu0 0
    %4401 = vmatprep.subr.bf16.mxu0 0
    %4402 = vmatpush2.bf16.msra.mxu0 0
    %4403 = vmatprep.mubr.bf16.mxu0 0
    %4404 = vmatmul.mubr.bf16.gmra.mxu0 %v4366
    %v4405 = vpop.f32.mrf.mxu0
    %v4406 = vadd.f32 0.0, %v4405
    %v4407 = vpop.f32.mrf.mxu0
    %v4408 = vpop.f32.mrf.mxu0
    %v4409 = vpop.f32.mrf.mxu0
    %4410 = vdwg.mxu0
    %4411 = vrot.lane.b32.xlu0 %v4011, 56
    %v4412 = vpop.permute.xlu0 %4411
    %v4414 = vsel %vm607, %v4362, 0
    %v4417 = vsel %vm4143, %v4412, 0
    %4419 = vmatprep.subr.bf16.mxu0 0
    %4420 = vmatpush1.bf16.msra.mxu0 0
    %4421 = vmatprep.subr.bf16.mxu0 0
    %4422 = vmatpush1.bf16.msra.mxu0 0
    %4423 = vmatprep.subr.bf16.mxu0 0
    %4424 = vmatpush1.bf16.msra.mxu0 0
    %4425 = vmatprep.subr.bf16.mxu0 0
    %4426 = vmatpush1.bf16.msra.mxu0 0
    %4427 = vmatprep.subr.bf16.mxu0 0
    %4428 = vmatpush1.bf16.msra.mxu0 0
    %4429 = vmatprep.subr.bf16.mxu0 0
    %4430 = vmatpush1.bf16.msra.mxu0 0
    %4431 = vmatprep.subr.bf16.mxu0 0
    %4432 = vmatpush1.bf16.msra.mxu0 0
    %4433 = vmatprep.subr.bf16.mxu0 0
    %4434 = vmatpush1.bf16.msra.mxu0 %v4417
    %4435 = vmatprep.subr.bf16.mxu0 0
    %4436 = vmatpush2.bf16.msra.mxu0 0
    %4437 = vmatprep.subr.bf16.mxu0 0
    %4438 = vmatpush2.bf16.msra.mxu0 0
    %4439 = vmatprep.subr.bf16.mxu0 0
    %4440 = vmatpush2.bf16.msra.mxu0 0
    %4441 = vmatprep.subr.bf16.mxu0 0
    %4442 = vmatpush2.bf16.msra.mxu0 0
    %4443 = vmatprep.subr.bf16.mxu0 0
    %4444 = vmatpush2.bf16.msra.mxu0 0
    %4445 = vmatprep.subr.bf16.mxu0 0
    %4446 = vmatpush2.bf16.msra.mxu0 0
    %4447 = vmatprep.subr.bf16.mxu0 0
    %4448 = vmatpush2.bf16.msra.mxu0 0
    %4449 = vmatprep.subr.bf16.mxu0 0
    %4450 = vmatpush2.bf16.msra.mxu0 0
    %4451 = vmatprep.mubr.bf16.mxu0 0
    %4452 = vmatmul.mubr.bf16.gmra.mxu0 %v4414
    %v4453 = vpop.f32.mrf.mxu0
    %v4454 = vadd.f32 0.0, %v4453
    %v4455 = vpop.f32.mrf.mxu0
    %v4456 = vpop.f32.mrf.mxu0
    %v4457 = vpop.f32.mrf.mxu0
    %4458 = vdwg.mxu0
    %4459 = vrot.lane.b32.xlu0 %v4010, 112
    %v4460 = vpop.permute.xlu0 %4459
    %4461 = vrot.lane.b32.xlu0 %v4010, 80
    %v4462 = vpop.permute.xlu0 %4461
    %v4464 = vsel %vm607, %v4460, 0
    %v4467 = vsel %vm607, %v4462, 0
    %4469 = vmatprep.subr.bf16.mxu0 0
    %4470 = vmatpush1.bf16.xpose.msra.mxu0 0
    %4471 = vmatprep.subr.bf16.mxu0 0
    %4472 = vmatpush1.bf16.xpose.msra.mxu0 0
    %4473 = vmatprep.subr.bf16.mxu0 0
    %4474 = vmatpush1.bf16.xpose.msra.mxu0 0
    %4475 = vmatprep.subr.bf16.mxu0 0
    %4476 = vmatpush1.bf16.xpose.msra.mxu0 0
    %4477 = vmatprep.subr.bf16.mxu0 0
    %4478 = vmatpush1.bf16.xpose.msra.mxu0 0
    %4479 = vmatprep.subr.bf16.mxu0 0
    %4480 = vmatpush1.bf16.xpose.msra.mxu0 0
    %4481 = vmatprep.subr.bf16.mxu0 0
    %4482 = vmatpush1.bf16.xpose.msra.mxu0 0
    %4483 = vmatprep.subr.bf16.mxu0 0
    %4484 = vmatpush1.bf16.xpose.msra.mxu0 %v4467
    %4485 = vmatprep.subr.bf16.mxu0 0
    %4486 = vmatpush2.bf16.xpose.msra.mxu0 0
    %4487 = vmatprep.subr.bf16.mxu0 0
    %4488 = vmatpush2.bf16.xpose.msra.mxu0 0
    %4489 = vmatprep.subr.bf16.mxu0 0
    %4490 = vmatpush2.bf16.xpose.msra.mxu0 0
    %4491 = vmatprep.subr.bf16.mxu0 0
    %4492 = vmatpush2.bf16.xpose.msra.mxu0 0
    %4493 = vmatprep.subr.bf16.mxu0 0
    %4494 = vmatpush2.bf16.xpose.msra.mxu0 0
    %4495 = vmatprep.subr.bf16.mxu0 0
    %4496 = vmatpush2.bf16.xpose.msra.mxu0 0
    %4497 = vmatprep.subr.bf16.mxu0 0
    %4498 = vmatpush2.bf16.xpose.msra.mxu0 0
    %4499 = vmatprep.subr.bf16.mxu0 0
    %4500 = vmatpush2.bf16.xpose.msra.mxu0 0
    %4501 = vmatprep.mubr.bf16.mxu0 0
    %4502 = vmatmul.mubr.bf16.gmra.mxu0 %v4464
    %v4503 = vpop.f32.mrf.mxu0
    %v4504 = vadd.f32 0.0, %v4503
    %v4505 = vpop.f32.mrf.mxu0
    %v4506 = vpop.f32.mrf.mxu0
    %v4507 = vpop.f32.mrf.mxu0
    %4508 = vdwg.mxu0
    %4509 = vrot.lane.b32.xlu0 %v4011, 112
    %v4510 = vpop.permute.xlu0 %4509
    %4511 = vrot.lane.b32.xlu0 %v4011, 80
    %v4512 = vpop.permute.xlu0 %4511
    %v4514 = vsel %vm607, %v4510, 0
    %v4517 = vsel %vm607, %v4512, 0
    %4519 = vmatprep.subr.bf16.mxu0 0
    %4520 = vmatpush1.bf16.xpose.msra.mxu0 0
    %4521 = vmatprep.subr.bf16.mxu0 0
    %4522 = vmatpush1.bf16.xpose.msra.mxu0 0
    %4523 = vmatprep.subr.bf16.mxu0 0
    %4524 = vmatpush1.bf16.xpose.msra.mxu0 0
    %4525 = vmatprep.subr.bf16.mxu0 0
    %4526 = vmatpush1.bf16.xpose.msra.mxu0 0
    %4527 = vmatprep.subr.bf16.mxu0 0
    %4528 = vmatpush1.bf16.xpose.msra.mxu0 0
    %4529 = vmatprep.subr.bf16.mxu0 0
    %4530 = vmatpush1.bf16.xpose.msra.mxu0 0
    %4531 = vmatprep.subr.bf16.mxu0 0
    %4532 = vmatpush1.bf16.xpose.msra.mxu0 0
    %4533 = vmatprep.subr.bf16.mxu0 0
    %4534 = vmatpush1.bf16.xpose.msra.mxu0 %v4517
    %4535 = vmatprep.subr.bf16.mxu0 0
    %4536 = vmatpush2.bf16.xpose.msra.mxu0 0
    %4537 = vmatprep.subr.bf16.mxu0 0
    %4538 = vmatpush2.bf16.xpose.msra.mxu0 0
    %4539 = vmatprep.subr.bf16.mxu0 0
    %4540 = vmatpush2.bf16.xpose.msra.mxu0 0
    %4541 = vmatprep.subr.bf16.mxu0 0
    %4542 = vmatpush2.bf16.xpose.msra.mxu0 0
    %4543 = vmatprep.subr.bf16.mxu0 0
    %4544 = vmatpush2.bf16.xpose.msra.mxu0 0
    %4545 = vmatprep.subr.bf16.mxu0 0
    %4546 = vmatpush2.bf16.xpose.msra.mxu0 0
    %4547 = vmatprep.subr.bf16.mxu0 0
    %4548 = vmatpush2.bf16.xpose.msra.mxu0 0
    %4549 = vmatprep.subr.bf16.mxu0 0
    %4550 = vmatpush2.bf16.xpose.msra.mxu0 0
    %4551 = vmatprep.mubr.bf16.mxu0 0
    %4552 = vmatmul.mubr.bf16.gmra.mxu0 %v4514
    %v4553 = vpop.f32.mrf.mxu0
    %v4554 = vadd.f32 0.0, %v4553
    %v4555 = vpop.f32.mrf.mxu0
    %v4556 = vpop.f32.mrf.mxu0
    %v4557 = vpop.f32.mrf.mxu0
    %4558 = vdwg.mxu0
    %v4559 = vmul.f32 %v4504, 0.35355338
    %v4560 = vmul.f32 %v4554, 0.35355338
    %v4561 = vadd.f32 %v4559, %v345
    %v4562 = vadd.f32 %v4560, %v346
    %v4563 = vsel %vm607, %v4561, -inf
    %4564 = vmax.xlane.f32.xlu0 %v4563
    %v4565 = vpop.xlane.xlu0 %4564
    %v4566 = vsel %vm607, %v4562, -inf
    %4567 = vmax.xlane.f32.xlu0 %v4566
    %v4568 = vpop.xlane.xlu0 %4567
    %v4569 = vsub.f32 %v4561, %v4565
    %v4570 = vsub.f32 %v4562, %v4568
    %v4571 = vmul.f32 %v4569, 1.442695
    %v4572 = vpow.pop %v4571
    %v4573 = vmul.f32 %v4570, 1.442695
    %v4574 = vpow.pop %v4573
    %v4575 = vsel %vm607, %v4572, 0.0
    %4576 = vadd.xlane.f32.xlu0 %v4575
    %v4577 = vpop.xlane.xlu0 %4576
    %v4578 = vsel %vm607, %v4574, 0.0
    %4579 = vadd.xlane.f32.xlu0 %v4578
    %v4580 = vpop.xlane.xlu0 %4579
    %v4581 = vrcp.pop %v4577
    %v4582 = vrcp.pop %v4580
    %v4583 = vmul.f32 %v4572, %v4581
    %v4584 = vmul.f32 %v4574, %v4582
    %v4585 = vpack.c.bf16 %v4583, %v4583
    %v4586 = vpack.c.bf16 %v4584, %v4584
    %4587 = vrot.lane.b32.xlu0 %v4010, 48
    %v4588 = vpop.permute.xlu0 %4587
    %v4590 = vsel %vm607, %v4585, 0
    %v4593 = vsel %vm4143, %v4588, 0
    %4595 = vmatprep.subr.bf16.mxu0 0
    %4596 = vmatpush1.bf16.msra.mxu0 0
    %4597 = vmatprep.subr.bf16.mxu0 0
    %4598 = vmatpush1.bf16.msra.mxu0 0
    %4599 = vmatprep.subr.bf16.mxu0 0
    %4600 = vmatpush1.bf16.msra.mxu0 0
    %4601 = vmatprep.subr.bf16.mxu0 0
    %4602 = vmatpush1.bf16.msra.mxu0 0
    %4603 = vmatprep.subr.bf16.mxu0 0
    %4604 = vmatpush1.bf16.msra.mxu0 0
    %4605 = vmatprep.subr.bf16.mxu0 0
    %4606 = vmatpush1.bf16.msra.mxu0 0
    %4607 = vmatprep.subr.bf16.mxu0 0
    %4608 = vmatpush1.bf16.msra.mxu0 0
    %4609 = vmatprep.subr.bf16.mxu0 0
    %4610 = vmatpush1.bf16.msra.mxu0 %v4593
    %4611 = vmatprep.subr.bf16.mxu0 0
    %4612 = vmatpush2.bf16.msra.mxu0 0
    %4613 = vmatprep.subr.bf16.mxu0 0
    %4614 = vmatpush2.bf16.msra.mxu0 0
    %4615 = vmatprep.subr.bf16.mxu0 0
    %4616 = vmatpush2.bf16.msra.mxu0 0
    %4617 = vmatprep.subr.bf16.mxu0 0
    %4618 = vmatpush2.bf16.msra.mxu0 0
    %4619 = vmatprep.subr.bf16.mxu0 0
    %4620 = vmatpush2.bf16.msra.mxu0 0
    %4621 = vmatprep.subr.bf16.mxu0 0
    %4622 = vmatpush2.bf16.msra.mxu0 0
    %4623 = vmatprep.subr.bf16.mxu0 0
    %4624 = vmatpush2.bf16.msra.mxu0 0
    %4625 = vmatprep.subr.bf16.mxu0 0
    %4626 = vmatpush2.bf16.msra.mxu0 0
    %4627 = vmatprep.mubr.bf16.mxu0 0
    %4628 = vmatmul.mubr.bf16.gmra.mxu0 %v4590
    %v4629 = vpop.f32.mrf.mxu0
    %v4630 = vadd.f32 0.0, %v4629
    %v4631 = vpop.f32.mrf.mxu0
    %v4632 = vpop.f32.mrf.mxu0
    %v4633 = vpop.f32.mrf.mxu0
    %4634 = vdwg.mxu0
    %4635 = vrot.lane.b32.xlu0 %v4011, 48
    %v4636 = vpop.permute.xlu0 %4635
    %v4638 = vsel %vm607, %v4586, 0
    %v4641 = vsel %vm4143, %v4636, 0
    %4643 = vmatprep.subr.bf16.mxu0 0
    %4644 = vmatpush1.bf16.msra.mxu0 0
    %4645 = vmatprep.subr.bf16.mxu0 0
    %4646 = vmatpush1.bf16.msra.mxu0 0
    %4647 = vmatprep.subr.bf16.mxu0 0
    %4648 = vmatpush1.bf16.msra.mxu0 0
    %4649 = vmatprep.subr.bf16.mxu0 0
    %4650 = vmatpush1.bf16.msra.mxu0 0
    %4651 = vmatprep.subr.bf16.mxu0 0
    %4652 = vmatpush1.bf16.msra.mxu0 0
    %4653 = vmatprep.subr.bf16.mxu0 0
    %4654 = vmatpush1.bf16.msra.mxu0 0
    %4655 = vmatprep.subr.bf16.mxu0 0
    %4656 = vmatpush1.bf16.msra.mxu0 0
    %4657 = vmatprep.subr.bf16.mxu0 0
    %4658 = vmatpush1.bf16.msra.mxu0 %v4641
    %4659 = vmatprep.subr.bf16.mxu0 0
    %4660 = vmatpush2.bf16.msra.mxu0 0
    %4661 = vmatprep.subr.bf16.mxu0 0
    %4662 = vmatpush2.bf16.msra.mxu0 0
    %4663 = vmatprep.subr.bf16.mxu0 0
    %4664 = vmatpush2.bf16.msra.mxu0 0
    %4665 = vmatprep.subr.bf16.mxu0 0
    %4666 = vmatpush2.bf16.msra.mxu0 0
    %4667 = vmatprep.subr.bf16.mxu0 0
    %4668 = vmatpush2.bf16.msra.mxu0 0
    %4669 = vmatprep.subr.bf16.mxu0 0
    %4670 = vmatpush2.bf16.msra.mxu0 0
    %4671 = vmatprep.subr.bf16.mxu0 0
    %4672 = vmatpush2.bf16.msra.mxu0 0
    %4673 = vmatprep.subr.bf16.mxu0 0
    %4674 = vmatpush2.bf16.msra.mxu0 0
    %4675 = vmatprep.mubr.bf16.mxu0 0
    %4676 = vmatmul.mubr.bf16.gmra.mxu0 %v4638
    %v4677 = vpop.f32.mrf.mxu0
    %v4678 = vadd.f32 0.0, %v4677
    %v4679 = vpop.f32.mrf.mxu0
    %v4680 = vpop.f32.mrf.mxu0
    %v4681 = vpop.f32.mrf.mxu0
    %4682 = vdwg.mxu0
    %4683 = vrot.lane.b32.xlu0 %v4010, 104
    %v4684 = vpop.permute.xlu0 %4683
    %4685 = vrot.lane.b32.xlu0 %v4010, 72
    %v4686 = vpop.permute.xlu0 %4685
    %v4688 = vsel %vm607, %v4684, 0
    %v4691 = vsel %vm607, %v4686, 0
    %4693 = vmatprep.subr.bf16.mxu0 0
    %4694 = vmatpush1.bf16.xpose.msra.mxu0 0
    %4695 = vmatprep.subr.bf16.mxu0 0
    %4696 = vmatpush1.bf16.xpose.msra.mxu0 0
    %4697 = vmatprep.subr.bf16.mxu0 0
    %4698 = vmatpush1.bf16.xpose.msra.mxu0 0
    %4699 = vmatprep.subr.bf16.mxu0 0
    %4700 = vmatpush1.bf16.xpose.msra.mxu0 0
    %4701 = vmatprep.subr.bf16.mxu0 0
    %4702 = vmatpush1.bf16.xpose.msra.mxu0 0
    %4703 = vmatprep.subr.bf16.mxu0 0
    %4704 = vmatpush1.bf16.xpose.msra.mxu0 0
    %4705 = vmatprep.subr.bf16.mxu0 0
    %4706 = vmatpush1.bf16.xpose.msra.mxu0 0
    %4707 = vmatprep.subr.bf16.mxu0 0
    %4708 = vmatpush1.bf16.xpose.msra.mxu0 %v4691
    %4709 = vmatprep.subr.bf16.mxu0 0
    %4710 = vmatpush2.bf16.xpose.msra.mxu0 0
    %4711 = vmatprep.subr.bf16.mxu0 0
    %4712 = vmatpush2.bf16.xpose.msra.mxu0 0
    %4713 = vmatprep.subr.bf16.mxu0 0
    %4714 = vmatpush2.bf16.xpose.msra.mxu0 0
    %4715 = vmatprep.subr.bf16.mxu0 0
    %4716 = vmatpush2.bf16.xpose.msra.mxu0 0
    %4717 = vmatprep.subr.bf16.mxu0 0
    %4718 = vmatpush2.bf16.xpose.msra.mxu0 0
    %4719 = vmatprep.subr.bf16.mxu0 0
    %4720 = vmatpush2.bf16.xpose.msra.mxu0 0
    %4721 = vmatprep.subr.bf16.mxu0 0
    %4722 = vmatpush2.bf16.xpose.msra.mxu0 0
    %4723 = vmatprep.subr.bf16.mxu0 0
    %4724 = vmatpush2.bf16.xpose.msra.mxu0 0
    %4725 = vmatprep.mubr.bf16.mxu0 0
    %4726 = vmatmul.mubr.bf16.gmra.mxu0 %v4688
    %v4727 = vpop.f32.mrf.mxu0
    %v4728 = vadd.f32 0.0, %v4727
    %v4729 = vpop.f32.mrf.mxu0
    %v4730 = vpop.f32.mrf.mxu0
    %v4731 = vpop.f32.mrf.mxu0
    %4732 = vdwg.mxu0
    %4733 = vrot.lane.b32.xlu0 %v4011, 104
    %v4734 = vpop.permute.xlu0 %4733
    %4735 = vrot.lane.b32.xlu0 %v4011, 72
    %v4736 = vpop.permute.xlu0 %4735
    %v4738 = vsel %vm607, %v4734, 0
    %v4741 = vsel %vm607, %v4736, 0
    %4743 = vmatprep.subr.bf16.mxu0 0
    %4744 = vmatpush1.bf16.xpose.msra.mxu0 0
    %4745 = vmatprep.subr.bf16.mxu0 0
    %4746 = vmatpush1.bf16.xpose.msra.mxu0 0
    %4747 = vmatprep.subr.bf16.mxu0 0
    %4748 = vmatpush1.bf16.xpose.msra.mxu0 0
    %4749 = vmatprep.subr.bf16.mxu0 0
    %4750 = vmatpush1.bf16.xpose.msra.mxu0 0
    %4751 = vmatprep.subr.bf16.mxu0 0
    %4752 = vmatpush1.bf16.xpose.msra.mxu0 0
    %4753 = vmatprep.subr.bf16.mxu0 0
    %4754 = vmatpush1.bf16.xpose.msra.mxu0 0
    %4755 = vmatprep.subr.bf16.mxu0 0
    %4756 = vmatpush1.bf16.xpose.msra.mxu0 0
    %4757 = vmatprep.subr.bf16.mxu0 0
    %4758 = vmatpush1.bf16.xpose.msra.mxu0 %v4741
    %4759 = vmatprep.subr.bf16.mxu0 0
    %4760 = vmatpush2.bf16.xpose.msra.mxu0 0
    %4761 = vmatprep.subr.bf16.mxu0 0
    %4762 = vmatpush2.bf16.xpose.msra.mxu0 0
    %4763 = vmatprep.subr.bf16.mxu0 0
    %4764 = vmatpush2.bf16.xpose.msra.mxu0 0
    %4765 = vmatprep.subr.bf16.mxu0 0
    %4766 = vmatpush2.bf16.xpose.msra.mxu0 0
    %4767 = vmatprep.subr.bf16.mxu0 0
    %4768 = vmatpush2.bf16.xpose.msra.mxu0 0
    %4769 = vmatprep.subr.bf16.mxu0 0
    %4770 = vmatpush2.bf16.xpose.msra.mxu0 0
    %4771 = vmatprep.subr.bf16.mxu0 0
    %4772 = vmatpush2.bf16.xpose.msra.mxu0 0
    %4773 = vmatprep.subr.bf16.mxu0 0
    %4774 = vmatpush2.bf16.xpose.msra.mxu0 0
    %4775 = vmatprep.mubr.bf16.mxu0 0
    %4776 = vmatmul.mubr.bf16.gmra.mxu0 %v4738
    %v4777 = vpop.f32.mrf.mxu0
    %v4778 = vadd.f32 0.0, %v4777
    %v4779 = vpop.f32.mrf.mxu0
    %v4780 = vpop.f32.mrf.mxu0
    %v4781 = vpop.f32.mrf.mxu0
    %4782 = vdwg.mxu0
    %v4783 = vmul.f32 %v4728, 0.35355338
    %v4784 = vmul.f32 %v4778, 0.35355338
    %v4785 = vadd.f32 %v4783, %v345
    %v4786 = vadd.f32 %v4784, %v346
    %v4787 = vsel %vm607, %v4785, -inf
    %4788 = vmax.xlane.f32.xlu0 %v4787
    %v4789 = vpop.xlane.xlu0 %4788
    %v4790 = vsel %vm607, %v4786, -inf
    %4791 = vmax.xlane.f32.xlu0 %v4790
    %v4792 = vpop.xlane.xlu0 %4791
    %v4793 = vsub.f32 %v4785, %v4789
    %v4794 = vsub.f32 %v4786, %v4792
    %v4795 = vmul.f32 %v4793, 1.442695
    %v4796 = vpow.pop %v4795
    %v4797 = vmul.f32 %v4794, 1.442695
    %v4798 = vpow.pop %v4797
    %v4799 = vsel %vm607, %v4796, 0.0
    %4800 = vadd.xlane.f32.xlu0 %v4799
    %v4801 = vpop.xlane.xlu0 %4800
    %v4802 = vsel %vm607, %v4798, 0.0
    %4803 = vadd.xlane.f32.xlu0 %v4802
    %v4804 = vpop.xlane.xlu0 %4803
    %v4805 = vrcp.pop %v4801
    %v4806 = vrcp.pop %v4804
    %v4807 = vmul.f32 %v4796, %v4805
    %v4808 = vmul.f32 %v4798, %v4806
    %v4809 = vpack.c.bf16 %v4807, %v4807
    %v4810 = vpack.c.bf16 %v4808, %v4808
    %4811 = vrot.lane.b32.xlu0 %v4010, 40
    %v4812 = vpop.permute.xlu0 %4811
    %v4814 = vsel %vm607, %v4809, 0
    %v4817 = vsel %vm4143, %v4812, 0
    %4819 = vmatprep.subr.bf16.mxu0 0
    %4820 = vmatpush1.bf16.msra.mxu0 0
    %4821 = vmatprep.subr.bf16.mxu0 0
    %4822 = vmatpush1.bf16.msra.mxu0 0
    %4823 = vmatprep.subr.bf16.mxu0 0
    %4824 = vmatpush1.bf16.msra.mxu0 0
    %4825 = vmatprep.subr.bf16.mxu0 0
    %4826 = vmatpush1.bf16.msra.mxu0 0
    %4827 = vmatprep.subr.bf16.mxu0 0
    %4828 = vmatpush1.bf16.msra.mxu0 0
    %4829 = vmatprep.subr.bf16.mxu0 0
    %4830 = vmatpush1.bf16.msra.mxu0 0
    %4831 = vmatprep.subr.bf16.mxu0 0
    %4832 = vmatpush1.bf16.msra.mxu0 0
    %4833 = vmatprep.subr.bf16.mxu0 0
    %4834 = vmatpush1.bf16.msra.mxu0 %v4817
    %4835 = vmatprep.subr.bf16.mxu0 0
    %4836 = vmatpush2.bf16.msra.mxu0 0
    %4837 = vmatprep.subr.bf16.mxu0 0
    %4838 = vmatpush2.bf16.msra.mxu0 0
    %4839 = vmatprep.subr.bf16.mxu0 0
    %4840 = vmatpush2.bf16.msra.mxu0 0
    %4841 = vmatprep.subr.bf16.mxu0 0
    %4842 = vmatpush2.bf16.msra.mxu0 0
    %4843 = vmatprep.subr.bf16.mxu0 0
    %4844 = vmatpush2.bf16.msra.mxu0 0
    %4845 = vmatprep.subr.bf16.mxu0 0
    %4846 = vmatpush2.bf16.msra.mxu0 0
    %4847 = vmatprep.subr.bf16.mxu0 0
    %4848 = vmatpush2.bf16.msra.mxu0 0
    %4849 = vmatprep.subr.bf16.mxu0 0
    %4850 = vmatpush2.bf16.msra.mxu0 0
    %4851 = vmatprep.mubr.bf16.mxu0 0
    %4852 = vmatmul.mubr.bf16.gmra.mxu0 %v4814
    %v4853 = vpop.f32.mrf.mxu0
    %v4854 = vadd.f32 0.0, %v4853
    %v4855 = vpop.f32.mrf.mxu0
    %v4856 = vpop.f32.mrf.mxu0
    %v4857 = vpop.f32.mrf.mxu0
    %4858 = vdwg.mxu0
    %4859 = vrot.lane.b32.xlu0 %v4011, 40
    %v4860 = vpop.permute.xlu0 %4859
    %v4862 = vsel %vm607, %v4810, 0
    %v4865 = vsel %vm4143, %v4860, 0
    %4867 = vmatprep.subr.bf16.mxu0 0
    %4868 = vmatpush1.bf16.msra.mxu0 0
    %4869 = vmatprep.subr.bf16.mxu0 0
    %4870 = vmatpush1.bf16.msra.mxu0 0
    %4871 = vmatprep.subr.bf16.mxu0 0
    %4872 = vmatpush1.bf16.msra.mxu0 0
    %4873 = vmatprep.subr.bf16.mxu0 0
    %4874 = vmatpush1.bf16.msra.mxu0 0
    %4875 = vmatprep.subr.bf16.mxu0 0
    %4876 = vmatpush1.bf16.msra.mxu0 0
    %4877 = vmatprep.subr.bf16.mxu0 0
    %4878 = vmatpush1.bf16.msra.mxu0 0
    %4879 = vmatprep.subr.bf16.mxu0 0
    %4880 = vmatpush1.bf16.msra.mxu0 0
    %4881 = vmatprep.subr.bf16.mxu0 0
    %4882 = vmatpush1.bf16.msra.mxu0 %v4865
    %4883 = vmatprep.subr.bf16.mxu0 0
    %4884 = vmatpush2.bf16.msra.mxu0 0
    %4885 = vmatprep.subr.bf16.mxu0 0
    %4886 = vmatpush2.bf16.msra.mxu0 0
    %4887 = vmatprep.subr.bf16.mxu0 0
    %4888 = vmatpush2.bf16.msra.mxu0 0
    %4889 = vmatprep.subr.bf16.mxu0 0
    %4890 = vmatpush2.bf16.msra.mxu0 0
    %4891 = vmatprep.subr.bf16.mxu0 0
    %4892 = vmatpush2.bf16.msra.mxu0 0
    %4893 = vmatprep.subr.bf16.mxu0 0
    %4894 = vmatpush2.bf16.msra.mxu0 0
    %4895 = vmatprep.subr.bf16.mxu0 0
    %4896 = vmatpush2.bf16.msra.mxu0 0
    %4897 = vmatprep.subr.bf16.mxu0 0
    %4898 = vmatpush2.bf16.msra.mxu0 0
    %4899 = vmatprep.mubr.bf16.mxu0 0
    %4900 = vmatmul.mubr.bf16.gmra.mxu0 %v4862
    %v4901 = vpop.f32.mrf.mxu0
    %v4902 = vadd.f32 0.0, %v4901
    %v4903 = vpop.f32.mrf.mxu0
    %v4904 = vpop.f32.mrf.mxu0
    %v4905 = vpop.f32.mrf.mxu0
    %4906 = vdwg.mxu0
    %4909 = vrot.lane.b32.xlu0 %v4406, 8
    %v4910 = vpop.permute.xlu0 %4909
    %4911 = vrot.lane.b32.xlu0 %v4454, 8
    %v4912 = vpop.permute.xlu0 %4911
    %4917 = vrot.lane.b32.xlu0 %v4630, 16
    %v4918 = vpop.permute.xlu0 %4917
    %4919 = vrot.lane.b32.xlu0 %v4678, 16
    %v4920 = vpop.permute.xlu0 %4919
    %4925 = vrot.lane.b32.xlu0 %v4854, 24
    %v4926 = vpop.permute.xlu0 %4925
    %4927 = vrot.lane.b32.xlu0 %v4902, 24
    %v4928 = vpop.permute.xlu0 %4927
    %v4931 = vsel %vm607, %v4182, %v4910
    %v4932 = vsel %vm607, %v4230, %v4912
    %v4933 = vsel %vm725, %v4931, %v4918
    %v4934 = vsel %vm725, %v4932, %v4920
    %v4935 = vsel %vm1672, %v4933, %v4926
    %v4936 = vsel %vm1672, %v4934, %v4928
    %v4937 = vld [vmem:[%s51] sm:$0xf]
    %v4938 = vld [vmem:[%s51 + $0x4] sm:$0xf]
    %v4939 = vld [vmem:[%s51 + $0x8] sm:$0xf]
    %v4940 = vld [vmem:[%s51 + $0xc] sm:$0xf]
    %v4941 = vld [vmem:[%s49] sm:$0x1]
    %v4942 = vpack.c.bf16 %v4936, %v4935
    %v4944 = vlaneseq
    %v4945 = vshrl.u32 %v4944, 7
    %v4946 = vsub.s32 0, %v4945
    %v4947 = vrot.slane %v4941, %v4946
    %v4953 = vunpack.c.l.b16 %v4937
    %v4954 = vunpack.c.l.b16 %v4938
    %v4955 = vunpack.c.l.b16 %v4939
    %v4956 = vunpack.c.l.b16 %v4940
    %v4957 = vpack.c.b16 %v4954, %v4953
    %v4958 = vpack.c.b16 %v4956, %v4955
    %v4962 = vsel %vm546, %v4942, 0
    %4964 = vmatprep.subr.bf16.mxu0 0
    %4965 = vmatpush1.bf16.msra.mxu0 0
    %4966 = vmatprep.subr.bf16.mxu0 0
    %4967 = vmatpush1.bf16.msra.mxu0 0
    %4968 = vmatprep.subr.bf16.mxu0 0
    %4969 = vmatpush1.bf16.msra.mxu0 0
    %4970 = vmatprep.subr.bf16.mxu0 0
    %4971 = vmatpush1.bf16.msra.mxu0 0
    %4972 = vmatprep.subr.bf16.mxu0 0
    %4973 = vmatpush1.bf16.msra.mxu0 0
    %4974 = vmatprep.subr.bf16.mxu0 0
    %4975 = vmatpush1.bf16.msra.mxu0 0
    %4976 = vmatprep.subr.bf16.mxu0 0
    %4977 = vmatpush1.bf16.msra.mxu0 %v4958
    %4978 = vmatprep.subr.bf16.mxu0 0
    %4979 = vmatpush1.bf16.msra.mxu0 %v4957
    %4980 = vmatprep.subr.bf16.mxu0 0
    %4981 = vmatpush2.bf16.msra.mxu0 0
    %4982 = vmatprep.subr.bf16.mxu0 0
    %4983 = vmatpush2.bf16.msra.mxu0 0
    %4984 = vmatprep.subr.bf16.mxu0 0
    %4985 = vmatpush2.bf16.msra.mxu0 0
    %4986 = vmatprep.subr.bf16.mxu0 0
    %4987 = vmatpush2.bf16.msra.mxu0 0
    %4988 = vmatprep.subr.bf16.mxu0 0
    %4989 = vmatpush2.bf16.msra.mxu0 0
    %4990 = vmatprep.subr.bf16.mxu0 0
    %4991 = vmatpush2.bf16.msra.mxu0 0
    %4992 = vmatprep.subr.bf16.mxu0 0
    %4993 = vmatpush2.bf16.msra.mxu0 0
    %4994 = vmatprep.subr.bf16.mxu0 0
    %4995 = vmatpush2.bf16.msra.mxu0 0
    %4996 = vmatprep.mubr.bf16.mxu0 0
    %4997 = vmatmul.mubr.bf16.gmra.mxu0 %v4962
    %v4998 = vpop.f32.mrf.mxu0
    %v4999 = vadd.f32 %v4947, %v4998
    %v5000 = vpop.f32.mrf.mxu0
    %v5001 = vpop.f32.mrf.mxu0
    %v5002 = vadd.f32 %v4947, %v5001
    %v5003 = vpop.f32.mrf.mxu0
    %5004 = vdwg.mxu0
    %v5005 = vadd.f32 %v3860, %v4999
    %v5006 = vadd.f32 %v3861, %v5002
    %v5007 = vld [vmem:[%s39] sm:$0x1]
    %v5008 = vld [vmem:[%s37] sm:$0x1]
    %v5009 = vsel %vm546, %v5005, 0.0
    %5010 = vadd.xlane.f32.xlu0 %v5009
    %v5011 = vpop.xlane.xlu0 %5010
    %v5012 = vsel %vm546, %v5006, 0.0
    %5013 = vadd.xlane.f32.xlu0 %v5012
    %v5014 = vpop.xlane.xlu0 %5013
    %v5015 = vmul.f32 %v5011, %v1775
    %v5016 = vmul.f32 %v5014, %v1775
    %v5017 = vsub.f32 %v5005, %v5015
    %v5018 = vsub.f32 %v5006, %v5016
    %v5019 = vmul.f32 %v5017, %v5017
    %v5020 = vmul.f32 %v5018, %v5018
    %v5021 = vsel %vm546, %v5019, 0.0
    %5022 = vadd.xlane.f32.xlu0 %v5021
    %v5023 = vpop.xlane.xlu0 %5022
    %v5024 = vsel %vm546, %v5020, 0.0
    %5025 = vadd.xlane.f32.xlu0 %v5024
    %v5026 = vpop.xlane.xlu0 %5025
    %v5027 = vmul.f32 %v5023, %v1775
    %v5028 = vmul.f32 %v5026, %v1775
    %v5029 = vadd.f32 %v5027, 1e-05
    %v5030 = vadd.f32 %v5028, 1e-05
    %v5031 = vrsqrt.pop %v5029
    %v5032 = vrsqrt.pop %v5030
    %v5033 = vmul.f32 %v5017, %v5031
    %v5034 = vmul.f32 %v5018, %v5032
    %v5036 = vlaneseq
    %v5037 = vshrl.u32 %v5036, 7
    %v5038 = vsub.s32 0, %v5037
    %v5039 = vrot.slane %v5007, %v5038
    %v5041 = vmul.f32 %v5033, %v5039
    %v5042 = vmul.f32 %v5034, %v5039
    %v5044 = vlaneseq
    %v5045 = vshrl.u32 %v5044, 7
    %v5046 = vsub.s32 0, %v5045
    %v5047 = vrot.slane %v5008, %v5046
    %v5049 = vadd.f32 %v5041, %v5047
    %v5050 = vadd.f32 %v5042, %v5047
    %v5051 = vld [vmem:[%s27] sm:$0xf]
    %v5052 = vld [vmem:[%s27 + $0x4] sm:$0xf]
    %v5053 = vld [vmem:[%s27 + $0x8] sm:$0xf]
    %v5054 = vld [vmem:[%s27 + $0xc] sm:$0xf]
    %v5055 = vld [vmem:[%s25] sm:$0x1]
    %v5056 = vpack.c.bf16 %v5050, %v5049
    %v5058 = vlaneseq
    %v5059 = vshrl.u32 %v5058, 7
    %v5060 = vsub.s32 0, %v5059
    %v5061 = vrot.slane %v5055, %v5060
    %v5067 = vunpack.c.l.b16 %v5051
    %v5068 = vunpack.c.l.b16 %v5052
    %v5069 = vunpack.c.l.b16 %v5053
    %v5070 = vunpack.c.l.b16 %v5054
    %v5071 = vpack.c.b16 %v5068, %v5067
    %v5072 = vpack.c.b16 %v5070, %v5069
    %v5076 = vsel %vm546, %v5056, 0
    %5078 = vmatprep.subr.bf16.mxu0 0
    %5079 = vmatpush1.bf16.msra.mxu0 0
    %5080 = vmatprep.subr.bf16.mxu0 0
    %5081 = vmatpush1.bf16.msra.mxu0 0
    %5082 = vmatprep.subr.bf16.mxu0 0
    %5083 = vmatpush1.bf16.msra.mxu0 0
    %5084 = vmatprep.subr.bf16.mxu0 0
    %5085 = vmatpush1.bf16.msra.mxu0 0
    %5086 = vmatprep.subr.bf16.mxu0 0
    %5087 = vmatpush1.bf16.msra.mxu0 0
    %5088 = vmatprep.subr.bf16.mxu0 0
    %5089 = vmatpush1.bf16.msra.mxu0 0
    %5090 = vmatprep.subr.bf16.mxu0 0
    %5091 = vmatpush1.bf16.msra.mxu0 %v5072
    %5092 = vmatprep.subr.bf16.mxu0 0
    %5093 = vmatpush1.bf16.msra.mxu0 %v5071
    %5094 = vmatprep.subr.bf16.mxu0 0
    %5095 = vmatpush2.bf16.msra.mxu0 0
    %5096 = vmatprep.subr.bf16.mxu0 0
    %5097 = vmatpush2.bf16.msra.mxu0 0
    %5098 = vmatprep.subr.bf16.mxu0 0
    %5099 = vmatpush2.bf16.msra.mxu0 0
    %5100 = vmatprep.subr.bf16.mxu0 0
    %5101 = vmatpush2.bf16.msra.mxu0 0
    %5102 = vmatprep.subr.bf16.mxu0 0
    %5103 = vmatpush2.bf16.msra.mxu0 0
    %5104 = vmatprep.subr.bf16.mxu0 0
    %5105 = vmatpush2.bf16.msra.mxu0 0
    %5106 = vmatprep.subr.bf16.mxu0 0
    %5107 = vmatpush2.bf16.msra.mxu0 0
    %5108 = vmatprep.subr.bf16.mxu0 0
    %5109 = vmatpush2.bf16.msra.mxu0 0
    %5110 = vmatprep.mubr.bf16.mxu0 0
    %5111 = vmatmul.mubr.bf16.gmra.mxu0 %v5076
    %v5112 = vpop.f32.mrf.mxu0
    %v5113 = vadd.f32 %v5061, %v5112
    %v5114 = vpop.f32.mrf.mxu0
    %v5115 = vpop.f32.mrf.mxu0
    %v5116 = vadd.f32 %v5061, %v5115
    %v5117 = vpop.f32.mrf.mxu0
    %5118 = vdwg.mxu0
    %v5119 = vpack.c.bf16 %v5113, %v5113
    %v5120 = vpack.c.bf16 %v5116, %v5116
    %v5121 = vpack.c.bf16 %v3931, %v3928
    %v5122 = vpack.c.bf16 %v3939, %v3936
    %v5124 = vsel %vm607, %v5119, 0
    %v5127 = vsel %vm607, %v5121, 0
    %5129 = vmatprep.subr.bf16.mxu0 0
    %5130 = vmatpush1.bf16.xpose.msra.mxu0 0
    %5131 = vmatprep.subr.bf16.mxu0 0
    %5132 = vmatpush1.bf16.xpose.msra.mxu0 0
    %5133 = vmatprep.subr.bf16.mxu0 0
    %5134 = vmatpush1.bf16.xpose.msra.mxu0 0
    %5135 = vmatprep.subr.bf16.mxu0 0
    %5136 = vmatpush1.bf16.xpose.msra.mxu0 0
    %5137 = vmatprep.subr.bf16.mxu0 0
    %5138 = vmatpush1.bf16.xpose.msra.mxu0 0
    %5139 = vmatprep.subr.bf16.mxu0 0
    %5140 = vmatpush1.bf16.xpose.msra.mxu0 0
    %5141 = vmatprep.subr.bf16.mxu0 0
    %5142 = vmatpush1.bf16.xpose.msra.mxu0 0
    %5143 = vmatprep.subr.bf16.mxu0 0
    %5144 = vmatpush1.bf16.xpose.msra.mxu0 %v5127
    %5145 = vmatprep.subr.bf16.mxu0 0
    %5146 = vmatpush2.bf16.xpose.msra.mxu0 0
    %5147 = vmatprep.subr.bf16.mxu0 0
    %5148 = vmatpush2.bf16.xpose.msra.mxu0 0
    %5149 = vmatprep.subr.bf16.mxu0 0
    %5150 = vmatpush2.bf16.xpose.msra.mxu0 0
    %5151 = vmatprep.subr.bf16.mxu0 0
    %5152 = vmatpush2.bf16.xpose.msra.mxu0 0
    %5153 = vmatprep.subr.bf16.mxu0 0
    %5154 = vmatpush2.bf16.xpose.msra.mxu0 0
    %5155 = vmatprep.subr.bf16.mxu0 0
    %5156 = vmatpush2.bf16.xpose.msra.mxu0 0
    %5157 = vmatprep.subr.bf16.mxu0 0
    %5158 = vmatpush2.bf16.xpose.msra.mxu0 0
    %5159 = vmatprep.subr.bf16.mxu0 0
    %5160 = vmatpush2.bf16.xpose.msra.mxu0 0
    %5161 = vmatprep.mubr.bf16.mxu0 0
    %5162 = vmatmul.mubr.bf16.gmra.mxu0 %v5124
    %v5163 = vpop.f32.mrf.mxu0
    %v5164 = vadd.f32 0.0, %v5163
    %v5165 = vpop.f32.mrf.mxu0
    %v5166 = vpop.f32.mrf.mxu0
    %v5167 = vpop.f32.mrf.mxu0
    %5168 = vdwg.mxu0
    %v5170 = vsel %vm607, %v5120, 0
    %v5173 = vsel %vm607, %v5122, 0
    %5175 = vmatprep.subr.bf16.mxu0 0
    %5176 = vmatpush1.bf16.xpose.msra.mxu0 0
    %5177 = vmatprep.subr.bf16.mxu0 0
    %5178 = vmatpush1.bf16.xpose.msra.mxu0 0
    %5179 = vmatprep.subr.bf16.mxu0 0
    %5180 = vmatpush1.bf16.xpose.msra.mxu0 0
    %5181 = vmatprep.subr.bf16.mxu0 0
    %5182 = vmatpush1.bf16.xpose.msra.mxu0 0
    %5183 = vmatprep.subr.bf16.mxu0 0
    %5184 = vmatpush1.bf16.xpose.msra.mxu0 0
    %5185 = vmatprep.subr.bf16.mxu0 0
    %5186 = vmatpush1.bf16.xpose.msra.mxu0 0
    %5187 = vmatprep.subr.bf16.mxu0 0
    %5188 = vmatpush1.bf16.xpose.msra.mxu0 0
    %5189 = vmatprep.subr.bf16.mxu0 0
    %5190 = vmatpush1.bf16.xpose.msra.mxu0 %v5173
    %5191 = vmatprep.subr.bf16.mxu0 0
    %5192 = vmatpush2.bf16.xpose.msra.mxu0 0
    %5193 = vmatprep.subr.bf16.mxu0 0
    %5194 = vmatpush2.bf16.xpose.msra.mxu0 0
    %5195 = vmatprep.subr.bf16.mxu0 0
    %5196 = vmatpush2.bf16.xpose.msra.mxu0 0
    %5197 = vmatprep.subr.bf16.mxu0 0
    %5198 = vmatpush2.bf16.xpose.msra.mxu0 0
    %5199 = vmatprep.subr.bf16.mxu0 0
    %5200 = vmatpush2.bf16.xpose.msra.mxu0 0
    %5201 = vmatprep.subr.bf16.mxu0 0
    %5202 = vmatpush2.bf16.xpose.msra.mxu0 0
    %5203 = vmatprep.subr.bf16.mxu0 0
    %5204 = vmatpush2.bf16.xpose.msra.mxu0 0
    %5205 = vmatprep.subr.bf16.mxu0 0
    %5206 = vmatpush2.bf16.xpose.msra.mxu0 0
    %5207 = vmatprep.mubr.bf16.mxu0 0
    %5208 = vmatmul.mubr.bf16.gmra.mxu0 %v5170
    %v5209 = vpop.f32.mrf.mxu0
    %v5210 = vadd.f32 0.0, %v5209
    %v5211 = vpop.f32.mrf.mxu0
    %v5212 = vpop.f32.mrf.mxu0
    %v5213 = vpop.f32.mrf.mxu0
    %5214 = vdwg.mxu0
    %v5215 = vmul.f32 %v5164, 0.35355338
    %v5216 = vmul.f32 %v5210, 0.35355338
    %v5217 = vadd.f32 %v5215, %v714
    %v5218 = vadd.f32 %v5216, %v718
    %v5219 = vsel %vm725, %v5217, -inf
    %5220 = vmax.xlane.f32.xlu0 %v5219
    %v5221 = vpop.xlane.xlu0 %5220
    %v5222 = vsel %vm725, %v5218, -inf
    %5223 = vmax.xlane.f32.xlu0 %v5222
    %v5224 = vpop.xlane.xlu0 %5223
    %v5225 = vsub.f32 %v5217, %v5221
    %v5226 = vsub.f32 %v5218, %v5224
    %v5227 = vmul.f32 %v5225, 1.442695
    %v5228 = vpow.pop %v5227
    %v5229 = vmul.f32 %v5226, 1.442695
    %v5230 = vpow.pop %v5229
    %v5231 = vsel %vm725, %v5228, 0.0
    %5232 = vadd.xlane.f32.xlu0 %v5231
    %v5233 = vpop.xlane.xlu0 %5232
    %v5234 = vsel %vm725, %v5230, 0.0
    %5235 = vadd.xlane.f32.xlu0 %v5234
    %v5236 = vpop.xlane.xlu0 %5235
    %v5237 = vrcp.pop %v5233
    %v5238 = vrcp.pop %v5236
    %v5239 = vmul.f32 %v5228, %v5237
    %v5240 = vmul.f32 %v5230, %v5238
    %v5241 = vpack.c.bf16 %v5239, %v5239
    %v5242 = vpack.c.bf16 %v5240, %v5240
    %5244 = vrot.lane.b32.xlu0 %v5121, 96
    %v5245 = vpop.permute.xlu0 %5244
    %v5248 = vsel %vm725, %v5241, 0
    %5250 = vmatprep.subr.bf16.mxu0 0
    %5251 = vmatpush1.bf16.msra.mxu0 0
    %5252 = vmatprep.subr.bf16.mxu0 0
    %5253 = vmatpush1.bf16.msra.mxu0 0
    %5254 = vmatprep.subr.bf16.mxu0 0
    %5255 = vmatpush1.bf16.msra.mxu0 0
    %5256 = vmatprep.subr.bf16.mxu0 0
    %5257 = vmatpush1.bf16.msra.mxu0 0
    %5258 = vmatprep.subr.bf16.mxu0 0
    %5259 = vmatpush1.bf16.msra.mxu0 0
    %5260 = vmatprep.subr.bf16.mxu0 0
    %5261 = vmatpush1.bf16.msra.mxu0 0
    %5262 = vmatprep.subr.bf16.mxu0 0
    %5263 = vmatpush1.bf16.msra.mxu0 0
    %5264 = vmatprep.subr.bf16.mxu0 0
    %5265 = vmatpush1.bf16.msra.mxu0 %v5245
    %5266 = vmatprep.subr.bf16.mxu0 0
    %5267 = vmatpush2.bf16.msra.mxu0 0
    %5268 = vmatprep.subr.bf16.mxu0 0
    %5269 = vmatpush2.bf16.msra.mxu0 0
    %5270 = vmatprep.subr.bf16.mxu0 0
    %5271 = vmatpush2.bf16.msra.mxu0 0
    %5272 = vmatprep.subr.bf16.mxu0 0
    %5273 = vmatpush2.bf16.msra.mxu0 0
    %5274 = vmatprep.subr.bf16.mxu0 0
    %5275 = vmatpush2.bf16.msra.mxu0 0
    %5276 = vmatprep.subr.bf16.mxu0 0
    %5277 = vmatpush2.bf16.msra.mxu0 0
    %5278 = vmatprep.subr.bf16.mxu0 0
    %5279 = vmatpush2.bf16.msra.mxu0 0
    %5280 = vmatprep.subr.bf16.mxu0 0
    %5281 = vmatpush2.bf16.msra.mxu0 0
    %5282 = vmatprep.mubr.bf16.mxu0 0
    %5283 = vmatmul.mubr.bf16.gmra.mxu0 %v5248
    %v5284 = vpop.f32.mrf.mxu0
    %v5285 = vadd.f32 0.0, %v5284
    %v5286 = vpop.f32.mrf.mxu0
    %v5287 = vpop.f32.mrf.mxu0
    %v5288 = vpop.f32.mrf.mxu0
    %5289 = vdwg.mxu0
    %5291 = vrot.lane.b32.xlu0 %v5122, 96
    %v5292 = vpop.permute.xlu0 %5291
    %v5295 = vsel %vm725, %v5242, 0
    %5297 = vmatprep.subr.bf16.mxu0 0
    %5298 = vmatpush1.bf16.msra.mxu0 0
    %5299 = vmatprep.subr.bf16.mxu0 0
    %5300 = vmatpush1.bf16.msra.mxu0 0
    %5301 = vmatprep.subr.bf16.mxu0 0
    %5302 = vmatpush1.bf16.msra.mxu0 0
    %5303 = vmatprep.subr.bf16.mxu0 0
    %5304 = vmatpush1.bf16.msra.mxu0 0
    %5305 = vmatprep.subr.bf16.mxu0 0
    %5306 = vmatpush1.bf16.msra.mxu0 0
    %5307 = vmatprep.subr.bf16.mxu0 0
    %5308 = vmatpush1.bf16.msra.mxu0 0
    %5309 = vmatprep.subr.bf16.mxu0 0
    %5310 = vmatpush1.bf16.msra.mxu0 0
    %5311 = vmatprep.subr.bf16.mxu0 0
    %5312 = vmatpush1.bf16.msra.mxu0 %v5292
    %5313 = vmatprep.subr.bf16.mxu0 0
    %5314 = vmatpush2.bf16.msra.mxu0 0
    %5315 = vmatprep.subr.bf16.mxu0 0
    %5316 = vmatpush2.bf16.msra.mxu0 0
    %5317 = vmatprep.subr.bf16.mxu0 0
    %5318 = vmatpush2.bf16.msra.mxu0 0
    %5319 = vmatprep.subr.bf16.mxu0 0
    %5320 = vmatpush2.bf16.msra.mxu0 0
    %5321 = vmatprep.subr.bf16.mxu0 0
    %5322 = vmatpush2.bf16.msra.mxu0 0
    %5323 = vmatprep.subr.bf16.mxu0 0
    %5324 = vmatpush2.bf16.msra.mxu0 0
    %5325 = vmatprep.subr.bf16.mxu0 0
    %5326 = vmatpush2.bf16.msra.mxu0 0
    %5327 = vmatprep.subr.bf16.mxu0 0
    %5328 = vmatpush2.bf16.msra.mxu0 0
    %5329 = vmatprep.mubr.bf16.mxu0 0
    %5330 = vmatmul.mubr.bf16.gmra.mxu0 %v5295
    %v5331 = vpop.f32.mrf.mxu0
    %v5332 = vadd.f32 0.0, %v5331
    %v5333 = vpop.f32.mrf.mxu0
    %v5334 = vpop.f32.mrf.mxu0
    %v5335 = vpop.f32.mrf.mxu0
    %5336 = vdwg.mxu0
    %5338 = vrot.lane.b32.xlu0 %v5119, 120
    %v5339 = vpop.permute.xlu0 %5338
    %5340 = vrot.lane.b32.xlu0 %v5121, 120
    %v5341 = vpop.permute.xlu0 %5340
    %v5343 = vsel %vm607, %v5339, 0
    %v5346 = vsel %vm607, %v5341, 0
    %5348 = vmatprep.subr.bf16.mxu0 0
    %5349 = vmatpush1.bf16.xpose.msra.mxu0 0
    %5350 = vmatprep.subr.bf16.mxu0 0
    %5351 = vmatpush1.bf16.xpose.msra.mxu0 0
    %5352 = vmatprep.subr.bf16.mxu0 0
    %5353 = vmatpush1.bf16.xpose.msra.mxu0 0
    %5354 = vmatprep.subr.bf16.mxu0 0
    %5355 = vmatpush1.bf16.xpose.msra.mxu0 0
    %5356 = vmatprep.subr.bf16.mxu0 0
    %5357 = vmatpush1.bf16.xpose.msra.mxu0 0
    %5358 = vmatprep.subr.bf16.mxu0 0
    %5359 = vmatpush1.bf16.xpose.msra.mxu0 0
    %5360 = vmatprep.subr.bf16.mxu0 0
    %5361 = vmatpush1.bf16.xpose.msra.mxu0 0
    %5362 = vmatprep.subr.bf16.mxu0 0
    %5363 = vmatpush1.bf16.xpose.msra.mxu0 %v5346
    %5364 = vmatprep.subr.bf16.mxu0 0
    %5365 = vmatpush2.bf16.xpose.msra.mxu0 0
    %5366 = vmatprep.subr.bf16.mxu0 0
    %5367 = vmatpush2.bf16.xpose.msra.mxu0 0
    %5368 = vmatprep.subr.bf16.mxu0 0
    %5369 = vmatpush2.bf16.xpose.msra.mxu0 0
    %5370 = vmatprep.subr.bf16.mxu0 0
    %5371 = vmatpush2.bf16.xpose.msra.mxu0 0
    %5372 = vmatprep.subr.bf16.mxu0 0
    %5373 = vmatpush2.bf16.xpose.msra.mxu0 0
    %5374 = vmatprep.subr.bf16.mxu0 0
    %5375 = vmatpush2.bf16.xpose.msra.mxu0 0
    %5376 = vmatprep.subr.bf16.mxu0 0
    %5377 = vmatpush2.bf16.xpose.msra.mxu0 0
    %5378 = vmatprep.subr.bf16.mxu0 0
    %5379 = vmatpush2.bf16.xpose.msra.mxu0 0
    %5380 = vmatprep.mubr.bf16.mxu0 0
    %5381 = vmatmul.mubr.bf16.gmra.mxu0 %v5343
    %v5382 = vpop.f32.mrf.mxu0
    %v5383 = vadd.f32 0.0, %v5382
    %v5384 = vpop.f32.mrf.mxu0
    %v5385 = vpop.f32.mrf.mxu0
    %v5386 = vpop.f32.mrf.mxu0
    %5387 = vdwg.mxu0
    %5389 = vrot.lane.b32.xlu0 %v5120, 120
    %v5390 = vpop.permute.xlu0 %5389
    %5391 = vrot.lane.b32.xlu0 %v5122, 120
    %v5392 = vpop.permute.xlu0 %5391
    %v5394 = vsel %vm607, %v5390, 0
    %v5397 = vsel %vm607, %v5392, 0
    %5399 = vmatprep.subr.bf16.mxu0 0
    %5400 = vmatpush1.bf16.xpose.msra.mxu0 0
    %5401 = vmatprep.subr.bf16.mxu0 0
    %5402 = vmatpush1.bf16.xpose.msra.mxu0 0
    %5403 = vmatprep.subr.bf16.mxu0 0
    %5404 = vmatpush1.bf16.xpose.msra.mxu0 0
    %5405 = vmatprep.subr.bf16.mxu0 0
    %5406 = vmatpush1.bf16.xpose.msra.mxu0 0
    %5407 = vmatprep.subr.bf16.mxu0 0
    %5408 = vmatpush1.bf16.xpose.msra.mxu0 0
    %5409 = vmatprep.subr.bf16.mxu0 0
    %5410 = vmatpush1.bf16.xpose.msra.mxu0 0
    %5411 = vmatprep.subr.bf16.mxu0 0
    %5412 = vmatpush1.bf16.xpose.msra.mxu0 0
    %5413 = vmatprep.subr.bf16.mxu0 0
    %5414 = vmatpush1.bf16.xpose.msra.mxu0 %v5397
    %5415 = vmatprep.subr.bf16.mxu0 0
    %5416 = vmatpush2.bf16.xpose.msra.mxu0 0
    %5417 = vmatprep.subr.bf16.mxu0 0
    %5418 = vmatpush2.bf16.xpose.msra.mxu0 0
    %5419 = vmatprep.subr.bf16.mxu0 0
    %5420 = vmatpush2.bf16.xpose.msra.mxu0 0
    %5421 = vmatprep.subr.bf16.mxu0 0
    %5422 = vmatpush2.bf16.xpose.msra.mxu0 0
    %5423 = vmatprep.subr.bf16.mxu0 0
    %5424 = vmatpush2.bf16.xpose.msra.mxu0 0
    %5425 = vmatprep.subr.bf16.mxu0 0
    %5426 = vmatpush2.bf16.xpose.msra.mxu0 0
    %5427 = vmatprep.subr.bf16.mxu0 0
    %5428 = vmatpush2.bf16.xpose.msra.mxu0 0
    %5429 = vmatprep.subr.bf16.mxu0 0
    %5430 = vmatpush2.bf16.xpose.msra.mxu0 0
    %5431 = vmatprep.mubr.bf16.mxu0 0
    %5432 = vmatmul.mubr.bf16.gmra.mxu0 %v5394
    %v5433 = vpop.f32.mrf.mxu0
    %v5434 = vadd.f32 0.0, %v5433
    %v5435 = vpop.f32.mrf.mxu0
    %v5436 = vpop.f32.mrf.mxu0
    %v5437 = vpop.f32.mrf.mxu0
    %5438 = vdwg.mxu0
    %v5439 = vmul.f32 %v5383, 0.35355338
    %v5440 = vmul.f32 %v5434, 0.35355338
    %v5441 = vadd.f32 %v5439, %v714
    %v5442 = vadd.f32 %v5440, %v718
    %v5443 = vsel %vm725, %v5441, -inf
    %5444 = vmax.xlane.f32.xlu0 %v5443
    %v5445 = vpop.xlane.xlu0 %5444
    %v5446 = vsel %vm725, %v5442, -inf
    %5447 = vmax.xlane.f32.xlu0 %v5446
    %v5448 = vpop.xlane.xlu0 %5447
    %v5449 = vsub.f32 %v5441, %v5445
    %v5450 = vsub.f32 %v5442, %v5448
    %v5451 = vmul.f32 %v5449, 1.442695
    %v5452 = vpow.pop %v5451
    %v5453 = vmul.f32 %v5450, 1.442695
    %v5454 = vpow.pop %v5453
    %v5455 = vsel %vm725, %v5452, 0.0
    %5456 = vadd.xlane.f32.xlu0 %v5455
    %v5457 = vpop.xlane.xlu0 %5456
    %v5458 = vsel %vm725, %v5454, 0.0
    %5459 = vadd.xlane.f32.xlu0 %v5458
    %v5460 = vpop.xlane.xlu0 %5459
    %v5461 = vrcp.pop %v5457
    %v5462 = vrcp.pop %v5460
    %v5463 = vmul.f32 %v5452, %v5461
    %v5464 = vmul.f32 %v5454, %v5462
    %v5465 = vpack.c.bf16 %v5463, %v5463
    %v5466 = vpack.c.bf16 %v5464, %v5464
    %5467 = vrot.lane.b32.xlu0 %v5121, 88
    %v5468 = vpop.permute.xlu0 %5467
    %v5471 = vsel %vm725, %v5465, 0
    %5473 = vmatprep.subr.bf16.mxu0 0
    %5474 = vmatpush1.bf16.msra.mxu0 0
    %5475 = vmatprep.subr.bf16.mxu0 0
    %5476 = vmatpush1.bf16.msra.mxu0 0
    %5477 = vmatprep.subr.bf16.mxu0 0
    %5478 = vmatpush1.bf16.msra.mxu0 0
    %5479 = vmatprep.subr.bf16.mxu0 0
    %5480 = vmatpush1.bf16.msra.mxu0 0
    %5481 = vmatprep.subr.bf16.mxu0 0
    %5482 = vmatpush1.bf16.msra.mxu0 0
    %5483 = vmatprep.subr.bf16.mxu0 0
    %5484 = vmatpush1.bf16.msra.mxu0 0
    %5485 = vmatprep.subr.bf16.mxu0 0
    %5486 = vmatpush1.bf16.msra.mxu0 0
    %5487 = vmatprep.subr.bf16.mxu0 0
    %5488 = vmatpush1.bf16.msra.mxu0 %v5468
    %5489 = vmatprep.subr.bf16.mxu0 0
    %5490 = vmatpush2.bf16.msra.mxu0 0
    %5491 = vmatprep.subr.bf16.mxu0 0
    %5492 = vmatpush2.bf16.msra.mxu0 0
    %5493 = vmatprep.subr.bf16.mxu0 0
    %5494 = vmatpush2.bf16.msra.mxu0 0
    %5495 = vmatprep.subr.bf16.mxu0 0
    %5496 = vmatpush2.bf16.msra.mxu0 0
    %5497 = vmatprep.subr.bf16.mxu0 0
    %5498 = vmatpush2.bf16.msra.mxu0 0
    %5499 = vmatprep.subr.bf16.mxu0 0
    %5500 = vmatpush2.bf16.msra.mxu0 0
    %5501 = vmatprep.subr.bf16.mxu0 0
    %5502 = vmatpush2.bf16.msra.mxu0 0
    %5503 = vmatprep.subr.bf16.mxu0 0
    %5504 = vmatpush2.bf16.msra.mxu0 0
    %5505 = vmatprep.mubr.bf16.mxu0 0
    %5506 = vmatmul.mubr.bf16.gmra.mxu0 %v5471
    %v5507 = vpop.f32.mrf.mxu0
    %v5508 = vadd.f32 0.0, %v5507
    %v5509 = vpop.f32.mrf.mxu0
    %v5510 = vpop.f32.mrf.mxu0
    %v5511 = vpop.f32.mrf.mxu0
    %5512 = vdwg.mxu0
    %5513 = vrot.lane.b32.xlu0 %v5122, 88
    %v5514 = vpop.permute.xlu0 %5513
    %v5517 = vsel %vm725, %v5466, 0
    %5519 = vmatprep.subr.bf16.mxu0 0
    %5520 = vmatpush1.bf16.msra.mxu0 0
    %5521 = vmatprep.subr.bf16.mxu0 0
    %5522 = vmatpush1.bf16.msra.mxu0 0
    %5523 = vmatprep.subr.bf16.mxu0 0
    %5524 = vmatpush1.bf16.msra.mxu0 0
    %5525 = vmatprep.subr.bf16.mxu0 0
    %5526 = vmatpush1.bf16.msra.mxu0 0
    %5527 = vmatprep.subr.bf16.mxu0 0
    %5528 = vmatpush1.bf16.msra.mxu0 0
    %5529 = vmatprep.subr.bf16.mxu0 0
    %5530 = vmatpush1.bf16.msra.mxu0 0
    %5531 = vmatprep.subr.bf16.mxu0 0
    %5532 = vmatpush1.bf16.msra.mxu0 0
    %5533 = vmatprep.subr.bf16.mxu0 0
    %5534 = vmatpush1.bf16.msra.mxu0 %v5514
    %5535 = vmatprep.subr.bf16.mxu0 0
    %5536 = vmatpush2.bf16.msra.mxu0 0
    %5537 = vmatprep.subr.bf16.mxu0 0
    %5538 = vmatpush2.bf16.msra.mxu0 0
    %5539 = vmatprep.subr.bf16.mxu0 0
    %5540 = vmatpush2.bf16.msra.mxu0 0
    %5541 = vmatprep.subr.bf16.mxu0 0
    %5542 = vmatpush2.bf16.msra.mxu0 0
    %5543 = vmatprep.subr.bf16.mxu0 0
    %5544 = vmatpush2.bf16.msra.mxu0 0
    %5545 = vmatprep.subr.bf16.mxu0 0
    %5546 = vmatpush2.bf16.msra.mxu0 0
    %5547 = vmatprep.subr.bf16.mxu0 0
    %5548 = vmatpush2.bf16.msra.mxu0 0
    %5549 = vmatprep.subr.bf16.mxu0 0
    %5550 = vmatpush2.bf16.msra.mxu0 0
    %5551 = vmatprep.mubr.bf16.mxu0 0
    %5552 = vmatmul.mubr.bf16.gmra.mxu0 %v5517
    %v5553 = vpop.f32.mrf.mxu0
    %v5554 = vadd.f32 0.0, %v5553
    %v5555 = vpop.f32.mrf.mxu0
    %v5556 = vpop.f32.mrf.mxu0
    %v5557 = vpop.f32.mrf.mxu0
    %5558 = vdwg.mxu0
    %5559 = vrot.lane.b32.xlu0 %v5119, 112
    %v5560 = vpop.permute.xlu0 %5559
    %5561 = vrot.lane.b32.xlu0 %v5121, 112
    %v5562 = vpop.permute.xlu0 %5561
    %v5564 = vsel %vm607, %v5560, 0
    %v5567 = vsel %vm607, %v5562, 0
    %5569 = vmatprep.subr.bf16.mxu0 0
    %5570 = vmatpush1.bf16.xpose.msra.mxu0 0
    %5571 = vmatprep.subr.bf16.mxu0 0
    %5572 = vmatpush1.bf16.xpose.msra.mxu0 0
    %5573 = vmatprep.subr.bf16.mxu0 0
    %5574 = vmatpush1.bf16.xpose.msra.mxu0 0
    %5575 = vmatprep.subr.bf16.mxu0 0
    %5576 = vmatpush1.bf16.xpose.msra.mxu0 0
    %5577 = vmatprep.subr.bf16.mxu0 0
    %5578 = vmatpush1.bf16.xpose.msra.mxu0 0
    %5579 = vmatprep.subr.bf16.mxu0 0
    %5580 = vmatpush1.bf16.xpose.msra.mxu0 0
    %5581 = vmatprep.subr.bf16.mxu0 0
    %5582 = vmatpush1.bf16.xpose.msra.mxu0 0
    %5583 = vmatprep.subr.bf16.mxu0 0
    %5584 = vmatpush1.bf16.xpose.msra.mxu0 %v5567
    %5585 = vmatprep.subr.bf16.mxu0 0
    %5586 = vmatpush2.bf16.xpose.msra.mxu0 0
    %5587 = vmatprep.subr.bf16.mxu0 0
    %5588 = vmatpush2.bf16.xpose.msra.mxu0 0
    %5589 = vmatprep.subr.bf16.mxu0 0
    %5590 = vmatpush2.bf16.xpose.msra.mxu0 0
    %5591 = vmatprep.subr.bf16.mxu0 0
    %5592 = vmatpush2.bf16.xpose.msra.mxu0 0
    %5593 = vmatprep.subr.bf16.mxu0 0
    %5594 = vmatpush2.bf16.xpose.msra.mxu0 0
    %5595 = vmatprep.subr.bf16.mxu0 0
    %5596 = vmatpush2.bf16.xpose.msra.mxu0 0
    %5597 = vmatprep.subr.bf16.mxu0 0
    %5598 = vmatpush2.bf16.xpose.msra.mxu0 0
    %5599 = vmatprep.subr.bf16.mxu0 0
    %5600 = vmatpush2.bf16.xpose.msra.mxu0 0
    %5601 = vmatprep.mubr.bf16.mxu0 0
    %5602 = vmatmul.mubr.bf16.gmra.mxu0 %v5564
    %v5603 = vpop.f32.mrf.mxu0
    %v5604 = vadd.f32 0.0, %v5603
    %v5605 = vpop.f32.mrf.mxu0
    %v5606 = vpop.f32.mrf.mxu0
    %v5607 = vpop.f32.mrf.mxu0
    %5608 = vdwg.mxu0
    %5609 = vrot.lane.b32.xlu0 %v5120, 112
    %v5610 = vpop.permute.xlu0 %5609
    %5611 = vrot.lane.b32.xlu0 %v5122, 112
    %v5612 = vpop.permute.xlu0 %5611
    %v5614 = vsel %vm607, %v5610, 0
    %v5617 = vsel %vm607, %v5612, 0
    %5619 = vmatprep.subr.bf16.mxu0 0
    %5620 = vmatpush1.bf16.xpose.msra.mxu0 0
    %5621 = vmatprep.subr.bf16.mxu0 0
    %5622 = vmatpush1.bf16.xpose.msra.mxu0 0
    %5623 = vmatprep.subr.bf16.mxu0 0
    %5624 = vmatpush1.bf16.xpose.msra.mxu0 0
    %5625 = vmatprep.subr.bf16.mxu0 0
    %5626 = vmatpush1.bf16.xpose.msra.mxu0 0
    %5627 = vmatprep.subr.bf16.mxu0 0
    %5628 = vmatpush1.bf16.xpose.msra.mxu0 0
    %5629 = vmatprep.subr.bf16.mxu0 0
    %5630 = vmatpush1.bf16.xpose.msra.mxu0 0
    %5631 = vmatprep.subr.bf16.mxu0 0
    %5632 = vmatpush1.bf16.xpose.msra.mxu0 0
    %5633 = vmatprep.subr.bf16.mxu0 0
    %5634 = vmatpush1.bf16.xpose.msra.mxu0 %v5617
    %5635 = vmatprep.subr.bf16.mxu0 0
    %5636 = vmatpush2.bf16.xpose.msra.mxu0 0
    %5637 = vmatprep.subr.bf16.mxu0 0
    %5638 = vmatpush2.bf16.xpose.msra.mxu0 0
    %5639 = vmatprep.subr.bf16.mxu0 0
    %5640 = vmatpush2.bf16.xpose.msra.mxu0 0
    %5641 = vmatprep.subr.bf16.mxu0 0
    %5642 = vmatpush2.bf16.xpose.msra.mxu0 0
    %5643 = vmatprep.subr.bf16.mxu0 0
    %5644 = vmatpush2.bf16.xpose.msra.mxu0 0
    %5645 = vmatprep.subr.bf16.mxu0 0
    %5646 = vmatpush2.bf16.xpose.msra.mxu0 0
    %5647 = vmatprep.subr.bf16.mxu0 0
    %5648 = vmatpush2.bf16.xpose.msra.mxu0 0
    %5649 = vmatprep.subr.bf16.mxu0 0
    %5650 = vmatpush2.bf16.xpose.msra.mxu0 0
    %5651 = vmatprep.mubr.bf16.mxu0 0
    %5652 = vmatmul.mubr.bf16.gmra.mxu0 %v5614
    %v5653 = vpop.f32.mrf.mxu0
    %v5654 = vadd.f32 0.0, %v5653
    %v5655 = vpop.f32.mrf.mxu0
    %v5656 = vpop.f32.mrf.mxu0
    %v5657 = vpop.f32.mrf.mxu0
    %5658 = vdwg.mxu0
    %v5659 = vmul.f32 %v5604, 0.35355338
    %v5660 = vmul.f32 %v5654, 0.35355338
    %v5661 = vadd.f32 %v5659, %v714
    %v5662 = vadd.f32 %v5660, %v718
    %v5663 = vsel %vm725, %v5661, -inf
    %5664 = vmax.xlane.f32.xlu0 %v5663
    %v5665 = vpop.xlane.xlu0 %5664
    %v5666 = vsel %vm725, %v5662, -inf
    %5667 = vmax.xlane.f32.xlu0 %v5666
    %v5668 = vpop.xlane.xlu0 %5667
    %v5669 = vsub.f32 %v5661, %v5665
    %v5670 = vsub.f32 %v5662, %v5668
    %v5671 = vmul.f32 %v5669, 1.442695
    %v5672 = vpow.pop %v5671
    %v5673 = vmul.f32 %v5670, 1.442695
    %v5674 = vpow.pop %v5673
    %v5675 = vsel %vm725, %v5672, 0.0
    %5676 = vadd.xlane.f32.xlu0 %v5675
    %v5677 = vpop.xlane.xlu0 %5676
    %v5678 = vsel %vm725, %v5674, 0.0
    %5679 = vadd.xlane.f32.xlu0 %v5678
    %v5680 = vpop.xlane.xlu0 %5679
    %v5681 = vrcp.pop %v5677
    %v5682 = vrcp.pop %v5680
    %v5683 = vmul.f32 %v5672, %v5681
    %v5684 = vmul.f32 %v5674, %v5682
    %v5685 = vpack.c.bf16 %v5683, %v5683
    %v5686 = vpack.c.bf16 %v5684, %v5684
    %5687 = vrot.lane.b32.xlu0 %v5121, 80
    %v5688 = vpop.permute.xlu0 %5687
    %v5691 = vsel %vm725, %v5685, 0
    %5693 = vmatprep.subr.bf16.mxu0 0
    %5694 = vmatpush1.bf16.msra.mxu0 0
    %5695 = vmatprep.subr.bf16.mxu0 0
    %5696 = vmatpush1.bf16.msra.mxu0 0
    %5697 = vmatprep.subr.bf16.mxu0 0
    %5698 = vmatpush1.bf16.msra.mxu0 0
    %5699 = vmatprep.subr.bf16.mxu0 0
    %5700 = vmatpush1.bf16.msra.mxu0 0
    %5701 = vmatprep.subr.bf16.mxu0 0
    %5702 = vmatpush1.bf16.msra.mxu0 0
    %5703 = vmatprep.subr.bf16.mxu0 0
    %5704 = vmatpush1.bf16.msra.mxu0 0
    %5705 = vmatprep.subr.bf16.mxu0 0
    %5706 = vmatpush1.bf16.msra.mxu0 0
    %5707 = vmatprep.subr.bf16.mxu0 0
    %5708 = vmatpush1.bf16.msra.mxu0 %v5688
    %5709 = vmatprep.subr.bf16.mxu0 0
    %5710 = vmatpush2.bf16.msra.mxu0 0
    %5711 = vmatprep.subr.bf16.mxu0 0
    %5712 = vmatpush2.bf16.msra.mxu0 0
    %5713 = vmatprep.subr.bf16.mxu0 0
    %5714 = vmatpush2.bf16.msra.mxu0 0
    %5715 = vmatprep.subr.bf16.mxu0 0
    %5716 = vmatpush2.bf16.msra.mxu0 0
    %5717 = vmatprep.subr.bf16.mxu0 0
    %5718 = vmatpush2.bf16.msra.mxu0 0
    %5719 = vmatprep.subr.bf16.mxu0 0
    %5720 = vmatpush2.bf16.msra.mxu0 0
    %5721 = vmatprep.subr.bf16.mxu0 0
    %5722 = vmatpush2.bf16.msra.mxu0 0
    %5723 = vmatprep.subr.bf16.mxu0 0
    %5724 = vmatpush2.bf16.msra.mxu0 0
    %5725 = vmatprep.mubr.bf16.mxu0 0
    %5726 = vmatmul.mubr.bf16.gmra.mxu0 %v5691
    %v5727 = vpop.f32.mrf.mxu0
    %v5728 = vadd.f32 0.0, %v5727
    %v5729 = vpop.f32.mrf.mxu0
    %v5730 = vpop.f32.mrf.mxu0
    %v5731 = vpop.f32.mrf.mxu0
    %5732 = vdwg.mxu0
    %5733 = vrot.lane.b32.xlu0 %v5122, 80
    %v5734 = vpop.permute.xlu0 %5733
    %v5737 = vsel %vm725, %v5686, 0
    %5739 = vmatprep.subr.bf16.mxu0 0
    %5740 = vmatpush1.bf16.msra.mxu0 0
    %5741 = vmatprep.subr.bf16.mxu0 0
    %5742 = vmatpush1.bf16.msra.mxu0 0
    %5743 = vmatprep.subr.bf16.mxu0 0
    %5744 = vmatpush1.bf16.msra.mxu0 0
    %5745 = vmatprep.subr.bf16.mxu0 0
    %5746 = vmatpush1.bf16.msra.mxu0 0
    %5747 = vmatprep.subr.bf16.mxu0 0
    %5748 = vmatpush1.bf16.msra.mxu0 0
    %5749 = vmatprep.subr.bf16.mxu0 0
    %5750 = vmatpush1.bf16.msra.mxu0 0
    %5751 = vmatprep.subr.bf16.mxu0 0
    %5752 = vmatpush1.bf16.msra.mxu0 0
    %5753 = vmatprep.subr.bf16.mxu0 0
    %5754 = vmatpush1.bf16.msra.mxu0 %v5734
    %5755 = vmatprep.subr.bf16.mxu0 0
    %5756 = vmatpush2.bf16.msra.mxu0 0
    %5757 = vmatprep.subr.bf16.mxu0 0
    %5758 = vmatpush2.bf16.msra.mxu0 0
    %5759 = vmatprep.subr.bf16.mxu0 0
    %5760 = vmatpush2.bf16.msra.mxu0 0
    %5761 = vmatprep.subr.bf16.mxu0 0
    %5762 = vmatpush2.bf16.msra.mxu0 0
    %5763 = vmatprep.subr.bf16.mxu0 0
    %5764 = vmatpush2.bf16.msra.mxu0 0
    %5765 = vmatprep.subr.bf16.mxu0 0
    %5766 = vmatpush2.bf16.msra.mxu0 0
    %5767 = vmatprep.subr.bf16.mxu0 0
    %5768 = vmatpush2.bf16.msra.mxu0 0
    %5769 = vmatprep.subr.bf16.mxu0 0
    %5770 = vmatpush2.bf16.msra.mxu0 0
    %5771 = vmatprep.mubr.bf16.mxu0 0
    %5772 = vmatmul.mubr.bf16.gmra.mxu0 %v5737
    %v5773 = vpop.f32.mrf.mxu0
    %v5774 = vadd.f32 0.0, %v5773
    %v5775 = vpop.f32.mrf.mxu0
    %v5776 = vpop.f32.mrf.mxu0
    %v5777 = vpop.f32.mrf.mxu0
    %5778 = vdwg.mxu0
    %5779 = vrot.lane.b32.xlu0 %v5119, 104
    %v5780 = vpop.permute.xlu0 %5779
    %5781 = vrot.lane.b32.xlu0 %v5121, 104
    %v5782 = vpop.permute.xlu0 %5781
    %v5784 = vsel %vm607, %v5780, 0
    %v5787 = vsel %vm607, %v5782, 0
    %5789 = vmatprep.subr.bf16.mxu0 0
    %5790 = vmatpush1.bf16.xpose.msra.mxu0 0
    %5791 = vmatprep.subr.bf16.mxu0 0
    %5792 = vmatpush1.bf16.xpose.msra.mxu0 0
    %5793 = vmatprep.subr.bf16.mxu0 0
    %5794 = vmatpush1.bf16.xpose.msra.mxu0 0
    %5795 = vmatprep.subr.bf16.mxu0 0
    %5796 = vmatpush1.bf16.xpose.msra.mxu0 0
    %5797 = vmatprep.subr.bf16.mxu0 0
    %5798 = vmatpush1.bf16.xpose.msra.mxu0 0
    %5799 = vmatprep.subr.bf16.mxu0 0
    %5800 = vmatpush1.bf16.xpose.msra.mxu0 0
    %5801 = vmatprep.subr.bf16.mxu0 0
    %5802 = vmatpush1.bf16.xpose.msra.mxu0 0
    %5803 = vmatprep.subr.bf16.mxu0 0
    %5804 = vmatpush1.bf16.xpose.msra.mxu0 %v5787
    %5805 = vmatprep.subr.bf16.mxu0 0
    %5806 = vmatpush2.bf16.xpose.msra.mxu0 0
    %5807 = vmatprep.subr.bf16.mxu0 0
    %5808 = vmatpush2.bf16.xpose.msra.mxu0 0
    %5809 = vmatprep.subr.bf16.mxu0 0
    %5810 = vmatpush2.bf16.xpose.msra.mxu0 0
    %5811 = vmatprep.subr.bf16.mxu0 0
    %5812 = vmatpush2.bf16.xpose.msra.mxu0 0
    %5813 = vmatprep.subr.bf16.mxu0 0
    %5814 = vmatpush2.bf16.xpose.msra.mxu0 0
    %5815 = vmatprep.subr.bf16.mxu0 0
    %5816 = vmatpush2.bf16.xpose.msra.mxu0 0
    %5817 = vmatprep.subr.bf16.mxu0 0
    %5818 = vmatpush2.bf16.xpose.msra.mxu0 0
    %5819 = vmatprep.subr.bf16.mxu0 0
    %5820 = vmatpush2.bf16.xpose.msra.mxu0 0
    %5821 = vmatprep.mubr.bf16.mxu0 0
    %5822 = vmatmul.mubr.bf16.gmra.mxu0 %v5784
    %v5823 = vpop.f32.mrf.mxu0
    %v5824 = vadd.f32 0.0, %v5823
    %v5825 = vpop.f32.mrf.mxu0
    %v5826 = vpop.f32.mrf.mxu0
    %v5827 = vpop.f32.mrf.mxu0
    %5828 = vdwg.mxu0
    %5829 = vrot.lane.b32.xlu0 %v5120, 104
    %v5830 = vpop.permute.xlu0 %5829
    %5831 = vrot.lane.b32.xlu0 %v5122, 104
    %v5832 = vpop.permute.xlu0 %5831
    %v5834 = vsel %vm607, %v5830, 0
    %v5837 = vsel %vm607, %v5832, 0
    %5839 = vmatprep.subr.bf16.mxu0 0
    %5840 = vmatpush1.bf16.xpose.msra.mxu0 0
    %5841 = vmatprep.subr.bf16.mxu0 0
    %5842 = vmatpush1.bf16.xpose.msra.mxu0 0
    %5843 = vmatprep.subr.bf16.mxu0 0
    %5844 = vmatpush1.bf16.xpose.msra.mxu0 0
    %5845 = vmatprep.subr.bf16.mxu0 0
    %5846 = vmatpush1.bf16.xpose.msra.mxu0 0
    %5847 = vmatprep.subr.bf16.mxu0 0
    %5848 = vmatpush1.bf16.xpose.msra.mxu0 0
    %5849 = vmatprep.subr.bf16.mxu0 0
    %5850 = vmatpush1.bf16.xpose.msra.mxu0 0
    %5851 = vmatprep.subr.bf16.mxu0 0
    %5852 = vmatpush1.bf16.xpose.msra.mxu0 0
    %5853 = vmatprep.subr.bf16.mxu0 0
    %5854 = vmatpush1.bf16.xpose.msra.mxu0 %v5837
    %5855 = vmatprep.subr.bf16.mxu0 0
    %5856 = vmatpush2.bf16.xpose.msra.mxu0 0
    %5857 = vmatprep.subr.bf16.mxu0 0
    %5858 = vmatpush2.bf16.xpose.msra.mxu0 0
    %5859 = vmatprep.subr.bf16.mxu0 0
    %5860 = vmatpush2.bf16.xpose.msra.mxu0 0
    %5861 = vmatprep.subr.bf16.mxu0 0
    %5862 = vmatpush2.bf16.xpose.msra.mxu0 0
    %5863 = vmatprep.subr.bf16.mxu0 0
    %5864 = vmatpush2.bf16.xpose.msra.mxu0 0
    %5865 = vmatprep.subr.bf16.mxu0 0
    %5866 = vmatpush2.bf16.xpose.msra.mxu0 0
    %5867 = vmatprep.subr.bf16.mxu0 0
    %5868 = vmatpush2.bf16.xpose.msra.mxu0 0
    %5869 = vmatprep.subr.bf16.mxu0 0
    %5870 = vmatpush2.bf16.xpose.msra.mxu0 0
    %5871 = vmatprep.mubr.bf16.mxu0 0
    %5872 = vmatmul.mubr.bf16.gmra.mxu0 %v5834
    %v5873 = vpop.f32.mrf.mxu0
    %v5874 = vadd.f32 0.0, %v5873
    %v5875 = vpop.f32.mrf.mxu0
    %v5876 = vpop.f32.mrf.mxu0
    %v5877 = vpop.f32.mrf.mxu0
    %5878 = vdwg.mxu0
    %v5879 = vmul.f32 %v5824, 0.35355338
    %v5880 = vmul.f32 %v5874, 0.35355338
    %v5881 = vadd.f32 %v5879, %v714
    %v5882 = vadd.f32 %v5880, %v718
    %v5883 = vsel %vm725, %v5881, -inf
    %5884 = vmax.xlane.f32.xlu0 %v5883
    %v5885 = vpop.xlane.xlu0 %5884
    %v5886 = vsel %vm725, %v5882, -inf
    %5887 = vmax.xlane.f32.xlu0 %v5886
    %v5888 = vpop.xlane.xlu0 %5887
    %v5889 = vsub.f32 %v5881, %v5885
    %v5890 = vsub.f32 %v5882, %v5888
    %v5891 = vmul.f32 %v5889, 1.442695
    %v5892 = vpow.pop %v5891
    %v5893 = vmul.f32 %v5890, 1.442695
    %v5894 = vpow.pop %v5893
    %v5895 = vsel %vm725, %v5892, 0.0
    %5896 = vadd.xlane.f32.xlu0 %v5895
    %v5897 = vpop.xlane.xlu0 %5896
    %v5898 = vsel %vm725, %v5894, 0.0
    %5899 = vadd.xlane.f32.xlu0 %v5898
    %v5900 = vpop.xlane.xlu0 %5899
    %v5901 = vrcp.pop %v5897
    %v5902 = vrcp.pop %v5900
    %v5903 = vmul.f32 %v5892, %v5901
    %v5904 = vmul.f32 %v5894, %v5902
    %v5905 = vpack.c.bf16 %v5903, %v5903
    %v5906 = vpack.c.bf16 %v5904, %v5904
    %5907 = vrot.lane.b32.xlu0 %v5121, 72
    %v5908 = vpop.permute.xlu0 %5907
    %v5911 = vsel %vm725, %v5905, 0
    %5913 = vmatprep.subr.bf16.mxu0 0
    %5914 = vmatpush1.bf16.msra.mxu0 0
    %5915 = vmatprep.subr.bf16.mxu0 0
    %5916 = vmatpush1.bf16.msra.mxu0 0
    %5917 = vmatprep.subr.bf16.mxu0 0
    %5918 = vmatpush1.bf16.msra.mxu0 0
    %5919 = vmatprep.subr.bf16.mxu0 0
    %5920 = vmatpush1.bf16.msra.mxu0 0
    %5921 = vmatprep.subr.bf16.mxu0 0
    %5922 = vmatpush1.bf16.msra.mxu0 0
    %5923 = vmatprep.subr.bf16.mxu0 0
    %5924 = vmatpush1.bf16.msra.mxu0 0
    %5925 = vmatprep.subr.bf16.mxu0 0
    %5926 = vmatpush1.bf16.msra.mxu0 0
    %5927 = vmatprep.subr.bf16.mxu0 0
    %5928 = vmatpush1.bf16.msra.mxu0 %v5908
    %5929 = vmatprep.subr.bf16.mxu0 0
    %5930 = vmatpush2.bf16.msra.mxu0 0
    %5931 = vmatprep.subr.bf16.mxu0 0
    %5932 = vmatpush2.bf16.msra.mxu0 0
    %5933 = vmatprep.subr.bf16.mxu0 0
    %5934 = vmatpush2.bf16.msra.mxu0 0
    %5935 = vmatprep.subr.bf16.mxu0 0
    %5936 = vmatpush2.bf16.msra.mxu0 0
    %5937 = vmatprep.subr.bf16.mxu0 0
    %5938 = vmatpush2.bf16.msra.mxu0 0
    %5939 = vmatprep.subr.bf16.mxu0 0
    %5940 = vmatpush2.bf16.msra.mxu0 0
    %5941 = vmatprep.subr.bf16.mxu0 0
    %5942 = vmatpush2.bf16.msra.mxu0 0
    %5943 = vmatprep.subr.bf16.mxu0 0
    %5944 = vmatpush2.bf16.msra.mxu0 0
    %5945 = vmatprep.mubr.bf16.mxu0 0
    %5946 = vmatmul.mubr.bf16.gmra.mxu0 %v5911
    %v5947 = vpop.f32.mrf.mxu0
    %v5948 = vadd.f32 0.0, %v5947
    %v5949 = vpop.f32.mrf.mxu0
    %v5950 = vpop.f32.mrf.mxu0
    %v5951 = vpop.f32.mrf.mxu0
    %5952 = vdwg.mxu0
    %5953 = vrot.lane.b32.xlu0 %v5122, 72
    %v5954 = vpop.permute.xlu0 %5953
    %v5957 = vsel %vm725, %v5906, 0
    %5959 = vmatprep.subr.bf16.mxu0 0
    %5960 = vmatpush1.bf16.msra.mxu0 0
    %5961 = vmatprep.subr.bf16.mxu0 0
    %5962 = vmatpush1.bf16.msra.mxu0 0
    %5963 = vmatprep.subr.bf16.mxu0 0
    %5964 = vmatpush1.bf16.msra.mxu0 0
    %5965 = vmatprep.subr.bf16.mxu0 0
    %5966 = vmatpush1.bf16.msra.mxu0 0
    %5967 = vmatprep.subr.bf16.mxu0 0
    %5968 = vmatpush1.bf16.msra.mxu0 0
    %5969 = vmatprep.subr.bf16.mxu0 0
    %5970 = vmatpush1.bf16.msra.mxu0 0
    %5971 = vmatprep.subr.bf16.mxu0 0
    %5972 = vmatpush1.bf16.msra.mxu0 0
    %5973 = vmatprep.subr.bf16.mxu0 0
    %5974 = vmatpush1.bf16.msra.mxu0 %v5954
    %5975 = vmatprep.subr.bf16.mxu0 0
    %5976 = vmatpush2.bf16.msra.mxu0 0
    %5977 = vmatprep.subr.bf16.mxu0 0
    %5978 = vmatpush2.bf16.msra.mxu0 0
    %5979 = vmatprep.subr.bf16.mxu0 0
    %5980 = vmatpush2.bf16.msra.mxu0 0
    %5981 = vmatprep.subr.bf16.mxu0 0
    %5982 = vmatpush2.bf16.msra.mxu0 0
    %5983 = vmatprep.subr.bf16.mxu0 0
    %5984 = vmatpush2.bf16.msra.mxu0 0
    %5985 = vmatprep.subr.bf16.mxu0 0
    %5986 = vmatpush2.bf16.msra.mxu0 0
    %5987 = vmatprep.subr.bf16.mxu0 0
    %5988 = vmatpush2.bf16.msra.mxu0 0
    %5989 = vmatprep.subr.bf16.mxu0 0
    %5990 = vmatpush2.bf16.msra.mxu0 0
    %5991 = vmatprep.mubr.bf16.mxu0 0
    %5992 = vmatmul.mubr.bf16.gmra.mxu0 %v5957
    %v5993 = vpop.f32.mrf.mxu0
    %v5994 = vadd.f32 0.0, %v5993
    %v5995 = vpop.f32.mrf.mxu0
    %v5996 = vpop.f32.mrf.mxu0
    %v5997 = vpop.f32.mrf.mxu0
    %5998 = vdwg.mxu0
    %6001 = vrot.lane.b32.xlu0 %v5508, 8
    %v6002 = vpop.permute.xlu0 %6001
    %6003 = vrot.lane.b32.xlu0 %v5554, 8
    %v6004 = vpop.permute.xlu0 %6003
    %6009 = vrot.lane.b32.xlu0 %v5728, 16
    %v6010 = vpop.permute.xlu0 %6009
    %6011 = vrot.lane.b32.xlu0 %v5774, 16
    %v6012 = vpop.permute.xlu0 %6011
    %6017 = vrot.lane.b32.xlu0 %v5948, 24
    %v6018 = vpop.permute.xlu0 %6017
    %6019 = vrot.lane.b32.xlu0 %v5994, 24
    %v6020 = vpop.permute.xlu0 %6019
    %v6023 = vsel %vm607, %v5285, %v6002
    %v6024 = vsel %vm607, %v5332, %v6004
    %v6025 = vsel %vm725, %v6023, %v6010
    %v6026 = vsel %vm725, %v6024, %v6012
    %v6027 = vsel %vm1672, %v6025, %v6018
    %v6028 = vsel %vm1672, %v6026, %v6020
    %v6029 = vld [vmem:[%s23] sm:$0xf]
    %v6030 = vld [vmem:[%s23 + $0x4] sm:$0xf]
    %v6031 = vld [vmem:[%s23 + $0x8] sm:$0xf]
    %v6032 = vld [vmem:[%s23 + $0xc] sm:$0xf]
    %v6033 = vld [vmem:[%s21] sm:$0x1]
    %v6034 = vpack.c.bf16 %v6028, %v6027
    %v6036 = vlaneseq
    %v6037 = vshrl.u32 %v6036, 7
    %v6038 = vsub.s32 0, %v6037
    %v6039 = vrot.slane %v6033, %v6038
    %v6045 = vunpack.c.l.b16 %v6029
    %v6046 = vunpack.c.l.b16 %v6030
    %v6047 = vunpack.c.l.b16 %v6031
    %v6048 = vunpack.c.l.b16 %v6032
    %v6049 = vpack.c.b16 %v6046, %v6045
    %v6050 = vpack.c.b16 %v6048, %v6047
    %v6054 = vsel %vm546, %v6034, 0
    %6056 = vmatprep.subr.bf16.mxu0 0
    %6057 = vmatpush1.bf16.msra.mxu0 0
    %6058 = vmatprep.subr.bf16.mxu0 0
    %6059 = vmatpush1.bf16.msra.mxu0 0
    %6060 = vmatprep.subr.bf16.mxu0 0
    %6061 = vmatpush1.bf16.msra.mxu0 0
    %6062 = vmatprep.subr.bf16.mxu0 0
    %6063 = vmatpush1.bf16.msra.mxu0 0
    %6064 = vmatprep.subr.bf16.mxu0 0
    %6065 = vmatpush1.bf16.msra.mxu0 0
    %6066 = vmatprep.subr.bf16.mxu0 0
    %6067 = vmatpush1.bf16.msra.mxu0 0
    %6068 = vmatprep.subr.bf16.mxu0 0
    %6069 = vmatpush1.bf16.msra.mxu0 %v6050
    %6070 = vmatprep.subr.bf16.mxu0 0
    %6071 = vmatpush1.bf16.msra.mxu0 %v6049
    %6072 = vmatprep.subr.bf16.mxu0 0
    %6073 = vmatpush2.bf16.msra.mxu0 0
    %6074 = vmatprep.subr.bf16.mxu0 0
    %6075 = vmatpush2.bf16.msra.mxu0 0
    %6076 = vmatprep.subr.bf16.mxu0 0
    %6077 = vmatpush2.bf16.msra.mxu0 0
    %6078 = vmatprep.subr.bf16.mxu0 0
    %6079 = vmatpush2.bf16.msra.mxu0 0
    %6080 = vmatprep.subr.bf16.mxu0 0
    %6081 = vmatpush2.bf16.msra.mxu0 0
    %6082 = vmatprep.subr.bf16.mxu0 0
    %6083 = vmatpush2.bf16.msra.mxu0 0
    %6084 = vmatprep.subr.bf16.mxu0 0
    %6085 = vmatpush2.bf16.msra.mxu0 0
    %6086 = vmatprep.subr.bf16.mxu0 0
    %6087 = vmatpush2.bf16.msra.mxu0 0
    %6088 = vmatprep.mubr.bf16.mxu0 0
    %6089 = vmatmul.mubr.bf16.gmra.mxu0 %v6054
    %v6090 = vpop.f32.mrf.mxu0
    %v6091 = vadd.f32 %v6039, %v6090
    %v6092 = vpop.f32.mrf.mxu0
    %v6093 = vpop.f32.mrf.mxu0
    %v6094 = vadd.f32 %v6039, %v6093
    %v6095 = vpop.f32.mrf.mxu0
    %6096 = vdwg.mxu0
    %v6097 = vadd.f32 %v5049, %v6091
    %v6098 = vadd.f32 %v5050, %v6094
    %v6099 = vld [vmem:[%s43] sm:$0x1]
    %v6100 = vld [vmem:[%s41] sm:$0x1]
    %v6101 = vsel %vm546, %v6097, 0.0
    %6102 = vadd.xlane.f32.xlu0 %v6101
    %v6103 = vpop.xlane.xlu0 %6102
    %v6104 = vsel %vm546, %v6098, 0.0
    %6105 = vadd.xlane.f32.xlu0 %v6104
    %v6106 = vpop.xlane.xlu0 %6105
    %v6107 = vmul.f32 %v6103, %v1775
    %v6108 = vmul.f32 %v6106, %v1775
    %v6109 = vsub.f32 %v6097, %v6107
    %v6110 = vsub.f32 %v6098, %v6108
    %v6111 = vmul.f32 %v6109, %v6109
    %v6112 = vmul.f32 %v6110, %v6110
    %v6113 = vsel %vm546, %v6111, 0.0
    %6114 = vadd.xlane.f32.xlu0 %v6113
    %v6115 = vpop.xlane.xlu0 %6114
    %v6116 = vsel %vm546, %v6112, 0.0
    %6117 = vadd.xlane.f32.xlu0 %v6116
    %v6118 = vpop.xlane.xlu0 %6117
    %v6119 = vmul.f32 %v6115, %v1775
    %v6120 = vmul.f32 %v6118, %v1775
    %v6121 = vadd.f32 %v6119, 1e-05
    %v6122 = vadd.f32 %v6120, 1e-05
    %v6123 = vrsqrt.pop %v6121
    %v6124 = vrsqrt.pop %v6122
    %v6125 = vmul.f32 %v6109, %v6123
    %v6126 = vmul.f32 %v6110, %v6124
    %v6128 = vlaneseq
    %v6129 = vshrl.u32 %v6128, 7
    %v6130 = vsub.s32 0, %v6129
    %v6131 = vrot.slane %v6099, %v6130
    %v6133 = vmul.f32 %v6125, %v6131
    %v6134 = vmul.f32 %v6126, %v6131
    %v6136 = vlaneseq
    %v6137 = vshrl.u32 %v6136, 7
    %v6138 = vsub.s32 0, %v6137
    %v6139 = vrot.slane %v6100, %v6138
    %v6141 = vadd.f32 %v6133, %v6139
    %v6142 = vadd.f32 %v6134, %v6139
    %v6143 = vld [vmem:[%s31] sm:$0xf]
    %v6144 = vld [vmem:[%s31 + $0x4] sm:$0xf]
    %v6145 = vld [vmem:[%s31 + $0x8] sm:$0xf]
    %v6146 = vld [vmem:[%s31 + $0xc] sm:$0xf]
    %v6147 = vld [vmem:[%s29] sm:$0x1]
    %v6148 = vpack.c.bf16 %v6142, %v6141
    %v6150 = vlaneseq
    %v6151 = vshrl.u32 %v6150, 7
    %v6152 = vsub.s32 0, %v6151
    %v6153 = vrot.slane %v6147, %v6152
    %v6159 = vunpack.c.l.b16 %v6143
    %v6160 = vunpack.c.l.b16 %v6144
    %v6161 = vunpack.c.l.b16 %v6145
    %v6162 = vunpack.c.l.b16 %v6146
    %v6163 = vpack.c.b16 %v6160, %v6159
    %v6164 = vpack.c.b16 %v6162, %v6161
    %v6168 = vsel %vm546, %v6148, 0
    %6170 = vmatprep.subr.bf16.mxu0 0
    %6171 = vmatpush1.bf16.msra.mxu0 0
    %6172 = vmatprep.subr.bf16.mxu0 0
    %6173 = vmatpush1.bf16.msra.mxu0 0
    %6174 = vmatprep.subr.bf16.mxu0 0
    %6175 = vmatpush1.bf16.msra.mxu0 0
    %6176 = vmatprep.subr.bf16.mxu0 0
    %6177 = vmatpush1.bf16.msra.mxu0 0
    %6178 = vmatprep.subr.bf16.mxu0 0
    %6179 = vmatpush1.bf16.msra.mxu0 0
    %6180 = vmatprep.subr.bf16.mxu0 0
    %6181 = vmatpush1.bf16.msra.mxu0 0
    %6182 = vmatprep.subr.bf16.mxu0 0
    %6183 = vmatpush1.bf16.msra.mxu0 %v6164
    %6184 = vmatprep.subr.bf16.mxu0 0
    %6185 = vmatpush1.bf16.msra.mxu0 %v6163
    %6186 = vmatprep.subr.bf16.mxu0 0
    %6187 = vmatpush2.bf16.msra.mxu0 0
    %6188 = vmatprep.subr.bf16.mxu0 0
    %6189 = vmatpush2.bf16.msra.mxu0 0
    %6190 = vmatprep.subr.bf16.mxu0 0
    %6191 = vmatpush2.bf16.msra.mxu0 0
    %6192 = vmatprep.subr.bf16.mxu0 0
    %6193 = vmatpush2.bf16.msra.mxu0 0
    %6194 = vmatprep.subr.bf16.mxu0 0
    %6195 = vmatpush2.bf16.msra.mxu0 0
    %6196 = vmatprep.subr.bf16.mxu0 0
    %6197 = vmatpush2.bf16.msra.mxu0 0
    %6198 = vmatprep.subr.bf16.mxu0 0
    %6199 = vmatpush2.bf16.msra.mxu0 0
    %6200 = vmatprep.subr.bf16.mxu0 0
    %6201 = vmatpush2.bf16.msra.mxu0 0
    %6202 = vmatprep.mubr.bf16.mxu0 0
    %6203 = vmatmul.mubr.bf16.gmra.mxu0 %v6168
    %v6204 = vpop.f32.mrf.mxu0
    %v6205 = vadd.f32 %v6153, %v6204
    %v6206 = vpop.f32.mrf.mxu0
    %v6207 = vpop.f32.mrf.mxu0
    %v6208 = vadd.f32 %v6153, %v6207
    %v6209 = vpop.f32.mrf.mxu0
    %6210 = vdwg.mxu0
    %v6211 = vmax.f32 %v6205, 0.0
    %v6212 = vmax.f32 %v6208, 0.0
    %v6213 = vld [vmem:[%s35] sm:$0xf]
    %v6214 = vld [vmem:[%s35 + $0x4] sm:$0xf]
    %v6215 = vld [vmem:[%s35 + $0x8] sm:$0xf]
    %v6216 = vld [vmem:[%s35 + $0xc] sm:$0xf]
    %v6217 = vld [vmem:[%s35 + $0x10] sm:$0xf]
    %v6218 = vld [vmem:[%s35 + $0x14] sm:$0xf]
    %v6219 = vld [vmem:[%s35 + $0x18] sm:$0xf]
    %v6220 = vld [vmem:[%s35 + $0x1c] sm:$0xf]
    %v6221 = vld [vmem:[%s33] sm:$0x1]
    %v6222 = vpack.c.bf16 %v6212, %v6211
    %v6224 = vlaneseq
    %v6225 = vshrl.u32 %v6224, 7
    %v6226 = vsub.s32 0, %v6225
    %v6227 = vrot.slane %v6221, %v6226
    %v6237 = vunpack.c.l.b16 %v6213
    %v6238 = vunpack.c.l.b16 %v6214
    %v6239 = vunpack.c.l.b16 %v6215
    %v6240 = vunpack.c.l.b16 %v6216
    %v6241 = vunpack.c.l.b16 %v6217
    %v6242 = vunpack.c.l.b16 %v6218
    %v6243 = vunpack.c.l.b16 %v6219
    %v6244 = vunpack.c.l.b16 %v6220
    %v6245 = vpack.c.b16 %v6238, %v6237
    %v6246 = vpack.c.b16 %v6240, %v6239
    %v6247 = vpack.c.b16 %v6242, %v6241
    %v6248 = vpack.c.b16 %v6244, %v6243
    %v6254 = vsel %vm1961, %v6222, 0
    %6256 = vmatprep.subr.bf16.mxu0 0
    %6257 = vmatpush1.bf16.msra.mxu0 0
    %6258 = vmatprep.subr.bf16.mxu0 0
    %6259 = vmatpush1.bf16.msra.mxu0 0
    %6260 = vmatprep.subr.bf16.mxu0 0
    %6261 = vmatpush1.bf16.msra.mxu0 0
    %6262 = vmatprep.subr.bf16.mxu0 0
    %6263 = vmatpush1.bf16.msra.mxu0 0
    %6264 = vmatprep.subr.bf16.mxu0 0
    %6265 = vmatpush1.bf16.msra.mxu0 %v6248
    %6266 = vmatprep.subr.bf16.mxu0 0
    %6267 = vmatpush1.bf16.msra.mxu0 %v6247
    %6268 = vmatprep.subr.bf16.mxu0 0
    %6269 = vmatpush1.bf16.msra.mxu0 %v6246
    %6270 = vmatprep.subr.bf16.mxu0 0
    %6271 = vmatpush1.bf16.msra.mxu0 %v6245
    %6272 = vmatprep.subr.bf16.mxu0 0
    %6273 = vmatpush2.bf16.msra.mxu0 0
    %6274 = vmatprep.subr.bf16.mxu0 0
    %6275 = vmatpush2.bf16.msra.mxu0 0
    %6276 = vmatprep.subr.bf16.mxu0 0
    %6277 = vmatpush2.bf16.msra.mxu0 0
    %6278 = vmatprep.subr.bf16.mxu0 0
    %6279 = vmatpush2.bf16.msra.mxu0 0
    %6280 = vmatprep.subr.bf16.mxu0 0
    %6281 = vmatpush2.bf16.msra.mxu0 0
    %6282 = vmatprep.subr.bf16.mxu0 0
    %6283 = vmatpush2.bf16.msra.mxu0 0
    %6284 = vmatprep.subr.bf16.mxu0 0
    %6285 = vmatpush2.bf16.msra.mxu0 0
    %6286 = vmatprep.subr.bf16.mxu0 0
    %6287 = vmatpush2.bf16.msra.mxu0 0
    %6288 = vmatprep.mubr.bf16.mxu0 0
    %6289 = vmatmul.mubr.bf16.gmra.mxu0 %v6254
    %v6290 = vpop.f32.mrf.mxu0
    %v6291 = vadd.f32 %v6227, %v6290
    %v6292 = vpop.f32.mrf.mxu0
    %v6293 = vpop.f32.mrf.mxu0
    %v6294 = vadd.f32 %v6227, %v6293
    %v6295 = vpop.f32.mrf.mxu0
    %6296 = vdwg.mxu0
    %v6297 = vadd.f32 %v6141, %v6291
    %v6298 = vadd.f32 %v6142, %v6294
    %v6299 = vld [vmem:[%s47] sm:$0x1]
    %v6300 = vld [vmem:[%s45] sm:$0x1]
    %v6301 = vsel %vm546, %v6297, 0.0
    %6302 = vadd.xlane.f32.xlu0 %v6301
    %v6303 = vpop.xlane.xlu0 %6302
    %v6304 = vsel %vm546, %v6298, 0.0
    %6305 = vadd.xlane.f32.xlu0 %v6304
    %v6306 = vpop.xlane.xlu0 %6305
    %v6307 = vmul.f32 %v6303, %v1775
    %v6308 = vmul.f32 %v6306, %v1775
    %v6309 = vsub.f32 %v6297, %v6307
    %v6310 = vsub.f32 %v6298, %v6308
    %v6311 = vmul.f32 %v6309, %v6309
    %v6312 = vmul.f32 %v6310, %v6310
    %v6313 = vsel %vm546, %v6311, 0.0
    %6314 = vadd.xlane.f32.xlu0 %v6313
    %v6315 = vpop.xlane.xlu0 %6314
    %v6316 = vsel %vm546, %v6312, 0.0
    %6317 = vadd.xlane.f32.xlu0 %v6316
    %v6318 = vpop.xlane.xlu0 %6317
    %v6319 = vmul.f32 %v6315, %v1775
    %v6320 = vmul.f32 %v6318, %v1775
    %v6321 = vadd.f32 %v6319, 1e-05
    %v6322 = vadd.f32 %v6320, 1e-05
    %v6323 = vrsqrt.pop %v6321
    %v6324 = vrsqrt.pop %v6322
    %v6325 = vmul.f32 %v6309, %v6323
    %v6326 = vmul.f32 %v6310, %v6324
    %v6328 = vlaneseq
    %v6329 = vshrl.u32 %v6328, 7
    %v6330 = vsub.s32 0, %v6329
    %v6331 = vrot.slane %v6299, %v6330
    %v6333 = vmul.f32 %v6325, %v6331
    %v6334 = vmul.f32 %v6326, %v6331
    %v6336 = vlaneseq
    %v6337 = vshrl.u32 %v6336, 7
    %v6338 = vsub.s32 0, %v6337
    %v6339 = vrot.slane %v6300, %v6338
    %v6341 = vadd.f32 %v6333, %v6339
    %v6342 = vadd.f32 %v6334, %v6339
    %s6343 = scalar_lea.vmem %s55, 16
    %v6344 = vld [vmem:[%s6343] sm:$0xf]
    %v6345 = vld [vmem:[%s6343 + $0x4] sm:$0xf]
    %v6346 = vld [vmem:[%s6343 + $0x8] sm:$0xf]
    %v6347 = vld [vmem:[%s6343 + $0xc] sm:$0xf]
    %s6348 = scalar_lea.vmem %s53, 1
    %v6349 = vld [vmem:[%s6348] sm:$0x1]
    %v6350 = vpack.c.bf16 %v6342, %v6341
    %v6352 = vlaneseq
    %v6353 = vshrl.u32 %v6352, 7
    %v6354 = vsub.s32 0, %v6353
    %v6355 = vrot.slane %v6349, %v6354
    %v6361 = vunpack.c.l.b16 %v6344
    %v6362 = vunpack.c.l.b16 %v6345
    %v6363 = vunpack.c.l.b16 %v6346
    %v6364 = vunpack.c.l.b16 %v6347
    %v6365 = vpack.c.b16 %v6362, %v6361
    %v6366 = vpack.c.b16 %v6364, %v6363
    %v6370 = vsel %vm546, %v6350, 0
    %6372 = vmatprep.subr.bf16.mxu0 0
    %6373 = vmatpush1.bf16.msra.mxu0 0
    %6374 = vmatprep.subr.bf16.mxu0 0
    %6375 = vmatpush1.bf16.msra.mxu0 0
    %6376 = vmatprep.subr.bf16.mxu0 0
    %6377 = vmatpush1.bf16.msra.mxu0 0
    %6378 = vmatprep.subr.bf16.mxu0 0
    %6379 = vmatpush1.bf16.msra.mxu0 0
    %6380 = vmatprep.subr.bf16.mxu0 0
    %6381 = vmatpush1.bf16.msra.mxu0 0
    %6382 = vmatprep.subr.bf16.mxu0 0
    %6383 = vmatpush1.bf16.msra.mxu0 0
    %6384 = vmatprep.subr.bf16.mxu0 0
    %6385 = vmatpush1.bf16.msra.mxu0 %v6366
    %6386 = vmatprep.subr.bf16.mxu0 0
    %6387 = vmatpush1.bf16.msra.mxu0 %v6365
    %6388 = vmatprep.subr.bf16.mxu0 0
    %6389 = vmatpush2.bf16.msra.mxu0 0
    %6390 = vmatprep.subr.bf16.mxu0 0
    %6391 = vmatpush2.bf16.msra.mxu0 0
    %6392 = vmatprep.subr.bf16.mxu0 0
    %6393 = vmatpush2.bf16.msra.mxu0 0
    %6394 = vmatprep.subr.bf16.mxu0 0
    %6395 = vmatpush2.bf16.msra.mxu0 0
    %6396 = vmatprep.subr.bf16.mxu0 0
    %6397 = vmatpush2.bf16.msra.mxu0 0
    %6398 = vmatprep.subr.bf16.mxu0 0
    %6399 = vmatpush2.bf16.msra.mxu0 0
    %6400 = vmatprep.subr.bf16.mxu0 0
    %6401 = vmatpush2.bf16.msra.mxu0 0
    %6402 = vmatprep.subr.bf16.mxu0 0
    %6403 = vmatpush2.bf16.msra.mxu0 0
    %6404 = vmatprep.mubr.bf16.mxu0 0
    %6405 = vmatmul.mubr.bf16.gmra.mxu0 %v6370
    %v6406 = vpop.f32.mrf.mxu0
    %v6407 = vadd.f32 %v6355, %v6406
    %v6408 = vpop.f32.mrf.mxu0
    %v6409 = vpop.f32.mrf.mxu0
    %v6410 = vadd.f32 %v6355, %v6409
    %v6411 = vpop.f32.mrf.mxu0
    %6412 = vdwg.mxu0
    %v6413 = vpack.c.bf16 %v6407, %v6407
    %v6414 = vpack.c.bf16 %v6410, %v6410
    %6416 = vrot.lane.b32.xlu0 %v6413, 96
    %v6417 = vpop.permute.xlu0 %6416
    %v6419 = vsel %vm607, %v6413, 0
    %v6422 = vsel %vm607, %v6417, 0
    %6424 = vmatprep.subr.bf16.mxu0 0
    %6425 = vmatpush1.bf16.xpose.msra.mxu0 0
    %6426 = vmatprep.subr.bf16.mxu0 0
    %6427 = vmatpush1.bf16.xpose.msra.mxu0 0
    %6428 = vmatprep.subr.bf16.mxu0 0
    %6429 = vmatpush1.bf16.xpose.msra.mxu0 0
    %6430 = vmatprep.subr.bf16.mxu0 0
    %6431 = vmatpush1.bf16.xpose.msra.mxu0 0
    %6432 = vmatprep.subr.bf16.mxu0 0
    %6433 = vmatpush1.bf16.xpose.msra.mxu0 0
    %6434 = vmatprep.subr.bf16.mxu0 0
    %6435 = vmatpush1.bf16.xpose.msra.mxu0 0
    %6436 = vmatprep.subr.bf16.mxu0 0
    %6437 = vmatpush1.bf16.xpose.msra.mxu0 0
    %6438 = vmatprep.subr.bf16.mxu0 0
    %6439 = vmatpush1.bf16.xpose.msra.mxu0 %v6422
    %6440 = vmatprep.subr.bf16.mxu0 0
    %6441 = vmatpush2.bf16.xpose.msra.mxu0 0
    %6442 = vmatprep.subr.bf16.mxu0 0
    %6443 = vmatpush2.bf16.xpose.msra.mxu0 0
    %6444 = vmatprep.subr.bf16.mxu0 0
    %6445 = vmatpush2.bf16.xpose.msra.mxu0 0
    %6446 = vmatprep.subr.bf16.mxu0 0
    %6447 = vmatpush2.bf16.xpose.msra.mxu0 0
    %6448 = vmatprep.subr.bf16.mxu0 0
    %6449 = vmatpush2.bf16.xpose.msra.mxu0 0
    %6450 = vmatprep.subr.bf16.mxu0 0
    %6451 = vmatpush2.bf16.xpose.msra.mxu0 0
    %6452 = vmatprep.subr.bf16.mxu0 0
    %6453 = vmatpush2.bf16.xpose.msra.mxu0 0
    %6454 = vmatprep.subr.bf16.mxu0 0
    %6455 = vmatpush2.bf16.xpose.msra.mxu0 0
    %6456 = vmatprep.mubr.bf16.mxu0 0
    %6457 = vmatmul.mubr.bf16.gmra.mxu0 %v6419
    %v6458 = vpop.f32.mrf.mxu0
    %v6459 = vadd.f32 0.0, %v6458
    %v6460 = vpop.f32.mrf.mxu0
    %v6461 = vpop.f32.mrf.mxu0
    %v6462 = vpop.f32.mrf.mxu0
    %6463 = vdwg.mxu0
    %6465 = vrot.lane.b32.xlu0 %v6414, 96
    %v6466 = vpop.permute.xlu0 %6465
    %v6468 = vsel %vm607, %v6414, 0
    %v6471 = vsel %vm607, %v6466, 0
    %6473 = vmatprep.subr.bf16.mxu0 0
    %6474 = vmatpush1.bf16.xpose.msra.mxu0 0
    %6475 = vmatprep.subr.bf16.mxu0 0
    %6476 = vmatpush1.bf16.xpose.msra.mxu0 0
    %6477 = vmatprep.subr.bf16.mxu0 0
    %6478 = vmatpush1.bf16.xpose.msra.mxu0 0
    %6479 = vmatprep.subr.bf16.mxu0 0
    %6480 = vmatpush1.bf16.xpose.msra.mxu0 0
    %6481 = vmatprep.subr.bf16.mxu0 0
    %6482 = vmatpush1.bf16.xpose.msra.mxu0 0
    %6483 = vmatprep.subr.bf16.mxu0 0
    %6484 = vmatpush1.bf16.xpose.msra.mxu0 0
    %6485 = vmatprep.subr.bf16.mxu0 0
    %6486 = vmatpush1.bf16.xpose.msra.mxu0 0
    %6487 = vmatprep.subr.bf16.mxu0 0
    %6488 = vmatpush1.bf16.xpose.msra.mxu0 %v6471
    %6489 = vmatprep.subr.bf16.mxu0 0
    %6490 = vmatpush2.bf16.xpose.msra.mxu0 0
    %6491 = vmatprep.subr.bf16.mxu0 0
    %6492 = vmatpush2.bf16.xpose.msra.mxu0 0
    %6493 = vmatprep.subr.bf16.mxu0 0
    %6494 = vmatpush2.bf16.xpose.msra.mxu0 0
    %6495 = vmatprep.subr.bf16.mxu0 0
    %6496 = vmatpush2.bf16.xpose.msra.mxu0 0
    %6497 = vmatprep.subr.bf16.mxu0 0
    %6498 = vmatpush2.bf16.xpose.msra.mxu0 0
    %6499 = vmatprep.subr.bf16.mxu0 0
    %6500 = vmatpush2.bf16.xpose.msra.mxu0 0
    %6501 = vmatprep.subr.bf16.mxu0 0
    %6502 = vmatpush2.bf16.xpose.msra.mxu0 0
    %6503 = vmatprep.subr.bf16.mxu0 0
    %6504 = vmatpush2.bf16.xpose.msra.mxu0 0
    %6505 = vmatprep.mubr.bf16.mxu0 0
    %6506 = vmatmul.mubr.bf16.gmra.mxu0 %v6468
    %v6507 = vpop.f32.mrf.mxu0
    %v6508 = vadd.f32 0.0, %v6507
    %v6509 = vpop.f32.mrf.mxu0
    %v6510 = vpop.f32.mrf.mxu0
    %v6511 = vpop.f32.mrf.mxu0
    %6512 = vdwg.mxu0
    %v6513 = vmul.f32 %v6459, 0.35355338
    %v6514 = vmul.f32 %v6508, 0.35355338
    %v6515 = vadd.f32 %v6513, %v345
    %v6516 = vadd.f32 %v6514, %v346
    %v6517 = vsel %vm607, %v6515, -inf
    %6518 = vmax.xlane.f32.xlu0 %v6517
    %v6519 = vpop.xlane.xlu0 %6518
    %v6520 = vsel %vm607, %v6516, -inf
    %6521 = vmax.xlane.f32.xlu0 %v6520
    %v6522 = vpop.xlane.xlu0 %6521
    %v6523 = vsub.f32 %v6515, %v6519
    %v6524 = vsub.f32 %v6516, %v6522
    %v6525 = vmul.f32 %v6523, 1.442695
    %v6526 = vpow.pop %v6525
    %v6527 = vmul.f32 %v6524, 1.442695
    %v6528 = vpow.pop %v6527
    %v6529 = vsel %vm607, %v6526, 0.0
    %6530 = vadd.xlane.f32.xlu0 %v6529
    %v6531 = vpop.xlane.xlu0 %6530
    %v6532 = vsel %vm607, %v6528, 0.0
    %6533 = vadd.xlane.f32.xlu0 %v6532
    %v6534 = vpop.xlane.xlu0 %6533
    %v6535 = vrcp.pop %v6531
    %v6536 = vrcp.pop %v6534
    %v6537 = vmul.f32 %v6526, %v6535
    %v6538 = vmul.f32 %v6528, %v6536
    %v6539 = vpack.c.bf16 %v6537, %v6537
    %v6540 = vpack.c.bf16 %v6538, %v6538
    %6541 = vrot.lane.b32.xlu0 %v6413, 64
    %v6542 = vpop.permute.xlu0 %6541
    %v6544 = vsel %vm607, %v6539, 0
    %v6547 = vsel %vm4143, %v6542, 0
    %6549 = vmatprep.subr.bf16.mxu0 0
    %6550 = vmatpush1.bf16.msra.mxu0 0
    %6551 = vmatprep.subr.bf16.mxu0 0
    %6552 = vmatpush1.bf16.msra.mxu0 0
    %6553 = vmatprep.subr.bf16.mxu0 0
    %6554 = vmatpush1.bf16.msra.mxu0 0
    %6555 = vmatprep.subr.bf16.mxu0 0
    %6556 = vmatpush1.bf16.msra.mxu0 0
    %6557 = vmatprep.subr.bf16.mxu0 0
    %6558 = vmatpush1.bf16.msra.mxu0 0
    %6559 = vmatprep.subr.bf16.mxu0 0
    %6560 = vmatpush1.bf16.msra.mxu0 0
    %6561 = vmatprep.subr.bf16.mxu0 0
    %6562 = vmatpush1.bf16.msra.mxu0 0
    %6563 = vmatprep.subr.bf16.mxu0 0
    %6564 = vmatpush1.bf16.msra.mxu0 %v6547
    %6565 = vmatprep.subr.bf16.mxu0 0
    %6566 = vmatpush2.bf16.msra.mxu0 0
    %6567 = vmatprep.subr.bf16.mxu0 0
    %6568 = vmatpush2.bf16.msra.mxu0 0
    %6569 = vmatprep.subr.bf16.mxu0 0
    %6570 = vmatpush2.bf16.msra.mxu0 0
    %6571 = vmatprep.subr.bf16.mxu0 0
    %6572 = vmatpush2.bf16.msra.mxu0 0
    %6573 = vmatprep.subr.bf16.mxu0 0
    %6574 = vmatpush2.bf16.msra.mxu0 0
    %6575 = vmatprep.subr.bf16.mxu0 0
    %6576 = vmatpush2.bf16.msra.mxu0 0
    %6577 = vmatprep.subr.bf16.mxu0 0
    %6578 = vmatpush2.bf16.msra.mxu0 0
    %6579 = vmatprep.subr.bf16.mxu0 0
    %6580 = vmatpush2.bf16.msra.mxu0 0
    %6581 = vmatprep.mubr.bf16.mxu0 0
    %6582 = vmatmul.mubr.bf16.gmra.mxu0 %v6544
    %v6583 = vpop.f32.mrf.mxu0
    %v6584 = vadd.f32 0.0, %v6583
    %v6585 = vpop.f32.mrf.mxu0
    %v6586 = vpop.f32.mrf.mxu0
    %v6587 = vpop.f32.mrf.mxu0
    %6588 = vdwg.mxu0
    %6589 = vrot.lane.b32.xlu0 %v6414, 64
    %v6590 = vpop.permute.xlu0 %6589
    %v6592 = vsel %vm607, %v6540, 0
    %v6595 = vsel %vm4143, %v6590, 0
    %6597 = vmatprep.subr.bf16.mxu0 0
    %6598 = vmatpush1.bf16.msra.mxu0 0
    %6599 = vmatprep.subr.bf16.mxu0 0
    %6600 = vmatpush1.bf16.msra.mxu0 0
    %6601 = vmatprep.subr.bf16.mxu0 0
    %6602 = vmatpush1.bf16.msra.mxu0 0
    %6603 = vmatprep.subr.bf16.mxu0 0
    %6604 = vmatpush1.bf16.msra.mxu0 0
    %6605 = vmatprep.subr.bf16.mxu0 0
    %6606 = vmatpush1.bf16.msra.mxu0 0
    %6607 = vmatprep.subr.bf16.mxu0 0
    %6608 = vmatpush1.bf16.msra.mxu0 0
    %6609 = vmatprep.subr.bf16.mxu0 0
    %6610 = vmatpush1.bf16.msra.mxu0 0
    %6611 = vmatprep.subr.bf16.mxu0 0
    %6612 = vmatpush1.bf16.msra.mxu0 %v6595
    %6613 = vmatprep.subr.bf16.mxu0 0
    %6614 = vmatpush2.bf16.msra.mxu0 0
    %6615 = vmatprep.subr.bf16.mxu0 0
    %6616 = vmatpush2.bf16.msra.mxu0 0
    %6617 = vmatprep.subr.bf16.mxu0 0
    %6618 = vmatpush2.bf16.msra.mxu0 0
    %6619 = vmatprep.subr.bf16.mxu0 0
    %6620 = vmatpush2.bf16.msra.mxu0 0
    %6621 = vmatprep.subr.bf16.mxu0 0
    %6622 = vmatpush2.bf16.msra.mxu0 0
    %6623 = vmatprep.subr.bf16.mxu0 0
    %6624 = vmatpush2.bf16.msra.mxu0 0
    %6625 = vmatprep.subr.bf16.mxu0 0
    %6626 = vmatpush2.bf16.msra.mxu0 0
    %6627 = vmatprep.subr.bf16.mxu0 0
    %6628 = vmatpush2.bf16.msra.mxu0 0
    %6629 = vmatprep.mubr.bf16.mxu0 0
    %6630 = vmatmul.mubr.bf16.gmra.mxu0 %v6592
    %v6631 = vpop.f32.mrf.mxu0
    %v6632 = vadd.f32 0.0, %v6631
    %v6633 = vpop.f32.mrf.mxu0
    %v6634 = vpop.f32.mrf.mxu0
    %v6635 = vpop.f32.mrf.mxu0
    %6636 = vdwg.mxu0
    %6637 = vrot.lane.b32.xlu0 %v6413, 120
    %v6638 = vpop.permute.xlu0 %6637
    %6639 = vrot.lane.b32.xlu0 %v6413, 88
    %v6640 = vpop.permute.xlu0 %6639
    %v6642 = vsel %vm607, %v6638, 0
    %v6645 = vsel %vm607, %v6640, 0
    %6647 = vmatprep.subr.bf16.mxu0 0
    %6648 = vmatpush1.bf16.xpose.msra.mxu0 0
    %6649 = vmatprep.subr.bf16.mxu0 0
    %6650 = vmatpush1.bf16.xpose.msra.mxu0 0
    %6651 = vmatprep.subr.bf16.mxu0 0
    %6652 = vmatpush1.bf16.xpose.msra.mxu0 0
    %6653 = vmatprep.subr.bf16.mxu0 0
    %6654 = vmatpush1.bf16.xpose.msra.mxu0 0
    %6655 = vmatprep.subr.bf16.mxu0 0
    %6656 = vmatpush1.bf16.xpose.msra.mxu0 0
    %6657 = vmatprep.subr.bf16.mxu0 0
    %6658 = vmatpush1.bf16.xpose.msra.mxu0 0
    %6659 = vmatprep.subr.bf16.mxu0 0
    %6660 = vmatpush1.bf16.xpose.msra.mxu0 0
    %6661 = vmatprep.subr.bf16.mxu0 0
    %6662 = vmatpush1.bf16.xpose.msra.mxu0 %v6645
    %6663 = vmatprep.subr.bf16.mxu0 0
    %6664 = vmatpush2.bf16.xpose.msra.mxu0 0
    %6665 = vmatprep.subr.bf16.mxu0 0
    %6666 = vmatpush2.bf16.xpose.msra.mxu0 0
    %6667 = vmatprep.subr.bf16.mxu0 0
    %6668 = vmatpush2.bf16.xpose.msra.mxu0 0
    %6669 = vmatprep.subr.bf16.mxu0 0
    %6670 = vmatpush2.bf16.xpose.msra.mxu0 0
    %6671 = vmatprep.subr.bf16.mxu0 0
    %6672 = vmatpush2.bf16.xpose.msra.mxu0 0
    %6673 = vmatprep.subr.bf16.mxu0 0
    %6674 = vmatpush2.bf16.xpose.msra.mxu0 0
    %6675 = vmatprep.subr.bf16.mxu0 0
    %6676 = vmatpush2.bf16.xpose.msra.mxu0 0
    %6677 = vmatprep.subr.bf16.mxu0 0
    %6678 = vmatpush2.bf16.xpose.msra.mxu0 0
    %6679 = vmatprep.mubr.bf16.mxu0 0
    %6680 = vmatmul.mubr.bf16.gmra.mxu0 %v6642
    %v6681 = vpop.f32.mrf.mxu0
    %v6682 = vadd.f32 0.0, %v6681
    %v6683 = vpop.f32.mrf.mxu0
    %v6684 = vpop.f32.mrf.mxu0
    %v6685 = vpop.f32.mrf.mxu0
    %6686 = vdwg.mxu0
    %6687 = vrot.lane.b32.xlu0 %v6414, 120
    %v6688 = vpop.permute.xlu0 %6687
    %6689 = vrot.lane.b32.xlu0 %v6414, 88
    %v6690 = vpop.permute.xlu0 %6689
    %v6692 = vsel %vm607, %v6688, 0
    %v6695 = vsel %vm607, %v6690, 0
    %6697 = vmatprep.subr.bf16.mxu0 0
    %6698 = vmatpush1.bf16.xpose.msra.mxu0 0
    %6699 = vmatprep.subr.bf16.mxu0 0
    %6700 = vmatpush1.bf16.xpose.msra.mxu0 0
    %6701 = vmatprep.subr.bf16.mxu0 0
    %6702 = vmatpush1.bf16.xpose.msra.mxu0 0
    %6703 = vmatprep.subr.bf16.mxu0 0
    %6704 = vmatpush1.bf16.xpose.msra.mxu0 0
    %6705 = vmatprep.subr.bf16.mxu0 0
    %6706 = vmatpush1.bf16.xpose.msra.mxu0 0
    %6707 = vmatprep.subr.bf16.mxu0 0
    %6708 = vmatpush1.bf16.xpose.msra.mxu0 0
    %6709 = vmatprep.subr.bf16.mxu0 0
    %6710 = vmatpush1.bf16.xpose.msra.mxu0 0
    %6711 = vmatprep.subr.bf16.mxu0 0
    %6712 = vmatpush1.bf16.xpose.msra.mxu0 %v6695
    %6713 = vmatprep.subr.bf16.mxu0 0
    %6714 = vmatpush2.bf16.xpose.msra.mxu0 0
    %6715 = vmatprep.subr.bf16.mxu0 0
    %6716 = vmatpush2.bf16.xpose.msra.mxu0 0
    %6717 = vmatprep.subr.bf16.mxu0 0
    %6718 = vmatpush2.bf16.xpose.msra.mxu0 0
    %6719 = vmatprep.subr.bf16.mxu0 0
    %6720 = vmatpush2.bf16.xpose.msra.mxu0 0
    %6721 = vmatprep.subr.bf16.mxu0 0
    %6722 = vmatpush2.bf16.xpose.msra.mxu0 0
    %6723 = vmatprep.subr.bf16.mxu0 0
    %6724 = vmatpush2.bf16.xpose.msra.mxu0 0
    %6725 = vmatprep.subr.bf16.mxu0 0
    %6726 = vmatpush2.bf16.xpose.msra.mxu0 0
    %6727 = vmatprep.subr.bf16.mxu0 0
    %6728 = vmatpush2.bf16.xpose.msra.mxu0 0
    %6729 = vmatprep.mubr.bf16.mxu0 0
    %6730 = vmatmul.mubr.bf16.gmra.mxu0 %v6692
    %v6731 = vpop.f32.mrf.mxu0
    %v6732 = vadd.f32 0.0, %v6731
    %v6733 = vpop.f32.mrf.mxu0
    %v6734 = vpop.f32.mrf.mxu0
    %v6735 = vpop.f32.mrf.mxu0
    %6736 = vdwg.mxu0
    %v6737 = vmul.f32 %v6682, 0.35355338
    %v6738 = vmul.f32 %v6732, 0.35355338
    %v6739 = vadd.f32 %v6737, %v345
    %v6740 = vadd.f32 %v6738, %v346
    %v6741 = vsel %vm607, %v6739, -inf
    %6742 = vmax.xlane.f32.xlu0 %v6741
    %v6743 = vpop.xlane.xlu0 %6742
    %v6744 = vsel %vm607, %v6740, -inf
    %6745 = vmax.xlane.f32.xlu0 %v6744
    %v6746 = vpop.xlane.xlu0 %6745
    %v6747 = vsub.f32 %v6739, %v6743
    %v6748 = vsub.f32 %v6740, %v6746
    %v6749 = vmul.f32 %v6747, 1.442695
    %v6750 = vpow.pop %v6749
    %v6751 = vmul.f32 %v6748, 1.442695
    %v6752 = vpow.pop %v6751
    %v6753 = vsel %vm607, %v6750, 0.0
    %6754 = vadd.xlane.f32.xlu0 %v6753
    %v6755 = vpop.xlane.xlu0 %6754
    %v6756 = vsel %vm607, %v6752, 0.0
    %6757 = vadd.xlane.f32.xlu0 %v6756
    %v6758 = vpop.xlane.xlu0 %6757
    %v6759 = vrcp.pop %v6755
    %v6760 = vrcp.pop %v6758
    %v6761 = vmul.f32 %v6750, %v6759
    %v6762 = vmul.f32 %v6752, %v6760
    %v6763 = vpack.c.bf16 %v6761, %v6761
    %v6764 = vpack.c.bf16 %v6762, %v6762
    %6765 = vrot.lane.b32.xlu0 %v6413, 56
    %v6766 = vpop.permute.xlu0 %6765
    %v6768 = vsel %vm607, %v6763, 0
    %v6771 = vsel %vm4143, %v6766, 0
    %6773 = vmatprep.subr.bf16.mxu0 0
    %6774 = vmatpush1.bf16.msra.mxu0 0
    %6775 = vmatprep.subr.bf16.mxu0 0
    %6776 = vmatpush1.bf16.msra.mxu0 0
    %6777 = vmatprep.subr.bf16.mxu0 0
    %6778 = vmatpush1.bf16.msra.mxu0 0
    %6779 = vmatprep.subr.bf16.mxu0 0
    %6780 = vmatpush1.bf16.msra.mxu0 0
    %6781 = vmatprep.subr.bf16.mxu0 0
    %6782 = vmatpush1.bf16.msra.mxu0 0
    %6783 = vmatprep.subr.bf16.mxu0 0
    %6784 = vmatpush1.bf16.msra.mxu0 0
    %6785 = vmatprep.subr.bf16.mxu0 0
    %6786 = vmatpush1.bf16.msra.mxu0 0
    %6787 = vmatprep.subr.bf16.mxu0 0
    %6788 = vmatpush1.bf16.msra.mxu0 %v6771
    %6789 = vmatprep.subr.bf16.mxu0 0
    %6790 = vmatpush2.bf16.msra.mxu0 0
    %6791 = vmatprep.subr.bf16.mxu0 0
    %6792 = vmatpush2.bf16.msra.mxu0 0
    %6793 = vmatprep.subr.bf16.mxu0 0
    %6794 = vmatpush2.bf16.msra.mxu0 0
    %6795 = vmatprep.subr.bf16.mxu0 0
    %6796 = vmatpush2.bf16.msra.mxu0 0
    %6797 = vmatprep.subr.bf16.mxu0 0
    %6798 = vmatpush2.bf16.msra.mxu0 0
    %6799 = vmatprep.subr.bf16.mxu0 0
    %6800 = vmatpush2.bf16.msra.mxu0 0
    %6801 = vmatprep.subr.bf16.mxu0 0
    %6802 = vmatpush2.bf16.msra.mxu0 0
    %6803 = vmatprep.subr.bf16.mxu0 0
    %6804 = vmatpush2.bf16.msra.mxu0 0
    %6805 = vmatprep.mubr.bf16.mxu0 0
    %6806 = vmatmul.mubr.bf16.gmra.mxu0 %v6768
    %v6807 = vpop.f32.mrf.mxu0
    %v6808 = vadd.f32 0.0, %v6807
    %v6809 = vpop.f32.mrf.mxu0
    %v6810 = vpop.f32.mrf.mxu0
    %v6811 = vpop.f32.mrf.mxu0
    %6812 = vdwg.mxu0
    %6813 = vrot.lane.b32.xlu0 %v6414, 56
    %v6814 = vpop.permute.xlu0 %6813
    %v6816 = vsel %vm607, %v6764, 0
    %v6819 = vsel %vm4143, %v6814, 0
    %6821 = vmatprep.subr.bf16.mxu0 0
    %6822 = vmatpush1.bf16.msra.mxu0 0
    %6823 = vmatprep.subr.bf16.mxu0 0
    %6824 = vmatpush1.bf16.msra.mxu0 0
    %6825 = vmatprep.subr.bf16.mxu0 0
    %6826 = vmatpush1.bf16.msra.mxu0 0
    %6827 = vmatprep.subr.bf16.mxu0 0
    %6828 = vmatpush1.bf16.msra.mxu0 0
    %6829 = vmatprep.subr.bf16.mxu0 0
    %6830 = vmatpush1.bf16.msra.mxu0 0
    %6831 = vmatprep.subr.bf16.mxu0 0
    %6832 = vmatpush1.bf16.msra.mxu0 0
    %6833 = vmatprep.subr.bf16.mxu0 0
    %6834 = vmatpush1.bf16.msra.mxu0 0
    %6835 = vmatprep.subr.bf16.mxu0 0
    %6836 = vmatpush1.bf16.msra.mxu0 %v6819
    %6837 = vmatprep.subr.bf16.mxu0 0
    %6838 = vmatpush2.bf16.msra.mxu0 0
    %6839 = vmatprep.subr.bf16.mxu0 0
    %6840 = vmatpush2.bf16.msra.mxu0 0
    %6841 = vmatprep.subr.bf16.mxu0 0
    %6842 = vmatpush2.bf16.msra.mxu0 0
    %6843 = vmatprep.subr.bf16.mxu0 0
    %6844 = vmatpush2.bf16.msra.mxu0 0
    %6845 = vmatprep.subr.bf16.mxu0 0
    %6846 = vmatpush2.bf16.msra.mxu0 0
    %6847 = vmatprep.subr.bf16.mxu0 0
    %6848 = vmatpush2.bf16.msra.mxu0 0
    %6849 = vmatprep.subr.bf16.mxu0 0
    %6850 = vmatpush2.bf16.msra.mxu0 0
    %6851 = vmatprep.subr.bf16.mxu0 0
    %6852 = vmatpush2.bf16.msra.mxu0 0
    %6853 = vmatprep.mubr.bf16.mxu0 0
    %6854 = vmatmul.mubr.bf16.gmra.mxu0 %v6816
    %v6855 = vpop.f32.mrf.mxu0
    %v6856 = vadd.f32 0.0, %v6855
    %v6857 = vpop.f32.mrf.mxu0
    %v6858 = vpop.f32.mrf.mxu0
    %v6859 = vpop.f32.mrf.mxu0
    %6860 = vdwg.mxu0
    %6861 = vrot.lane.b32.xlu0 %v6413, 112
    %v6862 = vpop.permute.xlu0 %6861
    %6863 = vrot.lane.b32.xlu0 %v6413, 80
    %v6864 = vpop.permute.xlu0 %6863
    %v6866 = vsel %vm607, %v6862, 0
    %v6869 = vsel %vm607, %v6864, 0
    %6871 = vmatprep.subr.bf16.mxu0 0
    %6872 = vmatpush1.bf16.xpose.msra.mxu0 0
    %6873 = vmatprep.subr.bf16.mxu0 0
    %6874 = vmatpush1.bf16.xpose.msra.mxu0 0
    %6875 = vmatprep.subr.bf16.mxu0 0
    %6876 = vmatpush1.bf16.xpose.msra.mxu0 0
    %6877 = vmatprep.subr.bf16.mxu0 0
    %6878 = vmatpush1.bf16.xpose.msra.mxu0 0
    %6879 = vmatprep.subr.bf16.mxu0 0
    %6880 = vmatpush1.bf16.xpose.msra.mxu0 0
    %6881 = vmatprep.subr.bf16.mxu0 0
    %6882 = vmatpush1.bf16.xpose.msra.mxu0 0
    %6883 = vmatprep.subr.bf16.mxu0 0
    %6884 = vmatpush1.bf16.xpose.msra.mxu0 0
    %6885 = vmatprep.subr.bf16.mxu0 0
    %6886 = vmatpush1.bf16.xpose.msra.mxu0 %v6869
    %6887 = vmatprep.subr.bf16.mxu0 0
    %6888 = vmatpush2.bf16.xpose.msra.mxu0 0
    %6889 = vmatprep.subr.bf16.mxu0 0
    %6890 = vmatpush2.bf16.xpose.msra.mxu0 0
    %6891 = vmatprep.subr.bf16.mxu0 0
    %6892 = vmatpush2.bf16.xpose.msra.mxu0 0
    %6893 = vmatprep.subr.bf16.mxu0 0
    %6894 = vmatpush2.bf16.xpose.msra.mxu0 0
    %6895 = vmatprep.subr.bf16.mxu0 0
    %6896 = vmatpush2.bf16.xpose.msra.mxu0 0
    %6897 = vmatprep.subr.bf16.mxu0 0
    %6898 = vmatpush2.bf16.xpose.msra.mxu0 0
    %6899 = vmatprep.subr.bf16.mxu0 0
    %6900 = vmatpush2.bf16.xpose.msra.mxu0 0
    %6901 = vmatprep.subr.bf16.mxu0 0
    %6902 = vmatpush2.bf16.xpose.msra.mxu0 0
    %6903 = vmatprep.mubr.bf16.mxu0 0
    %6904 = vmatmul.mubr.bf16.gmra.mxu0 %v6866
    %v6905 = vpop.f32.mrf.mxu0
    %v6906 = vadd.f32 0.0, %v6905
    %v6907 = vpop.f32.mrf.mxu0
    %v6908 = vpop.f32.mrf.mxu0
    %v6909 = vpop.f32.mrf.mxu0
    %6910 = vdwg.mxu0
    %6911 = vrot.lane.b32.xlu0 %v6414, 112
    %v6912 = vpop.permute.xlu0 %6911
    %6913 = vrot.lane.b32.xlu0 %v6414, 80
    %v6914 = vpop.permute.xlu0 %6913
    %v6916 = vsel %vm607, %v6912, 0
    %v6919 = vsel %vm607, %v6914, 0
    %6921 = vmatprep.subr.bf16.mxu0 0
    %6922 = vmatpush1.bf16.xpose.msra.mxu0 0
    %6923 = vmatprep.subr.bf16.mxu0 0
    %6924 = vmatpush1.bf16.xpose.msra.mxu0 0
    %6925 = vmatprep.subr.bf16.mxu0 0
    %6926 = vmatpush1.bf16.xpose.msra.mxu0 0
    %6927 = vmatprep.subr.bf16.mxu0 0
    %6928 = vmatpush1.bf16.xpose.msra.mxu0 0
    %6929 = vmatprep.subr.bf16.mxu0 0
    %6930 = vmatpush1.bf16.xpose.msra.mxu0 0
    %6931 = vmatprep.subr.bf16.mxu0 0
    %6932 = vmatpush1.bf16.xpose.msra.mxu0 0
    %6933 = vmatprep.subr.bf16.mxu0 0
    %6934 = vmatpush1.bf16.xpose.msra.mxu0 0
    %6935 = vmatprep.subr.bf16.mxu0 0
    %6936 = vmatpush1.bf16.xpose.msra.mxu0 %v6919
    %6937 = vmatprep.subr.bf16.mxu0 0
    %6938 = vmatpush2.bf16.xpose.msra.mxu0 0
    %6939 = vmatprep.subr.bf16.mxu0 0
    %6940 = vmatpush2.bf16.xpose.msra.mxu0 0
    %6941 = vmatprep.subr.bf16.mxu0 0
    %6942 = vmatpush2.bf16.xpose.msra.mxu0 0
    %6943 = vmatprep.subr.bf16.mxu0 0
    %6944 = vmatpush2.bf16.xpose.msra.mxu0 0
    %6945 = vmatprep.subr.bf16.mxu0 0
    %6946 = vmatpush2.bf16.xpose.msra.mxu0 0
    %6947 = vmatprep.subr.bf16.mxu0 0
    %6948 = vmatpush2.bf16.xpose.msra.mxu0 0
    %6949 = vmatprep.subr.bf16.mxu0 0
    %6950 = vmatpush2.bf16.xpose.msra.mxu0 0
    %6951 = vmatprep.subr.bf16.mxu0 0
    %6952 = vmatpush2.bf16.xpose.msra.mxu0 0
    %6953 = vmatprep.mubr.bf16.mxu0 0
    %6954 = vmatmul.mubr.bf16.gmra.mxu0 %v6916
    %v6955 = vpop.f32.mrf.mxu0
    %v6956 = vadd.f32 0.0, %v6955
    %v6957 = vpop.f32.mrf.mxu0
    %v6958 = vpop.f32.mrf.mxu0
    %v6959 = vpop.f32.mrf.mxu0
    %6960 = vdwg.mxu0
    %v6961 = vmul.f32 %v6906, 0.35355338
    %v6962 = vmul.f32 %v6956, 0.35355338
    %v6963 = vadd.f32 %v6961, %v345
    %v6964 = vadd.f32 %v6962, %v346
    %v6965 = vsel %vm607, %v6963, -inf
    %6966 = vmax.xlane.f32.xlu0 %v6965
    %v6967 = vpop.xlane.xlu0 %6966
    %v6968 = vsel %vm607, %v6964, -inf
    %6969 = vmax.xlane.f32.xlu0 %v6968
    %v6970 = vpop.xlane.xlu0 %6969
    %v6971 = vsub.f32 %v6963, %v6967
    %v6972 = vsub.f32 %v6964, %v6970
    %v6973 = vmul.f32 %v6971, 1.442695
    %v6974 = vpow.pop %v6973
    %v6975 = vmul.f32 %v6972, 1.442695
    %v6976 = vpow.pop %v6975
    %v6977 = vsel %vm607, %v6974, 0.0
    %6978 = vadd.xlane.f32.xlu0 %v6977
    %v6979 = vpop.xlane.xlu0 %6978
    %v6980 = vsel %vm607, %v6976, 0.0
    %6981 = vadd.xlane.f32.xlu0 %v6980
    %v6982 = vpop.xlane.xlu0 %6981
    %v6983 = vrcp.pop %v6979
    %v6984 = vrcp.pop %v6982
    %v6985 = vmul.f32 %v6974, %v6983
    %v6986 = vmul.f32 %v6976, %v6984
    %v6987 = vpack.c.bf16 %v6985, %v6985
    %v6988 = vpack.c.bf16 %v6986, %v6986
    %6989 = vrot.lane.b32.xlu0 %v6413, 48
    %v6990 = vpop.permute.xlu0 %6989
    %v6992 = vsel %vm607, %v6987, 0
    %v6995 = vsel %vm4143, %v6990, 0
    %6997 = vmatprep.subr.bf16.mxu0 0
    %6998 = vmatpush1.bf16.msra.mxu0 0
    %6999 = vmatprep.subr.bf16.mxu0 0
    %7000 = vmatpush1.bf16.msra.mxu0 0
    %7001 = vmatprep.subr.bf16.mxu0 0
    %7002 = vmatpush1.bf16.msra.mxu0 0
    %7003 = vmatprep.subr.bf16.mxu0 0
    %7004 = vmatpush1.bf16.msra.mxu0 0
    %7005 = vmatprep.subr.bf16.mxu0 0
    %7006 = vmatpush1.bf16.msra.mxu0 0
    %7007 = vmatprep.subr.bf16.mxu0 0
    %7008 = vmatpush1.bf16.msra.mxu0 0
    %7009 = vmatprep.subr.bf16.mxu0 0
    %7010 = vmatpush1.bf16.msra.mxu0 0
    %7011 = vmatprep.subr.bf16.mxu0 0
    %7012 = vmatpush1.bf16.msra.mxu0 %v6995
    %7013 = vmatprep.subr.bf16.mxu0 0
    %7014 = vmatpush2.bf16.msra.mxu0 0
    %7015 = vmatprep.subr.bf16.mxu0 0
    %7016 = vmatpush2.bf16.msra.mxu0 0
    %7017 = vmatprep.subr.bf16.mxu0 0
    %7018 = vmatpush2.bf16.msra.mxu0 0
    %7019 = vmatprep.subr.bf16.mxu0 0
    %7020 = vmatpush2.bf16.msra.mxu0 0
    %7021 = vmatprep.subr.bf16.mxu0 0
    %7022 = vmatpush2.bf16.msra.mxu0 0
    %7023 = vmatprep.subr.bf16.mxu0 0
    %7024 = vmatpush2.bf16.msra.mxu0 0
    %7025 = vmatprep.subr.bf16.mxu0 0
    %7026 = vmatpush2.bf16.msra.mxu0 0
    %7027 = vmatprep.subr.bf16.mxu0 0
    %7028 = vmatpush2.bf16.msra.mxu0 0
    %7029 = vmatprep.mubr.bf16.mxu0 0
    %7030 = vmatmul.mubr.bf16.gmra.mxu0 %v6992
    %v7031 = vpop.f32.mrf.mxu0
    %v7032 = vadd.f32 0.0, %v7031
    %v7033 = vpop.f32.mrf.mxu0
    %v7034 = vpop.f32.mrf.mxu0
    %v7035 = vpop.f32.mrf.mxu0
    %7036 = vdwg.mxu0
    %7037 = vrot.lane.b32.xlu0 %v6414, 48
    %v7038 = vpop.permute.xlu0 %7037
    %v7040 = vsel %vm607, %v6988, 0
    %v7043 = vsel %vm4143, %v7038, 0
    %7045 = vmatprep.subr.bf16.mxu0 0
    %7046 = vmatpush1.bf16.msra.mxu0 0
    %7047 = vmatprep.subr.bf16.mxu0 0
    %7048 = vmatpush1.bf16.msra.mxu0 0
    %7049 = vmatprep.subr.bf16.mxu0 0
    %7050 = vmatpush1.bf16.msra.mxu0 0
    %7051 = vmatprep.subr.bf16.mxu0 0
    %7052 = vmatpush1.bf16.msra.mxu0 0
    %7053 = vmatprep.subr.bf16.mxu0 0
    %7054 = vmatpush1.bf16.msra.mxu0 0
    %7055 = vmatprep.subr.bf16.mxu0 0
    %7056 = vmatpush1.bf16.msra.mxu0 0
    %7057 = vmatprep.subr.bf16.mxu0 0
    %7058 = vmatpush1.bf16.msra.mxu0 0
    %7059 = vmatprep.subr.bf16.mxu0 0
    %7060 = vmatpush1.bf16.msra.mxu0 %v7043
    %7061 = vmatprep.subr.bf16.mxu0 0
    %7062 = vmatpush2.bf16.msra.mxu0 0
    %7063 = vmatprep.subr.bf16.mxu0 0
    %7064 = vmatpush2.bf16.msra.mxu0 0
    %7065 = vmatprep.subr.bf16.mxu0 0
    %7066 = vmatpush2.bf16.msra.mxu0 0
    %7067 = vmatprep.subr.bf16.mxu0 0
    %7068 = vmatpush2.bf16.msra.mxu0 0
    %7069 = vmatprep.subr.bf16.mxu0 0
    %7070 = vmatpush2.bf16.msra.mxu0 0
    %7071 = vmatprep.subr.bf16.mxu0 0
    %7072 = vmatpush2.bf16.msra.mxu0 0
    %7073 = vmatprep.subr.bf16.mxu0 0
    %7074 = vmatpush2.bf16.msra.mxu0 0
    %7075 = vmatprep.subr.bf16.mxu0 0
    %7076 = vmatpush2.bf16.msra.mxu0 0
    %7077 = vmatprep.mubr.bf16.mxu0 0
    %7078 = vmatmul.mubr.bf16.gmra.mxu0 %v7040
    %v7079 = vpop.f32.mrf.mxu0
    %v7080 = vadd.f32 0.0, %v7079
    %v7081 = vpop.f32.mrf.mxu0
    %v7082 = vpop.f32.mrf.mxu0
    %v7083 = vpop.f32.mrf.mxu0
    %7084 = vdwg.mxu0
    %7085 = vrot.lane.b32.xlu0 %v6413, 104
    %v7086 = vpop.permute.xlu0 %7085
    %7087 = vrot.lane.b32.xlu0 %v6413, 72
    %v7088 = vpop.permute.xlu0 %7087
    %v7090 = vsel %vm607, %v7086, 0
    %v7093 = vsel %vm607, %v7088, 0
    %7095 = vmatprep.subr.bf16.mxu0 0
    %7096 = vmatpush1.bf16.xpose.msra.mxu0 0
    %7097 = vmatprep.subr.bf16.mxu0 0
    %7098 = vmatpush1.bf16.xpose.msra.mxu0 0
    %7099 = vmatprep.subr.bf16.mxu0 0
    %7100 = vmatpush1.bf16.xpose.msra.mxu0 0
    %7101 = vmatprep.subr.bf16.mxu0 0
    %7102 = vmatpush1.bf16.xpose.msra.mxu0 0
    %7103 = vmatprep.subr.bf16.mxu0 0
    %7104 = vmatpush1.bf16.xpose.msra.mxu0 0
    %7105 = vmatprep.subr.bf16.mxu0 0
    %7106 = vmatpush1.bf16.xpose.msra.mxu0 0
    %7107 = vmatprep.subr.bf16.mxu0 0
    %7108 = vmatpush1.bf16.xpose.msra.mxu0 0
    %7109 = vmatprep.subr.bf16.mxu0 0
    %7110 = vmatpush1.bf16.xpose.msra.mxu0 %v7093
    %7111 = vmatprep.subr.bf16.mxu0 0
    %7112 = vmatpush2.bf16.xpose.msra.mxu0 0
    %7113 = vmatprep.subr.bf16.mxu0 0
    %7114 = vmatpush2.bf16.xpose.msra.mxu0 0
    %7115 = vmatprep.subr.bf16.mxu0 0
    %7116 = vmatpush2.bf16.xpose.msra.mxu0 0
    %7117 = vmatprep.subr.bf16.mxu0 0
    %7118 = vmatpush2.bf16.xpose.msra.mxu0 0
    %7119 = vmatprep.subr.bf16.mxu0 0
    %7120 = vmatpush2.bf16.xpose.msra.mxu0 0
    %7121 = vmatprep.subr.bf16.mxu0 0
    %7122 = vmatpush2.bf16.xpose.msra.mxu0 0
    %7123 = vmatprep.subr.bf16.mxu0 0
    %7124 = vmatpush2.bf16.xpose.msra.mxu0 0
    %7125 = vmatprep.subr.bf16.mxu0 0
    %7126 = vmatpush2.bf16.xpose.msra.mxu0 0
    %7127 = vmatprep.mubr.bf16.mxu0 0
    %7128 = vmatmul.mubr.bf16.gmra.mxu0 %v7090
    %v7129 = vpop.f32.mrf.mxu0
    %v7130 = vadd.f32 0.0, %v7129
    %v7131 = vpop.f32.mrf.mxu0
    %v7132 = vpop.f32.mrf.mxu0
    %v7133 = vpop.f32.mrf.mxu0
    %7134 = vdwg.mxu0
    %7135 = vrot.lane.b32.xlu0 %v6414, 104
    %v7136 = vpop.permute.xlu0 %7135
    %7137 = vrot.lane.b32.xlu0 %v6414, 72
    %v7138 = vpop.permute.xlu0 %7137
    %v7140 = vsel %vm607, %v7136, 0
    %v7143 = vsel %vm607, %v7138, 0
    %7145 = vmatprep.subr.bf16.mxu0 0
    %7146 = vmatpush1.bf16.xpose.msra.mxu0 0
    %7147 = vmatprep.subr.bf16.mxu0 0
    %7148 = vmatpush1.bf16.xpose.msra.mxu0 0
    %7149 = vmatprep.subr.bf16.mxu0 0
    %7150 = vmatpush1.bf16.xpose.msra.mxu0 0
    %7151 = vmatprep.subr.bf16.mxu0 0
    %7152 = vmatpush1.bf16.xpose.msra.mxu0 0
    %7153 = vmatprep.subr.bf16.mxu0 0
    %7154 = vmatpush1.bf16.xpose.msra.mxu0 0
    %7155 = vmatprep.subr.bf16.mxu0 0
    %7156 = vmatpush1.bf16.xpose.msra.mxu0 0
    %7157 = vmatprep.subr.bf16.mxu0 0
    %7158 = vmatpush1.bf16.xpose.msra.mxu0 0
    %7159 = vmatprep.subr.bf16.mxu0 0
    %7160 = vmatpush1.bf16.xpose.msra.mxu0 %v7143
    %7161 = vmatprep.subr.bf16.mxu0 0
    %7162 = vmatpush2.bf16.xpose.msra.mxu0 0
    %7163 = vmatprep.subr.bf16.mxu0 0
    %7164 = vmatpush2.bf16.xpose.msra.mxu0 0
    %7165 = vmatprep.subr.bf16.mxu0 0
    %7166 = vmatpush2.bf16.xpose.msra.mxu0 0
    %7167 = vmatprep.subr.bf16.mxu0 0
    %7168 = vmatpush2.bf16.xpose.msra.mxu0 0
    %7169 = vmatprep.subr.bf16.mxu0 0
    %7170 = vmatpush2.bf16.xpose.msra.mxu0 0
    %7171 = vmatprep.subr.bf16.mxu0 0
    %7172 = vmatpush2.bf16.xpose.msra.mxu0 0
    %7173 = vmatprep.subr.bf16.mxu0 0
    %7174 = vmatpush2.bf16.xpose.msra.mxu0 0
    %7175 = vmatprep.subr.bf16.mxu0 0
    %7176 = vmatpush2.bf16.xpose.msra.mxu0 0
    %7177 = vmatprep.mubr.bf16.mxu0 0
    %7178 = vmatmul.mubr.bf16.gmra.mxu0 %v7140
    %v7179 = vpop.f32.mrf.mxu0
    %v7180 = vadd.f32 0.0, %v7179
    %v7181 = vpop.f32.mrf.mxu0
    %v7182 = vpop.f32.mrf.mxu0
    %v7183 = vpop.f32.mrf.mxu0
    %7184 = vdwg.mxu0
    %v7185 = vmul.f32 %v7130, 0.35355338
    %v7186 = vmul.f32 %v7180, 0.35355338
    %v7187 = vadd.f32 %v7185, %v345
    %v7188 = vadd.f32 %v7186, %v346
    %v7189 = vsel %vm607, %v7187, -inf
    %7190 = vmax.xlane.f32.xlu0 %v7189
    %v7191 = vpop.xlane.xlu0 %7190
    %v7192 = vsel %vm607, %v7188, -inf
    %7193 = vmax.xlane.f32.xlu0 %v7192
    %v7194 = vpop.xlane.xlu0 %7193
    %v7195 = vsub.f32 %v7187, %v7191
    %v7196 = vsub.f32 %v7188, %v7194
    %v7197 = vmul.f32 %v7195, 1.442695
    %v7198 = vpow.pop %v7197
    %v7199 = vmul.f32 %v7196, 1.442695
    %v7200 = vpow.pop %v7199
    %v7201 = vsel %vm607, %v7198, 0.0
    %7202 = vadd.xlane.f32.xlu0 %v7201
    %v7203 = vpop.xlane.xlu0 %7202
    %v7204 = vsel %vm607, %v7200, 0.0
    %7205 = vadd.xlane.f32.xlu0 %v7204
    %v7206 = vpop.xlane.xlu0 %7205
    %v7207 = vrcp.pop %v7203
    %v7208 = vrcp.pop %v7206
    %v7209 = vmul.f32 %v7198, %v7207
    %v7210 = vmul.f32 %v7200, %v7208
    %v7211 = vpack.c.bf16 %v7209, %v7209
    %v7212 = vpack.c.bf16 %v7210, %v7210
    %7213 = vrot.lane.b32.xlu0 %v6413, 40
    %v7214 = vpop.permute.xlu0 %7213
    %v7216 = vsel %vm607, %v7211, 0
    %v7219 = vsel %vm4143, %v7214, 0
    %7221 = vmatprep.subr.bf16.mxu0 0
    %7222 = vmatpush1.bf16.msra.mxu0 0
    %7223 = vmatprep.subr.bf16.mxu0 0
    %7224 = vmatpush1.bf16.msra.mxu0 0
    %7225 = vmatprep.subr.bf16.mxu0 0
    %7226 = vmatpush1.bf16.msra.mxu0 0
    %7227 = vmatprep.subr.bf16.mxu0 0
    %7228 = vmatpush1.bf16.msra.mxu0 0
    %7229 = vmatprep.subr.bf16.mxu0 0
    %7230 = vmatpush1.bf16.msra.mxu0 0
    %7231 = vmatprep.subr.bf16.mxu0 0
    %7232 = vmatpush1.bf16.msra.mxu0 0
    %7233 = vmatprep.subr.bf16.mxu0 0
    %7234 = vmatpush1.bf16.msra.mxu0 0
    %7235 = vmatprep.subr.bf16.mxu0 0
    %7236 = vmatpush1.bf16.msra.mxu0 %v7219
    %7237 = vmatprep.subr.bf16.mxu0 0
    %7238 = vmatpush2.bf16.msra.mxu0 0
    %7239 = vmatprep.subr.bf16.mxu0 0
    %7240 = vmatpush2.bf16.msra.mxu0 0
    %7241 = vmatprep.subr.bf16.mxu0 0
    %7242 = vmatpush2.bf16.msra.mxu0 0
    %7243 = vmatprep.subr.bf16.mxu0 0
    %7244 = vmatpush2.bf16.msra.mxu0 0
    %7245 = vmatprep.subr.bf16.mxu0 0
    %7246 = vmatpush2.bf16.msra.mxu0 0
    %7247 = vmatprep.subr.bf16.mxu0 0
    %7248 = vmatpush2.bf16.msra.mxu0 0
    %7249 = vmatprep.subr.bf16.mxu0 0
    %7250 = vmatpush2.bf16.msra.mxu0 0
    %7251 = vmatprep.subr.bf16.mxu0 0
    %7252 = vmatpush2.bf16.msra.mxu0 0
    %7253 = vmatprep.mubr.bf16.mxu0 0
    %7254 = vmatmul.mubr.bf16.gmra.mxu0 %v7216
    %v7255 = vpop.f32.mrf.mxu0
    %v7256 = vadd.f32 0.0, %v7255
    %v7257 = vpop.f32.mrf.mxu0
    %v7258 = vpop.f32.mrf.mxu0
    %v7259 = vpop.f32.mrf.mxu0
    %7260 = vdwg.mxu0
    %7261 = vrot.lane.b32.xlu0 %v6414, 40
    %v7262 = vpop.permute.xlu0 %7261
    %v7264 = vsel %vm607, %v7212, 0
    %v7267 = vsel %vm4143, %v7262, 0
    %7269 = vmatprep.subr.bf16.mxu0 0
    %7270 = vmatpush1.bf16.msra.mxu0 0
    %7271 = vmatprep.subr.bf16.mxu0 0
    %7272 = vmatpush1.bf16.msra.mxu0 0
    %7273 = vmatprep.subr.bf16.mxu0 0
    %7274 = vmatpush1.bf16.msra.mxu0 0
    %7275 = vmatprep.subr.bf16.mxu0 0
    %7276 = vmatpush1.bf16.msra.mxu0 0
    %7277 = vmatprep.subr.bf16.mxu0 0
    %7278 = vmatpush1.bf16.msra.mxu0 0
    %7279 = vmatprep.subr.bf16.mxu0 0
    %7280 = vmatpush1.bf16.msra.mxu0 0
    %7281 = vmatprep.subr.bf16.mxu0 0
    %7282 = vmatpush1.bf16.msra.mxu0 0
    %7283 = vmatprep.subr.bf16.mxu0 0
    %7284 = vmatpush1.bf16.msra.mxu0 %v7267
    %7285 = vmatprep.subr.bf16.mxu0 0
    %7286 = vmatpush2.bf16.msra.mxu0 0
    %7287 = vmatprep.subr.bf16.mxu0 0
    %7288 = vmatpush2.bf16.msra.mxu0 0
    %7289 = vmatprep.subr.bf16.mxu0 0
    %7290 = vmatpush2.bf16.msra.mxu0 0
    %7291 = vmatprep.subr.bf16.mxu0 0
    %7292 = vmatpush2.bf16.msra.mxu0 0
    %7293 = vmatprep.subr.bf16.mxu0 0
    %7294 = vmatpush2.bf16.msra.mxu0 0
    %7295 = vmatprep.subr.bf16.mxu0 0
    %7296 = vmatpush2.bf16.msra.mxu0 0
    %7297 = vmatprep.subr.bf16.mxu0 0
    %7298 = vmatpush2.bf16.msra.mxu0 0
    %7299 = vmatprep.subr.bf16.mxu0 0
    %7300 = vmatpush2.bf16.msra.mxu0 0
    %7301 = vmatprep.mubr.bf16.mxu0 0
    %7302 = vmatmul.mubr.bf16.gmra.mxu0 %v7264
    %v7303 = vpop.f32.mrf.mxu0
    %v7304 = vadd.f32 0.0, %v7303
    %v7305 = vpop.f32.mrf.mxu0
    %v7306 = vpop.f32.mrf.mxu0
    %v7307 = vpop.f32.mrf.mxu0
    %7308 = vdwg.mxu0
    %7311 = vrot.lane.b32.xlu0 %v6808, 8
    %v7312 = vpop.permute.xlu0 %7311
    %7313 = vrot.lane.b32.xlu0 %v6856, 8
    %v7314 = vpop.permute.xlu0 %7313
    %7319 = vrot.lane.b32.xlu0 %v7032, 16
    %v7320 = vpop.permute.xlu0 %7319
    %7321 = vrot.lane.b32.xlu0 %v7080, 16
    %v7322 = vpop.permute.xlu0 %7321
    %7327 = vrot.lane.b32.xlu0 %v7256, 24
    %v7328 = vpop.permute.xlu0 %7327
    %7329 = vrot.lane.b32.xlu0 %v7304, 24
    %v7330 = vpop.permute.xlu0 %7329
    %v7333 = vsel %vm607, %v6584, %v7312
    %v7334 = vsel %vm607, %v6632, %v7314
    %v7335 = vsel %vm725, %v7333, %v7320
    %v7336 = vsel %vm725, %v7334, %v7322
    %v7337 = vsel %vm1672, %v7335, %v7328
    %v7338 = vsel %vm1672, %v7336, %v7330
    %s7339 = scalar_lea.vmem %s51, 16
    %v7340 = vld [vmem:[%s7339] sm:$0xf]
    %v7341 = vld [vmem:[%s7339 + $0x4] sm:$0xf]
    %v7342 = vld [vmem:[%s7339 + $0x8] sm:$0xf]
    %v7343 = vld [vmem:[%s7339 + $0xc] sm:$0xf]
    %s7344 = scalar_lea.vmem %s49, 1
    %v7345 = vld [vmem:[%s7344] sm:$0x1]
    %v7346 = vpack.c.bf16 %v7338, %v7337
    %v7348 = vlaneseq
    %v7349 = vshrl.u32 %v7348, 7
    %v7350 = vsub.s32 0, %v7349
    %v7351 = vrot.slane %v7345, %v7350
    %v7357 = vunpack.c.l.b16 %v7340
    %v7358 = vunpack.c.l.b16 %v7341
    %v7359 = vunpack.c.l.b16 %v7342
    %v7360 = vunpack.c.l.b16 %v7343
    %v7361 = vpack.c.b16 %v7358, %v7357
    %v7362 = vpack.c.b16 %v7360, %v7359
    %v7366 = vsel %vm546, %v7346, 0
    %7368 = vmatprep.subr.bf16.mxu0 0
    %7369 = vmatpush1.bf16.msra.mxu0 0
    %7370 = vmatprep.subr.bf16.mxu0 0
    %7371 = vmatpush1.bf16.msra.mxu0 0
    %7372 = vmatprep.subr.bf16.mxu0 0
    %7373 = vmatpush1.bf16.msra.mxu0 0
    %7374 = vmatprep.subr.bf16.mxu0 0
    %7375 = vmatpush1.bf16.msra.mxu0 0
    %7376 = vmatprep.subr.bf16.mxu0 0
    %7377 = vmatpush1.bf16.msra.mxu0 0
    %7378 = vmatprep.subr.bf16.mxu0 0
    %7379 = vmatpush1.bf16.msra.mxu0 0
    %7380 = vmatprep.subr.bf16.mxu0 0
    %7381 = vmatpush1.bf16.msra.mxu0 %v7362
    %7382 = vmatprep.subr.bf16.mxu0 0
    %7383 = vmatpush1.bf16.msra.mxu0 %v7361
    %7384 = vmatprep.subr.bf16.mxu0 0
    %7385 = vmatpush2.bf16.msra.mxu0 0
    %7386 = vmatprep.subr.bf16.mxu0 0
    %7387 = vmatpush2.bf16.msra.mxu0 0
    %7388 = vmatprep.subr.bf16.mxu0 0
    %7389 = vmatpush2.bf16.msra.mxu0 0
    %7390 = vmatprep.subr.bf16.mxu0 0
    %7391 = vmatpush2.bf16.msra.mxu0 0
    %7392 = vmatprep.subr.bf16.mxu0 0
    %7393 = vmatpush2.bf16.msra.mxu0 0
    %7394 = vmatprep.subr.bf16.mxu0 0
    %7395 = vmatpush2.bf16.msra.mxu0 0
    %7396 = vmatprep.subr.bf16.mxu0 0
    %7397 = vmatpush2.bf16.msra.mxu0 0
    %7398 = vmatprep.subr.bf16.mxu0 0
    %7399 = vmatpush2.bf16.msra.mxu0 0
    %7400 = vmatprep.mubr.bf16.mxu0 0
    %7401 = vmatmul.mubr.bf16.gmra.mxu0 %v7366
    %v7402 = vpop.f32.mrf.mxu0
    %v7403 = vadd.f32 %v7351, %v7402
    %v7404 = vpop.f32.mrf.mxu0
    %v7405 = vpop.f32.mrf.mxu0
    %v7406 = vadd.f32 %v7351, %v7405
    %v7407 = vpop.f32.mrf.mxu0
    %7408 = vdwg.mxu0
    %v7409 = vadd.f32 %v6341, %v7403
    %v7410 = vadd.f32 %v6342, %v7406
    %s7411 = scalar_lea.vmem %s39, 1
    %v7412 = vld [vmem:[%s7411] sm:$0x1]
    %s7413 = scalar_lea.vmem %s37, 1
    %v7414 = vld [vmem:[%s7413] sm:$0x1]
    %v7415 = vsel %vm546, %v7409, 0.0
    %7416 = vadd.xlane.f32.xlu0 %v7415
    %v7417 = vpop.xlane.xlu0 %7416
    %v7418 = vsel %vm546, %v7410, 0.0
    %7419 = vadd.xlane.f32.xlu0 %v7418
    %v7420 = vpop.xlane.xlu0 %7419
    %v7421 = vmul.f32 %v7417, %v1775
    %v7422 = vmul.f32 %v7420, %v1775
    %v7423 = vsub.f32 %v7409, %v7421
    %v7424 = vsub.f32 %v7410, %v7422
    %v7425 = vmul.f32 %v7423, %v7423
    %v7426 = vmul.f32 %v7424, %v7424
    %v7427 = vsel %vm546, %v7425, 0.0
    %7428 = vadd.xlane.f32.xlu0 %v7427
    %v7429 = vpop.xlane.xlu0 %7428
    %v7430 = vsel %vm546, %v7426, 0.0
    %7431 = vadd.xlane.f32.xlu0 %v7430
    %v7432 = vpop.xlane.xlu0 %7431
    %v7433 = vmul.f32 %v7429, %v1775
    %v7434 = vmul.f32 %v7432, %v1775
    %v7435 = vadd.f32 %v7433, 1e-05
    %v7436 = vadd.f32 %v7434, 1e-05
    %v7437 = vrsqrt.pop %v7435
    %v7438 = vrsqrt.pop %v7436
    %v7439 = vmul.f32 %v7423, %v7437
    %v7440 = vmul.f32 %v7424, %v7438
    %v7442 = vlaneseq
    %v7443 = vshrl.u32 %v7442, 7
    %v7444 = vsub.s32 0, %v7443
    %v7445 = vrot.slane %v7412, %v7444
    %v7447 = vmul.f32 %v7439, %v7445
    %v7448 = vmul.f32 %v7440, %v7445
    %v7450 = vlaneseq
    %v7451 = vshrl.u32 %v7450, 7
    %v7452 = vsub.s32 0, %v7451
    %v7453 = vrot.slane %v7414, %v7452
    %v7455 = vadd.f32 %v7447, %v7453
    %v7456 = vadd.f32 %v7448, %v7453
    %s7457 = scalar_lea.vmem %s27, 16
    %v7458 = vld [vmem:[%s7457] sm:$0xf]
    %v7459 = vld [vmem:[%s7457 + $0x4] sm:$0xf]
    %v7460 = vld [vmem:[%s7457 + $0x8] sm:$0xf]
    %v7461 = vld [vmem:[%s7457 + $0xc] sm:$0xf]
    %s7462 = scalar_lea.vmem %s25, 1
    %v7463 = vld [vmem:[%s7462] sm:$0x1]
    %v7464 = vpack.c.bf16 %v7456, %v7455
    %v7466 = vlaneseq
    %v7467 = vshrl.u32 %v7466, 7
    %v7468 = vsub.s32 0, %v7467
    %v7469 = vrot.slane %v7463, %v7468
    %v7475 = vunpack.c.l.b16 %v7458
    %v7476 = vunpack.c.l.b16 %v7459
    %v7477 = vunpack.c.l.b16 %v7460
    %v7478 = vunpack.c.l.b16 %v7461
    %v7479 = vpack.c.b16 %v7476, %v7475
    %v7480 = vpack.c.b16 %v7478, %v7477
    %v7484 = vsel %vm546, %v7464, 0
    %7486 = vmatprep.subr.bf16.mxu0 0
    %7487 = vmatpush1.bf16.msra.mxu0 0
    %7488 = vmatprep.subr.bf16.mxu0 0
    %7489 = vmatpush1.bf16.msra.mxu0 0
    %7490 = vmatprep.subr.bf16.mxu0 0
    %7491 = vmatpush1.bf16.msra.mxu0 0
    %7492 = vmatprep.subr.bf16.mxu0 0
    %7493 = vmatpush1.bf16.msra.mxu0 0
    %7494 = vmatprep.subr.bf16.mxu0 0
    %7495 = vmatpush1.bf16.msra.mxu0 0
    %7496 = vmatprep.subr.bf16.mxu0 0
    %7497 = vmatpush1.bf16.msra.mxu0 0
    %7498 = vmatprep.subr.bf16.mxu0 0
    %7499 = vmatpush1.bf16.msra.mxu0 %v7480
    %7500 = vmatprep.subr.bf16.mxu0 0
    %7501 = vmatpush1.bf16.msra.mxu0 %v7479
    %7502 = vmatprep.subr.bf16.mxu0 0
    %7503 = vmatpush2.bf16.msra.mxu0 0
    %7504 = vmatprep.subr.bf16.mxu0 0
    %7505 = vmatpush2.bf16.msra.mxu0 0
    %7506 = vmatprep.subr.bf16.mxu0 0
    %7507 = vmatpush2.bf16.msra.mxu0 0
    %7508 = vmatprep.subr.bf16.mxu0 0
    %7509 = vmatpush2.bf16.msra.mxu0 0
    %7510 = vmatprep.subr.bf16.mxu0 0
    %7511 = vmatpush2.bf16.msra.mxu0 0
    %7512 = vmatprep.subr.bf16.mxu0 0
    %7513 = vmatpush2.bf16.msra.mxu0 0
    %7514 = vmatprep.subr.bf16.mxu0 0
    %7515 = vmatpush2.bf16.msra.mxu0 0
    %7516 = vmatprep.subr.bf16.mxu0 0
    %7517 = vmatpush2.bf16.msra.mxu0 0
    %7518 = vmatprep.mubr.bf16.mxu0 0
    %7519 = vmatmul.mubr.bf16.gmra.mxu0 %v7484
    %v7520 = vpop.f32.mrf.mxu0
    %v7521 = vadd.f32 %v7469, %v7520
    %v7522 = vpop.f32.mrf.mxu0
    %v7523 = vpop.f32.mrf.mxu0
    %v7524 = vadd.f32 %v7469, %v7523
    %v7525 = vpop.f32.mrf.mxu0
    %7526 = vdwg.mxu0
    %v7527 = vpack.c.bf16 %v7521, %v7521
    %v7528 = vpack.c.bf16 %v7524, %v7524
    %7529 = vrot.lane.b32.xlu0 %v5121, 64
    %v7530 = vpop.permute.xlu0 %7529
    %v7532 = vsel %vm607, %v7527, 0
    %v7535 = vsel %vm607, %v7530, 0
    %7537 = vmatprep.subr.bf16.mxu0 0
    %7538 = vmatpush1.bf16.xpose.msra.mxu0 0
    %7539 = vmatprep.subr.bf16.mxu0 0
    %7540 = vmatpush1.bf16.xpose.msra.mxu0 0
    %7541 = vmatprep.subr.bf16.mxu0 0
    %7542 = vmatpush1.bf16.xpose.msra.mxu0 0
    %7543 = vmatprep.subr.bf16.mxu0 0
    %7544 = vmatpush1.bf16.xpose.msra.mxu0 0
    %7545 = vmatprep.subr.bf16.mxu0 0
    %7546 = vmatpush1.bf16.xpose.msra.mxu0 0
    %7547 = vmatprep.subr.bf16.mxu0 0
    %7548 = vmatpush1.bf16.xpose.msra.mxu0 0
    %7549 = vmatprep.subr.bf16.mxu0 0
    %7550 = vmatpush1.bf16.xpose.msra.mxu0 0
    %7551 = vmatprep.subr.bf16.mxu0 0
    %7552 = vmatpush1.bf16.xpose.msra.mxu0 %v7535
    %7553 = vmatprep.subr.bf16.mxu0 0
    %7554 = vmatpush2.bf16.xpose.msra.mxu0 0
    %7555 = vmatprep.subr.bf16.mxu0 0
    %7556 = vmatpush2.bf16.xpose.msra.mxu0 0
    %7557 = vmatprep.subr.bf16.mxu0 0
    %7558 = vmatpush2.bf16.xpose.msra.mxu0 0
    %7559 = vmatprep.subr.bf16.mxu0 0
    %7560 = vmatpush2.bf16.xpose.msra.mxu0 0
    %7561 = vmatprep.subr.bf16.mxu0 0
    %7562 = vmatpush2.bf16.xpose.msra.mxu0 0
    %7563 = vmatprep.subr.bf16.mxu0 0
    %7564 = vmatpush2.bf16.xpose.msra.mxu0 0
    %7565 = vmatprep.subr.bf16.mxu0 0
    %7566 = vmatpush2.bf16.xpose.msra.mxu0 0
    %7567 = vmatprep.subr.bf16.mxu0 0
    %7568 = vmatpush2.bf16.xpose.msra.mxu0 0
    %7569 = vmatprep.mubr.bf16.mxu0 0
    %7570 = vmatmul.mubr.bf16.gmra.mxu0 %v7532
    %v7571 = vpop.f32.mrf.mxu0
    %v7572 = vadd.f32 0.0, %v7571
    %v7573 = vpop.f32.mrf.mxu0
    %v7574 = vpop.f32.mrf.mxu0
    %v7575 = vpop.f32.mrf.mxu0
    %7576 = vdwg.mxu0
    %7577 = vrot.lane.b32.xlu0 %v5122, 64
    %v7578 = vpop.permute.xlu0 %7577
    %v7580 = vsel %vm607, %v7528, 0
    %v7583 = vsel %vm607, %v7578, 0
    %7585 = vmatprep.subr.bf16.mxu0 0
    %7586 = vmatpush1.bf16.xpose.msra.mxu0 0
    %7587 = vmatprep.subr.bf16.mxu0 0
    %7588 = vmatpush1.bf16.xpose.msra.mxu0 0
    %7589 = vmatprep.subr.bf16.mxu0 0
    %7590 = vmatpush1.bf16.xpose.msra.mxu0 0
    %7591 = vmatprep.subr.bf16.mxu0 0
    %7592 = vmatpush1.bf16.xpose.msra.mxu0 0
    %7593 = vmatprep.subr.bf16.mxu0 0
    %7594 = vmatpush1.bf16.xpose.msra.mxu0 0
    %7595 = vmatprep.subr.bf16.mxu0 0
    %7596 = vmatpush1.bf16.xpose.msra.mxu0 0
    %7597 = vmatprep.subr.bf16.mxu0 0
    %7598 = vmatpush1.bf16.xpose.msra.mxu0 0
    %7599 = vmatprep.subr.bf16.mxu0 0
    %7600 = vmatpush1.bf16.xpose.msra.mxu0 %v7583
    %7601 = vmatprep.subr.bf16.mxu0 0
    %7602 = vmatpush2.bf16.xpose.msra.mxu0 0
    %7603 = vmatprep.subr.bf16.mxu0 0
    %7604 = vmatpush2.bf16.xpose.msra.mxu0 0
    %7605 = vmatprep.subr.bf16.mxu0 0
    %7606 = vmatpush2.bf16.xpose.msra.mxu0 0
    %7607 = vmatprep.subr.bf16.mxu0 0
    %7608 = vmatpush2.bf16.xpose.msra.mxu0 0
    %7609 = vmatprep.subr.bf16.mxu0 0
    %7610 = vmatpush2.bf16.xpose.msra.mxu0 0
    %7611 = vmatprep.subr.bf16.mxu0 0
    %7612 = vmatpush2.bf16.xpose.msra.mxu0 0
    %7613 = vmatprep.subr.bf16.mxu0 0
    %7614 = vmatpush2.bf16.xpose.msra.mxu0 0
    %7615 = vmatprep.subr.bf16.mxu0 0
    %7616 = vmatpush2.bf16.xpose.msra.mxu0 0
    %7617 = vmatprep.mubr.bf16.mxu0 0
    %7618 = vmatmul.mubr.bf16.gmra.mxu0 %v7580
    %v7619 = vpop.f32.mrf.mxu0
    %v7620 = vadd.f32 0.0, %v7619
    %v7621 = vpop.f32.mrf.mxu0
    %v7622 = vpop.f32.mrf.mxu0
    %v7623 = vpop.f32.mrf.mxu0
    %7624 = vdwg.mxu0
    %v7625 = vmul.f32 %v7572, 0.35355338
    %v7626 = vmul.f32 %v7620, 0.35355338
    %v7627 = vadd.f32 %v7625, %v714
    %v7628 = vadd.f32 %v7626, %v718
    %v7629 = vsel %vm725, %v7627, -inf
    %7630 = vmax.xlane.f32.xlu0 %v7629
    %v7631 = vpop.xlane.xlu0 %7630
    %v7632 = vsel %vm725, %v7628, -inf
    %7633 = vmax.xlane.f32.xlu0 %v7632
    %v7634 = vpop.xlane.xlu0 %7633
    %v7635 = vsub.f32 %v7627, %v7631
    %v7636 = vsub.f32 %v7628, %v7634
    %v7637 = vmul.f32 %v7635, 1.442695
    %v7638 = vpow.pop %v7637
    %v7639 = vmul.f32 %v7636, 1.442695
    %v7640 = vpow.pop %v7639
    %v7641 = vsel %vm725, %v7638, 0.0
    %7642 = vadd.xlane.f32.xlu0 %v7641
    %v7643 = vpop.xlane.xlu0 %7642
    %v7644 = vsel %vm725, %v7640, 0.0
    %7645 = vadd.xlane.f32.xlu0 %v7644
    %v7646 = vpop.xlane.xlu0 %7645
    %v7647 = vrcp.pop %v7643
    %v7648 = vrcp.pop %v7646
    %v7649 = vmul.f32 %v7638, %v7647
    %v7650 = vmul.f32 %v7640, %v7648
    %v7651 = vpack.c.bf16 %v7649, %v7649
    %v7652 = vpack.c.bf16 %v7650, %v7650
    %7653 = vrot.lane.b32.xlu0 %v5121, 32
    %v7654 = vpop.permute.xlu0 %7653
    %v7657 = vsel %vm725, %v7651, 0
    %7659 = vmatprep.subr.bf16.mxu0 0
    %7660 = vmatpush1.bf16.msra.mxu0 0
    %7661 = vmatprep.subr.bf16.mxu0 0
    %7662 = vmatpush1.bf16.msra.mxu0 0
    %7663 = vmatprep.subr.bf16.mxu0 0
    %7664 = vmatpush1.bf16.msra.mxu0 0
    %7665 = vmatprep.subr.bf16.mxu0 0
    %7666 = vmatpush1.bf16.msra.mxu0 0
    %7667 = vmatprep.subr.bf16.mxu0 0
    %7668 = vmatpush1.bf16.msra.mxu0 0
    %7669 = vmatprep.subr.bf16.mxu0 0
    %7670 = vmatpush1.bf16.msra.mxu0 0
    %7671 = vmatprep.subr.bf16.mxu0 0
    %7672 = vmatpush1.bf16.msra.mxu0 0
    %7673 = vmatprep.subr.bf16.mxu0 0
    %7674 = vmatpush1.bf16.msra.mxu0 %v7654
    %7675 = vmatprep.subr.bf16.mxu0 0
    %7676 = vmatpush2.bf16.msra.mxu0 0
    %7677 = vmatprep.subr.bf16.mxu0 0
    %7678 = vmatpush2.bf16.msra.mxu0 0
    %7679 = vmatprep.subr.bf16.mxu0 0
    %7680 = vmatpush2.bf16.msra.mxu0 0
    %7681 = vmatprep.subr.bf16.mxu0 0
    %7682 = vmatpush2.bf16.msra.mxu0 0
    %7683 = vmatprep.subr.bf16.mxu0 0
    %7684 = vmatpush2.bf16.msra.mxu0 0
    %7685 = vmatprep.subr.bf16.mxu0 0
    %7686 = vmatpush2.bf16.msra.mxu0 0
    %7687 = vmatprep.subr.bf16.mxu0 0
    %7688 = vmatpush2.bf16.msra.mxu0 0
    %7689 = vmatprep.subr.bf16.mxu0 0
    %7690 = vmatpush2.bf16.msra.mxu0 0
    %7691 = vmatprep.mubr.bf16.mxu0 0
    %7692 = vmatmul.mubr.bf16.gmra.mxu0 %v7657
    %v7693 = vpop.f32.mrf.mxu0
    %v7694 = vadd.f32 0.0, %v7693
    %v7695 = vpop.f32.mrf.mxu0
    %v7696 = vpop.f32.mrf.mxu0
    %v7697 = vpop.f32.mrf.mxu0
    %7698 = vdwg.mxu0
    %7699 = vrot.lane.b32.xlu0 %v5122, 32
    %v7700 = vpop.permute.xlu0 %7699
    %v7703 = vsel %vm725, %v7652, 0
    %7705 = vmatprep.subr.bf16.mxu0 0
    %7706 = vmatpush1.bf16.msra.mxu0 0
    %7707 = vmatprep.subr.bf16.mxu0 0
    %7708 = vmatpush1.bf16.msra.mxu0 0
    %7709 = vmatprep.subr.bf16.mxu0 0
    %7710 = vmatpush1.bf16.msra.mxu0 0
    %7711 = vmatprep.subr.bf16.mxu0 0
    %7712 = vmatpush1.bf16.msra.mxu0 0
    %7713 = vmatprep.subr.bf16.mxu0 0
    %7714 = vmatpush1.bf16.msra.mxu0 0
    %7715 = vmatprep.subr.bf16.mxu0 0
    %7716 = vmatpush1.bf16.msra.mxu0 0
    %7717 = vmatprep.subr.bf16.mxu0 0
    %7718 = vmatpush1.bf16.msra.mxu0 0
    %7719 = vmatprep.subr.bf16.mxu0 0
    %7720 = vmatpush1.bf16.msra.mxu0 %v7700
    %7721 = vmatprep.subr.bf16.mxu0 0
    %7722 = vmatpush2.bf16.msra.mxu0 0
    %7723 = vmatprep.subr.bf16.mxu0 0
    %7724 = vmatpush2.bf16.msra.mxu0 0
    %7725 = vmatprep.subr.bf16.mxu0 0
    %7726 = vmatpush2.bf16.msra.mxu0 0
    %7727 = vmatprep.subr.bf16.mxu0 0
    %7728 = vmatpush2.bf16.msra.mxu0 0
    %7729 = vmatprep.subr.bf16.mxu0 0
    %7730 = vmatpush2.bf16.msra.mxu0 0
    %7731 = vmatprep.subr.bf16.mxu0 0
    %7732 = vmatpush2.bf16.msra.mxu0 0
    %7733 = vmatprep.subr.bf16.mxu0 0
    %7734 = vmatpush2.bf16.msra.mxu0 0
    %7735 = vmatprep.subr.bf16.mxu0 0
    %7736 = vmatpush2.bf16.msra.mxu0 0
    %7737 = vmatprep.mubr.bf16.mxu0 0
    %7738 = vmatmul.mubr.bf16.gmra.mxu0 %v7703
    %v7739 = vpop.f32.mrf.mxu0
    %v7740 = vadd.f32 0.0, %v7739
    %v7741 = vpop.f32.mrf.mxu0
    %v7742 = vpop.f32.mrf.mxu0
    %v7743 = vpop.f32.mrf.mxu0
    %7744 = vdwg.mxu0
    %7746 = vrot.lane.b32.xlu0 %v7527, 120
    %v7747 = vpop.permute.xlu0 %7746
    %7748 = vrot.lane.b32.xlu0 %v5121, 56
    %v7749 = vpop.permute.xlu0 %7748
    %v7751 = vsel %vm607, %v7747, 0
    %v7754 = vsel %vm607, %v7749, 0
    %7756 = vmatprep.subr.bf16.mxu0 0
    %7757 = vmatpush1.bf16.xpose.msra.mxu0 0
    %7758 = vmatprep.subr.bf16.mxu0 0
    %7759 = vmatpush1.bf16.xpose.msra.mxu0 0
    %7760 = vmatprep.subr.bf16.mxu0 0
    %7761 = vmatpush1.bf16.xpose.msra.mxu0 0
    %7762 = vmatprep.subr.bf16.mxu0 0
    %7763 = vmatpush1.bf16.xpose.msra.mxu0 0
    %7764 = vmatprep.subr.bf16.mxu0 0
    %7765 = vmatpush1.bf16.xpose.msra.mxu0 0
    %7766 = vmatprep.subr.bf16.mxu0 0
    %7767 = vmatpush1.bf16.xpose.msra.mxu0 0
    %7768 = vmatprep.subr.bf16.mxu0 0
    %7769 = vmatpush1.bf16.xpose.msra.mxu0 0
    %7770 = vmatprep.subr.bf16.mxu0 0
    %7771 = vmatpush1.bf16.xpose.msra.mxu0 %v7754
    %7772 = vmatprep.subr.bf16.mxu0 0
    %7773 = vmatpush2.bf16.xpose.msra.mxu0 0
    %7774 = vmatprep.subr.bf16.mxu0 0
    %7775 = vmatpush2.bf16.xpose.msra.mxu0 0
    %7776 = vmatprep.subr.bf16.mxu0 0
    %7777 = vmatpush2.bf16.xpose.msra.mxu0 0
    %7778 = vmatprep.subr.bf16.mxu0 0
    %7779 = vmatpush2.bf16.xpose.msra.mxu0 0
    %7780 = vmatprep.subr.bf16.mxu0 0
    %7781 = vmatpush2.bf16.xpose.msra.mxu0 0
    %7782 = vmatprep.subr.bf16.mxu0 0
    %7783 = vmatpush2.bf16.xpose.msra.mxu0 0
    %7784 = vmatprep.subr.bf16.mxu0 0
    %7785 = vmatpush2.bf16.xpose.msra.mxu0 0
    %7786 = vmatprep.subr.bf16.mxu0 0
    %7787 = vmatpush2.bf16.xpose.msra.mxu0 0
    %7788 = vmatprep.mubr.bf16.mxu0 0
    %7789 = vmatmul.mubr.bf16.gmra.mxu0 %v7751
    %v7790 = vpop.f32.mrf.mxu0
    %v7791 = vadd.f32 0.0, %v7790
    %v7792 = vpop.f32.mrf.mxu0
    %v7793 = vpop.f32.mrf.mxu0
    %v7794 = vpop.f32.mrf.mxu0
    %7795 = vdwg.mxu0
    %7797 = vrot.lane.b32.xlu0 %v7528, 120
    %v7798 = vpop.permute.xlu0 %7797
    %7799 = vrot.lane.b32.xlu0 %v5122, 56
    %v7800 = vpop.permute.xlu0 %7799
    %v7802 = vsel %vm607, %v7798, 0
    %v7805 = vsel %vm607, %v7800, 0
    %7807 = vmatprep.subr.bf16.mxu0 0
    %7808 = vmatpush1.bf16.xpose.msra.mxu0 0
    %7809 = vmatprep.subr.bf16.mxu0 0
    %7810 = vmatpush1.bf16.xpose.msra.mxu0 0
    %7811 = vmatprep.subr.bf16.mxu0 0
    %7812 = vmatpush1.bf16.xpose.msra.mxu0 0
    %7813 = vmatprep.subr.bf16.mxu0 0
    %7814 = vmatpush1.bf16.xpose.msra.mxu0 0
    %7815 = vmatprep.subr.bf16.mxu0 0
    %7816 = vmatpush1.bf16.xpose.msra.mxu0 0
    %7817 = vmatprep.subr.bf16.mxu0 0
    %7818 = vmatpush1.bf16.xpose.msra.mxu0 0
    %7819 = vmatprep.subr.bf16.mxu0 0
    %7820 = vmatpush1.bf16.xpose.msra.mxu0 0
    %7821 = vmatprep.subr.bf16.mxu0 0
    %7822 = vmatpush1.bf16.xpose.msra.mxu0 %v7805
    %7823 = vmatprep.subr.bf16.mxu0 0
    %7824 = vmatpush2.bf16.xpose.msra.mxu0 0
    %7825 = vmatprep.subr.bf16.mxu0 0
    %7826 = vmatpush2.bf16.xpose.msra.mxu0 0
    %7827 = vmatprep.subr.bf16.mxu0 0
    %7828 = vmatpush2.bf16.xpose.msra.mxu0 0
    %7829 = vmatprep.subr.bf16.mxu0 0
    %7830 = vmatpush2.bf16.xpose.msra.mxu0 0
    %7831 = vmatprep.subr.bf16.mxu0 0
    %7832 = vmatpush2.bf16.xpose.msra.mxu0 0
    %7833 = vmatprep.subr.bf16.mxu0 0
    %7834 = vmatpush2.bf16.xpose.msra.mxu0 0
    %7835 = vmatprep.subr.bf16.mxu0 0
    %7836 = vmatpush2.bf16.xpose.msra.mxu0 0
    %7837 = vmatprep.subr.bf16.mxu0 0
    %7838 = vmatpush2.bf16.xpose.msra.mxu0 0
    %7839 = vmatprep.mubr.bf16.mxu0 0
    %7840 = vmatmul.mubr.bf16.gmra.mxu0 %v7802
    %v7841 = vpop.f32.mrf.mxu0
    %v7842 = vadd.f32 0.0, %v7841
    %v7843 = vpop.f32.mrf.mxu0
    %v7844 = vpop.f32.mrf.mxu0
    %v7845 = vpop.f32.mrf.mxu0
    %7846 = vdwg.mxu0
    %v7847 = vmul.f32 %v7791, 0.35355338
    %v7848 = vmul.f32 %v7842, 0.35355338
    %v7849 = vadd.f32 %v7847, %v714
    %v7850 = vadd.f32 %v7848, %v718
    %v7851 = vsel %vm725, %v7849, -inf
    %7852 = vmax.xlane.f32.xlu0 %v7851
    %v7853 = vpop.xlane.xlu0 %7852
    %v7854 = vsel %vm725, %v7850, -inf
    %7855 = vmax.xlane.f32.xlu0 %v7854
    %v7856 = vpop.xlane.xlu0 %7855
    %v7857 = vsub.f32 %v7849, %v7853
    %v7858 = vsub.f32 %v7850, %v7856
    %v7859 = vmul.f32 %v7857, 1.442695
    %v7860 = vpow.pop %v7859
    %v7861 = vmul.f32 %v7858, 1.442695
    %v7862 = vpow.pop %v7861
    %v7863 = vsel %vm725, %v7860, 0.0
    %7864 = vadd.xlane.f32.xlu0 %v7863
    %v7865 = vpop.xlane.xlu0 %7864
    %v7866 = vsel %vm725, %v7862, 0.0
    %7867 = vadd.xlane.f32.xlu0 %v7866
    %v7868 = vpop.xlane.xlu0 %7867
    %v7869 = vrcp.pop %v7865
    %v7870 = vrcp.pop %v7868
    %v7871 = vmul.f32 %v7860, %v7869
    %v7872 = vmul.f32 %v7862, %v7870
    %v7873 = vpack.c.bf16 %v7871, %v7871
    %v7874 = vpack.c.bf16 %v7872, %v7872
    %7875 = vrot.lane.b32.xlu0 %v5121, 24
    %v7876 = vpop.permute.xlu0 %7875
    %v7879 = vsel %vm725, %v7873, 0
    %7881 = vmatprep.subr.bf16.mxu0 0
    %7882 = vmatpush1.bf16.msra.mxu0 0
    %7883 = vmatprep.subr.bf16.mxu0 0
    %7884 = vmatpush1.bf16.msra.mxu0 0
    %7885 = vmatprep.subr.bf16.mxu0 0
    %7886 = vmatpush1.bf16.msra.mxu0 0
    %7887 = vmatprep.subr.bf16.mxu0 0
    %7888 = vmatpush1.bf16.msra.mxu0 0
    %7889 = vmatprep.subr.bf16.mxu0 0
    %7890 = vmatpush1.bf16.msra.mxu0 0
    %7891 = vmatprep.subr.bf16.mxu0 0
    %7892 = vmatpush1.bf16.msra.mxu0 0
    %7893 = vmatprep.subr.bf16.mxu0 0
    %7894 = vmatpush1.bf16.msra.mxu0 0
    %7895 = vmatprep.subr.bf16.mxu0 0
    %7896 = vmatpush1.bf16.msra.mxu0 %v7876
    %7897 = vmatprep.subr.bf16.mxu0 0
    %7898 = vmatpush2.bf16.msra.mxu0 0
    %7899 = vmatprep.subr.bf16.mxu0 0
    %7900 = vmatpush2.bf16.msra.mxu0 0
    %7901 = vmatprep.subr.bf16.mxu0 0
    %7902 = vmatpush2.bf16.msra.mxu0 0
    %7903 = vmatprep.subr.bf16.mxu0 0
    %7904 = vmatpush2.bf16.msra.mxu0 0
    %7905 = vmatprep.subr.bf16.mxu0 0
    %7906 = vmatpush2.bf16.msra.mxu0 0
    %7907 = vmatprep.subr.bf16.mxu0 0
    %7908 = vmatpush2.bf16.msra.mxu0 0
    %7909 = vmatprep.subr.bf16.mxu0 0
    %7910 = vmatpush2.bf16.msra.mxu0 0
    %7911 = vmatprep.subr.bf16.mxu0 0
    %7912 = vmatpush2.bf16.msra.mxu0 0
    %7913 = vmatprep.mubr.bf16.mxu0 0
    %7914 = vmatmul.mubr.bf16.gmra.mxu0 %v7879
    %v7915 = vpop.f32.mrf.mxu0
    %v7916 = vadd.f32 0.0, %v7915
    %v7917 = vpop.f32.mrf.mxu0
    %v7918 = vpop.f32.mrf.mxu0
    %v7919 = vpop.f32.mrf.mxu0
    %7920 = vdwg.mxu0
    %7921 = vrot.lane.b32.xlu0 %v5122, 24
    %v7922 = vpop.permute.xlu0 %7921
    %v7925 = vsel %vm725, %v7874, 0
    %7927 = vmatprep.subr.bf16.mxu0 0
    %7928 = vmatpush1.bf16.msra.mxu0 0
    %7929 = vmatprep.subr.bf16.mxu0 0
    %7930 = vmatpush1.bf16.msra.mxu0 0
    %7931 = vmatprep.subr.bf16.mxu0 0
    %7932 = vmatpush1.bf16.msra.mxu0 0
    %7933 = vmatprep.subr.bf16.mxu0 0
    %7934 = vmatpush1.bf16.msra.mxu0 0
    %7935 = vmatprep.subr.bf16.mxu0 0
    %7936 = vmatpush1.bf16.msra.mxu0 0
    %7937 = vmatprep.subr.bf16.mxu0 0
    %7938 = vmatpush1.bf16.msra.mxu0 0
    %7939 = vmatprep.subr.bf16.mxu0 0
    %7940 = vmatpush1.bf16.msra.mxu0 0
    %7941 = vmatprep.subr.bf16.mxu0 0
    %7942 = vmatpush1.bf16.msra.mxu0 %v7922
    %7943 = vmatprep.subr.bf16.mxu0 0
    %7944 = vmatpush2.bf16.msra.mxu0 0
    %7945 = vmatprep.subr.bf16.mxu0 0
    %7946 = vmatpush2.bf16.msra.mxu0 0
    %7947 = vmatprep.subr.bf16.mxu0 0
    %7948 = vmatpush2.bf16.msra.mxu0 0
    %7949 = vmatprep.subr.bf16.mxu0 0
    %7950 = vmatpush2.bf16.msra.mxu0 0
    %7951 = vmatprep.subr.bf16.mxu0 0
    %7952 = vmatpush2.bf16.msra.mxu0 0
    %7953 = vmatprep.subr.bf16.mxu0 0
    %7954 = vmatpush2.bf16.msra.mxu0 0
    %7955 = vmatprep.subr.bf16.mxu0 0
    %7956 = vmatpush2.bf16.msra.mxu0 0
    %7957 = vmatprep.subr.bf16.mxu0 0
    %7958 = vmatpush2.bf16.msra.mxu0 0
    %7959 = vmatprep.mubr.bf16.mxu0 0
    %7960 = vmatmul.mubr.bf16.gmra.mxu0 %v7925
    %v7961 = vpop.f32.mrf.mxu0
    %v7962 = vadd.f32 0.0, %v7961
    %v7963 = vpop.f32.mrf.mxu0
    %v7964 = vpop.f32.mrf.mxu0
    %v7965 = vpop.f32.mrf.mxu0
    %7966 = vdwg.mxu0
    %7967 = vrot.lane.b32.xlu0 %v7527, 112
    %v7968 = vpop.permute.xlu0 %7967
    %7969 = vrot.lane.b32.xlu0 %v5121, 48
    %v7970 = vpop.permute.xlu0 %7969
    %v7972 = vsel %vm607, %v7968, 0
    %v7975 = vsel %vm607, %v7970, 0
    %7977 = vmatprep.subr.bf16.mxu0 0
    %7978 = vmatpush1.bf16.xpose.msra.mxu0 0
    %7979 = vmatprep.subr.bf16.mxu0 0
    %7980 = vmatpush1.bf16.xpose.msra.mxu0 0
    %7981 = vmatprep.subr.bf16.mxu0 0
    %7982 = vmatpush1.bf16.xpose.msra.mxu0 0
    %7983 = vmatprep.subr.bf16.mxu0 0
    %7984 = vmatpush1.bf16.xpose.msra.mxu0 0
    %7985 = vmatprep.subr.bf16.mxu0 0
    %7986 = vmatpush1.bf16.xpose.msra.mxu0 0
    %7987 = vmatprep.subr.bf16.mxu0 0
    %7988 = vmatpush1.bf16.xpose.msra.mxu0 0
    %7989 = vmatprep.subr.bf16.mxu0 0
    %7990 = vmatpush1.bf16.xpose.msra.mxu0 0
    %7991 = vmatprep.subr.bf16.mxu0 0
    %7992 = vmatpush1.bf16.xpose.msra.mxu0 %v7975
    %7993 = vmatprep.subr.bf16.mxu0 0
    %7994 = vmatpush2.bf16.xpose.msra.mxu0 0
    %7995 = vmatprep.subr.bf16.mxu0 0
    %7996 = vmatpush2.bf16.xpose.msra.mxu0 0
    %7997 = vmatprep.subr.bf16.mxu0 0
    %7998 = vmatpush2.bf16.xpose.msra.mxu0 0
    %7999 = vmatprep.subr.bf16.mxu0 0
    %8000 = vmatpush2.bf16.xpose.msra.mxu0 0
    %8001 = vmatprep.subr.bf16.mxu0 0
    %8002 = vmatpush2.bf16.xpose.msra.mxu0 0
    %8003 = vmatprep.subr.bf16.mxu0 0
    %8004 = vmatpush2.bf16.xpose.msra.mxu0 0
    %8005 = vmatprep.subr.bf16.mxu0 0
    %8006 = vmatpush2.bf16.xpose.msra.mxu0 0
    %8007 = vmatprep.subr.bf16.mxu0 0
    %8008 = vmatpush2.bf16.xpose.msra.mxu0 0
    %8009 = vmatprep.mubr.bf16.mxu0 0
    %8010 = vmatmul.mubr.bf16.gmra.mxu0 %v7972
    %v8011 = vpop.f32.mrf.mxu0
    %v8012 = vadd.f32 0.0, %v8011
    %v8013 = vpop.f32.mrf.mxu0
    %v8014 = vpop.f32.mrf.mxu0
    %v8015 = vpop.f32.mrf.mxu0
    %8016 = vdwg.mxu0
    %8017 = vrot.lane.b32.xlu0 %v7528, 112
    %v8018 = vpop.permute.xlu0 %8017
    %8019 = vrot.lane.b32.xlu0 %v5122, 48
    %v8020 = vpop.permute.xlu0 %8019
    %v8022 = vsel %vm607, %v8018, 0
    %v8025 = vsel %vm607, %v8020, 0
    %8027 = vmatprep.subr.bf16.mxu0 0
    %8028 = vmatpush1.bf16.xpose.msra.mxu0 0
    %8029 = vmatprep.subr.bf16.mxu0 0
    %8030 = vmatpush1.bf16.xpose.msra.mxu0 0
    %8031 = vmatprep.subr.bf16.mxu0 0
    %8032 = vmatpush1.bf16.xpose.msra.mxu0 0
    %8033 = vmatprep.subr.bf16.mxu0 0
    %8034 = vmatpush1.bf16.xpose.msra.mxu0 0
    %8035 = vmatprep.subr.bf16.mxu0 0
    %8036 = vmatpush1.bf16.xpose.msra.mxu0 0
    %8037 = vmatprep.subr.bf16.mxu0 0
    %8038 = vmatpush1.bf16.xpose.msra.mxu0 0
    %8039 = vmatprep.subr.bf16.mxu0 0
    %8040 = vmatpush1.bf16.xpose.msra.mxu0 0
    %8041 = vmatprep.subr.bf16.mxu0 0
    %8042 = vmatpush1.bf16.xpose.msra.mxu0 %v8025
    %8043 = vmatprep.subr.bf16.mxu0 0
    %8044 = vmatpush2.bf16.xpose.msra.mxu0 0
    %8045 = vmatprep.subr.bf16.mxu0 0
    %8046 = vmatpush2.bf16.xpose.msra.mxu0 0
    %8047 = vmatprep.subr.bf16.mxu0 0
    %8048 = vmatpush2.bf16.xpose.msra.mxu0 0
    %8049 = vmatprep.subr.bf16.mxu0 0
    %8050 = vmatpush2.bf16.xpose.msra.mxu0 0
    %8051 = vmatprep.subr.bf16.mxu0 0
    %8052 = vmatpush2.bf16.xpose.msra.mxu0 0
    %8053 = vmatprep.subr.bf16.mxu0 0
    %8054 = vmatpush2.bf16.xpose.msra.mxu0 0
    %8055 = vmatprep.subr.bf16.mxu0 0
    %8056 = vmatpush2.bf16.xpose.msra.mxu0 0
    %8057 = vmatprep.subr.bf16.mxu0 0
    %8058 = vmatpush2.bf16.xpose.msra.mxu0 0
    %8059 = vmatprep.mubr.bf16.mxu0 0
    %8060 = vmatmul.mubr.bf16.gmra.mxu0 %v8022
    %v8061 = vpop.f32.mrf.mxu0
    %v8062 = vadd.f32 0.0, %v8061
    %v8063 = vpop.f32.mrf.mxu0
    %v8064 = vpop.f32.mrf.mxu0
    %v8065 = vpop.f32.mrf.mxu0
    %8066 = vdwg.mxu0
    %v8067 = vmul.f32 %v8012, 0.35355338
    %v8068 = vmul.f32 %v8062, 0.35355338
    %v8069 = vadd.f32 %v8067, %v714
    %v8070 = vadd.f32 %v8068, %v718
    %v8071 = vsel %vm725, %v8069, -inf
    %8072 = vmax.xlane.f32.xlu0 %v8071
    %v8073 = vpop.xlane.xlu0 %8072
    %v8074 = vsel %vm725, %v8070, -inf
    %8075 = vmax.xlane.f32.xlu0 %v8074
    %v8076 = vpop.xlane.xlu0 %8075
    %v8077 = vsub.f32 %v8069, %v8073
    %v8078 = vsub.f32 %v8070, %v8076
    %v8079 = vmul.f32 %v8077, 1.442695
    %v8080 = vpow.pop %v8079
    %v8081 = vmul.f32 %v8078, 1.442695
    %v8082 = vpow.pop %v8081
    %v8083 = vsel %vm725, %v8080, 0.0
    %8084 = vadd.xlane.f32.xlu0 %v8083
    %v8085 = vpop.xlane.xlu0 %8084
    %v8086 = vsel %vm725, %v8082, 0.0
    %8087 = vadd.xlane.f32.xlu0 %v8086
    %v8088 = vpop.xlane.xlu0 %8087
    %v8089 = vrcp.pop %v8085
    %v8090 = vrcp.pop %v8088
    %v8091 = vmul.f32 %v8080, %v8089
    %v8092 = vmul.f32 %v8082, %v8090
    %v8093 = vpack.c.bf16 %v8091, %v8091
    %v8094 = vpack.c.bf16 %v8092, %v8092
    %8095 = vrot.lane.b32.xlu0 %v5121, 16
    %v8096 = vpop.permute.xlu0 %8095
    %v8099 = vsel %vm725, %v8093, 0
    %8101 = vmatprep.subr.bf16.mxu0 0
    %8102 = vmatpush1.bf16.msra.mxu0 0
    %8103 = vmatprep.subr.bf16.mxu0 0
    %8104 = vmatpush1.bf16.msra.mxu0 0
    %8105 = vmatprep.subr.bf16.mxu0 0
    %8106 = vmatpush1.bf16.msra.mxu0 0
    %8107 = vmatprep.subr.bf16.mxu0 0
    %8108 = vmatpush1.bf16.msra.mxu0 0
    %8109 = vmatprep.subr.bf16.mxu0 0
    %8110 = vmatpush1.bf16.msra.mxu0 0
    %8111 = vmatprep.subr.bf16.mxu0 0
    %8112 = vmatpush1.bf16.msra.mxu0 0
    %8113 = vmatprep.subr.bf16.mxu0 0
    %8114 = vmatpush1.bf16.msra.mxu0 0
    %8115 = vmatprep.subr.bf16.mxu0 0
    %8116 = vmatpush1.bf16.msra.mxu0 %v8096
    %8117 = vmatprep.subr.bf16.mxu0 0
    %8118 = vmatpush2.bf16.msra.mxu0 0
    %8119 = vmatprep.subr.bf16.mxu0 0
    %8120 = vmatpush2.bf16.msra.mxu0 0
    %8121 = vmatprep.subr.bf16.mxu0 0
    %8122 = vmatpush2.bf16.msra.mxu0 0
    %8123 = vmatprep.subr.bf16.mxu0 0
    %8124 = vmatpush2.bf16.msra.mxu0 0
    %8125 = vmatprep.subr.bf16.mxu0 0
    %8126 = vmatpush2.bf16.msra.mxu0 0
    %8127 = vmatprep.subr.bf16.mxu0 0
    %8128 = vmatpush2.bf16.msra.mxu0 0
    %8129 = vmatprep.subr.bf16.mxu0 0
    %8130 = vmatpush2.bf16.msra.mxu0 0
    %8131 = vmatprep.subr.bf16.mxu0 0
    %8132 = vmatpush2.bf16.msra.mxu0 0
    %8133 = vmatprep.mubr.bf16.mxu0 0
    %8134 = vmatmul.mubr.bf16.gmra.mxu0 %v8099
    %v8135 = vpop.f32.mrf.mxu0
    %v8136 = vadd.f32 0.0, %v8135
    %v8137 = vpop.f32.mrf.mxu0
    %v8138 = vpop.f32.mrf.mxu0
    %v8139 = vpop.f32.mrf.mxu0
    %8140 = vdwg.mxu0
    %8141 = vrot.lane.b32.xlu0 %v5122, 16
    %v8142 = vpop.permute.xlu0 %8141
    %v8145 = vsel %vm725, %v8094, 0
    %8147 = vmatprep.subr.bf16.mxu0 0
    %8148 = vmatpush1.bf16.msra.mxu0 0
    %8149 = vmatprep.subr.bf16.mxu0 0
    %8150 = vmatpush1.bf16.msra.mxu0 0
    %8151 = vmatprep.subr.bf16.mxu0 0
    %8152 = vmatpush1.bf16.msra.mxu0 0
    %8153 = vmatprep.subr.bf16.mxu0 0
    %8154 = vmatpush1.bf16.msra.mxu0 0
    %8155 = vmatprep.subr.bf16.mxu0 0
    %8156 = vmatpush1.bf16.msra.mxu0 0
    %8157 = vmatprep.subr.bf16.mxu0 0
    %8158 = vmatpush1.bf16.msra.mxu0 0
    %8159 = vmatprep.subr.bf16.mxu0 0
    %8160 = vmatpush1.bf16.msra.mxu0 0
    %8161 = vmatprep.subr.bf16.mxu0 0
    %8162 = vmatpush1.bf16.msra.mxu0 %v8142
    %8163 = vmatprep.subr.bf16.mxu0 0
    %8164 = vmatpush2.bf16.msra.mxu0 0
    %8165 = vmatprep.subr.bf16.mxu0 0
    %8166 = vmatpush2.bf16.msra.mxu0 0
    %8167 = vmatprep.subr.bf16.mxu0 0
    %8168 = vmatpush2.bf16.msra.mxu0 0
    %8169 = vmatprep.subr.bf16.mxu0 0
    %8170 = vmatpush2.bf16.msra.mxu0 0
    %8171 = vmatprep.subr.bf16.mxu0 0
    %8172 = vmatpush2.bf16.msra.mxu0 0
    %8173 = vmatprep.subr.bf16.mxu0 0
    %8174 = vmatpush2.bf16.msra.mxu0 0
    %8175 = vmatprep.subr.bf16.mxu0 0
    %8176 = vmatpush2.bf16.msra.mxu0 0
    %8177 = vmatprep.subr.bf16.mxu0 0
    %8178 = vmatpush2.bf16.msra.mxu0 0
    %8179 = vmatprep.mubr.bf16.mxu0 0
    %8180 = vmatmul.mubr.bf16.gmra.mxu0 %v8145
    %v8181 = vpop.f32.mrf.mxu0
    %v8182 = vadd.f32 0.0, %v8181
    %v8183 = vpop.f32.mrf.mxu0
    %v8184 = vpop.f32.mrf.mxu0
    %v8185 = vpop.f32.mrf.mxu0
    %8186 = vdwg.mxu0
    %8187 = vrot.lane.b32.xlu0 %v7527, 104
    %v8188 = vpop.permute.xlu0 %8187
    %8189 = vrot.lane.b32.xlu0 %v5121, 40
    %v8190 = vpop.permute.xlu0 %8189
    %v8192 = vsel %vm607, %v8188, 0
    %v8195 = vsel %vm607, %v8190, 0
    %8197 = vmatprep.subr.bf16.mxu0 0
    %8198 = vmatpush1.bf16.xpose.msra.mxu0 0
    %8199 = vmatprep.subr.bf16.mxu0 0
    %8200 = vmatpush1.bf16.xpose.msra.mxu0 0
    %8201 = vmatprep.subr.bf16.mxu0 0
    %8202 = vmatpush1.bf16.xpose.msra.mxu0 0
    %8203 = vmatprep.subr.bf16.mxu0 0
    %8204 = vmatpush1.bf16.xpose.msra.mxu0 0
    %8205 = vmatprep.subr.bf16.mxu0 0
    %8206 = vmatpush1.bf16.xpose.msra.mxu0 0
    %8207 = vmatprep.subr.bf16.mxu0 0
    %8208 = vmatpush1.bf16.xpose.msra.mxu0 0
    %8209 = vmatprep.subr.bf16.mxu0 0
    %8210 = vmatpush1.bf16.xpose.msra.mxu0 0
    %8211 = vmatprep.subr.bf16.mxu0 0
    %8212 = vmatpush1.bf16.xpose.msra.mxu0 %v8195
    %8213 = vmatprep.subr.bf16.mxu0 0
    %8214 = vmatpush2.bf16.xpose.msra.mxu0 0
    %8215 = vmatprep.subr.bf16.mxu0 0
    %8216 = vmatpush2.bf16.xpose.msra.mxu0 0
    %8217 = vmatprep.subr.bf16.mxu0 0
    %8218 = vmatpush2.bf16.xpose.msra.mxu0 0
    %8219 = vmatprep.subr.bf16.mxu0 0
    %8220 = vmatpush2.bf16.xpose.msra.mxu0 0
    %8221 = vmatprep.subr.bf16.mxu0 0
    %8222 = vmatpush2.bf16.xpose.msra.mxu0 0
    %8223 = vmatprep.subr.bf16.mxu0 0
    %8224 = vmatpush2.bf16.xpose.msra.mxu0 0
    %8225 = vmatprep.subr.bf16.mxu0 0
    %8226 = vmatpush2.bf16.xpose.msra.mxu0 0
    %8227 = vmatprep.subr.bf16.mxu0 0
    %8228 = vmatpush2.bf16.xpose.msra.mxu0 0
    %8229 = vmatprep.mubr.bf16.mxu0 0
    %8230 = vmatmul.mubr.bf16.gmra.mxu0 %v8192
    %v8231 = vpop.f32.mrf.mxu0
    %v8232 = vadd.f32 0.0, %v8231
    %v8233 = vpop.f32.mrf.mxu0
    %v8234 = vpop.f32.mrf.mxu0
    %v8235 = vpop.f32.mrf.mxu0
    %8236 = vdwg.mxu0
    %8237 = vrot.lane.b32.xlu0 %v7528, 104
    %v8238 = vpop.permute.xlu0 %8237
    %8239 = vrot.lane.b32.xlu0 %v5122, 40
    %v8240 = vpop.permute.xlu0 %8239
    %v8242 = vsel %vm607, %v8238, 0
    %v8245 = vsel %vm607, %v8240, 0
    %8247 = vmatprep.subr.bf16.mxu0 0
    %8248 = vmatpush1.bf16.xpose.msra.mxu0 0
    %8249 = vmatprep.subr.bf16.mxu0 0
    %8250 = vmatpush1.bf16.xpose.msra.mxu0 0
    %8251 = vmatprep.subr.bf16.mxu0 0
    %8252 = vmatpush1.bf16.xpose.msra.mxu0 0
    %8253 = vmatprep.subr.bf16.mxu0 0
    %8254 = vmatpush1.bf16.xpose.msra.mxu0 0
    %8255 = vmatprep.subr.bf16.mxu0 0
    %8256 = vmatpush1.bf16.xpose.msra.mxu0 0
    %8257 = vmatprep.subr.bf16.mxu0 0
    %8258 = vmatpush1.bf16.xpose.msra.mxu0 0
    %8259 = vmatprep.subr.bf16.mxu0 0
    %8260 = vmatpush1.bf16.xpose.msra.mxu0 0
    %8261 = vmatprep.subr.bf16.mxu0 0
    %8262 = vmatpush1.bf16.xpose.msra.mxu0 %v8245
    %8263 = vmatprep.subr.bf16.mxu0 0
    %8264 = vmatpush2.bf16.xpose.msra.mxu0 0
    %8265 = vmatprep.subr.bf16.mxu0 0
    %8266 = vmatpush2.bf16.xpose.msra.mxu0 0
    %8267 = vmatprep.subr.bf16.mxu0 0
    %8268 = vmatpush2.bf16.xpose.msra.mxu0 0
    %8269 = vmatprep.subr.bf16.mxu0 0
    %8270 = vmatpush2.bf16.xpose.msra.mxu0 0
    %8271 = vmatprep.subr.bf16.mxu0 0
    %8272 = vmatpush2.bf16.xpose.msra.mxu0 0
    %8273 = vmatprep.subr.bf16.mxu0 0
    %8274 = vmatpush2.bf16.xpose.msra.mxu0 0
    %8275 = vmatprep.subr.bf16.mxu0 0
    %8276 = vmatpush2.bf16.xpose.msra.mxu0 0
    %8277 = vmatprep.subr.bf16.mxu0 0
    %8278 = vmatpush2.bf16.xpose.msra.mxu0 0
    %8279 = vmatprep.mubr.bf16.mxu0 0
    %8280 = vmatmul.mubr.bf16.gmra.mxu0 %v8242
    %v8281 = vpop.f32.mrf.mxu0
    %v8282 = vadd.f32 0.0, %v8281
    %v8283 = vpop.f32.mrf.mxu0
    %v8284 = vpop.f32.mrf.mxu0
    %v8285 = vpop.f32.mrf.mxu0
    %8286 = vdwg.mxu0
    %v8287 = vmul.f32 %v8232, 0.35355338
    %v8288 = vmul.f32 %v8282, 0.35355338
    %v8289 = vadd.f32 %v8287, %v714
    %v8290 = vadd.f32 %v8288, %v718
    %v8291 = vsel %vm725, %v8289, -inf
    %8292 = vmax.xlane.f32.xlu0 %v8291
    %v8293 = vpop.xlane.xlu0 %8292
    %v8294 = vsel %vm725, %v8290, -inf
    %8295 = vmax.xlane.f32.xlu0 %v8294
    %v8296 = vpop.xlane.xlu0 %8295
    %v8297 = vsub.f32 %v8289, %v8293
    %v8298 = vsub.f32 %v8290, %v8296
    %v8299 = vmul.f32 %v8297, 1.442695
    %v8300 = vpow.pop %v8299
    %v8301 = vmul.f32 %v8298, 1.442695
    %v8302 = vpow.pop %v8301
    %v8303 = vsel %vm725, %v8300, 0.0
    %8304 = vadd.xlane.f32.xlu0 %v8303
    %v8305 = vpop.xlane.xlu0 %8304
    %v8306 = vsel %vm725, %v8302, 0.0
    %8307 = vadd.xlane.f32.xlu0 %v8306
    %v8308 = vpop.xlane.xlu0 %8307
    %v8309 = vrcp.pop %v8305
    %v8310 = vrcp.pop %v8308
    %v8311 = vmul.f32 %v8300, %v8309
    %v8312 = vmul.f32 %v8302, %v8310
    %v8313 = vpack.c.bf16 %v8311, %v8311
    %v8314 = vpack.c.bf16 %v8312, %v8312
    %8315 = vrot.lane.b32.xlu0 %v5121, 8
    %v8316 = vpop.permute.xlu0 %8315
    %v8319 = vsel %vm725, %v8313, 0
    %8321 = vmatprep.subr.bf16.mxu0 0
    %8322 = vmatpush1.bf16.msra.mxu0 0
    %8323 = vmatprep.subr.bf16.mxu0 0
    %8324 = vmatpush1.bf16.msra.mxu0 0
    %8325 = vmatprep.subr.bf16.mxu0 0
    %8326 = vmatpush1.bf16.msra.mxu0 0
    %8327 = vmatprep.subr.bf16.mxu0 0
    %8328 = vmatpush1.bf16.msra.mxu0 0
    %8329 = vmatprep.subr.bf16.mxu0 0
    %8330 = vmatpush1.bf16.msra.mxu0 0
    %8331 = vmatprep.subr.bf16.mxu0 0
    %8332 = vmatpush1.bf16.msra.mxu0 0
    %8333 = vmatprep.subr.bf16.mxu0 0
    %8334 = vmatpush1.bf16.msra.mxu0 0
    %8335 = vmatprep.subr.bf16.mxu0 0
    %8336 = vmatpush1.bf16.msra.mxu0 %v8316
    %8337 = vmatprep.subr.bf16.mxu0 0
    %8338 = vmatpush2.bf16.msra.mxu0 0
    %8339 = vmatprep.subr.bf16.mxu0 0
    %8340 = vmatpush2.bf16.msra.mxu0 0
    %8341 = vmatprep.subr.bf16.mxu0 0
    %8342 = vmatpush2.bf16.msra.mxu0 0
    %8343 = vmatprep.subr.bf16.mxu0 0
    %8344 = vmatpush2.bf16.msra.mxu0 0
    %8345 = vmatprep.subr.bf16.mxu0 0
    %8346 = vmatpush2.bf16.msra.mxu0 0
    %8347 = vmatprep.subr.bf16.mxu0 0
    %8348 = vmatpush2.bf16.msra.mxu0 0
    %8349 = vmatprep.subr.bf16.mxu0 0
    %8350 = vmatpush2.bf16.msra.mxu0 0
    %8351 = vmatprep.subr.bf16.mxu0 0
    %8352 = vmatpush2.bf16.msra.mxu0 0
    %8353 = vmatprep.mubr.bf16.mxu0 0
    %8354 = vmatmul.mubr.bf16.gmra.mxu0 %v8319
    %v8355 = vpop.f32.mrf.mxu0
    %v8356 = vadd.f32 0.0, %v8355
    %v8357 = vpop.f32.mrf.mxu0
    %v8358 = vpop.f32.mrf.mxu0
    %v8359 = vpop.f32.mrf.mxu0
    %8360 = vdwg.mxu0
    %8361 = vrot.lane.b32.xlu0 %v5122, 8
    %v8362 = vpop.permute.xlu0 %8361
    %v8365 = vsel %vm725, %v8314, 0
    %8367 = vmatprep.subr.bf16.mxu0 0
    %8368 = vmatpush1.bf16.msra.mxu0 0
    %8369 = vmatprep.subr.bf16.mxu0 0
    %8370 = vmatpush1.bf16.msra.mxu0 0
    %8371 = vmatprep.subr.bf16.mxu0 0
    %8372 = vmatpush1.bf16.msra.mxu0 0
    %8373 = vmatprep.subr.bf16.mxu0 0
    %8374 = vmatpush1.bf16.msra.mxu0 0
    %8375 = vmatprep.subr.bf16.mxu0 0
    %8376 = vmatpush1.bf16.msra.mxu0 0
    %8377 = vmatprep.subr.bf16.mxu0 0
    %8378 = vmatpush1.bf16.msra.mxu0 0
    %8379 = vmatprep.subr.bf16.mxu0 0
    %8380 = vmatpush1.bf16.msra.mxu0 0
    %8381 = vmatprep.subr.bf16.mxu0 0
    %8382 = vmatpush1.bf16.msra.mxu0 %v8362
    %8383 = vmatprep.subr.bf16.mxu0 0
    %8384 = vmatpush2.bf16.msra.mxu0 0
    %8385 = vmatprep.subr.bf16.mxu0 0
    %8386 = vmatpush2.bf16.msra.mxu0 0
    %8387 = vmatprep.subr.bf16.mxu0 0
    %8388 = vmatpush2.bf16.msra.mxu0 0
    %8389 = vmatprep.subr.bf16.mxu0 0
    %8390 = vmatpush2.bf16.msra.mxu0 0
    %8391 = vmatprep.subr.bf16.mxu0 0
    %8392 = vmatpush2.bf16.msra.mxu0 0
    %8393 = vmatprep.subr.bf16.mxu0 0
    %8394 = vmatpush2.bf16.msra.mxu0 0
    %8395 = vmatprep.subr.bf16.mxu0 0
    %8396 = vmatpush2.bf16.msra.mxu0 0
    %8397 = vmatprep.subr.bf16.mxu0 0
    %8398 = vmatpush2.bf16.msra.mxu0 0
    %8399 = vmatprep.mubr.bf16.mxu0 0
    %8400 = vmatmul.mubr.bf16.gmra.mxu0 %v8365
    %v8401 = vpop.f32.mrf.mxu0
    %v8402 = vadd.f32 0.0, %v8401
    %v8403 = vpop.f32.mrf.mxu0
    %v8404 = vpop.f32.mrf.mxu0
    %v8405 = vpop.f32.mrf.mxu0
    %8406 = vdwg.mxu0
    %8409 = vrot.lane.b32.xlu0 %v7916, 8
    %v8410 = vpop.permute.xlu0 %8409
    %8411 = vrot.lane.b32.xlu0 %v7962, 8
    %v8412 = vpop.permute.xlu0 %8411
    %8417 = vrot.lane.b32.xlu0 %v8136, 16
    %v8418 = vpop.permute.xlu0 %8417
    %8419 = vrot.lane.b32.xlu0 %v8182, 16
    %v8420 = vpop.permute.xlu0 %8419
    %8425 = vrot.lane.b32.xlu0 %v8356, 24
    %v8426 = vpop.permute.xlu0 %8425
    %8427 = vrot.lane.b32.xlu0 %v8402, 24
    %v8428 = vpop.permute.xlu0 %8427
    %v8431 = vsel %vm607, %v7694, %v8410
    %v8432 = vsel %vm607, %v7740, %v8412
    %v8433 = vsel %vm725, %v8431, %v8418
    %v8434 = vsel %vm725, %v8432, %v8420
    %v8435 = vsel %vm1672, %v8433, %v8426
    %v8436 = vsel %vm1672, %v8434, %v8428
    %s8437 = scalar_lea.vmem %s23, 16
    %v8438 = vld [vmem:[%s8437] sm:$0xf]
    %v8439 = vld [vmem:[%s8437 + $0x4] sm:$0xf]
    %v8440 = vld [vmem:[%s8437 + $0x8] sm:$0xf]
    %v8441 = vld [vmem:[%s8437 + $0xc] sm:$0xf]
    %s8442 = scalar_lea.vmem %s21, 1
    %v8443 = vld [vmem:[%s8442] sm:$0x1]
    %v8444 = vpack.c.bf16 %v8436, %v8435
    %v8446 = vlaneseq
    %v8447 = vshrl.u32 %v8446, 7
    %v8448 = vsub.s32 0, %v8447
    %v8449 = vrot.slane %v8443, %v8448
    %v8455 = vunpack.c.l.b16 %v8438
    %v8456 = vunpack.c.l.b16 %v8439
    %v8457 = vunpack.c.l.b16 %v8440
    %v8458 = vunpack.c.l.b16 %v8441
    %v8459 = vpack.c.b16 %v8456, %v8455
    %v8460 = vpack.c.b16 %v8458, %v8457
    %v8464 = vsel %vm546, %v8444, 0
    %8466 = vmatprep.subr.bf16.mxu0 0
    %8467 = vmatpush1.bf16.msra.mxu0 0
    %8468 = vmatprep.subr.bf16.mxu0 0
    %8469 = vmatpush1.bf16.msra.mxu0 0
    %8470 = vmatprep.subr.bf16.mxu0 0
    %8471 = vmatpush1.bf16.msra.mxu0 0
    %8472 = vmatprep.subr.bf16.mxu0 0
    %8473 = vmatpush1.bf16.msra.mxu0 0
    %8474 = vmatprep.subr.bf16.mxu0 0
    %8475 = vmatpush1.bf16.msra.mxu0 0
    %8476 = vmatprep.subr.bf16.mxu0 0
    %8477 = vmatpush1.bf16.msra.mxu0 0
    %8478 = vmatprep.subr.bf16.mxu0 0
    %8479 = vmatpush1.bf16.msra.mxu0 %v8460
    %8480 = vmatprep.subr.bf16.mxu0 0
    %8481 = vmatpush1.bf16.msra.mxu0 %v8459
    %8482 = vmatprep.subr.bf16.mxu0 0
    %8483 = vmatpush2.bf16.msra.mxu0 0
    %8484 = vmatprep.subr.bf16.mxu0 0
    %8485 = vmatpush2.bf16.msra.mxu0 0
    %8486 = vmatprep.subr.bf16.mxu0 0
    %8487 = vmatpush2.bf16.msra.mxu0 0
    %8488 = vmatprep.subr.bf16.mxu0 0
    %8489 = vmatpush2.bf16.msra.mxu0 0
    %8490 = vmatprep.subr.bf16.mxu0 0
    %8491 = vmatpush2.bf16.msra.mxu0 0
    %8492 = vmatprep.subr.bf16.mxu0 0
    %8493 = vmatpush2.bf16.msra.mxu0 0
    %8494 = vmatprep.subr.bf16.mxu0 0
    %8495 = vmatpush2.bf16.msra.mxu0 0
    %8496 = vmatprep.subr.bf16.mxu0 0
    %8497 = vmatpush2.bf16.msra.mxu0 0
    %8498 = vmatprep.mubr.bf16.mxu0 0
    %8499 = vmatmul.mubr.bf16.gmra.mxu0 %v8464
    %v8500 = vpop.f32.mrf.mxu0
    %v8501 = vadd.f32 %v8449, %v8500
    %v8502 = vpop.f32.mrf.mxu0
    %v8503 = vpop.f32.mrf.mxu0
    %v8504 = vadd.f32 %v8449, %v8503
    %v8505 = vpop.f32.mrf.mxu0
    %8506 = vdwg.mxu0
    %v8507 = vadd.f32 %v7455, %v8501
    %v8508 = vadd.f32 %v7456, %v8504
    %s8509 = scalar_lea.vmem %s43, 1
    %v8510 = vld [vmem:[%s8509] sm:$0x1]
    %s8511 = scalar_lea.vmem %s41, 1
    %v8512 = vld [vmem:[%s8511] sm:$0x1]
    %v8513 = vsel %vm546, %v8507, 0.0
    %8514 = vadd.xlane.f32.xlu0 %v8513
    %v8515 = vpop.xlane.xlu0 %8514
    %v8516 = vsel %vm546, %v8508, 0.0
    %8517 = vadd.xlane.f32.xlu0 %v8516
    %v8518 = vpop.xlane.xlu0 %8517
    %v8519 = vmul.f32 %v8515, %v1775
    %v8520 = vmul.f32 %v8518, %v1775
    %v8521 = vsub.f32 %v8507, %v8519
    %v8522 = vsub.f32 %v8508, %v8520
    %v8523 = vmul.f32 %v8521, %v8521
    %v8524 = vmul.f32 %v8522, %v8522
    %v8525 = vsel %vm546, %v8523, 0.0
    %8526 = vadd.xlane.f32.xlu0 %v8525
    %v8527 = vpop.xlane.xlu0 %8526
    %v8528 = vsel %vm546, %v8524, 0.0
    %8529 = vadd.xlane.f32.xlu0 %v8528
    %v8530 = vpop.xlane.xlu0 %8529
    %v8531 = vmul.f32 %v8527, %v1775
    %v8532 = vmul.f32 %v8530, %v1775
    %v8533 = vadd.f32 %v8531, 1e-05
    %v8534 = vadd.f32 %v8532, 1e-05
    %v8535 = vrsqrt.pop %v8533
    %v8536 = vrsqrt.pop %v8534
    %v8537 = vmul.f32 %v8521, %v8535
    %v8538 = vmul.f32 %v8522, %v8536
    %v8540 = vlaneseq
    %v8541 = vshrl.u32 %v8540, 7
    %v8542 = vsub.s32 0, %v8541
    %v8543 = vrot.slane %v8510, %v8542
    %v8545 = vmul.f32 %v8537, %v8543
    %v8546 = vmul.f32 %v8538, %v8543
    %v8548 = vlaneseq
    %v8549 = vshrl.u32 %v8548, 7
    %v8550 = vsub.s32 0, %v8549
    %v8551 = vrot.slane %v8512, %v8550
    %v8553 = vadd.f32 %v8545, %v8551
    %v8554 = vadd.f32 %v8546, %v8551
    %s8555 = scalar_lea.vmem %s31, 16
    %v8556 = vld [vmem:[%s8555] sm:$0xf]
    %v8557 = vld [vmem:[%s8555 + $0x4] sm:$0xf]
    %v8558 = vld [vmem:[%s8555 + $0x8] sm:$0xf]
    %v8559 = vld [vmem:[%s8555 + $0xc] sm:$0xf]
    %s8560 = scalar_lea.vmem %s29, 1
    %v8561 = vld [vmem:[%s8560] sm:$0x1]
    %v8562 = vpack.c.bf16 %v8554, %v8553
    %v8564 = vlaneseq
    %v8565 = vshrl.u32 %v8564, 7
    %v8566 = vsub.s32 0, %v8565
    %v8567 = vrot.slane %v8561, %v8566
    %v8573 = vunpack.c.l.b16 %v8556
    %v8574 = vunpack.c.l.b16 %v8557
    %v8575 = vunpack.c.l.b16 %v8558
    %v8576 = vunpack.c.l.b16 %v8559
    %v8577 = vpack.c.b16 %v8574, %v8573
    %v8578 = vpack.c.b16 %v8576, %v8575
    %v8582 = vsel %vm546, %v8562, 0
    %8584 = vmatprep.subr.bf16.mxu0 0
    %8585 = vmatpush1.bf16.msra.mxu0 0
    %8586 = vmatprep.subr.bf16.mxu0 0
    %8587 = vmatpush1.bf16.msra.mxu0 0
    %8588 = vmatprep.subr.bf16.mxu0 0
    %8589 = vmatpush1.bf16.msra.mxu0 0
    %8590 = vmatprep.subr.bf16.mxu0 0
    %8591 = vmatpush1.bf16.msra.mxu0 0
    %8592 = vmatprep.subr.bf16.mxu0 0
    %8593 = vmatpush1.bf16.msra.mxu0 0
    %8594 = vmatprep.subr.bf16.mxu0 0
    %8595 = vmatpush1.bf16.msra.mxu0 0
    %8596 = vmatprep.subr.bf16.mxu0 0
    %8597 = vmatpush1.bf16.msra.mxu0 %v8578
    %8598 = vmatprep.subr.bf16.mxu0 0
    %8599 = vmatpush1.bf16.msra.mxu0 %v8577
    %8600 = vmatprep.subr.bf16.mxu0 0
    %8601 = vmatpush2.bf16.msra.mxu0 0
    %8602 = vmatprep.subr.bf16.mxu0 0
    %8603 = vmatpush2.bf16.msra.mxu0 0
    %8604 = vmatprep.subr.bf16.mxu0 0
    %8605 = vmatpush2.bf16.msra.mxu0 0
    %8606 = vmatprep.subr.bf16.mxu0 0
    %8607 = vmatpush2.bf16.msra.mxu0 0
    %8608 = vmatprep.subr.bf16.mxu0 0
    %8609 = vmatpush2.bf16.msra.mxu0 0
    %8610 = vmatprep.subr.bf16.mxu0 0
    %8611 = vmatpush2.bf16.msra.mxu0 0
    %8612 = vmatprep.subr.bf16.mxu0 0
    %8613 = vmatpush2.bf16.msra.mxu0 0
    %8614 = vmatprep.subr.bf16.mxu0 0
    %8615 = vmatpush2.bf16.msra.mxu0 0
    %8616 = vmatprep.mubr.bf16.mxu0 0
    %8617 = vmatmul.mubr.bf16.gmra.mxu0 %v8582
    %v8618 = vpop.f32.mrf.mxu0
    %v8619 = vadd.f32 %v8567, %v8618
    %v8620 = vpop.f32.mrf.mxu0
    %v8621 = vpop.f32.mrf.mxu0
    %v8622 = vadd.f32 %v8567, %v8621
    %v8623 = vpop.f32.mrf.mxu0
    %8624 = vdwg.mxu0
    %v8625 = vmax.f32 %v8619, 0.0
    %v8626 = vmax.f32 %v8622, 0.0
    %s8627 = scalar_lea.vmem %s35, 32
    %v8628 = vld [vmem:[%s8627] sm:$0xf]
    %v8629 = vld [vmem:[%s8627 + $0x4] sm:$0xf]
    %v8630 = vld [vmem:[%s8627 + $0x8] sm:$0xf]
    %v8631 = vld [vmem:[%s8627 + $0xc] sm:$0xf]
    %v8632 = vld [vmem:[%s8627 + $0x10] sm:$0xf]
    %v8633 = vld [vmem:[%s8627 + $0x14] sm:$0xf]
    %v8634 = vld [vmem:[%s8627 + $0x18] sm:$0xf]
    %v8635 = vld [vmem:[%s8627 + $0x1c] sm:$0xf]
    %s8636 = scalar_lea.vmem %s33, 1
    %v8637 = vld [vmem:[%s8636] sm:$0x1]
    %v8638 = vpack.c.bf16 %v8626, %v8625
    %v8640 = vlaneseq
    %v8641 = vshrl.u32 %v8640, 7
    %v8642 = vsub.s32 0, %v8641
    %v8643 = vrot.slane %v8637, %v8642
    %v8653 = vunpack.c.l.b16 %v8628
    %v8654 = vunpack.c.l.b16 %v8629
    %v8655 = vunpack.c.l.b16 %v8630
    %v8656 = vunpack.c.l.b16 %v8631
    %v8657 = vunpack.c.l.b16 %v8632
    %v8658 = vunpack.c.l.b16 %v8633
    %v8659 = vunpack.c.l.b16 %v8634
    %v8660 = vunpack.c.l.b16 %v8635
    %v8661 = vpack.c.b16 %v8654, %v8653
    %v8662 = vpack.c.b16 %v8656, %v8655
    %v8663 = vpack.c.b16 %v8658, %v8657
    %v8664 = vpack.c.b16 %v8660, %v8659
    %v8670 = vsel %vm1961, %v8638, 0
    %8672 = vmatprep.subr.bf16.mxu0 0
    %8673 = vmatpush1.bf16.msra.mxu0 0
    %8674 = vmatprep.subr.bf16.mxu0 0
    %8675 = vmatpush1.bf16.msra.mxu0 0
    %8676 = vmatprep.subr.bf16.mxu0 0
    %8677 = vmatpush1.bf16.msra.mxu0 0
    %8678 = vmatprep.subr.bf16.mxu0 0
    %8679 = vmatpush1.bf16.msra.mxu0 0
    %8680 = vmatprep.subr.bf16.mxu0 0
    %8681 = vmatpush1.bf16.msra.mxu0 %v8664
    %8682 = vmatprep.subr.bf16.mxu0 0
    %8683 = vmatpush1.bf16.msra.mxu0 %v8663
    %8684 = vmatprep.subr.bf16.mxu0 0
    %8685 = vmatpush1.bf16.msra.mxu0 %v8662
    %8686 = vmatprep.subr.bf16.mxu0 0
    %8687 = vmatpush1.bf16.msra.mxu0 %v8661
    %8688 = vmatprep.subr.bf16.mxu0 0
    %8689 = vmatpush2.bf16.msra.mxu0 0
    %8690 = vmatprep.subr.bf16.mxu0 0
    %8691 = vmatpush2.bf16.msra.mxu0 0
    %8692 = vmatprep.subr.bf16.mxu0 0
    %8693 = vmatpush2.bf16.msra.mxu0 0
    %8694 = vmatprep.subr.bf16.mxu0 0
    %8695 = vmatpush2.bf16.msra.mxu0 0
    %8696 = vmatprep.subr.bf16.mxu0 0
    %8697 = vmatpush2.bf16.msra.mxu0 0
    %8698 = vmatprep.subr.bf16.mxu0 0
    %8699 = vmatpush2.bf16.msra.mxu0 0
    %8700 = vmatprep.subr.bf16.mxu0 0
    %8701 = vmatpush2.bf16.msra.mxu0 0
    %8702 = vmatprep.subr.bf16.mxu0 0
    %8703 = vmatpush2.bf16.msra.mxu0 0
    %8704 = vmatprep.mubr.bf16.mxu0 0
    %8705 = vmatmul.mubr.bf16.gmra.mxu0 %v8670
    %v8706 = vpop.f32.mrf.mxu0
    %v8707 = vadd.f32 %v8643, %v8706
    %v8708 = vpop.f32.mrf.mxu0
    %v8709 = vpop.f32.mrf.mxu0
    %v8710 = vadd.f32 %v8643, %v8709
    %v8711 = vpop.f32.mrf.mxu0
    %8712 = vdwg.mxu0
    %v8713 = vadd.f32 %v8553, %v8707
    %v8714 = vadd.f32 %v8554, %v8710
    %s8715 = scalar_lea.vmem %s47, 1
    %v8716 = vld [vmem:[%s8715] sm:$0x1]
    %s8717 = scalar_lea.vmem %s45, 1
    %v8718 = vld [vmem:[%s8717] sm:$0x1]
    %v8719 = vsel %vm546, %v8713, 0.0
    %8720 = vadd.xlane.f32.xlu0 %v8719
    %v8721 = vpop.xlane.xlu0 %8720
    %v8722 = vsel %vm546, %v8714, 0.0
    %8723 = vadd.xlane.f32.xlu0 %v8722
    %v8724 = vpop.xlane.xlu0 %8723
    %v8725 = vmul.f32 %v8721, %v1775
    %v8726 = vmul.f32 %v8724, %v1775
    %v8727 = vsub.f32 %v8713, %v8725
    %v8728 = vsub.f32 %v8714, %v8726
    %v8729 = vmul.f32 %v8727, %v8727
    %v8730 = vmul.f32 %v8728, %v8728
    %v8731 = vsel %vm546, %v8729, 0.0
    %8732 = vadd.xlane.f32.xlu0 %v8731
    %v8733 = vpop.xlane.xlu0 %8732
    %v8734 = vsel %vm546, %v8730, 0.0
    %8735 = vadd.xlane.f32.xlu0 %v8734
    %v8736 = vpop.xlane.xlu0 %8735
    %v8737 = vmul.f32 %v8733, %v1775
    %v8738 = vmul.f32 %v8736, %v1775
    %v8739 = vadd.f32 %v8737, 1e-05
    %v8740 = vadd.f32 %v8738, 1e-05
    %v8741 = vrsqrt.pop %v8739
    %v8742 = vrsqrt.pop %v8740
    %v8743 = vmul.f32 %v8727, %v8741
    %v8744 = vmul.f32 %v8728, %v8742
    %v8746 = vlaneseq
    %v8747 = vshrl.u32 %v8746, 7
    %v8748 = vsub.s32 0, %v8747
    %v8749 = vrot.slane %v8716, %v8748
    %v8751 = vmul.f32 %v8743, %v8749
    %v8752 = vmul.f32 %v8744, %v8749
    %v8754 = vlaneseq
    %v8755 = vshrl.u32 %v8754, 7
    %v8756 = vsub.s32 0, %v8755
    %v8757 = vrot.slane %v8718, %v8756
    %v8759 = vadd.f32 %v8751, %v8757
    %v8760 = vadd.f32 %v8752, %v8757
    %v8761 = vld [vmem:[#allocation7] sm:$0x1]
    %v8762 = vld [vmem:[#allocation5] sm:$0x1]
    %v8763 = vsel %vm546, %v8759, 0.0
    %8764 = vadd.xlane.f32.xlu0 %v8763
    %v8765 = vpop.xlane.xlu0 %8764
    %v8766 = vsel %vm546, %v8760, 0.0
    %8767 = vadd.xlane.f32.xlu0 %v8766
    %v8768 = vpop.xlane.xlu0 %8767
    %v8769 = vmul.f32 %v8765, %v1775
    %v8770 = vmul.f32 %v8768, %v1775
    %v8771 = vsub.f32 %v8759, %v8769
    %v8772 = vsub.f32 %v8760, %v8770
    %v8773 = vmul.f32 %v8771, %v8771
    %v8774 = vmul.f32 %v8772, %v8772
    %v8775 = vsel %vm546, %v8773, 0.0
    %8776 = vadd.xlane.f32.xlu0 %v8775
    %v8777 = vpop.xlane.xlu0 %8776
    %v8778 = vsel %vm546, %v8774, 0.0
    %8779 = vadd.xlane.f32.xlu0 %v8778
    %v8780 = vpop.xlane.xlu0 %8779
    %v8781 = vmul.f32 %v8777, %v1775
    %v8782 = vmul.f32 %v8780, %v1775
    %v8783 = vadd.f32 %v8781, 1e-05
    %v8784 = vadd.f32 %v8782, 1e-05
    %v8785 = vrsqrt.pop %v8783
    %v8786 = vrsqrt.pop %v8784
    %v8787 = vmul.f32 %v8771, %v8785
    %v8788 = vmul.f32 %v8772, %v8786
    %v8790 = vlaneseq
    %v8791 = vshrl.u32 %v8790, 7
    %v8792 = vsub.s32 0, %v8791
    %v8793 = vrot.slane %v8761, %v8792
    %v8795 = vmul.f32 %v8787, %v8793
    %v8796 = vmul.f32 %v8788, %v8793
    %v8798 = vlaneseq
    %v8799 = vshrl.u32 %v8798, 7
    %v8800 = vsub.s32 0, %v8799
    %v8801 = vrot.slane %v8762, %v8800
    %v8803 = vadd.f32 %v8795, %v8801
    %v8804 = vadd.f32 %v8796, %v8801
    %v8805 = vld [vmem:[%s95] sm:$0xf]
    %v8806 = vld [vmem:[%s95 + $0x4] sm:$0xf]
    %v8807 = vld [vmem:[%s95 + $0x8] sm:$0xf]
    %v8808 = vld [vmem:[%s95 + $0xc] sm:$0xf]
    %v8809 = vld [vmem:[#allocation13] sm:$0x1]
    %v8810 = vpack.c.bf16 %v8804, %v8803
    %v8812 = vlaneseq
    %v8813 = vshrl.u32 %v8812, 7
    %v8814 = vsub.s32 0, %v8813
    %v8815 = vrot.slane %v8809, %v8814
    %v8821 = vunpack.c.l.b16 %v8805
    %v8822 = vunpack.c.l.b16 %v8806
    %v8823 = vunpack.c.l.b16 %v8807
    %v8824 = vunpack.c.l.b16 %v8808
    %v8825 = vpack.c.b16 %v8822, %v8821
    %v8826 = vpack.c.b16 %v8824, %v8823
    %v8830 = vsel %vm546, %v8810, 0
    %8832 = vmatprep.subr.bf16.mxu0 0
    %8833 = vmatpush1.bf16.msra.mxu0 0
    %8834 = vmatprep.subr.bf16.mxu0 0
    %8835 = vmatpush1.bf16.msra.mxu0 0
    %8836 = vmatprep.subr.bf16.mxu0 0
    %8837 = vmatpush1.bf16.msra.mxu0 0
    %8838 = vmatprep.subr.bf16.mxu0 0
    %8839 = vmatpush1.bf16.msra.mxu0 0
    %8840 = vmatprep.subr.bf16.mxu0 0
    %8841 = vmatpush1.bf16.msra.mxu0 0
    %8842 = vmatprep.subr.bf16.mxu0 0
    %8843 = vmatpush1.bf16.msra.mxu0 0
    %8844 = vmatprep.subr.bf16.mxu0 0
    %8845 = vmatpush1.bf16.msra.mxu0 %v8826
    %8846 = vmatprep.subr.bf16.mxu0 0
    %8847 = vmatpush1.bf16.msra.mxu0 %v8825
    %8848 = vmatprep.subr.bf16.mxu0 0
    %8849 = vmatpush2.bf16.msra.mxu0 0
    %8850 = vmatprep.subr.bf16.mxu0 0
    %8851 = vmatpush2.bf16.msra.mxu0 0
    %8852 = vmatprep.subr.bf16.mxu0 0
    %8853 = vmatpush2.bf16.msra.mxu0 0
    %8854 = vmatprep.subr.bf16.mxu0 0
    %8855 = vmatpush2.bf16.msra.mxu0 0
    %8856 = vmatprep.subr.bf16.mxu0 0
    %8857 = vmatpush2.bf16.msra.mxu0 0
    %8858 = vmatprep.subr.bf16.mxu0 0
    %8859 = vmatpush2.bf16.msra.mxu0 0
    %8860 = vmatprep.subr.bf16.mxu0 0
    %8861 = vmatpush2.bf16.msra.mxu0 0
    %8862 = vmatprep.subr.bf16.mxu0 0
    %8863 = vmatpush2.bf16.msra.mxu0 0
    %8864 = vmatprep.mubr.bf16.mxu0 0
    %8865 = vmatmul.mubr.bf16.gmra.mxu0 %v8830
    %v8866 = vpop.f32.mrf.mxu0
    %v8867 = vadd.f32 %v8815, %v8866
    %v8868 = vpop.f32.mrf.mxu0
    %v8869 = vpop.f32.mrf.mxu0
    %v8870 = vadd.f32 %v8815, %v8869
    %v8871 = vpop.f32.mrf.mxu0
    %8872 = vdwg.mxu0
    %8873 = vst [vmem:[#allocation20] sm:$0xff] %v8867
    %8874 = vst [vmem:[#allocation20 + $0x8] sm:$0xff] %v8870
    // Predicated region
    $region254: #{machine_translation_forward.1} parent=1 // pred_check
      _
    $region255: #{machine_translation_forward.1} parent=1 // pred_check_branch
      %8876 = sbr.rel (0) target = $region257
    $region256: #{machine_translation_forward.1} parent=1 // pred_region
      %s8878 = ssub.s32 256, 256
      %8879 = vsyncadd [#allocation4], %s8878
      %s8880 = sshll.u32 [#allocation20], 4
      %s8881 = int_to_ptr.vmem [resolvable:$true] %s8880
      %8886 = dma.vmem_to_hbm [thread:$0]  %s8881, 256, %s105, [#allocation4], 128, 128, 8
    $region257: #{machine_translation_forward.1} parent=1 // pred_fallthru
      _
    // Predicated region
    $region258: #{machine_translation_forward.1} parent=1 // pred_check
      _
    $region259: #{machine_translation_forward.1} parent=1 // pred_check_branch
      %8888 = sbr.rel (0) target = $region261
    $region260: #{machine_translation_forward.1} parent=1 // pred_region
      %8889 = dma.done [#allocation4], 256
    $region261: #{machine_translation_forward.1} parent=1 // pred_fallthru
      _
    %8890 = vsyncpa [#allocation3], 1
    %8891 = vsyncpa [#allocation6], 1
    %8892 = vsyncpa [#allocation9], 1
    %8893 = vsyncpa [#allocation12], 1
    %8894 = vsyncpa [#allocation15], 1
    %8895 = vsyncpa [#allocation18], 1
    %8896 = vsyncpa [#allocation4], 1

</llo_original>
